<compile_context>
chip_gen: v5e
topology: v5e:2x2
jax: 0.10.0
libtpu: 0.0.40
codegen_flags: <defaults>
</compile_context>

<pallas_src>
import functools
import math

import jax
import jax.numpy as jnp
from jax.experimental import pallas as pl
from jax.experimental.pallas import tpu as pltpu


def _round_up(x, m):
    return (x + m - 1) // m * m


# --------------------------------------------------------------------------
# Fused matmul + BN-scale/bias + ReLU kernel (M/N/K tiled)
# --------------------------------------------------------------------------

def _mm_kernel(x_ref, w_ref, s_ref, b_ref, o_ref, acc_ref, *, relu):
    """acc += x @ w over the K grid axis; epilogue: (acc*scale+bias) [+ReLU]."""
    k = pl.program_id(2)

    @pl.when(k == 0)
    def _():
        acc_ref[...] = jnp.zeros_like(acc_ref)

    acc_ref[...] += jnp.dot(x_ref[...], w_ref[...],
                            preferred_element_type=jnp.float32)

    @pl.when(k == pl.num_programs(2) - 1)
    def _():
        y = acc_ref[...] * s_ref[...] + b_ref[...]
        if relu:
            y = jnp.maximum(y, 0.0)
        o_ref[...] = y.astype(o_ref.dtype)


def _pick_tk(kp):
    for t in (512, 256, 128):
        if kp % t == 0:
            return t
    return 128


def fused_matmul(x, w, scale, bias, *, relu, out_dtype=jnp.bfloat16):
    """act((x[M,K] @ w[K,N]) * scale[N] + bias[N]); bf16 MXU, f32 accumulate."""
    M, K = x.shape
    _, N = w.shape
    tn = 128
    Kp = _round_up(K, 128)
    tk = _pick_tk(Kp)
    Np = _round_up(N, tn)
    tm = 512 if M >= 512 else _round_up(M, 16)
    Mp = _round_up(M, tm)

    xp = jnp.pad(x.astype(jnp.bfloat16), ((0, Mp - M), (0, Kp - K)))
    wp = jnp.pad(w.astype(jnp.bfloat16), ((0, Kp - K), (0, Np - N)))
    sp = jnp.pad(scale.astype(jnp.float32), (0, Np - N)).reshape(1, Np)
    bp = jnp.pad(bias.astype(jnp.float32), (0, Np - N)).reshape(1, Np)

    grid = (Mp // tm, Np // tn, Kp // tk)
    # VMEM budget (double-buffered): x 2*(tm,tk)bf16 + w 2*(tk,tn)bf16
    # + out 2*(tm,tn)f32 + acc (tm,tn)f32  ≈ 2.3 MiB  << 32 MiB scoped default.
    out = pl.pallas_call(
        functools.partial(_mm_kernel, relu=relu),
        out_shape=jax.ShapeDtypeStruct((Mp, Np), out_dtype),
        grid_spec=pltpu.PrefetchScalarGridSpec(
            num_scalar_prefetch=0,
            grid=grid,
            in_specs=[
                pl.BlockSpec((tm, tk), lambda i, j, k: (i, k)),
                pl.BlockSpec((tk, tn), lambda i, j, k: (k, j)),
                pl.BlockSpec((1, tn), lambda i, j, k: (0, j)),
                pl.BlockSpec((1, tn), lambda i, j, k: (0, j)),
            ],
            out_specs=pl.BlockSpec((tm, tn), lambda i, j, k: (i, j)),
            scratch_shapes=[pltpu.VMEM((tm, tn), jnp.float32)],
        ),
        compiler_params=pltpu.CompilerParams(
            dimension_semantics=("parallel", "parallel", "arbitrary"),
            vmem_limit_bytes=32 * 1024 * 1024,
        ),
    )(xp, wp, sp, bp)
    return out[:M, :N]


# --------------------------------------------------------------------------
# MaxPool 2x2 stride 2: tiled 4-way elementwise max kernel
# --------------------------------------------------------------------------

def _max4_kernel(a_ref, b_ref, c_ref, d_ref, o_ref):
    o_ref[...] = jnp.maximum(jnp.maximum(a_ref[...], b_ref[...]),
                             jnp.maximum(c_ref[...], d_ref[...]))


def maxpool_2x2(x):
    """x: NHWC (H, W even) -> NHWC pooled, via 4 shifted sub-grids."""
    n, h, w, c = x.shape
    ho, wo = h // 2, w // 2
    a = x[:, 0::2, 0::2, :].reshape(-1, c)
    b = x[:, 0::2, 1::2, :].reshape(-1, c)
    d0 = x[:, 1::2, 0::2, :].reshape(-1, c)
    d1 = x[:, 1::2, 1::2, :].reshape(-1, c)

    m = a.shape[0]
    tm = 512 if m >= 512 else _round_up(m, 16)
    mp = _round_up(m, tm)
    pad = lambda t: jnp.pad(t, ((0, mp - m), (0, 0)))

    out = pl.pallas_call(
        _max4_kernel,
        out_shape=jax.ShapeDtypeStruct((mp, c), x.dtype),
        grid_spec=pltpu.PrefetchScalarGridSpec(
            num_scalar_prefetch=0,
            grid=(mp // tm,),
            in_specs=[pl.BlockSpec((tm, c), lambda i: (i, 0))] * 4,
            out_specs=pl.BlockSpec((tm, c), lambda i: (i, 0)),
        ),
        compiler_params=pltpu.CompilerParams(
            dimension_semantics=("parallel",)),
    )(pad(a), pad(b), pad(d0), pad(d1))
    return out[:m].reshape(n, ho, wo, c)


# --------------------------------------------------------------------------
# Conv 3x3 s1 p1 + folded BN + ReLU (im2col glue + fused Pallas matmul)
# --------------------------------------------------------------------------

def conv3x3_bn_relu(x, p):
    """x: NHWC bf16; p: {'w':[3,3,cin,cout], 'scale':[cout], 'bias':[cout]}."""
    n, h, w, cin = x.shape
    cout = p["w"].shape[-1]
    xp = jnp.pad(x, ((0, 0), (1, 1), (1, 1), (0, 0)))
    cols = []
    for i in range(3):
        for j in range(3):
            cols.append(xp[:, i:i + h, j:j + w, :])
    # channel order (i*3+j)*cin + c  ==  weight.reshape(9*cin, cout) row order
    patches = jnp.concatenate(cols, axis=-1).reshape(n * h * w, 9 * cin)
    wmat = p["w"].reshape(9 * cin, cout)
    y = fused_matmul(patches, wmat, p["scale"], p["bias"],
                     relu=True, out_dtype=jnp.bfloat16)
    return y.reshape(n, h, w, cout)


# --------------------------------------------------------------------------
# Parameters (deterministic synthetic init; conv bias + BN folded)
# --------------------------------------------------------------------------

class _KeyGen:
    def __init__(self, seed):
        self._key = jax.random.PRNGKey(seed)

    def __call__(self):
        self._key, sub = jax.random.split(self._key)
        return sub


def _conv_bn_params(kg, cin, cout):
    fan_in = 9 * cin
    w = jax.random.normal(kg(), (3, 3, cin, cout), jnp.float32) / math.sqrt(fan_in)
    conv_b = 0.1 * jax.random.normal(kg(), (cout,), jnp.float32)
    gamma = 1.0 + 0.1 * jax.random.normal(kg(), (cout,), jnp.float32)
    beta = 0.1 * jax.random.normal(kg(), (cout,), jnp.float32)
    mean = 0.1 * jax.random.normal(kg(), (cout,), jnp.float32)
    var = 1.0 + jnp.abs(jax.random.normal(kg(), (cout,), jnp.float32))
    scale = gamma / jnp.sqrt(var + 1e-5)          # folded inference BN
    bias = (conv_b - mean) * scale + beta
    return {"w": w, "scale": scale, "bias": bias}


def make_net_params(seed=0, num_classes=3, fc_in=320000):
    kg = _KeyGen(seed)
    params = {
        "blocks": [_conv_bn_params(kg, 3, 16),
                   _conv_bn_params(kg, 16, 64),
                   _conv_bn_params(kg, 64, 128)],
        "fc_w": jax.random.normal(kg(), (fc_in, num_classes), jnp.float32)
                / math.sqrt(fc_in),
        "fc_b": 0.1 * jax.random.normal(kg(), (num_classes,), jnp.float32),
    }
    return params


# --------------------------------------------------------------------------
# Forward pass (matches Net.forward: conv blocks -> flatten(NCHW) -> Linear)
# --------------------------------------------------------------------------

def net_forward(params, x_nchw):
    x = jnp.transpose(x_nchw, (0, 2, 3, 1)).astype(jnp.bfloat16)   # NCHW -> NHWC
    for blk in params["blocks"]:
        x = conv3x3_bn_relu(x, blk)
        x = maxpool_2x2(x)
    n = x.shape[0]
    # PyTorch flattens NCHW, so transpose back before flattening.
    feat = jnp.transpose(x, (0, 3, 1, 2)).reshape(n, -1)
    nc = params["fc_b"].shape[0]
    logits = fused_matmul(feat, params["fc_w"],
                          jnp.ones((nc,), jnp.float32), params["fc_b"],
                          relu=False, out_dtype=jnp.float32)
    return logits


if __name__ == "__main__":
    # Linear(320000, 3) implies 128 * (H/8) * (W/8) == 320000  ->  H = W = 400.
    H = W = 400
    batch = 2
    fc_in = 128 * (H // 8) * (W // 8)
    assert fc_in == 320000
    params = make_net_params(seed=0, num_classes=3, fc_in=fc_in)
    x = jax.random.normal(jax.random.PRNGKey(0), (batch, 3, H, W), jnp.float32)
    fwd = jax.jit(net_forward)
    out = fwd(params, x)
    jax.block_until_ready(out)
    assert out.shape == (batch, 3) and out.dtype == jnp.float32
    assert bool(jnp.all(jnp.isfinite(out)))
    print("KERNEL_OK")
</pallas_src>

<mosaic_0001>
module attributes {stable_mosaic.version = 11 : i64} {
  func.func @_mm_kernel(%arg0: i32, %arg1: i32, %arg2: i32, %arg3: memref<512x128xbf16, #tpu.memory_space<vmem>>, %arg4: memref<128x128xbf16, #tpu.memory_space<vmem>>, %arg5: memref<1x128xf32, #tpu.memory_space<vmem>>, %arg6: memref<1x128xf32, #tpu.memory_space<vmem>>, %arg7: memref<512x128xbf16, #tpu.memory_space<vmem>>, %arg8: memref<512x128xf32, #tpu.memory_space<vmem>>) attributes {dimension_semantics = [#tpu.dimension_semantics<parallel>, #tpu.dimension_semantics<parallel>, #tpu.dimension_semantics<arbitrary>], iteration_bounds = array<i64: 625, 1, 1>, scalar_prefetch = 0 : i64, scratch_operands = 1 : i64, tpu.core_type = #tpu.core_type<tc>, window_params = [{transform_indices = @transform_0, window_bounds = array<i64: 512, 128>}, {transform_indices = @transform_1, window_bounds = array<i64: 128, 128>}, {transform_indices = @transform_2, window_bounds = array<i64: 1, 128>}, {transform_indices = @transform_3, window_bounds = array<i64: 1, 128>}, {transform_indices = @transform_4, window_bounds = array<i64: 512, 128>}]} {
    %c0_i32 = arith.constant 0 : i32
    %0 = arith.cmpi eq, %arg2, %c0_i32 : i32
    %1 = arith.extui %0 : i1 to i32
    %c0_i32_0 = arith.constant 0 : i32
    %2 = arith.cmpi ne, %1, %c0_i32_0 : i32
    scf.if %2 {
      %cst_10 = arith.constant 0.000000e+00 : f32
      %12 = vector.broadcast %cst_10 : f32 to vector<512x128xf32>
      %c0_11 = arith.constant 0 : index
      %c0_12 = arith.constant 0 : index
      %13 = vector.load %arg8[%c0_11, %c0_12] : memref<512x128xf32, #tpu.memory_space<vmem>>, vector<512x128xf32>
      tpu.vector_store %arg8[%c0_11, %c0_12], %12 {strides = array<i32>} : memref<512x128xf32, #tpu.memory_space<vmem>>, vector<512x128xf32>,
    } else {
    }
    %c0 = arith.constant 0 : index
    %c0_1 = arith.constant 0 : index
    %3 = vector.load %arg8[%c0, %c0_1] : memref<512x128xf32, #tpu.memory_space<vmem>>, vector<512x128xf32>
    %c0_2 = arith.constant 0 : index
    %c0_3 = arith.constant 0 : index
    %4 = vector.load %arg3[%c0_2, %c0_3] : memref<512x128xbf16, #tpu.memory_space<vmem>>, vector<512x128xbf16>
    %c0_4 = arith.constant 0 : index
    %c0_5 = arith.constant 0 : index
    %5 = vector.load %arg4[%c0_4, %c0_5] : memref<128x128xbf16, #tpu.memory_space<vmem>>, vector<128x128xbf16>
    %cst = arith.constant dense<0.000000e+00> : vector<512x128xf32>
    %6 = tpu.matmul %4, %5, %cst {dimension_numbers = #tpu.dot_dimension_numbers<[1], [0], [0], [1], [0, 0, 1, 1], [], []>} : vector<512x128xbf16>, vector<128x128xbf16>, vector<512x128xf32> -> vector<512x128xf32>
    %7 = arith.addf %3, %6 : vector<512x128xf32>
    %c0_6 = arith.constant 0 : index
    %c0_7 = arith.constant 0 : index
    %8 = vector.load %arg8[%c0_6, %c0_7] : memref<512x128xf32, #tpu.memory_space<vmem>>, vector<512x128xf32>
    tpu.vector_store %arg8[%c0_6, %c0_7], %7 {strides = array<i32>} : memref<512x128xf32, #tpu.memory_space<vmem>>, vector<512x128xf32>,
    %c0_i32_8 = arith.constant 0 : i32
    %9 = arith.cmpi eq, %arg2, %c0_i32_8 : i32
    %10 = arith.extui %9 : i1 to i32
    %c0_i32_9 = arith.constant 0 : i32
    %11 = arith.cmpi ne, %10, %c0_i32_9 : i32
    scf.if %11 {
      %c0_10 = arith.constant 0 : index
      %c0_11 = arith.constant 0 : index
      %12 = vector.load %arg8[%c0_10, %c0_11] : memref<512x128xf32, #tpu.memory_space<vmem>>, vector<512x128xf32>
      %c0_12 = arith.constant 0 : index
      %c0_13 = arith.constant 0 : index
      %13 = vector.load %arg5[%c0_12, %c0_13] : memref<1x128xf32, #tpu.memory_space<vmem>>, vector<1x128xf32>
      %14 = vector.broadcast %13 : vector<1x128xf32> to vector<512x128xf32>
      %15 = arith.mulf %12, %14 : vector<512x128xf32>
      %c0_14 = arith.constant 0 : index
      %c0_15 = arith.constant 0 : index
      %16 = vector.load %arg6[%c0_14, %c0_15] : memref<1x128xf32, #tpu.memory_space<vmem>>, vector<1x128xf32>
      %17 = vector.broadcast %16 : vector<1x128xf32> to vector<512x128xf32>
      %18 = arith.addf %15, %17 : vector<512x128xf32>
      %cst_16 = arith.constant 0.000000e+00 : f32
      %19 = vector.broadcast %cst_16 : f32 to vector<512x128xf32>
      %20 = arith.maximumf %18, %19 : vector<512x128xf32>
      %21 = arith.truncf %20 : vector<512x128xf32> to vector<512x128xbf16>
      %c0_17 = arith.constant 0 : index
      %c0_18 = arith.constant 0 : index
      %22 = vector.load %arg7[%c0_17, %c0_18] : memref<512x128xbf16, #tpu.memory_space<vmem>>, vector<512x128xbf16>
      tpu.vector_store %arg7[%c0_17, %c0_18], %21 {strides = array<i32>} : memref<512x128xbf16, #tpu.memory_space<vmem>>, vector<512x128xbf16>,
    } else {
    }
    return
  }
  func.func @transform_0(%arg0: i32, %arg1: i32, %arg2: i32) -> (i32, i32) {
    %c0_i32 = arith.constant 0 : i32
    return %arg0, %arg2 : i32, i32
  }
  func.func @transform_1(%arg0: i32, %arg1: i32, %arg2: i32) -> (i32, i32) {
    %c0_i32 = arith.constant 0 : i32
    return %arg2, %arg1 : i32, i32
  }
  func.func @transform_2(%arg0: i32, %arg1: i32, %arg2: i32) -> (i32, i32) {
    %c0_i32 = arith.constant 0 : i32
    %c0_i32_0 = arith.constant 0 : i32
    return %c0_i32, %arg1 : i32, i32
  }
  func.func @transform_3(%arg0: i32, %arg1: i32, %arg2: i32) -> (i32, i32) {
    %c0_i32 = arith.constant 0 : i32
    %c0_i32_0 = arith.constant 0 : i32
    return %c0_i32, %arg1 : i32, i32
  }
  func.func @transform_4(%arg0: i32, %arg1: i32, %arg2: i32) -> (i32, i32) {
    %c0_i32 = arith.constant 0 : i32
    return %arg0, %arg1 : i32, i32
  }
}

module attributes {stable_mosaic.version = 11 : i64} {
  func.func @_max4_kernel(%arg0: i32, %arg1: memref<512x16xbf16, #tpu.memory_space<vmem>>, %arg2: memref<512x16xbf16, #tpu.memory_space<vmem>>, %arg3: memref<512x16xbf16, #tpu.memory_space<vmem>>, %arg4: memref<512x16xbf16, #tpu.memory_space<vmem>>, %arg5: memref<512x16xbf16, #tpu.memory_space<vmem>>) attributes {dimension_semantics = [#tpu.dimension_semantics<parallel>], iteration_bounds = array<i64: 157>, scalar_prefetch = 0 : i64, scratch_operands = 0 : i64, tpu.core_type = #tpu.core_type<tc>, window_params = [{transform_indices = @transform_0, window_bounds = array<i64: 512, 16>}, {transform_indices = @transform_1, window_bounds = array<i64: 512, 16>}, {transform_indices = @transform_2, window_bounds = array<i64: 512, 16>}, {transform_indices = @transform_3, window_bounds = array<i64: 512, 16>}, {transform_indices = @transform_4, window_bounds = array<i64: 512, 16>}]} {
    %c0 = arith.constant 0 : index
    %c0_0 = arith.constant 0 : index
    %0 = vector.load %arg1[%c0, %c0_0] : memref<512x16xbf16, #tpu.memory_space<vmem>>, vector<512x16xbf16>
    %c0_1 = arith.constant 0 : index
    %c0_2 = arith.constant 0 : index
    %1 = vector.load %arg2[%c0_1, %c0_2] : memref<512x16xbf16, #tpu.memory_space<vmem>>, vector<512x16xbf16>
    %2 = arith.maximumf %0, %1 : vector<512x16xbf16>
    %c0_3 = arith.constant 0 : index
    %c0_4 = arith.constant 0 : index
    %3 = vector.load %arg3[%c0_3, %c0_4] : memref<512x16xbf16, #tpu.memory_space<vmem>>, vector<512x16xbf16>
    %c0_5 = arith.constant 0 : index
    %c0_6 = arith.constant 0 : index
    %4 = vector.load %arg4[%c0_5, %c0_6] : memref<512x16xbf16, #tpu.memory_space<vmem>>, vector<512x16xbf16>
    %5 = arith.maximumf %3, %4 : vector<512x16xbf16>
    %6 = arith.maximumf %2, %5 : vector<512x16xbf16>
    %c0_7 = arith.constant 0 : index
    %c0_8 = arith.constant 0 : index
    %7 = vector.load %arg5[%c0_7, %c0_8] : memref<512x16xbf16, #tpu.memory_space<vmem>>, vector<512x16xbf16>
    tpu.vector_store %arg5[%c0_7, %c0_8], %6 {strides = array<i32>} : memref<512x16xbf16, #tpu.memory_space<vmem>>, vector<512x16xbf16>,
    return
  }
  func.func @transform_0(%arg0: i32) -> (i32, i32) {
    %c0_i32 = arith.constant 0 : i32
    %c0_i32_0 = arith.constant 0 : i32
    return %arg0, %c0_i32 : i32, i32
  }
  func.func @transform_1(%arg0: i32) -> (i32, i32) {
    %c0_i32 = arith.constant 0 : i32
    %c0_i32_0 = arith.constant 0 : i32
    return %arg0, %c0_i32 : i32, i32
  }
  func.func @transform_2(%arg0: i32) -> (i32, i32) {
    %c0_i32 = arith.constant 0 : i32
    %c0_i32_0 = arith.constant 0 : i32
    return %arg0, %c0_i32 : i32, i32
  }
  func.func @transform_3(%arg0: i32) -> (i32, i32) {
    %c0_i32 = arith.constant 0 : i32
    %c0_i32_0 = arith.constant 0 : i32
    return %arg0, %c0_i32 : i32, i32
  }
  func.func @transform_4(%arg0: i32) -> (i32, i32) {
    %c0_i32 = arith.constant 0 : i32
    %c0_i32_0 = arith.constant 0 : i32
    return %arg0, %c0_i32 : i32, i32
  }
}

module attributes {stable_mosaic.version = 11 : i64} {
  func.func @_mm_kernel(%arg0: i32, %arg1: i32, %arg2: i32, %arg3: memref<512x256xbf16, #tpu.memory_space<vmem>>, %arg4: memref<256x128xbf16, #tpu.memory_space<vmem>>, %arg5: memref<1x128xf32, #tpu.memory_space<vmem>>, %arg6: memref<1x128xf32, #tpu.memory_space<vmem>>, %arg7: memref<512x128xbf16, #tpu.memory_space<vmem>>, %arg8: memref<512x128xf32, #tpu.memory_space<vmem>>) attributes {dimension_semantics = [#tpu.dimension_semantics<parallel>, #tpu.dimension_semantics<parallel>, #tpu.dimension_semantics<arbitrary>], iteration_bounds = array<i64: 157, 1, 1>, scalar_prefetch = 0 : i64, scratch_operands = 1 : i64, tpu.core_type = #tpu.core_type<tc>, window_params = [{transform_indices = @transform_0, window_bounds = array<i64: 512, 256>}, {transform_indices = @transform_1, window_bounds = array<i64: 256, 128>}, {transform_indices = @transform_2, window_bounds = array<i64: 1, 128>}, {transform_indices = @transform_3, window_bounds = array<i64: 1, 128>}, {transform_indices = @transform_4, window_bounds = array<i64: 512, 128>}]} {
    %c0_i32 = arith.constant 0 : i32
    %0 = arith.cmpi eq, %arg2, %c0_i32 : i32
    %1 = arith.extui %0 : i1 to i32
    %c0_i32_0 = arith.constant 0 : i32
    %2 = arith.cmpi ne, %1, %c0_i32_0 : i32
    scf.if %2 {
      %cst_10 = arith.constant 0.000000e+00 : f32
      %12 = vector.broadcast %cst_10 : f32 to vector<512x128xf32>
      %c0_11 = arith.constant 0 : index
      %c0_12 = arith.constant 0 : index
      %13 = vector.load %arg8[%c0_11, %c0_12] : memref<512x128xf32, #tpu.memory_space<vmem>>, vector<512x128xf32>
      tpu.vector_store %arg8[%c0_11, %c0_12], %12 {strides = array<i32>} : memref<512x128xf32, #tpu.memory_space<vmem>>, vector<512x128xf32>,
    } else {
    }
    %c0 = arith.constant 0 : index
    %c0_1 = arith.constant 0 : index
    %3 = vector.load %arg8[%c0, %c0_1] : memref<512x128xf32, #tpu.memory_space<vmem>>, vector<512x128xf32>
    %c0_2 = arith.constant 0 : index
    %c0_3 = arith.constant 0 : index
    %4 = vector.load %arg3[%c0_2, %c0_3] : memref<512x256xbf16, #tpu.memory_space<vmem>>, vector<512x256xbf16>
    %c0_4 = arith.constant 0 : index
    %c0_5 = arith.constant 0 : index
    %5 = vector.load %arg4[%c0_4, %c0_5] : memref<256x128xbf16, #tpu.memory_space<vmem>>, vector<256x128xbf16>
    %cst = arith.constant dense<0.000000e+00> : vector<512x128xf32>
    %6 = tpu.matmul %4, %5, %cst {dimension_numbers = #tpu.dot_dimension_numbers<[1], [0], [0], [1], [0, 0, 1, 1], [], []>} : vector<512x256xbf16>, vector<256x128xbf16>, vector<512x128xf32> -> vector<512x128xf32>
    %7 = arith.addf %3, %6 : vector<512x128xf32>
    %c0_6 = arith.constant 0 : index
    %c0_7 = arith.constant 0 : index
    %8 = vector.load %arg8[%c0_6, %c0_7] : memref<512x128xf32, #tpu.memory_space<vmem>>, vector<512x128xf32>
    tpu.vector_store %arg8[%c0_6, %c0_7], %7 {strides = array<i32>} : memref<512x128xf32, #tpu.memory_space<vmem>>, vector<512x128xf32>,
    %c0_i32_8 = arith.constant 0 : i32
    %9 = arith.cmpi eq, %arg2, %c0_i32_8 : i32
    %10 = arith.extui %9 : i1 to i32
    %c0_i32_9 = arith.constant 0 : i32
    %11 = arith.cmpi ne, %10, %c0_i32_9 : i32
    scf.if %11 {
      %c0_10 = arith.constant 0 : index
      %c0_11 = arith.constant 0 : index
      %12 = vector.load %arg8[%c0_10, %c0_11] : memref<512x128xf32, #tpu.memory_space<vmem>>, vector<512x128xf32>
      %c0_12 = arith.constant 0 : index
      %c0_13 = arith.constant 0 : index
      %13 = vector.load %arg5[%c0_12, %c0_13] : memref<1x128xf32, #tpu.memory_space<vmem>>, vector<1x128xf32>
      %14 = vector.broadcast %13 : vector<1x128xf32> to vector<512x128xf32>
      %15 = arith.mulf %12, %14 : vector<512x128xf32>
      %c0_14 = arith.constant 0 : index
      %c0_15 = arith.constant 0 : index
      %16 = vector.load %arg6[%c0_14, %c0_15] : memref<1x128xf32, #tpu.memory_space<vmem>>, vector<1x128xf32>
      %17 = vector.broadcast %16 : vector<1x128xf32> to vector<512x128xf32>
      %18 = arith.addf %15, %17 : vector<512x128xf32>
      %cst_16 = arith.constant 0.000000e+00 : f32
      %19 = vector.broadcast %cst_16 : f32 to vector<512x128xf32>
      %20 = arith.maximumf %18, %19 : vector<512x128xf32>
      %21 = arith.truncf %20 : vector<512x128xf32> to vector<512x128xbf16>
      %c0_17 = arith.constant 0 : index
      %c0_18 = arith.constant 0 : index
      %22 = vector.load %arg7[%c0_17, %c0_18] : memref<512x128xbf16, #tpu.memory_space<vmem>>, vector<512x128xbf16>
      tpu.vector_store %arg7[%c0_17, %c0_18], %21 {strides = array<i32>} : memref<512x128xbf16, #tpu.memory_space<vmem>>, vector<512x128xbf16>,
    } else {
    }
    return
  }
  func.func @transform_0(%arg0: i32, %arg1: i32, %arg2: i32) -> (i32, i32) {
    %c0_i32 = arith.constant 0 : i32
    return %arg0, %arg2 : i32, i32
  }
  func.func @transform_1(%arg0: i32, %arg1: i32, %arg2: i32) -> (i32, i32) {
    %c0_i32 = arith.constant 0 : i32
    return %arg2, %arg1 : i32, i32
  }
  func.func @transform_2(%arg0: i32, %arg1: i32, %arg2: i32) -> (i32, i32) {
    %c0_i32 = arith.constant 0 : i32
    %c0_i32_0 = arith.constant 0 : i32
    return %c0_i32, %arg1 : i32, i32
  }
  func.func @transform_3(%arg0: i32, %arg1: i32, %arg2: i32) -> (i32, i32) {
    %c0_i32 = arith.constant 0 : i32
    %c0_i32_0 = arith.constant 0 : i32
    return %c0_i32, %arg1 : i32, i32
  }
  func.func @transform_4(%arg0: i32, %arg1: i32, %arg2: i32) -> (i32, i32) {
    %c0_i32 = arith.constant 0 : i32
    return %arg0, %arg1 : i32, i32
  }
}

module attributes {stable_mosaic.version = 11 : i64} {
  func.func @_max4_kernel(%arg0: i32, %arg1: memref<512x64xbf16, #tpu.memory_space<vmem>>, %arg2: memref<512x64xbf16, #tpu.memory_space<vmem>>, %arg3: memref<512x64xbf16, #tpu.memory_space<vmem>>, %arg4: memref<512x64xbf16, #tpu.memory_space<vmem>>, %arg5: memref<512x64xbf16, #tpu.memory_space<vmem>>) attributes {dimension_semantics = [#tpu.dimension_semantics<parallel>], iteration_bounds = array<i64: 40>, scalar_prefetch = 0 : i64, scratch_operands = 0 : i64, tpu.core_type = #tpu.core_type<tc>, window_params = [{transform_indices = @transform_0, window_bounds = array<i64: 512, 64>}, {transform_indices = @transform_1, window_bounds = array<i64: 512, 64>}, {transform_indices = @transform_2, window_bounds = array<i64: 512, 64>}, {transform_indices = @transform_3, window_bounds = array<i64: 512, 64>}, {transform_indices = @transform_4, window_bounds = array<i64: 512, 64>}]} {
    %c0 = arith.constant 0 : index
    %c0_0 = arith.constant 0 : index
    %0 = vector.load %arg1[%c0, %c0_0] : memref<512x64xbf16, #tpu.memory_space<vmem>>, vector<512x64xbf16>
    %c0_1 = arith.constant 0 : index
    %c0_2 = arith.constant 0 : index
    %1 = vector.load %arg2[%c0_1, %c0_2] : memref<512x64xbf16, #tpu.memory_space<vmem>>, vector<512x64xbf16>
    %2 = arith.maximumf %0, %1 : vector<512x64xbf16>
    %c0_3 = arith.constant 0 : index
    %c0_4 = arith.constant 0 : index
    %3 = vector.load %arg3[%c0_3, %c0_4] : memref<512x64xbf16, #tpu.memory_space<vmem>>, vector<512x64xbf16>
    %c0_5 = arith.constant 0 : index
    %c0_6 = arith.constant 0 : index
    %4 = vector.load %arg4[%c0_5, %c0_6] : memref<512x64xbf16, #tpu.memory_space<vmem>>, vector<512x64xbf16>
    %5 = arith.maximumf %3, %4 : vector<512x64xbf16>
    %6 = arith.maximumf %2, %5 : vector<512x64xbf16>
    %c0_7 = arith.constant 0 : index
    %c0_8 = arith.constant 0 : index
    %7 = vector.load %arg5[%c0_7, %c0_8] : memref<512x64xbf16, #tpu.memory_space<vmem>>, vector<512x64xbf16>
    tpu.vector_store %arg5[%c0_7, %c0_8], %6 {strides = array<i32>} : memref<512x64xbf16, #tpu.memory_space<vmem>>, vector<512x64xbf16>,
    return
  }
  func.func @transform_0(%arg0: i32) -> (i32, i32) {
    %c0_i32 = arith.constant 0 : i32
    %c0_i32_0 = arith.constant 0 : i32
    return %arg0, %c0_i32 : i32, i32
  }
  func.func @transform_1(%arg0: i32) -> (i32, i32) {
    %c0_i32 = arith.constant 0 : i32
    %c0_i32_0 = arith.constant 0 : i32
    return %arg0, %c0_i32 : i32, i32
  }
  func.func @transform_2(%arg0: i32) -> (i32, i32) {
    %c0_i32 = arith.constant 0 : i32
    %c0_i32_0 = arith.constant 0 : i32
    return %arg0, %c0_i32 : i32, i32
  }
  func.func @transform_3(%arg0: i32) -> (i32, i32) {
    %c0_i32 = arith.constant 0 : i32
    %c0_i32_0 = arith.constant 0 : i32
    return %arg0, %c0_i32 : i32, i32
  }
  func.func @transform_4(%arg0: i32) -> (i32, i32) {
    %c0_i32 = arith.constant 0 : i32
    %c0_i32_0 = arith.constant 0 : i32
    return %arg0, %c0_i32 : i32, i32
  }
}

module attributes {stable_mosaic.version = 11 : i64} {
  func.func @_mm_kernel(%arg0: i32, %arg1: i32, %arg2: i32, %arg3: memref<512x128xbf16, #tpu.memory_space<vmem>>, %arg4: memref<128x128xbf16, #tpu.memory_space<vmem>>, %arg5: memref<1x128xf32, #tpu.memory_space<vmem>>, %arg6: memref<1x128xf32, #tpu.memory_space<vmem>>, %arg7: memref<512x128xbf16, #tpu.memory_space<vmem>>, %arg8: memref<512x128xf32, #tpu.memory_space<vmem>>) attributes {dimension_semantics = [#tpu.dimension_semantics<parallel>, #tpu.dimension_semantics<parallel>, #tpu.dimension_semantics<arbitrary>], iteration_bounds = array<i64: 40, 1, 5>, scalar_prefetch = 0 : i64, scratch_operands = 1 : i64, tpu.core_type = #tpu.core_type<tc>, window_params = [{transform_indices = @transform_0, window_bounds = array<i64: 512, 128>}, {transform_indices = @transform_1, window_bounds = array<i64: 128, 128>}, {transform_indices = @transform_2, window_bounds = array<i64: 1, 128>}, {transform_indices = @transform_3, window_bounds = array<i64: 1, 128>}, {transform_indices = @transform_4, window_bounds = array<i64: 512, 128>}]} {
    %c0_i32 = arith.constant 0 : i32
    %0 = arith.cmpi eq, %arg2, %c0_i32 : i32
    %1 = arith.extui %0 : i1 to i32
    %c0_i32_0 = arith.constant 0 : i32
    %2 = arith.cmpi ne, %1, %c0_i32_0 : i32
    scf.if %2 {
      %cst_9 = arith.constant 0.000000e+00 : f32
      %12 = vector.broadcast %cst_9 : f32 to vector<512x128xf32>
      %c0_10 = arith.constant 0 : index
      %c0_11 = arith.constant 0 : index
      %13 = vector.load %arg8[%c0_10, %c0_11] : memref<512x128xf32, #tpu.memory_space<vmem>>, vector<512x128xf32>
      tpu.vector_store %arg8[%c0_10, %c0_11], %12 {strides = array<i32>} : memref<512x128xf32, #tpu.memory_space<vmem>>, vector<512x128xf32>,
    } else {
    }
    %c0 = arith.constant 0 : index
    %c0_1 = arith.constant 0 : index
    %3 = vector.load %arg8[%c0, %c0_1] : memref<512x128xf32, #tpu.memory_space<vmem>>, vector<512x128xf32>
    %c0_2 = arith.constant 0 : index
    %c0_3 = arith.constant 0 : index
    %4 = vector.load %arg3[%c0_2, %c0_3] : memref<512x128xbf16, #tpu.memory_space<vmem>>, vector<512x128xbf16>
    %c0_4 = arith.constant 0 : index
    %c0_5 = arith.constant 0 : index
    %5 = vector.load %arg4[%c0_4, %c0_5] : memref<128x128xbf16, #tpu.memory_space<vmem>>, vector<128x128xbf16>
    %cst = arith.constant dense<0.000000e+00> : vector<512x128xf32>
    %6 = tpu.matmul %4, %5, %cst {dimension_numbers = #tpu.dot_dimension_numbers<[1], [0], [0], [1], [0, 0, 1, 1], [], []>} : vector<512x128xbf16>, vector<128x128xbf16>, vector<512x128xf32> -> vector<512x128xf32>
    %7 = arith.addf %3, %6 : vector<512x128xf32>
    %c0_6 = arith.constant 0 : index
    %c0_7 = arith.constant 0 : index
    %8 = vector.load %arg8[%c0_6, %c0_7] : memref<512x128xf32, #tpu.memory_space<vmem>>, vector<512x128xf32>
    tpu.vector_store %arg8[%c0_6, %c0_7], %7 {strides = array<i32>} : memref<512x128xf32, #tpu.memory_space<vmem>>, vector<512x128xf32>,
    %c4_i32 = arith.constant 4 : i32
    %9 = arith.cmpi eq, %arg2, %c4_i32 : i32
    %10 = arith.extui %9 : i1 to i32
    %c0_i32_8 = arith.constant 0 : i32
    %11 = arith.cmpi ne, %10, %c0_i32_8 : i32
    scf.if %11 {
      %c0_9 = arith.constant 0 : index
      %c0_10 = arith.constant 0 : index
      %12 = vector.load %arg8[%c0_9, %c0_10] : memref<512x128xf32, #tpu.memory_space<vmem>>, vector<512x128xf32>
      %c0_11 = arith.constant 0 : index
      %c0_12 = arith.constant 0 : index
      %13 = vector.load %arg5[%c0_11, %c0_12] : memref<1x128xf32, #tpu.memory_space<vmem>>, vector<1x128xf32>
      %14 = vector.broadcast %13 : vector<1x128xf32> to vector<512x128xf32>
      %15 = arith.mulf %12, %14 : vector<512x128xf32>
      %c0_13 = arith.constant 0 : index
      %c0_14 = arith.constant 0 : index
      %16 = vector.load %arg6[%c0_13, %c0_14] : memref<1x128xf32, #tpu.memory_space<vmem>>, vector<1x128xf32>
      %17 = vector.broadcast %16 : vector<1x128xf32> to vector<512x128xf32>
      %18 = arith.addf %15, %17 : vector<512x128xf32>
      %cst_15 = arith.constant 0.000000e+00 : f32
      %19 = vector.broadcast %cst_15 : f32 to vector<512x128xf32>
      %20 = arith.maximumf %18, %19 : vector<512x128xf32>
      %21 = arith.truncf %20 : vector<512x128xf32> to vector<512x128xbf16>
      %c0_16 = arith.constant 0 : index
      %c0_17 = arith.constant 0 : index
      %22 = vector.load %arg7[%c0_16, %c0_17] : memref<512x128xbf16, #tpu.memory_space<vmem>>, vector<512x128xbf16>
      tpu.vector_store %arg7[%c0_16, %c0_17], %21 {strides = array<i32>} : memref<512x128xbf16, #tpu.memory_space<vmem>>, vector<512x128xbf16>,
    } else {
    }
    return
  }
  func.func @transform_0(%arg0: i32, %arg1: i32, %arg2: i32) -> (i32, i32) {
    %c0_i32 = arith.constant 0 : i32
    return %arg0, %arg2 : i32, i32
  }
  func.func @transform_1(%arg0: i32, %arg1: i32, %arg2: i32) -> (i32, i32) {
    %c0_i32 = arith.constant 0 : i32
    return %arg2, %arg1 : i32, i32
  }
  func.func @transform_2(%arg0: i32, %arg1: i32, %arg2: i32) -> (i32, i32) {
    %c0_i32 = arith.constant 0 : i32
    %c0_i32_0 = arith.constant 0 : i32
    return %c0_i32, %arg1 : i32, i32
  }
  func.func @transform_3(%arg0: i32, %arg1: i32, %arg2: i32) -> (i32, i32) {
    %c0_i32 = arith.constant 0 : i32
    %c0_i32_0 = arith.constant 0 : i32
    return %c0_i32, %arg1 : i32, i32
  }
  func.func @transform_4(%arg0: i32, %arg1: i32, %arg2: i32) -> (i32, i32) {
    %c0_i32 = arith.constant 0 : i32
    return %arg0, %arg1 : i32, i32
  }
}

module attributes {stable_mosaic.version = 11 : i64} {
  func.func @_max4_kernel(%arg0: i32, %arg1: memref<512x128xbf16, #tpu.memory_space<vmem>>, %arg2: memref<512x128xbf16, #tpu.memory_space<vmem>>, %arg3: memref<512x128xbf16, #tpu.memory_space<vmem>>, %arg4: memref<512x128xbf16, #tpu.memory_space<vmem>>, %arg5: memref<512x128xbf16, #tpu.memory_space<vmem>>) attributes {dimension_semantics = [#tpu.dimension_semantics<parallel>], iteration_bounds = array<i64: 10>, scalar_prefetch = 0 : i64, scratch_operands = 0 : i64, tpu.core_type = #tpu.core_type<tc>, window_params = [{transform_indices = @transform_0, window_bounds = array<i64: 512, 128>}, {transform_indices = @transform_1, window_bounds = array<i64: 512, 128>}, {transform_indices = @transform_2, window_bounds = array<i64: 512, 128>}, {transform_indices = @transform_3, window_bounds = array<i64: 512, 128>}, {transform_indices = @transform_4, window_bounds = array<i64: 512, 128>}]} {
    %c0 = arith.constant 0 : index
    %c0_0 = arith.constant 0 : index
    %0 = vector.load %arg1[%c0, %c0_0] : memref<512x128xbf16, #tpu.memory_space<vmem>>, vector<512x128xbf16>
    %c0_1 = arith.constant 0 : index
    %c0_2 = arith.constant 0 : index
    %1 = vector.load %arg2[%c0_1, %c0_2] : memref<512x128xbf16, #tpu.memory_space<vmem>>, vector<512x128xbf16>
    %2 = arith.maximumf %0, %1 : vector<512x128xbf16>
    %c0_3 = arith.constant 0 : index
    %c0_4 = arith.constant 0 : index
    %3 = vector.load %arg3[%c0_3, %c0_4] : memref<512x128xbf16, #tpu.memory_space<vmem>>, vector<512x128xbf16>
    %c0_5 = arith.constant 0 : index
    %c0_6 = arith.constant 0 : index
    %4 = vector.load %arg4[%c0_5, %c0_6] : memref<512x128xbf16, #tpu.memory_space<vmem>>, vector<512x128xbf16>
    %5 = arith.maximumf %3, %4 : vector<512x128xbf16>
    %6 = arith.maximumf %2, %5 : vector<512x128xbf16>
    %c0_7 = arith.constant 0 : index
    %c0_8 = arith.constant 0 : index
    %7 = vector.load %arg5[%c0_7, %c0_8] : memref<512x128xbf16, #tpu.memory_space<vmem>>, vector<512x128xbf16>
    tpu.vector_store %arg5[%c0_7, %c0_8], %6 {strides = array<i32>} : memref<512x128xbf16, #tpu.memory_space<vmem>>, vector<512x128xbf16>,
    return
  }
  func.func @transform_0(%arg0: i32) -> (i32, i32) {
    %c0_i32 = arith.constant 0 : i32
    %c0_i32_0 = arith.constant 0 : i32
    return %arg0, %c0_i32 : i32, i32
  }
  func.func @transform_1(%arg0: i32) -> (i32, i32) {
    %c0_i32 = arith.constant 0 : i32
    %c0_i32_0 = arith.constant 0 : i32
    return %arg0, %c0_i32 : i32, i32
  }
  func.func @transform_2(%arg0: i32) -> (i32, i32) {
    %c0_i32 = arith.constant 0 : i32
    %c0_i32_0 = arith.constant 0 : i32
    return %arg0, %c0_i32 : i32, i32
  }
  func.func @transform_3(%arg0: i32) -> (i32, i32) {
    %c0_i32 = arith.constant 0 : i32
    %c0_i32_0 = arith.constant 0 : i32
    return %arg0, %c0_i32 : i32, i32
  }
  func.func @transform_4(%arg0: i32) -> (i32, i32) {
    %c0_i32 = arith.constant 0 : i32
    %c0_i32_0 = arith.constant 0 : i32
    return %arg0, %c0_i32 : i32, i32
  }
}

module attributes {stable_mosaic.version = 11 : i64} {
  func.func @_mm_kernel(%arg0: i32, %arg1: i32, %arg2: i32, %arg3: memref<16x512xbf16, #tpu.memory_space<vmem>>, %arg4: memref<512x128xbf16, #tpu.memory_space<vmem>>, %arg5: memref<1x128xf32, #tpu.memory_space<vmem>>, %arg6: memref<1x128xf32, #tpu.memory_space<vmem>>, %arg7: memref<16x128xf32, #tpu.memory_space<vmem>>, %arg8: memref<16x128xf32, #tpu.memory_space<vmem>>) attributes {dimension_semantics = [#tpu.dimension_semantics<parallel>, #tpu.dimension_semantics<parallel>, #tpu.dimension_semantics<arbitrary>], iteration_bounds = array<i64: 1, 1, 625>, scalar_prefetch = 0 : i64, scratch_operands = 1 : i64, tpu.core_type = #tpu.core_type<tc>, window_params = [{transform_indices = @transform_0, window_bounds = array<i64: 16, 512>}, {transform_indices = @transform_1, window_bounds = array<i64: 512, 128>}, {transform_indices = @transform_2, window_bounds = array<i64: 1, 128>}, {transform_indices = @transform_3, window_bounds = array<i64: 1, 128>}, {transform_indices = @transform_4, window_bounds = array<i64: 16, 128>}]} {
    %c0_i32 = arith.constant 0 : i32
    %0 = arith.cmpi eq, %arg2, %c0_i32 : i32
    %1 = arith.extui %0 : i1 to i32
    %c0_i32_0 = arith.constant 0 : i32
    %2 = arith.cmpi ne, %1, %c0_i32_0 : i32
    scf.if %2 {
      %cst_9 = arith.constant 0.000000e+00 : f32
      %12 = vector.broadcast %cst_9 : f32 to vector<16x128xf32>
      %c0_10 = arith.constant 0 : index
      %c0_11 = arith.constant 0 : index
      %13 = vector.load %arg8[%c0_10, %c0_11] : memref<16x128xf32, #tpu.memory_space<vmem>>, vector<16x128xf32>
      tpu.vector_store %arg8[%c0_10, %c0_11], %12 {strides = array<i32>} : memref<16x128xf32, #tpu.memory_space<vmem>>, vector<16x128xf32>,
    } else {
    }
    %c0 = arith.constant 0 : index
    %c0_1 = arith.constant 0 : index
    %3 = vector.load %arg8[%c0, %c0_1] : memref<16x128xf32, #tpu.memory_space<vmem>>, vector<16x128xf32>
    %c0_2 = arith.constant 0 : index
    %c0_3 = arith.constant 0 : index
    %4 = vector.load %arg3[%c0_2, %c0_3] : memref<16x512xbf16, #tpu.memory_space<vmem>>, vector<16x512xbf16>
    %c0_4 = arith.constant 0 : index
    %c0_5 = arith.constant 0 : index
    %5 = vector.load %arg4[%c0_4, %c0_5] : memref<512x128xbf16, #tpu.memory_space<vmem>>, vector<512x128xbf16>
    %cst = arith.constant dense<0.000000e+00> : vector<16x128xf32>
    %6 = tpu.matmul %4, %5, %cst {dimension_numbers = #tpu.dot_dimension_numbers<[1], [0], [0], [1], [0, 0, 1, 1], [], []>} : vector<16x512xbf16>, vector<512x128xbf16>, vector<16x128xf32> -> vector<16x128xf32>
    %7 = arith.addf %3, %6 : vector<16x128xf32>
    %c0_6 = arith.constant 0 : index
    %c0_7 = arith.constant 0 : index
    %8 = vector.load %arg8[%c0_6, %c0_7] : memref<16x128xf32, #tpu.memory_space<vmem>>, vector<16x128xf32>
    tpu.vector_store %arg8[%c0_6, %c0_7], %7 {strides = array<i32>} : memref<16x128xf32, #tpu.memory_space<vmem>>, vector<16x128xf32>,
    %c624_i32 = arith.constant 624 : i32
    %9 = arith.cmpi eq, %arg2, %c624_i32 : i32
    %10 = arith.extui %9 : i1 to i32
    %c0_i32_8 = arith.constant 0 : i32
    %11 = arith.cmpi ne, %10, %c0_i32_8 : i32
    scf.if %11 {
      %c0_9 = arith.constant 0 : index
      %c0_10 = arith.constant 0 : index
      %12 = vector.load %arg8[%c0_9, %c0_10] : memref<16x128xf32, #tpu.memory_space<vmem>>, vector<16x128xf32>
      %c0_11 = arith.constant 0 : index
      %c0_12 = arith.constant 0 : index
      %13 = vector.load %arg5[%c0_11, %c0_12] : memref<1x128xf32, #tpu.memory_space<vmem>>, vector<1x128xf32>
      %14 = vector.broadcast %13 : vector<1x128xf32> to vector<16x128xf32>
      %15 = arith.mulf %12, %14 : vector<16x128xf32>
      %c0_13 = arith.constant 0 : index
      %c0_14 = arith.constant 0 : index
      %16 = vector.load %arg6[%c0_13, %c0_14] : memref<1x128xf32, #tpu.memory_space<vmem>>, vector<1x128xf32>
      %17 = vector.broadcast %16 : vector<1x128xf32> to vector<16x128xf32>
      %18 = arith.addf %15, %17 : vector<16x128xf32>
      %c0_15 = arith.constant 0 : index
      %c0_16 = arith.constant 0 : index
      %19 = vector.load %arg7[%c0_15, %c0_16] : memref<16x128xf32, #tpu.memory_space<vmem>>, vector<16x128xf32>
      tpu.vector_store %arg7[%c0_15, %c0_16], %18 {strides = array<i32>} : memref<16x128xf32, #tpu.memory_space<vmem>>, vector<16x128xf32>,
    } else {
    }
    return
  }
  func.func @transform_0(%arg0: i32, %arg1: i32, %arg2: i32) -> (i32, i32) {
    %c0_i32 = arith.constant 0 : i32
    return %arg0, %arg2 : i32, i32
  }
  func.func @transform_1(%arg0: i32, %arg1: i32, %arg2: i32) -> (i32, i32) {
    %c0_i32 = arith.constant 0 : i32
    return %arg2, %arg1 : i32, i32
  }
  func.func @transform_2(%arg0: i32, %arg1: i32, %arg2: i32) -> (i32, i32) {
    %c0_i32 = arith.constant 0 : i32
    %c0_i32_0 = arith.constant 0 : i32
    return %c0_i32, %arg1 : i32, i32
  }
  func.func @transform_3(%arg0: i32, %arg1: i32, %arg2: i32) -> (i32, i32) {
    %c0_i32 = arith.constant 0 : i32
    %c0_i32_0 = arith.constant 0 : i32
    return %c0_i32, %arg1 : i32, i32
  }
  func.func @transform_4(%arg0: i32, %arg1: i32, %arg2: i32) -> (i32, i32) {
    %c0_i32 = arith.constant 0 : i32
    return %arg0, %arg1 : i32, i32
  }
}

</mosaic_0001>

<llo_original>
// kernel: net_forward.7
$region0: #{net_forward.7}
  #allocation0 [shape = 'u32[]', space=smem, size = 0x4, offset = 0x4, fixed_abs, tag = 'smem constant byte address 0x4 - core index']
  #allocation1 [shape = 'u32[72,128]{1,0:T(1,128)}', space=vmem, size = 0x9000, scoped, tag = 'internal scratch']
  #allocation2 [shape = 'f32[512,128]{1,0:T(8,128)}', space=vmem, size = 0x40000, scoped, tag = 'scratch operand']
  %s0 = inlined_call_operand.hbm [shape: bf16[320000,128], index: 0, kind: input, shape index: {}]
  %s1 = inlined_call_operand.vmem [shape: bf16[128,128], index: 1, kind: input, shape index: {}]
  %s2 = inlined_call_operand.vmem [shape: f32[1,128], index: 2, kind: input, shape index: {}]
  %s3 = inlined_call_operand.vmem [shape: f32[1,128], index: 3, kind: input, shape index: {}]
  %s4 = inlined_call_operand.vmem [shape: bf16[320000,128], index: 4, kind: output, shape index: {}]
  %s5 = sld [smem:[#allocation0]]
  $region61: #{net_forward.7} parent=0
    _
  %s7 = ssub.s32 1, %s5
  %s8 = scalar_select 0, %s7, %s5
  $region1: #{net_forward.7} parent=0
    #allocation3 [shape = 'u8[262144]{0}', space=vmem, size = 0x40000, scoped, tag = 'input window, operand 0']
    #allocation4 [shape = 's32[2]{0}', space=sflag, size = 0x8, scoped, tag = 'scoped memory for net_forward.7']
    %9 = vsyncpa [#allocation4], 0
    %s10 = scalar_lea.sflag [#allocation4], 1
    %11 = vsyncpa %s10, 0
    loop: start=0, step=1, limit=627
    $region2: #{net_forward.7} parent=1 // loop_pre_header
      _
    $region3: #{net_forward.7} parent=1 // loop_header
      %s13 = sphi 0, %s17
      %p14 = scmp.ge.s32.totalorder %s13, 627
      %s20 = sphi 0, %s39
      %s21 = sphi 0, %s35
      %s22 = sphi 0, %s31
      %s23 = sphi 0, %s20
      %s24 = sphi 0, %s21
      %s25 = sphi 0, %s22
      %s26 = sphi 0, %s23
      %s27 = sphi 0, %s24
      %s28 = sphi 0, %s25
      %s44 = sphi 0, %s46
      %s47 = sphi 0, %s44
      %s48 = sphi 0, %s47
      %s64 = sphi 0, %s48
      %s72 = sphi 0, %s74
      %s75 = sphi 0, %s72
      %s76 = sphi 0, %s75
      %s92 = sphi 0, %s76
      %s98 = sphi 0, %s100
      %s101 = sphi 0, %s98
      %s102 = sphi 0, %s101
      %s118 = sphi 0, %s102
      %s124 = sphi 0, %s126
      %s127 = sphi 0, %s124
      %s128 = sphi 0, %s127
      %s144 = sphi 0, %s128
      %s152 = sphi 0, %s154
      %s155 = sphi 0, %s152
      %s156 = sphi 0, %s155
      %s172 = sphi 0, %s156
    $region4: #{net_forward.7} parent=1 // loop_header_branch
      %16 = sbr.rel (%p14) target = $region8
    $region5: #{net_forward.7} parent=1 // loop_body
      %s18 = ssub.s32 %s13, 1
      %s19 = ssub.s32 %s13, 2
      %s29 = sadd.s32 1, %s22
      %p30 = scmp.ge.s32.totalorder %s29, 1
      %s31 = scalar_select %p30, 0, %s29
      %s32 = sadd.s32 1, %s21
      %s33 = scalar_select %p30, %s32, %s21
      %p34 = scmp.ge.s32.totalorder %s33, 1
      %s35 = scalar_select %p34, 0, %s33
      %s36 = sadd.s32 1, %s20
      %s37 = scalar_select %p34, %s36, %s20
      %p38 = scmp.ge.s32.totalorder %s37, 625
      %s39 = scalar_select %p38, 0, %s37
      %s40 = ssub.s32 %s20, %s39
      %s41 = ssub.s32 %s22, %s31
      %s42 = sor.u32 %s40, %s41
      %p43 = scmp.eq.s32.totalorder %s42, 0
      %s45 = sadd.s32 %s44, 1
      %s46 = scalar_select %p43, %s44, %s45
      %p49 = pneg %p43
      %p50 = scmp.eq.s32.totalorder %s13, 624
      %p51 = por %p49, %p50
      %p52 = scmp.ne.s32.totalorder %s44, %s47
      %p53 = scmp.eq.s32.totalorder %s13, 0
      %p54 = por %p52, %p53
      %p55 = scmp.ne.s32.totalorder %s44, %s47
      %p56 = scmp.eq.s32.totalorder %s18, 624
      %p57 = por %p55, %p56
      %p58 = scmp.ne.s32.totalorder %s47, %s48
      %p59 = scmp.eq.s32.totalorder %s18, 0
      %p60 = por %p58, %p59
      %p61 = scmp.ne.s32.totalorder %s47, %s48
      %p62 = scmp.eq.s32.totalorder %s19, 624
      %p63 = por %p61, %p62
      %p65 = scmp.ne.s32.totalorder %s48, %s64
      %p66 = scmp.eq.s32.totalorder %s19, 0
      %p67 = por %p65, %p66
      %s68 = ssub.s32 %s22, %s31
      %s69 = ssub.s32 %s21, %s35
      %s70 = sor.u32 %s68, %s69
      %p71 = scmp.eq.s32.totalorder %s70, 0
      %s73 = sadd.s32 %s72, 1
      %s74 = scalar_select %p71, %s72, %s73
      %p77 = pneg %p71
      %p78 = scmp.eq.s32.totalorder %s13, 624
      %p79 = por %p77, %p78
      %p80 = scmp.ne.s32.totalorder %s72, %s75
      %p81 = scmp.eq.s32.totalorder %s13, 0
      %p82 = por %p80, %p81
      %p83 = scmp.ne.s32.totalorder %s72, %s75
      %p84 = scmp.eq.s32.totalorder %s18, 624
      %p85 = por %p83, %p84
      %p86 = scmp.ne.s32.totalorder %s75, %s76
      %p87 = scmp.eq.s32.totalorder %s18, 0
      %p88 = por %p86, %p87
      %p89 = scmp.ne.s32.totalorder %s75, %s76
      %p90 = scmp.eq.s32.totalorder %s19, 624
      %p91 = por %p89, %p90
      %p93 = scmp.ne.s32.totalorder %s76, %s92
      %p94 = scmp.eq.s32.totalorder %s19, 0
      %p95 = por %p93, %p94
      %s96 = ssub.s32 %s21, %s35
      %p97 = scmp.eq.s32.totalorder %s96, 0
      %s99 = sadd.s32 %s98, 1
      %s100 = scalar_select %p97, %s98, %s99
      %p103 = pneg %p97
      %p104 = scmp.eq.s32.totalorder %s13, 624
      %p105 = por %p103, %p104
      %p106 = scmp.ne.s32.totalorder %s98, %s101
      %p107 = scmp.eq.s32.totalorder %s13, 0
      %p108 = por %p106, %p107
      %p109 = scmp.ne.s32.totalorder %s98, %s101
      %p110 = scmp.eq.s32.totalorder %s18, 624
      %p111 = por %p109, %p110
      %p112 = scmp.ne.s32.totalorder %s101, %s102
      %p113 = scmp.eq.s32.totalorder %s18, 0
      %p114 = por %p112, %p113
      %p115 = scmp.ne.s32.totalorder %s101, %s102
      %p116 = scmp.eq.s32.totalorder %s19, 624
      %p117 = por %p115, %p116
      %p119 = scmp.ne.s32.totalorder %s102, %s118
      %p120 = scmp.eq.s32.totalorder %s19, 0
      %p121 = por %p119, %p120
      %s122 = ssub.s32 %s21, %s35
      %p123 = scmp.eq.s32.totalorder %s122, 0
      %s125 = sadd.s32 %s124, 1
      %s126 = scalar_select %p123, %s124, %s125
      %p129 = pneg %p123
      %p130 = scmp.eq.s32.totalorder %s13, 624
      %p131 = por %p129, %p130
      %p132 = scmp.ne.s32.totalorder %s124, %s127
      %p133 = scmp.eq.s32.totalorder %s13, 0
      %p134 = por %p132, %p133
      %p135 = scmp.ne.s32.totalorder %s124, %s127
      %p136 = scmp.eq.s32.totalorder %s18, 624
      %p137 = por %p135, %p136
      %p138 = scmp.ne.s32.totalorder %s127, %s128
      %p139 = scmp.eq.s32.totalorder %s18, 0
      %p140 = por %p138, %p139
      %p141 = scmp.ne.s32.totalorder %s127, %s128
      %p142 = scmp.eq.s32.totalorder %s19, 624
      %p143 = por %p141, %p142
      %p145 = scmp.ne.s32.totalorder %s128, %s144
      %p146 = scmp.eq.s32.totalorder %s19, 0
      %p147 = por %p145, %p146
      %s148 = ssub.s32 %s20, %s39
      %s149 = ssub.s32 %s21, %s35
      %s150 = sor.u32 %s148, %s149
      %p151 = scmp.eq.s32.totalorder %s150, 0
      %s153 = sadd.s32 %s152, 1
      %s154 = scalar_select %p151, %s152, %s153
      %p157 = pneg %p151
      %p158 = scmp.eq.s32.totalorder %s13, 624
      %p159 = por %p157, %p158
      %p160 = scmp.ne.s32.totalorder %s152, %s155
      %p161 = scmp.eq.s32.totalorder %s13, 0
      %p162 = por %p160, %p161
      %p163 = scmp.ne.s32.totalorder %s152, %s155
      %p164 = scmp.eq.s32.totalorder %s18, 624
      %p165 = por %p163, %p164
      %p166 = scmp.ne.s32.totalorder %s155, %s156
      %p167 = scmp.eq.s32.totalorder %s18, 0
      %p168 = por %p166, %p167
      %p169 = scmp.ne.s32.totalorder %s155, %s156
      %p170 = scmp.eq.s32.totalorder %s19, 624
      %p171 = por %p169, %p170
      %p173 = scmp.ne.s32.totalorder %s156, %s172
      %p174 = scmp.eq.s32.totalorder %s19, 0
      %p175 = por %p173, %p174
      %p176 = scmp.le.s32.totalorder 1, %s13
      %p177 = scmp.lt.s32.totalorder %s13, 626
      %p178 = pnand %p176, %p177
      %p179 = pneg %p178
      // Predicated region
      $region9: #{net_forward.7} parent=5 // pred_check
        _
      $region10: #{net_forward.7} parent=5 // pred_check_branch
        %181 = sbr.rel (%p178) target = $region12
      $region11: #{net_forward.7} parent=5 // pred_region
        %s182 = ssub.s32 %s13, 1
        // Predicated region
        $region13: #{net_forward.7} parent=11 // pred_check
          %p183 = pneg %p88
        $region14: #{net_forward.7} parent=11 // pred_check_branch
          %185 = sbr.rel (%p183) target = $region16
        $region15: #{net_forward.7} parent=11 // pred_region
          %s186 = smul.u32 16, %s25
          %p187 = scmp.lt.s32.totalorder %s186, 15
          %s188 = scalar_select %p187, %s186, 15
          %p189 = scmp.lt.s32.totalorder %s24, 0
          %s190 = scalar_select %p189, %s24, 0
          %s191 = sadd.s32 %s190, %s188
          %s192 = smul.addr %s191, 4
          %s193 = scalar_lea.vmem %s1, %s192
          %s194 = smul.u32 16, %s25
        $region16: #{net_forward.7} parent=11 // pred_fallthru
          _
        // Predicated region
        $region17: #{net_forward.7} parent=11 // pred_check
          %p195 = pneg %p114
        $region18: #{net_forward.7} parent=11 // pred_check_branch
          %197 = sbr.rel (%p195) target = $region20
        $region19: #{net_forward.7} parent=11 // pred_region
          %p198 = scmp.lt.s32.totalorder %s24, 0
          %s199 = scalar_select %p198, %s24, 0
          %s200 = scalar_lea.vmem %s2, %s199
        $region20: #{net_forward.7} parent=11 // pred_fallthru
          _
        // Predicated region
        $region21: #{net_forward.7} parent=11 // pred_check
          %p201 = pneg %p140
        $region22: #{net_forward.7} parent=11 // pred_check_branch
          %203 = sbr.rel (%p201) target = $region24
        $region23: #{net_forward.7} parent=11 // pred_region
          %p204 = scmp.lt.s32.totalorder %s24, 0
          %s205 = scalar_select %p204, %s24, 0
          %s206 = scalar_lea.vmem %s3, %s205
        $region24: #{net_forward.7} parent=11 // pred_fallthru
          _
      $region12: #{net_forward.7} parent=5 // pred_fallthru
        _
      %p207 = scmp.lt.s32.totalorder %s13, 625
      // Predicated region
      $region25: #{net_forward.7} parent=5 // pred_check
        %p208 = pneg %p207
      $region26: #{net_forward.7} parent=5 // pred_check_branch
        %210 = sbr.rel (%p208) target = $region28
      $region27: #{net_forward.7} parent=5 // pred_region
        // Predicated region
        $region29: #{net_forward.7} parent=27 // pred_check
          %p211 = pneg %p54
        $region30: #{net_forward.7} parent=27 // pred_check_branch
          %213 = sbr.rel (%p211) target = $region32
        $region31: #{net_forward.7} parent=27 // pred_region
          %s214 = sand.u32 %s44, 1
          %s215 = scalar_lea.sflag [#allocation4], %s214
          %s216 = sand.u32 %s44, 1
          %s217 = smul.addr %s216, 256
          %s218 = scalar_lea.vmem [#allocation3], %s217
          %s219 = smul.u32 64, %s20
          %221 = vsyncadd %s215, 0
          %s222 = sadd.s32 %s22, %s219
          %s223 = smul.addr %s222, 4
          %s224 = scalar_lea.hbm %s0, %s223
          %s225 = sshll.u32 %s224, 4
          %s226 = int_to_ptr.hbm [resolvable:$true] %s225
          %s227 = sshll.u32 %s218, 4
          %s228 = int_to_ptr.vmem [resolvable:$true] %s227
          %233 = dma.hbm_to_vmem [thread:$0]  %s226, 4096, %s228, %s215, 64, 64, 4
        $region32: #{net_forward.7} parent=27 // pred_fallthru
          _
      $region28: #{net_forward.7} parent=5 // pred_fallthru
        _
      %p234 = scmp.le.s32.totalorder 1, %s13
      %p235 = scmp.lt.s32.totalorder %s13, 626
      %p236 = pnand %p234, %p235
      %p237 = pneg %p236
      // Predicated region
      $region33: #{net_forward.7} parent=5 // pred_check
        _
      $region34: #{net_forward.7} parent=5 // pred_check_branch
        %239 = sbr.rel (%p236) target = $region36
      $region35: #{net_forward.7} parent=5 // pred_region
        %s240 = ssub.s32 %s13, 1
        %s241 = sand.u32 %s47, 1
        %s242 = scalar_lea.sflag [#allocation4], %s241
        %s243 = sand.u32 %s47, 1
        %s244 = smul.addr %s243, 256
        %s245 = scalar_lea.vmem [#allocation3], %s244
        // Predicated region
        $region37: #{net_forward.7} parent=35 // pred_check
          %p246 = pneg %p60
        $region38: #{net_forward.7} parent=35 // pred_check_branch
          %248 = sbr.rel (%p246) target = $region40
        $region39: #{net_forward.7} parent=35 // pred_region
          %250 = dma.done %s242, 4096
        $region40: #{net_forward.7} parent=35 // pred_fallthru
          _
        %s251 = sand.u32 %s47, 1
        %s252 = scalar_lea.sflag [#allocation4], %s251
        %s253 = sand.u32 %s47, 1
        %s254 = smul.addr %s253, 256
        %s255 = scalar_lea.vmem [#allocation3], %s254
        %p256 = pneg %p60
        %p257 = pneg %p57
        %s258 = smul.u32 16, %s25
        %p259 = scmp.lt.s32.totalorder %s258, 15
        %s260 = scalar_select %p259, %s258, 15
        %p261 = scmp.lt.s32.totalorder %s24, 0
        %s262 = scalar_select %p261, %s24, 0
        %s263 = sadd.s32 %s262, %s260
        %s264 = smul.addr %s263, 4
        %s265 = scalar_lea.vmem %s1, %s264
        %p266 = pneg %p88
        %p267 = pneg %p85
        %p268 = scmp.lt.s32.totalorder %s24, 0
        %s269 = scalar_select %p268, %s24, 0
        %s270 = scalar_lea.vmem %s2, %s269
        %p271 = pneg %p114
        %p272 = pneg %p111
        %p273 = scmp.lt.s32.totalorder %s24, 0
        %s274 = scalar_select %p273, %s24, 0
        %s275 = scalar_lea.vmem %s3, %s274
        %p276 = pneg %p140
        %p277 = pneg %p137
        %p278 = pneg %p168
        %p279 = pneg %p165
        %s280 = smul.u32 64, %s23
        %p281 = scmp.lt.s32.totalorder %s280, 39999
        %s282 = scalar_select %p281, %s280, 39999
        %p283 = scmp.lt.s32.totalorder %s24, 0
        %s284 = scalar_select %p283, %s24, 0
        %s285 = sadd.s32 %s284, %s282
        %s286 = smul.addr %s285, 4
        %s287 = scalar_lea.vmem %s4, %s286
        %s288 = smul.u32 64, %s23
        %s289 = smul.u32 16, %s25
        %p290 = scmp.lt.s32.totalorder %s289, 15
        %s291 = scalar_select %p290, %s289, 15
        %p292 = scmp.lt.s32.totalorder %s24, 0
        %s293 = scalar_select %p292, %s24, 0
        %s294 = sadd.s32 %s293, %s291
        %s295 = smul.addr %s294, 4
        %s296 = scalar_lea.vmem %s1, %s295
        %s297 = smul.u32 16, %s25
        %p298 = scmp.lt.s32.totalorder %s24, 0
        %s299 = scalar_select %p298, %s24, 0
        %s300 = scalar_lea.vmem %s2, %s299
        %p301 = scmp.lt.s32.totalorder %s24, 0
        %s302 = scalar_select %p301, %s24, 0
        %s303 = scalar_lea.vmem %s3, %s302
        %s304 = smul.u32 64, %s23
        %p305 = scmp.lt.s32.totalorder %s304, 39999
        %s306 = scalar_select %p305, %s304, 39999
        %p307 = scmp.lt.s32.totalorder %s24, 0
        %s308 = scalar_select %p307, %s24, 0
        %s309 = sadd.s32 %s308, %s306
        %s310 = smul.addr %s309, 4
        %s311 = scalar_lea.vmem %s4, %s310
        %s312 = smul.u32 64, %s23
        %p313 = scmp.eq.s32.totalorder %s25, 0
        // Predicated region
        $region41: #{net_forward.7} parent=35 // pred_check
          %p314 = pneg %p313
        $region42: #{net_forward.7} parent=35 // pred_check_branch
          %316 = sbr.rel (%p314) target = $region44
        $region43: #{net_forward.7} parent=35 // pred_region
          %317 = vst [vmem:[#allocation2] sm:$0xff] 0.0
          %318 = vst [vmem:[#allocation2 + $0x8] sm:$0xff] 0.0
          %319 = vst [vmem:[#allocation2 + $0x10] sm:$0xff] 0.0
          %320 = vst [vmem:[#allocation2 + $0x18] sm:$0xff] 0.0
          %321 = vst [vmem:[#allocation2 + $0x20] sm:$0xff] 0.0
          %322 = vst [vmem:[#allocation2 + $0x28] sm:$0xff] 0.0
          %323 = vst [vmem:[#allocation2 + $0x30] sm:$0xff] 0.0
          %324 = vst [vmem:[#allocation2 + $0x38] sm:$0xff] 0.0
          %325 = vst [vmem:[#allocation2 + $0x40] sm:$0xff] 0.0
          %326 = vst [vmem:[#allocation2 + $0x48] sm:$0xff] 0.0
          %327 = vst [vmem:[#allocation2 + $0x50] sm:$0xff] 0.0
          %328 = vst [vmem:[#allocation2 + $0x58] sm:$0xff] 0.0
          %329 = vst [vmem:[#allocation2 + $0x60] sm:$0xff] 0.0
          %330 = vst [vmem:[#allocation2 + $0x68] sm:$0xff] 0.0
          %331 = vst [vmem:[#allocation2 + $0x70] sm:$0xff] 0.0
          %332 = vst [vmem:[#allocation2 + $0x78] sm:$0xff] 0.0
          %333 = vst [vmem:[#allocation2 + $0x80] sm:$0xff] 0.0
          %334 = vst [vmem:[#allocation2 + $0x88] sm:$0xff] 0.0
          %335 = vst [vmem:[#allocation2 + $0x90] sm:$0xff] 0.0
          %336 = vst [vmem:[#allocation2 + $0x98] sm:$0xff] 0.0
          %337 = vst [vmem:[#allocation2 + $0xa0] sm:$0xff] 0.0
          %338 = vst [vmem:[#allocation2 + $0xa8] sm:$0xff] 0.0
          %339 = vst [vmem:[#allocation2 + $0xb0] sm:$0xff] 0.0
          %340 = vst [vmem:[#allocation2 + $0xb8] sm:$0xff] 0.0
          %341 = vst [vmem:[#allocation2 + $0xc0] sm:$0xff] 0.0
          %342 = vst [vmem:[#allocation2 + $0xc8] sm:$0xff] 0.0
          %343 = vst [vmem:[#allocation2 + $0xd0] sm:$0xff] 0.0
          %344 = vst [vmem:[#allocation2 + $0xd8] sm:$0xff] 0.0
          %345 = vst [vmem:[#allocation2 + $0xe0] sm:$0xff] 0.0
          %346 = vst [vmem:[#allocation2 + $0xe8] sm:$0xff] 0.0
          %347 = vst [vmem:[#allocation2 + $0xf0] sm:$0xff] 0.0
          %348 = vst [vmem:[#allocation2 + $0xf8] sm:$0xff] 0.0
          %349 = vst [vmem:[#allocation2 + $0x100] sm:$0xff] 0.0
          %350 = vst [vmem:[#allocation2 + $0x108] sm:$0xff] 0.0
          %351 = vst [vmem:[#allocation2 + $0x110] sm:$0xff] 0.0
          %352 = vst [vmem:[#allocation2 + $0x118] sm:$0xff] 0.0
          %353 = vst [vmem:[#allocation2 + $0x120] sm:$0xff] 0.0
          %354 = vst [vmem:[#allocation2 + $0x128] sm:$0xff] 0.0
          %355 = vst [vmem:[#allocation2 + $0x130] sm:$0xff] 0.0
          %356 = vst [vmem:[#allocation2 + $0x138] sm:$0xff] 0.0
          %357 = vst [vmem:[#allocation2 + $0x140] sm:$0xff] 0.0
          %358 = vst [vmem:[#allocation2 + $0x148] sm:$0xff] 0.0
          %359 = vst [vmem:[#allocation2 + $0x150] sm:$0xff] 0.0
          %360 = vst [vmem:[#allocation2 + $0x158] sm:$0xff] 0.0
          %361 = vst [vmem:[#allocation2 + $0x160] sm:$0xff] 0.0
          %362 = vst [vmem:[#allocation2 + $0x168] sm:$0xff] 0.0
          %363 = vst [vmem:[#allocation2 + $0x170] sm:$0xff] 0.0
          %364 = vst [vmem:[#allocation2 + $0x178] sm:$0xff] 0.0
          %365 = vst [vmem:[#allocation2 + $0x180] sm:$0xff] 0.0
          %366 = vst [vmem:[#allocation2 + $0x188] sm:$0xff] 0.0
          %367 = vst [vmem:[#allocation2 + $0x190] sm:$0xff] 0.0
          %368 = vst [vmem:[#allocation2 + $0x198] sm:$0xff] 0.0
          %369 = vst [vmem:[#allocation2 + $0x1a0] sm:$0xff] 0.0
          %370 = vst [vmem:[#allocation2 + $0x1a8] sm:$0xff] 0.0
          %371 = vst [vmem:[#allocation2 + $0x1b0] sm:$0xff] 0.0
          %372 = vst [vmem:[#allocation2 + $0x1b8] sm:$0xff] 0.0
          %373 = vst [vmem:[#allocation2 + $0x1c0] sm:$0xff] 0.0
          %374 = vst [vmem:[#allocation2 + $0x1c8] sm:$0xff] 0.0
          %375 = vst [vmem:[#allocation2 + $0x1d0] sm:$0xff] 0.0
          %376 = vst [vmem:[#allocation2 + $0x1d8] sm:$0xff] 0.0
          %377 = vst [vmem:[#allocation2 + $0x1e0] sm:$0xff] 0.0
          %378 = vst [vmem:[#allocation2 + $0x1e8] sm:$0xff] 0.0
          %379 = vst [vmem:[#allocation2 + $0x1f0] sm:$0xff] 0.0
          %380 = vst [vmem:[#allocation2 + $0x1f8] sm:$0xff] 0.0
        $region44: #{net_forward.7} parent=35 // pred_fallthru
          _
        %v381 = vld [vmem:[#allocation2] sm:$0xff]
        %v382 = vld [vmem:[#allocation2 + $0x8] sm:$0xff]
        %v383 = vld [vmem:[#allocation2 + $0x10] sm:$0xff]
        %v384 = vld [vmem:[#allocation2 + $0x18] sm:$0xff]
        %v385 = vld [vmem:[#allocation2 + $0x20] sm:$0xff]
        %v386 = vld [vmem:[#allocation2 + $0x28] sm:$0xff]
        %v387 = vld [vmem:[#allocation2 + $0x30] sm:$0xff]
        %v388 = vld [vmem:[#allocation2 + $0x38] sm:$0xff]
        %v389 = vld [vmem:[#allocation2 + $0x40] sm:$0xff]
        %v390 = vld [vmem:[#allocation2 + $0x48] sm:$0xff]
        %v391 = vld [vmem:[#allocation2 + $0x50] sm:$0xff]
        %v392 = vld [vmem:[#allocation2 + $0x58] sm:$0xff]
        %v393 = vld [vmem:[#allocation2 + $0x60] sm:$0xff]
        %v394 = vld [vmem:[#allocation2 + $0x68] sm:$0xff]
        %v395 = vld [vmem:[#allocation2 + $0x70] sm:$0xff]
        %v396 = vld [vmem:[#allocation2 + $0x78] sm:$0xff]
        %v397 = vld [vmem:[#allocation2 + $0x80] sm:$0xff]
        %v398 = vld [vmem:[#allocation2 + $0x88] sm:$0xff]
        %v399 = vld [vmem:[#allocation2 + $0x90] sm:$0xff]
        %v400 = vld [vmem:[#allocation2 + $0x98] sm:$0xff]
        %v401 = vld [vmem:[#allocation2 + $0xa0] sm:$0xff]
        %v402 = vld [vmem:[#allocation2 + $0xa8] sm:$0xff]
        %v403 = vld [vmem:[#allocation2 + $0xb0] sm:$0xff]
        %v404 = vld [vmem:[#allocation2 + $0xb8] sm:$0xff]
        %v405 = vld [vmem:[#allocation2 + $0xc0] sm:$0xff]
        %v406 = vld [vmem:[#allocation2 + $0xc8] sm:$0xff]
        %v407 = vld [vmem:[#allocation2 + $0xd0] sm:$0xff]
        %v408 = vld [vmem:[#allocation2 + $0xd8] sm:$0xff]
        %v409 = vld [vmem:[#allocation2 + $0xe0] sm:$0xff]
        %v410 = vld [vmem:[#allocation2 + $0xe8] sm:$0xff]
        %v411 = vld [vmem:[#allocation2 + $0xf0] sm:$0xff]
        %v412 = vld [vmem:[#allocation2 + $0xf8] sm:$0xff]
        %v413 = vld [vmem:[#allocation2 + $0x100] sm:$0xff]
        %v414 = vld [vmem:[#allocation2 + $0x108] sm:$0xff]
        %v415 = vld [vmem:[#allocation2 + $0x110] sm:$0xff]
        %v416 = vld [vmem:[#allocation2 + $0x118] sm:$0xff]
        %v417 = vld [vmem:[#allocation2 + $0x120] sm:$0xff]
        %v418 = vld [vmem:[#allocation2 + $0x128] sm:$0xff]
        %v419 = vld [vmem:[#allocation2 + $0x130] sm:$0xff]
        %v420 = vld [vmem:[#allocation2 + $0x138] sm:$0xff]
        %v421 = vld [vmem:[#allocation2 + $0x140] sm:$0xff]
        %v422 = vld [vmem:[#allocation2 + $0x148] sm:$0xff]
        %v423 = vld [vmem:[#allocation2 + $0x150] sm:$0xff]
        %v424 = vld [vmem:[#allocation2 + $0x158] sm:$0xff]
        %v425 = vld [vmem:[#allocation2 + $0x160] sm:$0xff]
        %v426 = vld [vmem:[#allocation2 + $0x168] sm:$0xff]
        %v427 = vld [vmem:[#allocation2 + $0x170] sm:$0xff]
        %v428 = vld [vmem:[#allocation2 + $0x178] sm:$0xff]
        %v429 = vld [vmem:[#allocation2 + $0x180] sm:$0xff]
        %v430 = vld [vmem:[#allocation2 + $0x188] sm:$0xff]
        %v431 = vld [vmem:[#allocation2 + $0x190] sm:$0xff]
        %v432 = vld [vmem:[#allocation2 + $0x198] sm:$0xff]
        %v433 = vld [vmem:[#allocation2 + $0x1a0] sm:$0xff]
        %v434 = vld [vmem:[#allocation2 + $0x1a8] sm:$0xff]
        %v435 = vld [vmem:[#allocation2 + $0x1b0] sm:$0xff]
        %v436 = vld [vmem:[#allocation2 + $0x1b8] sm:$0xff]
        %v437 = vld [vmem:[#allocation2 + $0x1c0] sm:$0xff]
        %v438 = vld [vmem:[#allocation2 + $0x1c8] sm:$0xff]
        %v439 = vld [vmem:[#allocation2 + $0x1d0] sm:$0xff]
        %v440 = vld [vmem:[#allocation2 + $0x1d8] sm:$0xff]
        %v441 = vld [vmem:[#allocation2 + $0x1e0] sm:$0xff]
        %v442 = vld [vmem:[#allocation2 + $0x1e8] sm:$0xff]
        %v443 = vld [vmem:[#allocation2 + $0x1f0] sm:$0xff]
        %v444 = vld [vmem:[#allocation2 + $0x1f8] sm:$0xff]
        %v445 = vld [vmem:[%s245] sm:$0xf]
        %v446 = vld [vmem:[%s245 + $0x4] sm:$0xf]
        %v447 = vld [vmem:[%s245 + $0x8] sm:$0xf]
        %v448 = vld [vmem:[%s245 + $0xc] sm:$0xf]
        %v449 = vld [vmem:[%s245 + $0x10] sm:$0xf]
        %v450 = vld [vmem:[%s245 + $0x14] sm:$0xf]
        %v451 = vld [vmem:[%s245 + $0x18] sm:$0xf]
        %v452 = vld [vmem:[%s245 + $0x1c] sm:$0xf]
        %v453 = vld [vmem:[%s245 + $0x20] sm:$0xf]
        %v454 = vld [vmem:[%s245 + $0x24] sm:$0xf]
        %v455 = vld [vmem:[%s245 + $0x28] sm:$0xf]
        %v456 = vld [vmem:[%s245 + $0x2c] sm:$0xf]
        %v457 = vld [vmem:[%s245 + $0x30] sm:$0xf]
        %v458 = vld [vmem:[%s245 + $0x34] sm:$0xf]
        %v459 = vld [vmem:[%s245 + $0x38] sm:$0xf]
        %v460 = vld [vmem:[%s245 + $0x3c] sm:$0xf]
        %v461 = vld [vmem:[%s245 + $0x40] sm:$0xf]
        %v462 = vld [vmem:[%s245 + $0x44] sm:$0xf]
        %v463 = vld [vmem:[%s245 + $0x48] sm:$0xf]
        %v464 = vld [vmem:[%s245 + $0x4c] sm:$0xf]
        %v465 = vld [vmem:[%s245 + $0x50] sm:$0xf]
        %v466 = vld [vmem:[%s245 + $0x54] sm:$0xf]
        %v467 = vld [vmem:[%s245 + $0x58] sm:$0xf]
        %v468 = vld [vmem:[%s245 + $0x5c] sm:$0xf]
        %v469 = vld [vmem:[%s245 + $0x60] sm:$0xf]
        %v470 = vld [vmem:[%s245 + $0x64] sm:$0xf]
        %v471 = vld [vmem:[%s245 + $0x68] sm:$0xf]
        %v472 = vld [vmem:[%s245 + $0x6c] sm:$0xf]
        %v473 = vld [vmem:[%s245 + $0x70] sm:$0xf]
        %v474 = vld [vmem:[%s245 + $0x74] sm:$0xf]
        %v475 = vld [vmem:[%s245 + $0x78] sm:$0xf]
        %v476 = vld [vmem:[%s245 + $0x7c] sm:$0xf]
        %v477 = vld [vmem:[%s245 + $0x80] sm:$0xf]
        %v478 = vld [vmem:[%s245 + $0x84] sm:$0xf]
        %v479 = vld [vmem:[%s245 + $0x88] sm:$0xf]
        %v480 = vld [vmem:[%s245 + $0x8c] sm:$0xf]
        %v481 = vld [vmem:[%s245 + $0x90] sm:$0xf]
        %v482 = vld [vmem:[%s245 + $0x94] sm:$0xf]
        %v483 = vld [vmem:[%s245 + $0x98] sm:$0xf]
        %v484 = vld [vmem:[%s245 + $0x9c] sm:$0xf]
        %v485 = vld [vmem:[%s245 + $0xa0] sm:$0xf]
        %v486 = vld [vmem:[%s245 + $0xa4] sm:$0xf]
        %v487 = vld [vmem:[%s245 + $0xa8] sm:$0xf]
        %v488 = vld [vmem:[%s245 + $0xac] sm:$0xf]
        %v489 = vld [vmem:[%s245 + $0xb0] sm:$0xf]
        %v490 = vld [vmem:[%s245 + $0xb4] sm:$0xf]
        %v491 = vld [vmem:[%s245 + $0xb8] sm:$0xf]
        %v492 = vld [vmem:[%s245 + $0xbc] sm:$0xf]
        %v493 = vld [vmem:[%s245 + $0xc0] sm:$0xf]
        %v494 = vld [vmem:[%s245 + $0xc4] sm:$0xf]
        %v495 = vld [vmem:[%s245 + $0xc8] sm:$0xf]
        %v496 = vld [vmem:[%s245 + $0xcc] sm:$0xf]
        %v497 = vld [vmem:[%s245 + $0xd0] sm:$0xf]
        %v498 = vld [vmem:[%s245 + $0xd4] sm:$0xf]
        %v499 = vld [vmem:[%s245 + $0xd8] sm:$0xf]
        %v500 = vld [vmem:[%s245 + $0xdc] sm:$0xf]
        %v501 = vld [vmem:[%s245 + $0xe0] sm:$0xf]
        %v502 = vld [vmem:[%s245 + $0xe4] sm:$0xf]
        %v503 = vld [vmem:[%s245 + $0xe8] sm:$0xf]
        %v504 = vld [vmem:[%s245 + $0xec] sm:$0xf]
        %v505 = vld [vmem:[%s245 + $0xf0] sm:$0xf]
        %v506 = vld [vmem:[%s245 + $0xf4] sm:$0xf]
        %v507 = vld [vmem:[%s245 + $0xf8] sm:$0xf]
        %v508 = vld [vmem:[%s245 + $0xfc] sm:$0xf]
        %v509 = vld [vmem:[%s296] sm:$0xf]
        %v510 = vld [vmem:[%s296 + $0x4] sm:$0xf]
        %v511 = vld [vmem:[%s296 + $0x8] sm:$0xf]
        %v512 = vld [vmem:[%s296 + $0xc] sm:$0xf]
        %v513 = vld [vmem:[%s296 + $0x10] sm:$0xf]
        %v514 = vld [vmem:[%s296 + $0x14] sm:$0xf]
        %v515 = vld [vmem:[%s296 + $0x18] sm:$0xf]
        %v516 = vld [vmem:[%s296 + $0x1c] sm:$0xf]
        %v517 = vld [vmem:[%s296 + $0x20] sm:$0xf]
        %v518 = vld [vmem:[%s296 + $0x24] sm:$0xf]
        %v519 = vld [vmem:[%s296 + $0x28] sm:$0xf]
        %v520 = vld [vmem:[%s296 + $0x2c] sm:$0xf]
        %v521 = vld [vmem:[%s296 + $0x30] sm:$0xf]
        %v522 = vld [vmem:[%s296 + $0x34] sm:$0xf]
        %v523 = vld [vmem:[%s296 + $0x38] sm:$0xf]
        %v524 = vld [vmem:[%s296 + $0x3c] sm:$0xf]
        %v589 = vunpack.c.l.b16 %v445
        %v590 = vunpack.c.l.b16 %v446
        %v591 = vunpack.c.l.b16 %v447
        %v592 = vunpack.c.l.b16 %v448
        %v593 = vunpack.c.l.b16 %v449
        %v594 = vunpack.c.l.b16 %v450
        %v595 = vunpack.c.l.b16 %v451
        %v596 = vunpack.c.l.b16 %v452
        %v597 = vunpack.c.l.b16 %v453
        %v598 = vunpack.c.l.b16 %v454
        %v599 = vunpack.c.l.b16 %v455
        %v600 = vunpack.c.l.b16 %v456
        %v601 = vunpack.c.l.b16 %v457
        %v602 = vunpack.c.l.b16 %v458
        %v603 = vunpack.c.l.b16 %v459
        %v604 = vunpack.c.l.b16 %v460
        %v605 = vunpack.c.l.b16 %v461
        %v606 = vunpack.c.l.b16 %v462
        %v607 = vunpack.c.l.b16 %v463
        %v608 = vunpack.c.l.b16 %v464
        %v609 = vunpack.c.l.b16 %v465
        %v610 = vunpack.c.l.b16 %v466
        %v611 = vunpack.c.l.b16 %v467
        %v612 = vunpack.c.l.b16 %v468
        %v613 = vunpack.c.l.b16 %v469
        %v614 = vunpack.c.l.b16 %v470
        %v615 = vunpack.c.l.b16 %v471
        %v616 = vunpack.c.l.b16 %v472
        %v617 = vunpack.c.l.b16 %v473
        %v618 = vunpack.c.l.b16 %v474
        %v619 = vunpack.c.l.b16 %v475
        %v620 = vunpack.c.l.b16 %v476
        %v621 = vunpack.c.l.b16 %v477
        %v622 = vunpack.c.l.b16 %v478
        %v623 = vunpack.c.l.b16 %v479
        %v624 = vunpack.c.l.b16 %v480
        %v625 = vunpack.c.l.b16 %v481
        %v626 = vunpack.c.l.b16 %v482
        %v627 = vunpack.c.l.b16 %v483
        %v628 = vunpack.c.l.b16 %v484
        %v629 = vunpack.c.l.b16 %v485
        %v630 = vunpack.c.l.b16 %v486
        %v631 = vunpack.c.l.b16 %v487
        %v632 = vunpack.c.l.b16 %v488
        %v633 = vunpack.c.l.b16 %v489
        %v634 = vunpack.c.l.b16 %v490
        %v635 = vunpack.c.l.b16 %v491
        %v636 = vunpack.c.l.b16 %v492
        %v637 = vunpack.c.l.b16 %v493
        %v638 = vunpack.c.l.b16 %v494
        %v639 = vunpack.c.l.b16 %v495
        %v640 = vunpack.c.l.b16 %v496
        %v641 = vunpack.c.l.b16 %v497
        %v642 = vunpack.c.l.b16 %v498
        %v643 = vunpack.c.l.b16 %v499
        %v644 = vunpack.c.l.b16 %v500
        %v645 = vunpack.c.l.b16 %v501
        %v646 = vunpack.c.l.b16 %v502
        %v647 = vunpack.c.l.b16 %v503
        %v648 = vunpack.c.l.b16 %v504
        %v649 = vunpack.c.l.b16 %v505
        %v650 = vunpack.c.l.b16 %v506
        %v651 = vunpack.c.l.b16 %v507
        %v652 = vunpack.c.l.b16 %v508
        %v653 = vpack.c.b16 %v590, %v589
        %v654 = vpack.c.b16 %v592, %v591
        %v655 = vpack.c.b16 %v594, %v593
        %v656 = vpack.c.b16 %v596, %v595
        %v657 = vpack.c.b16 %v598, %v597
        %v658 = vpack.c.b16 %v600, %v599
        %v659 = vpack.c.b16 %v602, %v601
        %v660 = vpack.c.b16 %v604, %v603
        %v661 = vpack.c.b16 %v606, %v605
        %v662 = vpack.c.b16 %v608, %v607
        %v663 = vpack.c.b16 %v610, %v609
        %v664 = vpack.c.b16 %v612, %v611
        %v665 = vpack.c.b16 %v614, %v613
        %v666 = vpack.c.b16 %v616, %v615
        %v667 = vpack.c.b16 %v618, %v617
        %v668 = vpack.c.b16 %v620, %v619
        %v669 = vpack.c.b16 %v622, %v621
        %v670 = vpack.c.b16 %v624, %v623
        %v671 = vpack.c.b16 %v626, %v625
        %v672 = vpack.c.b16 %v628, %v627
        %v673 = vpack.c.b16 %v630, %v629
        %v674 = vpack.c.b16 %v632, %v631
        %v675 = vpack.c.b16 %v634, %v633
        %v676 = vpack.c.b16 %v636, %v635
        %v677 = vpack.c.b16 %v638, %v637
        %v678 = vpack.c.b16 %v640, %v639
        %v679 = vpack.c.b16 %v642, %v641
        %v680 = vpack.c.b16 %v644, %v643
        %v681 = vpack.c.b16 %v646, %v645
        %v682 = vpack.c.b16 %v648, %v647
        %v683 = vpack.c.b16 %v650, %v649
        %v684 = vpack.c.b16 %v652, %v651
        %v733 = vunpack.c.l.b16 %v509
        %v734 = vunpack.c.l.b16 %v510
        %v735 = vunpack.c.l.b16 %v511
        %v736 = vunpack.c.l.b16 %v512
        %v737 = vunpack.c.l.b16 %v513
        %v738 = vunpack.c.l.b16 %v514
        %v739 = vunpack.c.l.b16 %v515
        %v740 = vunpack.c.l.b16 %v516
        %v741 = vunpack.c.l.b16 %v517
        %v742 = vunpack.c.l.b16 %v518
        %v743 = vunpack.c.l.b16 %v519
        %v744 = vunpack.c.l.b16 %v520
        %v745 = vunpack.c.l.b16 %v521
        %v746 = vunpack.c.l.b16 %v522
        %v747 = vunpack.c.l.b16 %v523
        %v748 = vunpack.c.l.b16 %v524
        %v749 = vpack.c.b16 %v734, %v733
        %v750 = vpack.c.b16 %v736, %v735
        %v751 = vpack.c.b16 %v738, %v737
        %v752 = vpack.c.b16 %v740, %v739
        %v753 = vpack.c.b16 %v742, %v741
        %v754 = vpack.c.b16 %v744, %v743
        %v755 = vpack.c.b16 %v746, %v745
        %v756 = vpack.c.b16 %v748, %v747
        %765 = vmatpush.bf16.msra.mxu0 %v756
        %766 = vmatpush.bf16.msra.mxu0 %v755
        %767 = vmatpush.bf16.msra.mxu0 %v754
        %768 = vmatpush.bf16.msra.mxu0 %v753
        %769 = vmatpush.bf16.msra.mxu0 %v752
        %770 = vmatpush.bf16.msra.mxu0 %v751
        %771 = vmatpush.bf16.msra.mxu0 %v750
        %772 = vmatpush.bf16.msra.mxu0 %v749
        %773 = vmatmul.bf16.gmra.mxu0 %v653
        %v774 = vpop.f32.mrf.mxu0
        %v775 = vadd.f32 0.0, %v774
        %v776 = vpop.f32.mrf.mxu0
        %v777 = vadd.f32 0.0, %v776
        %778 = vmatmul.bf16.gmra.mxu0 %v654
        %v779 = vpop.f32.mrf.mxu0
        %v780 = vadd.f32 0.0, %v779
        %v781 = vpop.f32.mrf.mxu0
        %v782 = vadd.f32 0.0, %v781
        %783 = vmatmul.bf16.gmra.mxu0 %v655
        %v784 = vpop.f32.mrf.mxu0
        %v785 = vadd.f32 0.0, %v784
        %v786 = vpop.f32.mrf.mxu0
        %v787 = vadd.f32 0.0, %v786
        %788 = vmatmul.bf16.gmra.mxu0 %v656
        %v789 = vpop.f32.mrf.mxu0
        %v790 = vadd.f32 0.0, %v789
        %v791 = vpop.f32.mrf.mxu0
        %v792 = vadd.f32 0.0, %v791
        %793 = vmatmul.bf16.gmra.mxu0 %v657
        %v794 = vpop.f32.mrf.mxu0
        %v795 = vadd.f32 0.0, %v794
        %v796 = vpop.f32.mrf.mxu0
        %v797 = vadd.f32 0.0, %v796
        %798 = vmatmul.bf16.gmra.mxu0 %v658
        %v799 = vpop.f32.mrf.mxu0
        %v800 = vadd.f32 0.0, %v799
        %v801 = vpop.f32.mrf.mxu0
        %v802 = vadd.f32 0.0, %v801
        %803 = vmatmul.bf16.gmra.mxu0 %v659
        %v804 = vpop.f32.mrf.mxu0
        %v805 = vadd.f32 0.0, %v804
        %v806 = vpop.f32.mrf.mxu0
        %v807 = vadd.f32 0.0, %v806
        %808 = vmatmul.bf16.gmra.mxu0 %v660
        %v809 = vpop.f32.mrf.mxu0
        %v810 = vadd.f32 0.0, %v809
        %v811 = vpop.f32.mrf.mxu0
        %v812 = vadd.f32 0.0, %v811
        %813 = vmatmul.bf16.gmra.mxu0 %v661
        %v814 = vpop.f32.mrf.mxu0
        %v815 = vadd.f32 0.0, %v814
        %v816 = vpop.f32.mrf.mxu0
        %v817 = vadd.f32 0.0, %v816
        %818 = vmatmul.bf16.gmra.mxu0 %v662
        %v819 = vpop.f32.mrf.mxu0
        %v820 = vadd.f32 0.0, %v819
        %v821 = vpop.f32.mrf.mxu0
        %v822 = vadd.f32 0.0, %v821
        %823 = vmatmul.bf16.gmra.mxu0 %v663
        %v824 = vpop.f32.mrf.mxu0
        %v825 = vadd.f32 0.0, %v824
        %v826 = vpop.f32.mrf.mxu0
        %v827 = vadd.f32 0.0, %v826
        %828 = vmatmul.bf16.gmra.mxu0 %v664
        %v829 = vpop.f32.mrf.mxu0
        %v830 = vadd.f32 0.0, %v829
        %v831 = vpop.f32.mrf.mxu0
        %v832 = vadd.f32 0.0, %v831
        %833 = vmatmul.bf16.gmra.mxu0 %v665
        %v834 = vpop.f32.mrf.mxu0
        %v835 = vadd.f32 0.0, %v834
        %v836 = vpop.f32.mrf.mxu0
        %v837 = vadd.f32 0.0, %v836
        %838 = vmatmul.bf16.gmra.mxu0 %v666
        %v839 = vpop.f32.mrf.mxu0
        %v840 = vadd.f32 0.0, %v839
        %v841 = vpop.f32.mrf.mxu0
        %v842 = vadd.f32 0.0, %v841
        %843 = vmatmul.bf16.gmra.mxu0 %v667
        %v844 = vpop.f32.mrf.mxu0
        %v845 = vadd.f32 0.0, %v844
        %v846 = vpop.f32.mrf.mxu0
        %v847 = vadd.f32 0.0, %v846
        %848 = vmatmul.bf16.gmra.mxu0 %v668
        %v849 = vpop.f32.mrf.mxu0
        %v850 = vadd.f32 0.0, %v849
        %v851 = vpop.f32.mrf.mxu0
        %v852 = vadd.f32 0.0, %v851
        %853 = vmatmul.bf16.gmra.mxu0 %v669
        %v854 = vpop.f32.mrf.mxu0
        %v855 = vadd.f32 0.0, %v854
        %v856 = vpop.f32.mrf.mxu0
        %v857 = vadd.f32 0.0, %v856
        %858 = vmatmul.bf16.gmra.mxu0 %v670
        %v859 = vpop.f32.mrf.mxu0
        %v860 = vadd.f32 0.0, %v859
        %v861 = vpop.f32.mrf.mxu0
        %v862 = vadd.f32 0.0, %v861
        %863 = vmatmul.bf16.gmra.mxu0 %v671
        %v864 = vpop.f32.mrf.mxu0
        %v865 = vadd.f32 0.0, %v864
        %v866 = vpop.f32.mrf.mxu0
        %v867 = vadd.f32 0.0, %v866
        %868 = vmatmul.bf16.gmra.mxu0 %v672
        %v869 = vpop.f32.mrf.mxu0
        %v870 = vadd.f32 0.0, %v869
        %v871 = vpop.f32.mrf.mxu0
        %v872 = vadd.f32 0.0, %v871
        %873 = vmatmul.bf16.gmra.mxu0 %v673
        %v874 = vpop.f32.mrf.mxu0
        %v875 = vadd.f32 0.0, %v874
        %v876 = vpop.f32.mrf.mxu0
        %v877 = vadd.f32 0.0, %v876
        %878 = vmatmul.bf16.gmra.mxu0 %v674
        %v879 = vpop.f32.mrf.mxu0
        %v880 = vadd.f32 0.0, %v879
        %v881 = vpop.f32.mrf.mxu0
        %v882 = vadd.f32 0.0, %v881
        %883 = vmatmul.bf16.gmra.mxu0 %v675
        %v884 = vpop.f32.mrf.mxu0
        %v885 = vadd.f32 0.0, %v884
        %v886 = vpop.f32.mrf.mxu0
        %v887 = vadd.f32 0.0, %v886
        %888 = vmatmul.bf16.gmra.mxu0 %v676
        %v889 = vpop.f32.mrf.mxu0
        %v890 = vadd.f32 0.0, %v889
        %v891 = vpop.f32.mrf.mxu0
        %v892 = vadd.f32 0.0, %v891
        %893 = vmatmul.bf16.gmra.mxu0 %v677
        %v894 = vpop.f32.mrf.mxu0
        %v895 = vadd.f32 0.0, %v894
        %v896 = vpop.f32.mrf.mxu0
        %v897 = vadd.f32 0.0, %v896
        %898 = vmatmul.bf16.gmra.mxu0 %v678
        %v899 = vpop.f32.mrf.mxu0
        %v900 = vadd.f32 0.0, %v899
        %v901 = vpop.f32.mrf.mxu0
        %v902 = vadd.f32 0.0, %v901
        %903 = vmatmul.bf16.gmra.mxu0 %v679
        %v904 = vpop.f32.mrf.mxu0
        %v905 = vadd.f32 0.0, %v904
        %v906 = vpop.f32.mrf.mxu0
        %v907 = vadd.f32 0.0, %v906
        %908 = vmatmul.bf16.gmra.mxu0 %v680
        %v909 = vpop.f32.mrf.mxu0
        %v910 = vadd.f32 0.0, %v909
        %v911 = vpop.f32.mrf.mxu0
        %v912 = vadd.f32 0.0, %v911
        %913 = vmatmul.bf16.gmra.mxu0 %v681
        %v914 = vpop.f32.mrf.mxu0
        %v915 = vadd.f32 0.0, %v914
        %v916 = vpop.f32.mrf.mxu0
        %v917 = vadd.f32 0.0, %v916
        %918 = vmatmul.bf16.gmra.mxu0 %v682
        %v919 = vpop.f32.mrf.mxu0
        %v920 = vadd.f32 0.0, %v919
        %v921 = vpop.f32.mrf.mxu0
        %v922 = vadd.f32 0.0, %v921
        %923 = vmatmul.bf16.gmra.mxu0 %v683
        %v924 = vpop.f32.mrf.mxu0
        %v925 = vadd.f32 0.0, %v924
        %v926 = vpop.f32.mrf.mxu0
        %v927 = vadd.f32 0.0, %v926
        %928 = vmatmul.bf16.gmra.mxu0 %v684
        %v929 = vpop.f32.mrf.mxu0
        %v930 = vadd.f32 0.0, %v929
        %v931 = vpop.f32.mrf.mxu0
        %v932 = vadd.f32 0.0, %v931
        %933 = vdwg.mxu0
        %v934 = vadd.f32 %v381, %v775
        %v935 = vadd.f32 %v382, %v777
        %v936 = vadd.f32 %v383, %v780
        %v937 = vadd.f32 %v384, %v782
        %v938 = vadd.f32 %v385, %v785
        %v939 = vadd.f32 %v386, %v787
        %v940 = vadd.f32 %v387, %v790
        %v941 = vadd.f32 %v388, %v792
        %v942 = vadd.f32 %v389, %v795
        %v943 = vadd.f32 %v390, %v797
        %v944 = vadd.f32 %v391, %v800
        %v945 = vadd.f32 %v392, %v802
        %v946 = vadd.f32 %v393, %v805
        %v947 = vadd.f32 %v394, %v807
        %v948 = vadd.f32 %v395, %v810
        %v949 = vadd.f32 %v396, %v812
        %v950 = vadd.f32 %v397, %v815
        %v951 = vadd.f32 %v398, %v817
        %v952 = vadd.f32 %v399, %v820
        %v953 = vadd.f32 %v400, %v822
        %v954 = vadd.f32 %v401, %v825
        %v955 = vadd.f32 %v402, %v827
        %v956 = vadd.f32 %v403, %v830
        %v957 = vadd.f32 %v404, %v832
        %v958 = vadd.f32 %v405, %v835
        %v959 = vadd.f32 %v406, %v837
        %v960 = vadd.f32 %v407, %v840
        %v961 = vadd.f32 %v408, %v842
        %v962 = vadd.f32 %v409, %v845
        %v963 = vadd.f32 %v410, %v847
        %v964 = vadd.f32 %v411, %v850
        %v965 = vadd.f32 %v412, %v852
        %v966 = vadd.f32 %v413, %v855
        %v967 = vadd.f32 %v414, %v857
        %v968 = vadd.f32 %v415, %v860
        %v969 = vadd.f32 %v416, %v862
        %v970 = vadd.f32 %v417, %v865
        %v971 = vadd.f32 %v418, %v867
        %v972 = vadd.f32 %v419, %v870
        %v973 = vadd.f32 %v420, %v872
        %v974 = vadd.f32 %v421, %v875
        %v975 = vadd.f32 %v422, %v877
        %v976 = vadd.f32 %v423, %v880
        %v977 = vadd.f32 %v424, %v882
        %v978 = vadd.f32 %v425, %v885
        %v979 = vadd.f32 %v426, %v887
        %v980 = vadd.f32 %v427, %v890
        %v981 = vadd.f32 %v428, %v892
        %v982 = vadd.f32 %v429, %v895
        %v983 = vadd.f32 %v430, %v897
        %v984 = vadd.f32 %v431, %v900
        %v985 = vadd.f32 %v432, %v902
        %v986 = vadd.f32 %v433, %v905
        %v987 = vadd.f32 %v434, %v907
        %v988 = vadd.f32 %v435, %v910
        %v989 = vadd.f32 %v436, %v912
        %v990 = vadd.f32 %v437, %v915
        %v991 = vadd.f32 %v438, %v917
        %v992 = vadd.f32 %v439, %v920
        %v993 = vadd.f32 %v440, %v922
        %v994 = vadd.f32 %v441, %v925
        %v995 = vadd.f32 %v442, %v927
        %v996 = vadd.f32 %v443, %v930
        %v997 = vadd.f32 %v444, %v932
        %998 = vst [vmem:[#allocation2] sm:$0xff] %v934
        %999 = vst [vmem:[#allocation2 + $0x8] sm:$0xff] %v935
        %1000 = vst [vmem:[#allocation2 + $0x10] sm:$0xff] %v936
        %1001 = vst [vmem:[#allocation2 + $0x18] sm:$0xff] %v937
        %1002 = vst [vmem:[#allocation2 + $0x20] sm:$0xff] %v938
        %1003 = vst [vmem:[#allocation2 + $0x28] sm:$0xff] %v939
        %1004 = vst [vmem:[#allocation2 + $0x30] sm:$0xff] %v940
        %1005 = vst [vmem:[#allocation2 + $0x38] sm:$0xff] %v941
        %1006 = vst [vmem:[#allocation2 + $0x40] sm:$0xff] %v942
        %1007 = vst [vmem:[#allocation2 + $0x48] sm:$0xff] %v943
        %1008 = vst [vmem:[#allocation2 + $0x50] sm:$0xff] %v944
        %1009 = vst [vmem:[#allocation2 + $0x58] sm:$0xff] %v945
        %1010 = vst [vmem:[#allocation2 + $0x60] sm:$0xff] %v946
        %1011 = vst [vmem:[#allocation2 + $0x68] sm:$0xff] %v947
        %1012 = vst [vmem:[#allocation2 + $0x70] sm:$0xff] %v948
        %1013 = vst [vmem:[#allocation2 + $0x78] sm:$0xff] %v949
        %1014 = vst [vmem:[#allocation2 + $0x80] sm:$0xff] %v950
        %1015 = vst [vmem:[#allocation2 + $0x88] sm:$0xff] %v951
        %1016 = vst [vmem:[#allocation2 + $0x90] sm:$0xff] %v952
        %1017 = vst [vmem:[#allocation2 + $0x98] sm:$0xff] %v953
        %1018 = vst [vmem:[#allocation2 + $0xa0] sm:$0xff] %v954
        %1019 = vst [vmem:[#allocation2 + $0xa8] sm:$0xff] %v955
        %1020 = vst [vmem:[#allocation2 + $0xb0] sm:$0xff] %v956
        %1021 = vst [vmem:[#allocation2 + $0xb8] sm:$0xff] %v957
        %1022 = vst [vmem:[#allocation2 + $0xc0] sm:$0xff] %v958
        %1023 = vst [vmem:[#allocation2 + $0xc8] sm:$0xff] %v959
        %1024 = vst [vmem:[#allocation2 + $0xd0] sm:$0xff] %v960
        %1025 = vst [vmem:[#allocation2 + $0xd8] sm:$0xff] %v961
        %1026 = vst [vmem:[#allocation2 + $0xe0] sm:$0xff] %v962
        %1027 = vst [vmem:[#allocation2 + $0xe8] sm:$0xff] %v963
        %1028 = vst [vmem:[#allocation2 + $0xf0] sm:$0xff] %v964
        %1029 = vst [vmem:[#allocation2 + $0xf8] sm:$0xff] %v965
        %1030 = vst [vmem:[#allocation2 + $0x100] sm:$0xff] %v966
        %1031 = vst [vmem:[#allocation2 + $0x108] sm:$0xff] %v967
        %1032 = vst [vmem:[#allocation2 + $0x110] sm:$0xff] %v968
        %1033 = vst [vmem:[#allocation2 + $0x118] sm:$0xff] %v969
        %1034 = vst [vmem:[#allocation2 + $0x120] sm:$0xff] %v970
        %1035 = vst [vmem:[#allocation2 + $0x128] sm:$0xff] %v971
        %1036 = vst [vmem:[#allocation2 + $0x130] sm:$0xff] %v972
        %1037 = vst [vmem:[#allocation2 + $0x138] sm:$0xff] %v973
        %1038 = vst [vmem:[#allocation2 + $0x140] sm:$0xff] %v974
        %1039 = vst [vmem:[#allocation2 + $0x148] sm:$0xff] %v975
        %1040 = vst [vmem:[#allocation2 + $0x150] sm:$0xff] %v976
        %1041 = vst [vmem:[#allocation2 + $0x158] sm:$0xff] %v977
        %1042 = vst [vmem:[#allocation2 + $0x160] sm:$0xff] %v978
        %1043 = vst [vmem:[#allocation2 + $0x168] sm:$0xff] %v979
        %1044 = vst [vmem:[#allocation2 + $0x170] sm:$0xff] %v980
        %1045 = vst [vmem:[#allocation2 + $0x178] sm:$0xff] %v981
        %1046 = vst [vmem:[#allocation2 + $0x180] sm:$0xff] %v982
        %1047 = vst [vmem:[#allocation2 + $0x188] sm:$0xff] %v983
        %1048 = vst [vmem:[#allocation2 + $0x190] sm:$0xff] %v984
        %1049 = vst [vmem:[#allocation2 + $0x198] sm:$0xff] %v985
        %1050 = vst [vmem:[#allocation2 + $0x1a0] sm:$0xff] %v986
        %1051 = vst [vmem:[#allocation2 + $0x1a8] sm:$0xff] %v987
        %1052 = vst [vmem:[#allocation2 + $0x1b0] sm:$0xff] %v988
        %1053 = vst [vmem:[#allocation2 + $0x1b8] sm:$0xff] %v989
        %1054 = vst [vmem:[#allocation2 + $0x1c0] sm:$0xff] %v990
        %1055 = vst [vmem:[#allocation2 + $0x1c8] sm:$0xff] %v991
        %1056 = vst [vmem:[#allocation2 + $0x1d0] sm:$0xff] %v992
        %1057 = vst [vmem:[#allocation2 + $0x1d8] sm:$0xff] %v993
        %1058 = vst [vmem:[#allocation2 + $0x1e0] sm:$0xff] %v994
        %1059 = vst [vmem:[#allocation2 + $0x1e8] sm:$0xff] %v995
        %1060 = vst [vmem:[#allocation2 + $0x1f0] sm:$0xff] %v996
        %1061 = vst [vmem:[#allocation2 + $0x1f8] sm:$0xff] %v997
        // Predicated region
        $region45: #{net_forward.7} parent=35 // pred_check
          %p1062 = pneg %p313
        $region46: #{net_forward.7} parent=35 // pred_check_branch
          %1064 = sbr.rel (%p1062) target = $region48
        $region47: #{net_forward.7} parent=35 // pred_region
          %v1065 = vld [vmem:[#allocation2] sm:$0xff]
          %v1066 = vld [vmem:[#allocation2 + $0x8] sm:$0xff]
          %v1067 = vld [vmem:[#allocation2 + $0x10] sm:$0xff]
          %v1068 = vld [vmem:[#allocation2 + $0x18] sm:$0xff]
          %v1069 = vld [vmem:[#allocation2 + $0x20] sm:$0xff]
          %v1070 = vld [vmem:[#allocation2 + $0x28] sm:$0xff]
          %v1071 = vld [vmem:[#allocation2 + $0x30] sm:$0xff]
          %v1072 = vld [vmem:[#allocation2 + $0x38] sm:$0xff]
          %v1073 = vld [vmem:[#allocation2 + $0x40] sm:$0xff]
          %v1074 = vld [vmem:[#allocation2 + $0x48] sm:$0xff]
          %v1075 = vld [vmem:[#allocation2 + $0x50] sm:$0xff]
          %v1076 = vld [vmem:[#allocation2 + $0x58] sm:$0xff]
          %v1077 = vld [vmem:[#allocation2 + $0x60] sm:$0xff]
          %v1078 = vld [vmem:[#allocation2 + $0x68] sm:$0xff]
          %v1079 = vld [vmem:[#allocation2 + $0x70] sm:$0xff]
          %v1080 = vld [vmem:[#allocation2 + $0x78] sm:$0xff]
          %v1081 = vld [vmem:[#allocation2 + $0x80] sm:$0xff]
          %v1082 = vld [vmem:[#allocation2 + $0x88] sm:$0xff]
          %v1083 = vld [vmem:[#allocation2 + $0x90] sm:$0xff]
          %v1084 = vld [vmem:[#allocation2 + $0x98] sm:$0xff]
          %v1085 = vld [vmem:[#allocation2 + $0xa0] sm:$0xff]
          %v1086 = vld [vmem:[#allocation2 + $0xa8] sm:$0xff]
          %v1087 = vld [vmem:[#allocation2 + $0xb0] sm:$0xff]
          %v1088 = vld [vmem:[#allocation2 + $0xb8] sm:$0xff]
          %v1089 = vld [vmem:[#allocation2 + $0xc0] sm:$0xff]
          %v1090 = vld [vmem:[#allocation2 + $0xc8] sm:$0xff]
          %v1091 = vld [vmem:[#allocation2 + $0xd0] sm:$0xff]
          %v1092 = vld [vmem:[#allocation2 + $0xd8] sm:$0xff]
          %v1093 = vld [vmem:[#allocation2 + $0xe0] sm:$0xff]
          %v1094 = vld [vmem:[#allocation2 + $0xe8] sm:$0xff]
          %v1095 = vld [vmem:[#allocation2 + $0xf0] sm:$0xff]
          %v1096 = vld [vmem:[#allocation2 + $0xf8] sm:$0xff]
          %v1097 = vld [vmem:[#allocation2 + $0x100] sm:$0xff]
          %v1098 = vld [vmem:[#allocation2 + $0x108] sm:$0xff]
          %v1099 = vld [vmem:[#allocation2 + $0x110] sm:$0xff]
          %v1100 = vld [vmem:[#allocation2 + $0x118] sm:$0xff]
          %v1101 = vld [vmem:[#allocation2 + $0x120] sm:$0xff]
          %v1102 = vld [vmem:[#allocation2 + $0x128] sm:$0xff]
          %v1103 = vld [vmem:[#allocation2 + $0x130] sm:$0xff]
          %v1104 = vld [vmem:[#allocation2 + $0x138] sm:$0xff]
          %v1105 = vld [vmem:[#allocation2 + $0x140] sm:$0xff]
          %v1106 = vld [vmem:[#allocation2 + $0x148] sm:$0xff]
          %v1107 = vld [vmem:[#allocation2 + $0x150] sm:$0xff]
          %v1108 = vld [vmem:[#allocation2 + $0x158] sm:$0xff]
          %v1109 = vld [vmem:[#allocation2 + $0x160] sm:$0xff]
          %v1110 = vld [vmem:[#allocation2 + $0x168] sm:$0xff]
          %v1111 = vld [vmem:[#allocation2 + $0x170] sm:$0xff]
          %v1112 = vld [vmem:[#allocation2 + $0x178] sm:$0xff]
          %v1113 = vld [vmem:[#allocation2 + $0x180] sm:$0xff]
          %v1114 = vld [vmem:[#allocation2 + $0x188] sm:$0xff]
          %v1115 = vld [vmem:[#allocation2 + $0x190] sm:$0xff]
          %v1116 = vld [vmem:[#allocation2 + $0x198] sm:$0xff]
          %v1117 = vld [vmem:[#allocation2 + $0x1a0] sm:$0xff]
          %v1118 = vld [vmem:[#allocation2 + $0x1a8] sm:$0xff]
          %v1119 = vld [vmem:[#allocation2 + $0x1b0] sm:$0xff]
          %v1120 = vld [vmem:[#allocation2 + $0x1b8] sm:$0xff]
          %v1121 = vld [vmem:[#allocation2 + $0x1c0] sm:$0xff]
          %v1122 = vld [vmem:[#allocation2 + $0x1c8] sm:$0xff]
          %v1123 = vld [vmem:[#allocation2 + $0x1d0] sm:$0xff]
          %v1124 = vld [vmem:[#allocation2 + $0x1d8] sm:$0xff]
          %v1125 = vld [vmem:[#allocation2 + $0x1e0] sm:$0xff]
          %v1126 = vld [vmem:[#allocation2 + $0x1e8] sm:$0xff]
          %v1127 = vld [vmem:[#allocation2 + $0x1f0] sm:$0xff]
          %v1128 = vld [vmem:[#allocation2 + $0x1f8] sm:$0xff]
          %v1129 = vld [vmem:[%s300] sm:$0x1]
          %v1131 = vperm.slane %v1129, 0
          %v1133 = vmul.f32 %v1065, %v1131
          %v1134 = vmul.f32 %v1066, %v1131
          %v1135 = vmul.f32 %v1067, %v1131
          %v1136 = vmul.f32 %v1068, %v1131
          %v1137 = vmul.f32 %v1069, %v1131
          %v1138 = vmul.f32 %v1070, %v1131
          %v1139 = vmul.f32 %v1071, %v1131
          %v1140 = vmul.f32 %v1072, %v1131
          %v1141 = vmul.f32 %v1073, %v1131
          %v1142 = vmul.f32 %v1074, %v1131
          %v1143 = vmul.f32 %v1075, %v1131
          %v1144 = vmul.f32 %v1076, %v1131
          %v1145 = vmul.f32 %v1077, %v1131
          %v1146 = vmul.f32 %v1078, %v1131
          %v1147 = vmul.f32 %v1079, %v1131
          %v1148 = vmul.f32 %v1080, %v1131
          %v1149 = vmul.f32 %v1081, %v1131
          %v1150 = vmul.f32 %v1082, %v1131
          %v1151 = vmul.f32 %v1083, %v1131
          %v1152 = vmul.f32 %v1084, %v1131
          %v1153 = vmul.f32 %v1085, %v1131
          %v1154 = vmul.f32 %v1086, %v1131
          %v1155 = vmul.f32 %v1087, %v1131
          %v1156 = vmul.f32 %v1088, %v1131
          %v1157 = vmul.f32 %v1089, %v1131
          %v1158 = vmul.f32 %v1090, %v1131
          %v1159 = vmul.f32 %v1091, %v1131
          %v1160 = vmul.f32 %v1092, %v1131
          %v1161 = vmul.f32 %v1093, %v1131
          %v1162 = vmul.f32 %v1094, %v1131
          %v1163 = vmul.f32 %v1095, %v1131
          %v1164 = vmul.f32 %v1096, %v1131
          %v1165 = vmul.f32 %v1097, %v1131
          %v1166 = vmul.f32 %v1098, %v1131
          %v1167 = vmul.f32 %v1099, %v1131
          %v1168 = vmul.f32 %v1100, %v1131
          %v1169 = vmul.f32 %v1101, %v1131
          %v1170 = vmul.f32 %v1102, %v1131
          %v1171 = vmul.f32 %v1103, %v1131
          %v1172 = vmul.f32 %v1104, %v1131
          %v1173 = vmul.f32 %v1105, %v1131
          %v1174 = vmul.f32 %v1106, %v1131
          %v1175 = vmul.f32 %v1107, %v1131
          %v1176 = vmul.f32 %v1108, %v1131
          %v1177 = vmul.f32 %v1109, %v1131
          %v1178 = vmul.f32 %v1110, %v1131
          %v1179 = vmul.f32 %v1111, %v1131
          %v1180 = vmul.f32 %v1112, %v1131
          %v1181 = vmul.f32 %v1113, %v1131
          %v1182 = vmul.f32 %v1114, %v1131
          %v1183 = vmul.f32 %v1115, %v1131
          %v1184 = vmul.f32 %v1116, %v1131
          %v1185 = vmul.f32 %v1117, %v1131
          %v1186 = vmul.f32 %v1118, %v1131
          %v1187 = vmul.f32 %v1119, %v1131
          %v1188 = vmul.f32 %v1120, %v1131
          %v1189 = vmul.f32 %v1121, %v1131
          %v1190 = vmul.f32 %v1122, %v1131
          %v1191 = vmul.f32 %v1123, %v1131
          %v1192 = vmul.f32 %v1124, %v1131
          %v1193 = vmul.f32 %v1125, %v1131
          %v1194 = vmul.f32 %v1126, %v1131
          %v1195 = vmul.f32 %v1127, %v1131
          %v1196 = vmul.f32 %v1128, %v1131
          %v1197 = vld [vmem:[%s303] sm:$0x1]
          %v1199 = vperm.slane %v1197, 0
          %v1201 = vadd.f32 %v1133, %v1199
          %v1202 = vadd.f32 %v1134, %v1199
          %v1203 = vadd.f32 %v1135, %v1199
          %v1204 = vadd.f32 %v1136, %v1199
          %v1205 = vadd.f32 %v1137, %v1199
          %v1206 = vadd.f32 %v1138, %v1199
          %v1207 = vadd.f32 %v1139, %v1199
          %v1208 = vadd.f32 %v1140, %v1199
          %v1209 = vadd.f32 %v1141, %v1199
          %v1210 = vadd.f32 %v1142, %v1199
          %v1211 = vadd.f32 %v1143, %v1199
          %v1212 = vadd.f32 %v1144, %v1199
          %v1213 = vadd.f32 %v1145, %v1199
          %v1214 = vadd.f32 %v1146, %v1199
          %v1215 = vadd.f32 %v1147, %v1199
          %v1216 = vadd.f32 %v1148, %v1199
          %v1217 = vadd.f32 %v1149, %v1199
          %v1218 = vadd.f32 %v1150, %v1199
          %v1219 = vadd.f32 %v1151, %v1199
          %v1220 = vadd.f32 %v1152, %v1199
          %v1221 = vadd.f32 %v1153, %v1199
          %v1222 = vadd.f32 %v1154, %v1199
          %v1223 = vadd.f32 %v1155, %v1199
          %v1224 = vadd.f32 %v1156, %v1199
          %v1225 = vadd.f32 %v1157, %v1199
          %v1226 = vadd.f32 %v1158, %v1199
          %v1227 = vadd.f32 %v1159, %v1199
          %v1228 = vadd.f32 %v1160, %v1199
          %v1229 = vadd.f32 %v1161, %v1199
          %v1230 = vadd.f32 %v1162, %v1199
          %v1231 = vadd.f32 %v1163, %v1199
          %v1232 = vadd.f32 %v1164, %v1199
          %v1233 = vadd.f32 %v1165, %v1199
          %v1234 = vadd.f32 %v1166, %v1199
          %v1235 = vadd.f32 %v1167, %v1199
          %v1236 = vadd.f32 %v1168, %v1199
          %v1237 = vadd.f32 %v1169, %v1199
          %v1238 = vadd.f32 %v1170, %v1199
          %v1239 = vadd.f32 %v1171, %v1199
          %v1240 = vadd.f32 %v1172, %v1199
          %v1241 = vadd.f32 %v1173, %v1199
          %v1242 = vadd.f32 %v1174, %v1199
          %v1243 = vadd.f32 %v1175, %v1199
          %v1244 = vadd.f32 %v1176, %v1199
          %v1245 = vadd.f32 %v1177, %v1199
          %v1246 = vadd.f32 %v1178, %v1199
          %v1247 = vadd.f32 %v1179, %v1199
          %v1248 = vadd.f32 %v1180, %v1199
          %v1249 = vadd.f32 %v1181, %v1199
          %v1250 = vadd.f32 %v1182, %v1199
          %v1251 = vadd.f32 %v1183, %v1199
          %v1252 = vadd.f32 %v1184, %v1199
          %v1253 = vadd.f32 %v1185, %v1199
          %v1254 = vadd.f32 %v1186, %v1199
          %v1255 = vadd.f32 %v1187, %v1199
          %v1256 = vadd.f32 %v1188, %v1199
          %v1257 = vadd.f32 %v1189, %v1199
          %v1258 = vadd.f32 %v1190, %v1199
          %v1259 = vadd.f32 %v1191, %v1199
          %v1260 = vadd.f32 %v1192, %v1199
          %v1261 = vadd.f32 %v1193, %v1199
          %v1262 = vadd.f32 %v1194, %v1199
          %v1263 = vadd.f32 %v1195, %v1199
          %v1264 = vadd.f32 %v1196, %v1199
          %v1265 = vmax.f32 %v1201, 0.0
          %v1266 = vmax.f32 %v1202, 0.0
          %v1267 = vmax.f32 %v1203, 0.0
          %v1268 = vmax.f32 %v1204, 0.0
          %v1269 = vmax.f32 %v1205, 0.0
          %v1270 = vmax.f32 %v1206, 0.0
          %v1271 = vmax.f32 %v1207, 0.0
          %v1272 = vmax.f32 %v1208, 0.0
          %v1273 = vmax.f32 %v1209, 0.0
          %v1274 = vmax.f32 %v1210, 0.0
          %v1275 = vmax.f32 %v1211, 0.0
          %v1276 = vmax.f32 %v1212, 0.0
          %v1277 = vmax.f32 %v1213, 0.0
          %v1278 = vmax.f32 %v1214, 0.0
          %v1279 = vmax.f32 %v1215, 0.0
          %v1280 = vmax.f32 %v1216, 0.0
          %v1281 = vmax.f32 %v1217, 0.0
          %v1282 = vmax.f32 %v1218, 0.0
          %v1283 = vmax.f32 %v1219, 0.0
          %v1284 = vmax.f32 %v1220, 0.0
          %v1285 = vmax.f32 %v1221, 0.0
          %v1286 = vmax.f32 %v1222, 0.0
          %v1287 = vmax.f32 %v1223, 0.0
          %v1288 = vmax.f32 %v1224, 0.0
          %v1289 = vmax.f32 %v1225, 0.0
          %v1290 = vmax.f32 %v1226, 0.0
          %v1291 = vmax.f32 %v1227, 0.0
          %v1292 = vmax.f32 %v1228, 0.0
          %v1293 = vmax.f32 %v1229, 0.0
          %v1294 = vmax.f32 %v1230, 0.0
          %v1295 = vmax.f32 %v1231, 0.0
          %v1296 = vmax.f32 %v1232, 0.0
          %v1297 = vmax.f32 %v1233, 0.0
          %v1298 = vmax.f32 %v1234, 0.0
          %v1299 = vmax.f32 %v1235, 0.0
          %v1300 = vmax.f32 %v1236, 0.0
          %v1301 = vmax.f32 %v1237, 0.0
          %v1302 = vmax.f32 %v1238, 0.0
          %v1303 = vmax.f32 %v1239, 0.0
          %v1304 = vmax.f32 %v1240, 0.0
          %v1305 = vmax.f32 %v1241, 0.0
          %v1306 = vmax.f32 %v1242, 0.0
          %v1307 = vmax.f32 %v1243, 0.0
          %v1308 = vmax.f32 %v1244, 0.0
          %v1309 = vmax.f32 %v1245, 0.0
          %v1310 = vmax.f32 %v1246, 0.0
          %v1311 = vmax.f32 %v1247, 0.0
          %v1312 = vmax.f32 %v1248, 0.0
          %v1313 = vmax.f32 %v1249, 0.0
          %v1314 = vmax.f32 %v1250, 0.0
          %v1315 = vmax.f32 %v1251, 0.0
          %v1316 = vmax.f32 %v1252, 0.0
          %v1317 = vmax.f32 %v1253, 0.0
          %v1318 = vmax.f32 %v1254, 0.0
          %v1319 = vmax.f32 %v1255, 0.0
          %v1320 = vmax.f32 %v1256, 0.0
          %v1321 = vmax.f32 %v1257, 0.0
          %v1322 = vmax.f32 %v1258, 0.0
          %v1323 = vmax.f32 %v1259, 0.0
          %v1324 = vmax.f32 %v1260, 0.0
          %v1325 = vmax.f32 %v1261, 0.0
          %v1326 = vmax.f32 %v1262, 0.0
          %v1327 = vmax.f32 %v1263, 0.0
          %v1328 = vmax.f32 %v1264, 0.0
          %v1329 = vpack.c.bf16 %v1265, %v1265
          %v1330 = vpack.c.bf16 %v1266, %v1266
          %v1331 = vpack.c.bf16 %v1267, %v1267
          %v1332 = vpack.c.bf16 %v1268, %v1268
          %v1333 = vpack.c.bf16 %v1269, %v1269
          %v1334 = vpack.c.bf16 %v1270, %v1270
          %v1335 = vpack.c.bf16 %v1271, %v1271
          %v1336 = vpack.c.bf16 %v1272, %v1272
          %v1337 = vpack.c.bf16 %v1273, %v1273
          %v1338 = vpack.c.bf16 %v1274, %v1274
          %v1339 = vpack.c.bf16 %v1275, %v1275
          %v1340 = vpack.c.bf16 %v1276, %v1276
          %v1341 = vpack.c.bf16 %v1277, %v1277
          %v1342 = vpack.c.bf16 %v1278, %v1278
          %v1343 = vpack.c.bf16 %v1279, %v1279
          %v1344 = vpack.c.bf16 %v1280, %v1280
          %v1345 = vpack.c.bf16 %v1281, %v1281
          %v1346 = vpack.c.bf16 %v1282, %v1282
          %v1347 = vpack.c.bf16 %v1283, %v1283
          %v1348 = vpack.c.bf16 %v1284, %v1284
          %v1349 = vpack.c.bf16 %v1285, %v1285
          %v1350 = vpack.c.bf16 %v1286, %v1286
          %v1351 = vpack.c.bf16 %v1287, %v1287
          %v1352 = vpack.c.bf16 %v1288, %v1288
          %v1353 = vpack.c.bf16 %v1289, %v1289
          %v1354 = vpack.c.bf16 %v1290, %v1290
          %v1355 = vpack.c.bf16 %v1291, %v1291
          %v1356 = vpack.c.bf16 %v1292, %v1292
          %v1357 = vpack.c.bf16 %v1293, %v1293
          %v1358 = vpack.c.bf16 %v1294, %v1294
          %v1359 = vpack.c.bf16 %v1295, %v1295
          %v1360 = vpack.c.bf16 %v1296, %v1296
          %v1361 = vpack.c.bf16 %v1297, %v1297
          %v1362 = vpack.c.bf16 %v1298, %v1298
          %v1363 = vpack.c.bf16 %v1299, %v1299
          %v1364 = vpack.c.bf16 %v1300, %v1300
          %v1365 = vpack.c.bf16 %v1301, %v1301
          %v1366 = vpack.c.bf16 %v1302, %v1302
          %v1367 = vpack.c.bf16 %v1303, %v1303
          %v1368 = vpack.c.bf16 %v1304, %v1304
          %v1369 = vpack.c.bf16 %v1305, %v1305
          %v1370 = vpack.c.bf16 %v1306, %v1306
          %v1371 = vpack.c.bf16 %v1307, %v1307
          %v1372 = vpack.c.bf16 %v1308, %v1308
          %v1373 = vpack.c.bf16 %v1309, %v1309
          %v1374 = vpack.c.bf16 %v1310, %v1310
          %v1375 = vpack.c.bf16 %v1311, %v1311
          %v1376 = vpack.c.bf16 %v1312, %v1312
          %v1377 = vpack.c.bf16 %v1313, %v1313
          %v1378 = vpack.c.bf16 %v1314, %v1314
          %v1379 = vpack.c.bf16 %v1315, %v1315
          %v1380 = vpack.c.bf16 %v1316, %v1316
          %v1381 = vpack.c.bf16 %v1317, %v1317
          %v1382 = vpack.c.bf16 %v1318, %v1318
          %v1383 = vpack.c.bf16 %v1319, %v1319
          %v1384 = vpack.c.bf16 %v1320, %v1320
          %v1385 = vpack.c.bf16 %v1321, %v1321
          %v1386 = vpack.c.bf16 %v1322, %v1322
          %v1387 = vpack.c.bf16 %v1323, %v1323
          %v1388 = vpack.c.bf16 %v1324, %v1324
          %v1389 = vpack.c.bf16 %v1325, %v1325
          %v1390 = vpack.c.bf16 %v1326, %v1326
          %v1391 = vpack.c.bf16 %v1327, %v1327
          %v1392 = vpack.c.bf16 %v1328, %v1328
          %1393 = vst [vmem:[%s311] sm:$0xf] %v1329
          %1394 = vst [vmem:[%s311 + $0x4] sm:$0xf] %v1330
          %1395 = vst [vmem:[%s311 + $0x8] sm:$0xf] %v1331
          %1396 = vst [vmem:[%s311 + $0xc] sm:$0xf] %v1332
          %1397 = vst [vmem:[%s311 + $0x10] sm:$0xf] %v1333
          %1398 = vst [vmem:[%s311 + $0x14] sm:$0xf] %v1334
          %1399 = vst [vmem:[%s311 + $0x18] sm:$0xf] %v1335
          %1400 = vst [vmem:[%s311 + $0x1c] sm:$0xf] %v1336
          %1401 = vst [vmem:[%s311 + $0x20] sm:$0xf] %v1337
          %1402 = vst [vmem:[%s311 + $0x24] sm:$0xf] %v1338
          %1403 = vst [vmem:[%s311 + $0x28] sm:$0xf] %v1339
          %1404 = vst [vmem:[%s311 + $0x2c] sm:$0xf] %v1340
          %1405 = vst [vmem:[%s311 + $0x30] sm:$0xf] %v1341
          %1406 = vst [vmem:[%s311 + $0x34] sm:$0xf] %v1342
          %1407 = vst [vmem:[%s311 + $0x38] sm:$0xf] %v1343
          %1408 = vst [vmem:[%s311 + $0x3c] sm:$0xf] %v1344
          %1409 = vst [vmem:[%s311 + $0x40] sm:$0xf] %v1345
          %1410 = vst [vmem:[%s311 + $0x44] sm:$0xf] %v1346
          %1411 = vst [vmem:[%s311 + $0x48] sm:$0xf] %v1347
          %1412 = vst [vmem:[%s311 + $0x4c] sm:$0xf] %v1348
          %1413 = vst [vmem:[%s311 + $0x50] sm:$0xf] %v1349
          %1414 = vst [vmem:[%s311 + $0x54] sm:$0xf] %v1350
          %1415 = vst [vmem:[%s311 + $0x58] sm:$0xf] %v1351
          %1416 = vst [vmem:[%s311 + $0x5c] sm:$0xf] %v1352
          %1417 = vst [vmem:[%s311 + $0x60] sm:$0xf] %v1353
          %1418 = vst [vmem:[%s311 + $0x64] sm:$0xf] %v1354
          %1419 = vst [vmem:[%s311 + $0x68] sm:$0xf] %v1355
          %1420 = vst [vmem:[%s311 + $0x6c] sm:$0xf] %v1356
          %1421 = vst [vmem:[%s311 + $0x70] sm:$0xf] %v1357
          %1422 = vst [vmem:[%s311 + $0x74] sm:$0xf] %v1358
          %1423 = vst [vmem:[%s311 + $0x78] sm:$0xf] %v1359
          %1424 = vst [vmem:[%s311 + $0x7c] sm:$0xf] %v1360
          %1425 = vst [vmem:[%s311 + $0x80] sm:$0xf] %v1361
          %1426 = vst [vmem:[%s311 + $0x84] sm:$0xf] %v1362
          %1427 = vst [vmem:[%s311 + $0x88] sm:$0xf] %v1363
          %1428 = vst [vmem:[%s311 + $0x8c] sm:$0xf] %v1364
          %1429 = vst [vmem:[%s311 + $0x90] sm:$0xf] %v1365
          %1430 = vst [vmem:[%s311 + $0x94] sm:$0xf] %v1366
          %1431 = vst [vmem:[%s311 + $0x98] sm:$0xf] %v1367
          %1432 = vst [vmem:[%s311 + $0x9c] sm:$0xf] %v1368
          %1433 = vst [vmem:[%s311 + $0xa0] sm:$0xf] %v1369
          %1434 = vst [vmem:[%s311 + $0xa4] sm:$0xf] %v1370
          %1435 = vst [vmem:[%s311 + $0xa8] sm:$0xf] %v1371
          %1436 = vst [vmem:[%s311 + $0xac] sm:$0xf] %v1372
          %1437 = vst [vmem:[%s311 + $0xb0] sm:$0xf] %v1373
          %1438 = vst [vmem:[%s311 + $0xb4] sm:$0xf] %v1374
          %1439 = vst [vmem:[%s311 + $0xb8] sm:$0xf] %v1375
          %1440 = vst [vmem:[%s311 + $0xbc] sm:$0xf] %v1376
          %1441 = vst [vmem:[%s311 + $0xc0] sm:$0xf] %v1377
          %1442 = vst [vmem:[%s311 + $0xc4] sm:$0xf] %v1378
          %1443 = vst [vmem:[%s311 + $0xc8] sm:$0xf] %v1379
          %1444 = vst [vmem:[%s311 + $0xcc] sm:$0xf] %v1380
          %1445 = vst [vmem:[%s311 + $0xd0] sm:$0xf] %v1381
          %1446 = vst [vmem:[%s311 + $0xd4] sm:$0xf] %v1382
          %1447 = vst [vmem:[%s311 + $0xd8] sm:$0xf] %v1383
          %1448 = vst [vmem:[%s311 + $0xdc] sm:$0xf] %v1384
          %1449 = vst [vmem:[%s311 + $0xe0] sm:$0xf] %v1385
          %1450 = vst [vmem:[%s311 + $0xe4] sm:$0xf] %v1386
          %1451 = vst [vmem:[%s311 + $0xe8] sm:$0xf] %v1387
          %1452 = vst [vmem:[%s311 + $0xec] sm:$0xf] %v1388
          %1453 = vst [vmem:[%s311 + $0xf0] sm:$0xf] %v1389
          %1454 = vst [vmem:[%s311 + $0xf4] sm:$0xf] %v1390
          %1455 = vst [vmem:[%s311 + $0xf8] sm:$0xf] %v1391
          %1456 = vst [vmem:[%s311 + $0xfc] sm:$0xf] %v1392
        $region48: #{net_forward.7} parent=35 // pred_fallthru
          _
        %s1457 = smul.u32 64, %s23
        %p1458 = scmp.lt.s32.totalorder %s1457, 39999
        %s1459 = scalar_select %p1458, %s1457, 39999
        %p1460 = scmp.lt.s32.totalorder %s24, 0
        %s1461 = scalar_select %p1460, %s24, 0
        %s1462 = sadd.s32 %s1461, %s1459
        %s1463 = smul.addr %s1462, 4
        %s1464 = scalar_lea.vmem %s4, %s1463
        // Predicated region
        $region49: #{net_forward.7} parent=35 // pred_check
          %p1465 = pneg %p165
        $region50: #{net_forward.7} parent=35 // pred_check_branch
          %1467 = sbr.rel (%p1465) target = $region52
        $region51: #{net_forward.7} parent=35 // pred_region
          %s1468 = smul.u32 64, %s23
        $region52: #{net_forward.7} parent=35 // pred_fallthru
          _
      $region36: #{net_forward.7} parent=5 // pred_fallthru
        _
      %p1469 = scmp.le.s32.totalorder 2, %s13
      // Predicated region
      $region53: #{net_forward.7} parent=5 // pred_check
        %p1470 = pneg %p1469
      $region54: #{net_forward.7} parent=5 // pred_check_branch
        %1472 = sbr.rel (%p1470) target = $region56
      $region55: #{net_forward.7} parent=5 // pred_region
        %s1473 = ssub.s32 %s13, 2
        // Predicated region
        $region57: #{net_forward.7} parent=55 // pred_check
          %p1474 = pneg %p171
        $region58: #{net_forward.7} parent=55 // pred_check_branch
          %1476 = sbr.rel (%p1474) target = $region60
        $region59: #{net_forward.7} parent=55 // pred_region
          %s1477 = smul.u32 64, %s26
          %p1478 = scmp.lt.s32.totalorder %s1477, 39999
          %s1479 = scalar_select %p1478, %s1477, 39999
          %p1480 = scmp.lt.s32.totalorder %s27, 0
          %s1481 = scalar_select %p1480, %s27, 0
          %s1482 = sadd.s32 %s1481, %s1479
          %s1483 = smul.addr %s1482, 4
          %s1484 = scalar_lea.vmem %s4, %s1483
        $region60: #{net_forward.7} parent=55 // pred_fallthru
          _
      $region56: #{net_forward.7} parent=5 // pred_fallthru
        _
    $region6: #{net_forward.7} parent=1 // loop_footer
      %s17 = sadd.s32 1, %s13
    $region7: #{net_forward.7} parent=1 // loop_footer_branch
      %12 = sbr.rel target = $region3
    $region8: #{net_forward.7} parent=1 // loop_exit
      _
    %1485 = vsyncpa [#allocation4], 1
    %s1486 = scalar_lea.sflag [#allocation4], 1
    %1487 = vsyncpa %s1486, 1

// kernel: net_forward.8
$region0: #{net_forward.8}
  #allocation0 [shape = 'u32[]', space=smem, size = 0x4, offset = 0x4, fixed_abs, tag = 'smem constant byte address 0x4 - core index']
  #allocation1 [shape = 'u32[72,128]{1,0:T(1,128)}', space=vmem, size = 0x9000, scoped, tag = 'internal scratch']
  %s0 = inlined_call_operand.vmem [shape: bf16[80384,16], index: 0, kind: input, shape index: {}]
  %s1 = inlined_call_operand.vmem [shape: bf16[80384,16], index: 1, kind: input, shape index: {}]
  %s2 = inlined_call_operand.hbm [shape: bf16[80384,16], index: 2, kind: input, shape index: {}]
  %s3 = inlined_call_operand.vmem [shape: bf16[80384,16], index: 3, kind: input, shape index: {}]
  %s4 = inlined_call_operand.vmem [shape: bf16[80384,16], index: 4, kind: output, shape index: {}]
  %s5 = sld [smem:[#allocation0]]
  $region53: #{net_forward.8} parent=0
    _
  %s7 = ssub.s32 1, %s5
  %s8 = scalar_select 0, %s7, %s5
  $region1: #{net_forward.8} parent=0
    #allocation2 [shape = 'u8[262144]{0}', space=vmem, size = 0x40000, scoped, tag = 'input window, operand 2']
    #allocation3 [shape = 's32[2]{0}', space=sflag, size = 0x8, scoped, tag = 'scoped memory for net_forward.8']
    %9 = vsyncpa [#allocation3], 0
    %s10 = scalar_lea.sflag [#allocation3], 1
    %11 = vsyncpa %s10, 0
    loop: start=0, step=1, limit=159
    $region2: #{net_forward.8} parent=1 // loop_pre_header
      _
    $region3: #{net_forward.8} parent=1 // loop_header
      %s13 = sphi 0, %s17
      %p14 = scmp.ge.s32.totalorder %s13, 159
      %s23 = sphi 0, %s25
      %s26 = sphi 0, %s23
      %s27 = sphi 0, %s26
      %s43 = sphi 0, %s27
      %s49 = sphi 0, %s51
      %s52 = sphi 0, %s49
      %s53 = sphi 0, %s52
      %s69 = sphi 0, %s53
      %s75 = sphi 0, %s77
      %s78 = sphi 0, %s75
      %s79 = sphi 0, %s78
      %s95 = sphi 0, %s79
      %s101 = sphi 0, %s103
      %s104 = sphi 0, %s101
      %s105 = sphi 0, %s104
      %s121 = sphi 0, %s105
      %s127 = sphi 0, %s129
      %s130 = sphi 0, %s127
      %s131 = sphi 0, %s130
      %s147 = sphi 0, %s131
    $region4: #{net_forward.8} parent=1 // loop_header_branch
      %16 = sbr.rel (%p14) target = $region8
    $region5: #{net_forward.8} parent=1 // loop_body
      %s18 = ssub.s32 %s13, 1
      %s19 = ssub.s32 %s13, 2
      %s20 = sadd.s32 %s13, 1
      %s21 = ssub.s32 %s13, %s20
      %p22 = scmp.eq.s32.totalorder %s21, 0
      %s24 = sadd.s32 %s23, 1
      %s25 = scalar_select %p22, %s23, %s24
      %p28 = pneg %p22
      %p29 = scmp.eq.s32.totalorder %s13, 156
      %p30 = por %p28, %p29
      %p31 = scmp.ne.s32.totalorder %s23, %s26
      %p32 = scmp.eq.s32.totalorder %s13, 0
      %p33 = por %p31, %p32
      %p34 = scmp.ne.s32.totalorder %s23, %s26
      %p35 = scmp.eq.s32.totalorder %s18, 156
      %p36 = por %p34, %p35
      %p37 = scmp.ne.s32.totalorder %s26, %s27
      %p38 = scmp.eq.s32.totalorder %s18, 0
      %p39 = por %p37, %p38
      %p40 = scmp.ne.s32.totalorder %s26, %s27
      %p41 = scmp.eq.s32.totalorder %s19, 156
      %p42 = por %p40, %p41
      %p44 = scmp.ne.s32.totalorder %s27, %s43
      %p45 = scmp.eq.s32.totalorder %s19, 0
      %p46 = por %p44, %p45
      %s47 = ssub.s32 %s13, %s20
      %p48 = scmp.eq.s32.totalorder %s47, 0
      %s50 = sadd.s32 %s49, 1
      %s51 = scalar_select %p48, %s49, %s50
      %p54 = pneg %p48
      %p55 = scmp.eq.s32.totalorder %s13, 156
      %p56 = por %p54, %p55
      %p57 = scmp.ne.s32.totalorder %s49, %s52
      %p58 = scmp.eq.s32.totalorder %s13, 0
      %p59 = por %p57, %p58
      %p60 = scmp.ne.s32.totalorder %s49, %s52
      %p61 = scmp.eq.s32.totalorder %s18, 156
      %p62 = por %p60, %p61
      %p63 = scmp.ne.s32.totalorder %s52, %s53
      %p64 = scmp.eq.s32.totalorder %s18, 0
      %p65 = por %p63, %p64
      %p66 = scmp.ne.s32.totalorder %s52, %s53
      %p67 = scmp.eq.s32.totalorder %s19, 156
      %p68 = por %p66, %p67
      %p70 = scmp.ne.s32.totalorder %s53, %s69
      %p71 = scmp.eq.s32.totalorder %s19, 0
      %p72 = por %p70, %p71
      %s73 = ssub.s32 %s13, %s20
      %p74 = scmp.eq.s32.totalorder %s73, 0
      %s76 = sadd.s32 %s75, 1
      %s77 = scalar_select %p74, %s75, %s76
      %p80 = pneg %p74
      %p81 = scmp.eq.s32.totalorder %s13, 156
      %p82 = por %p80, %p81
      %p83 = scmp.ne.s32.totalorder %s75, %s78
      %p84 = scmp.eq.s32.totalorder %s13, 0
      %p85 = por %p83, %p84
      %p86 = scmp.ne.s32.totalorder %s75, %s78
      %p87 = scmp.eq.s32.totalorder %s18, 156
      %p88 = por %p86, %p87
      %p89 = scmp.ne.s32.totalorder %s78, %s79
      %p90 = scmp.eq.s32.totalorder %s18, 0
      %p91 = por %p89, %p90
      %p92 = scmp.ne.s32.totalorder %s78, %s79
      %p93 = scmp.eq.s32.totalorder %s19, 156
      %p94 = por %p92, %p93
      %p96 = scmp.ne.s32.totalorder %s79, %s95
      %p97 = scmp.eq.s32.totalorder %s19, 0
      %p98 = por %p96, %p97
      %s99 = ssub.s32 %s13, %s20
      %p100 = scmp.eq.s32.totalorder %s99, 0
      %s102 = sadd.s32 %s101, 1
      %s103 = scalar_select %p100, %s101, %s102
      %p106 = pneg %p100
      %p107 = scmp.eq.s32.totalorder %s13, 156
      %p108 = por %p106, %p107
      %p109 = scmp.ne.s32.totalorder %s101, %s104
      %p110 = scmp.eq.s32.totalorder %s13, 0
      %p111 = por %p109, %p110
      %p112 = scmp.ne.s32.totalorder %s101, %s104
      %p113 = scmp.eq.s32.totalorder %s18, 156
      %p114 = por %p112, %p113
      %p115 = scmp.ne.s32.totalorder %s104, %s105
      %p116 = scmp.eq.s32.totalorder %s18, 0
      %p117 = por %p115, %p116
      %p118 = scmp.ne.s32.totalorder %s104, %s105
      %p119 = scmp.eq.s32.totalorder %s19, 156
      %p120 = por %p118, %p119
      %p122 = scmp.ne.s32.totalorder %s105, %s121
      %p123 = scmp.eq.s32.totalorder %s19, 0
      %p124 = por %p122, %p123
      %s125 = ssub.s32 %s13, %s20
      %p126 = scmp.eq.s32.totalorder %s125, 0
      %s128 = sadd.s32 %s127, 1
      %s129 = scalar_select %p126, %s127, %s128
      %p132 = pneg %p126
      %p133 = scmp.eq.s32.totalorder %s13, 156
      %p134 = por %p132, %p133
      %p135 = scmp.ne.s32.totalorder %s127, %s130
      %p136 = scmp.eq.s32.totalorder %s13, 0
      %p137 = por %p135, %p136
      %p138 = scmp.ne.s32.totalorder %s127, %s130
      %p139 = scmp.eq.s32.totalorder %s18, 156
      %p140 = por %p138, %p139
      %p141 = scmp.ne.s32.totalorder %s130, %s131
      %p142 = scmp.eq.s32.totalorder %s18, 0
      %p143 = por %p141, %p142
      %p144 = scmp.ne.s32.totalorder %s130, %s131
      %p145 = scmp.eq.s32.totalorder %s19, 156
      %p146 = por %p144, %p145
      %p148 = scmp.ne.s32.totalorder %s131, %s147
      %p149 = scmp.eq.s32.totalorder %s19, 0
      %p150 = por %p148, %p149
      %p151 = scmp.le.s32.totalorder 1, %s13
      %p152 = scmp.lt.s32.totalorder %s13, 158
      %p153 = pnand %p151, %p152
      %p154 = pneg %p153
      // Predicated region
      $region9: #{net_forward.8} parent=5 // pred_check
        _
      $region10: #{net_forward.8} parent=5 // pred_check_branch
        %156 = sbr.rel (%p153) target = $region12
      $region11: #{net_forward.8} parent=5 // pred_region
        %s157 = ssub.s32 %s13, 1
      $region12: #{net_forward.8} parent=5 // pred_fallthru
        _
      %p158 = scmp.lt.s32.totalorder %s13, 157
      // Predicated region
      $region13: #{net_forward.8} parent=5 // pred_check
        %p159 = pneg %p158
      $region14: #{net_forward.8} parent=5 // pred_check_branch
        %161 = sbr.rel (%p159) target = $region16
      $region15: #{net_forward.8} parent=5 // pred_region
        // Predicated region
        $region17: #{net_forward.8} parent=15 // pred_check
          %p162 = pneg %p33
        $region18: #{net_forward.8} parent=15 // pred_check_branch
          %164 = sbr.rel (%p162) target = $region20
        $region19: #{net_forward.8} parent=15 // pred_region
          %s165 = smul.u32 64, %s13
          %p166 = scmp.lt.s32.totalorder %s165, 10047
          %s167 = scalar_select %p166, %s165, 10047
          %s168 = smul.addr %s167, 4
          %s169 = scalar_lea.vmem %s0, %s168
          %s170 = smul.u32 64, %s13
        $region20: #{net_forward.8} parent=15 // pred_fallthru
          _
        // Predicated region
        $region21: #{net_forward.8} parent=15 // pred_check
          %p171 = pneg %p59
        $region22: #{net_forward.8} parent=15 // pred_check_branch
          %173 = sbr.rel (%p171) target = $region24
        $region23: #{net_forward.8} parent=15 // pred_region
          %s174 = smul.u32 64, %s13
          %p175 = scmp.lt.s32.totalorder %s174, 10047
          %s176 = scalar_select %p175, %s174, 10047
          %s177 = smul.addr %s176, 4
          %s178 = scalar_lea.vmem %s1, %s177
          %s179 = smul.u32 64, %s13
        $region24: #{net_forward.8} parent=15 // pred_fallthru
          _
        // Predicated region
        $region25: #{net_forward.8} parent=15 // pred_check
          %p180 = pneg %p85
        $region26: #{net_forward.8} parent=15 // pred_check_branch
          %182 = sbr.rel (%p180) target = $region28
        $region27: #{net_forward.8} parent=15 // pred_region
          %s183 = sand.u32 %s75, 1
          %s184 = scalar_lea.sflag [#allocation3], %s183
          %s185 = sand.u32 %s75, 1
          %s186 = smul.addr %s185, 256
          %s187 = scalar_lea.vmem [#allocation2], %s186
          %s188 = smul.u32 64, %s13
          %190 = vsyncadd %s184, 0
          %s191 = smul.addr %s188, 4
          %s192 = scalar_lea.hbm %s2, %s191
          %s193 = sshll.u32 %s192, 4
          %s194 = int_to_ptr.hbm [resolvable:$true] %s193
          %s195 = sshll.u32 %s187, 4
          %s196 = int_to_ptr.vmem [resolvable:$true] %s195
          %201 = dma.hbm_to_vmem [thread:$0]  %s194, 4096, %s196, %s184, 64, 64, 4
        $region28: #{net_forward.8} parent=15 // pred_fallthru
          _
        // Predicated region
        $region29: #{net_forward.8} parent=15 // pred_check
          %p202 = pneg %p111
        $region30: #{net_forward.8} parent=15 // pred_check_branch
          %204 = sbr.rel (%p202) target = $region32
        $region31: #{net_forward.8} parent=15 // pred_region
          %s205 = smul.u32 64, %s13
          %p206 = scmp.lt.s32.totalorder %s205, 10047
          %s207 = scalar_select %p206, %s205, 10047
          %s208 = smul.addr %s207, 4
          %s209 = scalar_lea.vmem %s3, %s208
          %s210 = smul.u32 64, %s13
        $region32: #{net_forward.8} parent=15 // pred_fallthru
          _
      $region16: #{net_forward.8} parent=5 // pred_fallthru
        _
      %p211 = scmp.le.s32.totalorder 1, %s13
      %p212 = scmp.lt.s32.totalorder %s13, 158
      %p213 = pnand %p211, %p212
      %p214 = pneg %p213
      // Predicated region
      $region33: #{net_forward.8} parent=5 // pred_check
        _
      $region34: #{net_forward.8} parent=5 // pred_check_branch
        %216 = sbr.rel (%p213) target = $region36
      $region35: #{net_forward.8} parent=5 // pred_region
        %s217 = ssub.s32 %s13, 1
        %s218 = sand.u32 %s78, 1
        %s219 = scalar_lea.sflag [#allocation3], %s218
        %s220 = sand.u32 %s78, 1
        %s221 = smul.addr %s220, 256
        %s222 = scalar_lea.vmem [#allocation2], %s221
        // Predicated region
        $region37: #{net_forward.8} parent=35 // pred_check
          %p223 = pneg %p91
        $region38: #{net_forward.8} parent=35 // pred_check_branch
          %225 = sbr.rel (%p223) target = $region40
        $region39: #{net_forward.8} parent=35 // pred_region
          %227 = dma.done %s219, 4096
        $region40: #{net_forward.8} parent=35 // pred_fallthru
          _
        %s228 = smul.u32 64, %s18
        %p229 = scmp.lt.s32.totalorder %s228, 10047
        %s230 = scalar_select %p229, %s228, 10047
        %s231 = smul.addr %s230, 4
        %s232 = scalar_lea.vmem %s0, %s231
        %p233 = pneg %p39
        %p234 = pneg %p36
        %s235 = smul.u32 64, %s18
        %p236 = scmp.lt.s32.totalorder %s235, 10047
        %s237 = scalar_select %p236, %s235, 10047
        %s238 = smul.addr %s237, 4
        %s239 = scalar_lea.vmem %s1, %s238
        %p240 = pneg %p65
        %p241 = pneg %p62
        %s242 = sand.u32 %s78, 1
        %s243 = scalar_lea.sflag [#allocation3], %s242
        %s244 = sand.u32 %s78, 1
        %s245 = smul.addr %s244, 256
        %s246 = scalar_lea.vmem [#allocation2], %s245
        %p247 = pneg %p91
        %p248 = pneg %p88
        %s249 = smul.u32 64, %s18
        %p250 = scmp.lt.s32.totalorder %s249, 10047
        %s251 = scalar_select %p250, %s249, 10047
        %s252 = smul.addr %s251, 4
        %s253 = scalar_lea.vmem %s3, %s252
        %p254 = pneg %p117
        %p255 = pneg %p114
        %p256 = pneg %p143
        %p257 = pneg %p140
        %s258 = smul.u32 64, %s18
        %p259 = scmp.lt.s32.totalorder %s258, 10047
        %s260 = scalar_select %p259, %s258, 10047
        %s261 = smul.addr %s260, 4
        %s262 = scalar_lea.vmem %s4, %s261
        %s263 = smul.u32 64, %s18
        %p264 = scmp.lt.s32.totalorder %s263, 10047
        %s265 = scalar_select %p264, %s263, 10047
        %s266 = smul.addr %s265, 4
        %s267 = scalar_lea.vmem %s0, %s266
        %s268 = smul.u32 64, %s18
        %s269 = smul.u32 64, %s18
        %p270 = scmp.lt.s32.totalorder %s269, 10047
        %s271 = scalar_select %p270, %s269, 10047
        %s272 = smul.addr %s271, 4
        %s273 = scalar_lea.vmem %s1, %s272
        %s274 = smul.u32 64, %s18
        %s275 = smul.u32 64, %s18
        %s276 = smul.u32 64, %s18
        %p277 = scmp.lt.s32.totalorder %s276, 10047
        %s278 = scalar_select %p277, %s276, 10047
        %s279 = smul.addr %s278, 4
        %s280 = scalar_lea.vmem %s3, %s279
        %s281 = smul.u32 64, %s18
        %s282 = smul.u32 64, %s18
        %p283 = scmp.lt.s32.totalorder %s282, 10047
        %s284 = scalar_select %p283, %s282, 10047
        %s285 = smul.addr %s284, 4
        %s286 = scalar_lea.vmem %s4, %s285
        %s287 = smul.u32 64, %s18
        %v288 = vld [vmem:[%s267] sm:$0xf]
        %v289 = vld [vmem:[%s267 + $0x4] sm:$0xf]
        %v290 = vld [vmem:[%s267 + $0x8] sm:$0xf]
        %v291 = vld [vmem:[%s267 + $0xc] sm:$0xf]
        %v292 = vld [vmem:[%s267 + $0x10] sm:$0xf]
        %v293 = vld [vmem:[%s267 + $0x14] sm:$0xf]
        %v294 = vld [vmem:[%s267 + $0x18] sm:$0xf]
        %v295 = vld [vmem:[%s267 + $0x1c] sm:$0xf]
        %v296 = vld [vmem:[%s267 + $0x20] sm:$0xf]
        %v297 = vld [vmem:[%s267 + $0x24] sm:$0xf]
        %v298 = vld [vmem:[%s267 + $0x28] sm:$0xf]
        %v299 = vld [vmem:[%s267 + $0x2c] sm:$0xf]
        %v300 = vld [vmem:[%s267 + $0x30] sm:$0xf]
        %v301 = vld [vmem:[%s267 + $0x34] sm:$0xf]
        %v302 = vld [vmem:[%s267 + $0x38] sm:$0xf]
        %v303 = vld [vmem:[%s267 + $0x3c] sm:$0xf]
        %v304 = vld [vmem:[%s267 + $0x40] sm:$0xf]
        %v305 = vld [vmem:[%s267 + $0x44] sm:$0xf]
        %v306 = vld [vmem:[%s267 + $0x48] sm:$0xf]
        %v307 = vld [vmem:[%s267 + $0x4c] sm:$0xf]
        %v308 = vld [vmem:[%s267 + $0x50] sm:$0xf]
        %v309 = vld [vmem:[%s267 + $0x54] sm:$0xf]
        %v310 = vld [vmem:[%s267 + $0x58] sm:$0xf]
        %v311 = vld [vmem:[%s267 + $0x5c] sm:$0xf]
        %v312 = vld [vmem:[%s267 + $0x60] sm:$0xf]
        %v313 = vld [vmem:[%s267 + $0x64] sm:$0xf]
        %v314 = vld [vmem:[%s267 + $0x68] sm:$0xf]
        %v315 = vld [vmem:[%s267 + $0x6c] sm:$0xf]
        %v316 = vld [vmem:[%s267 + $0x70] sm:$0xf]
        %v317 = vld [vmem:[%s267 + $0x74] sm:$0xf]
        %v318 = vld [vmem:[%s267 + $0x78] sm:$0xf]
        %v319 = vld [vmem:[%s267 + $0x7c] sm:$0xf]
        %v320 = vld [vmem:[%s267 + $0x80] sm:$0xf]
        %v321 = vld [vmem:[%s267 + $0x84] sm:$0xf]
        %v322 = vld [vmem:[%s267 + $0x88] sm:$0xf]
        %v323 = vld [vmem:[%s267 + $0x8c] sm:$0xf]
        %v324 = vld [vmem:[%s267 + $0x90] sm:$0xf]
        %v325 = vld [vmem:[%s267 + $0x94] sm:$0xf]
        %v326 = vld [vmem:[%s267 + $0x98] sm:$0xf]
        %v327 = vld [vmem:[%s267 + $0x9c] sm:$0xf]
        %v328 = vld [vmem:[%s267 + $0xa0] sm:$0xf]
        %v329 = vld [vmem:[%s267 + $0xa4] sm:$0xf]
        %v330 = vld [vmem:[%s267 + $0xa8] sm:$0xf]
        %v331 = vld [vmem:[%s267 + $0xac] sm:$0xf]
        %v332 = vld [vmem:[%s267 + $0xb0] sm:$0xf]
        %v333 = vld [vmem:[%s267 + $0xb4] sm:$0xf]
        %v334 = vld [vmem:[%s267 + $0xb8] sm:$0xf]
        %v335 = vld [vmem:[%s267 + $0xbc] sm:$0xf]
        %v336 = vld [vmem:[%s267 + $0xc0] sm:$0xf]
        %v337 = vld [vmem:[%s267 + $0xc4] sm:$0xf]
        %v338 = vld [vmem:[%s267 + $0xc8] sm:$0xf]
        %v339 = vld [vmem:[%s267 + $0xcc] sm:$0xf]
        %v340 = vld [vmem:[%s267 + $0xd0] sm:$0xf]
        %v341 = vld [vmem:[%s267 + $0xd4] sm:$0xf]
        %v342 = vld [vmem:[%s267 + $0xd8] sm:$0xf]
        %v343 = vld [vmem:[%s267 + $0xdc] sm:$0xf]
        %v344 = vld [vmem:[%s267 + $0xe0] sm:$0xf]
        %v345 = vld [vmem:[%s267 + $0xe4] sm:$0xf]
        %v346 = vld [vmem:[%s267 + $0xe8] sm:$0xf]
        %v347 = vld [vmem:[%s267 + $0xec] sm:$0xf]
        %v348 = vld [vmem:[%s267 + $0xf0] sm:$0xf]
        %v349 = vld [vmem:[%s267 + $0xf4] sm:$0xf]
        %v350 = vld [vmem:[%s267 + $0xf8] sm:$0xf]
        %v351 = vld [vmem:[%s267 + $0xfc] sm:$0xf]
        %v352 = vld [vmem:[%s273] sm:$0xf]
        %v353 = vld [vmem:[%s273 + $0x4] sm:$0xf]
        %v354 = vld [vmem:[%s273 + $0x8] sm:$0xf]
        %v355 = vld [vmem:[%s273 + $0xc] sm:$0xf]
        %v356 = vld [vmem:[%s273 + $0x10] sm:$0xf]
        %v357 = vld [vmem:[%s273 + $0x14] sm:$0xf]
        %v358 = vld [vmem:[%s273 + $0x18] sm:$0xf]
        %v359 = vld [vmem:[%s273 + $0x1c] sm:$0xf]
        %v360 = vld [vmem:[%s273 + $0x20] sm:$0xf]
        %v361 = vld [vmem:[%s273 + $0x24] sm:$0xf]
        %v362 = vld [vmem:[%s273 + $0x28] sm:$0xf]
        %v363 = vld [vmem:[%s273 + $0x2c] sm:$0xf]
        %v364 = vld [vmem:[%s273 + $0x30] sm:$0xf]
        %v365 = vld [vmem:[%s273 + $0x34] sm:$0xf]
        %v366 = vld [vmem:[%s273 + $0x38] sm:$0xf]
        %v367 = vld [vmem:[%s273 + $0x3c] sm:$0xf]
        %v368 = vld [vmem:[%s273 + $0x40] sm:$0xf]
        %v369 = vld [vmem:[%s273 + $0x44] sm:$0xf]
        %v370 = vld [vmem:[%s273 + $0x48] sm:$0xf]
        %v371 = vld [vmem:[%s273 + $0x4c] sm:$0xf]
        %v372 = vld [vmem:[%s273 + $0x50] sm:$0xf]
        %v373 = vld [vmem:[%s273 + $0x54] sm:$0xf]
        %v374 = vld [vmem:[%s273 + $0x58] sm:$0xf]
        %v375 = vld [vmem:[%s273 + $0x5c] sm:$0xf]
        %v376 = vld [vmem:[%s273 + $0x60] sm:$0xf]
        %v377 = vld [vmem:[%s273 + $0x64] sm:$0xf]
        %v378 = vld [vmem:[%s273 + $0x68] sm:$0xf]
        %v379 = vld [vmem:[%s273 + $0x6c] sm:$0xf]
        %v380 = vld [vmem:[%s273 + $0x70] sm:$0xf]
        %v381 = vld [vmem:[%s273 + $0x74] sm:$0xf]
        %v382 = vld [vmem:[%s273 + $0x78] sm:$0xf]
        %v383 = vld [vmem:[%s273 + $0x7c] sm:$0xf]
        %v384 = vld [vmem:[%s273 + $0x80] sm:$0xf]
        %v385 = vld [vmem:[%s273 + $0x84] sm:$0xf]
        %v386 = vld [vmem:[%s273 + $0x88] sm:$0xf]
        %v387 = vld [vmem:[%s273 + $0x8c] sm:$0xf]
        %v388 = vld [vmem:[%s273 + $0x90] sm:$0xf]
        %v389 = vld [vmem:[%s273 + $0x94] sm:$0xf]
        %v390 = vld [vmem:[%s273 + $0x98] sm:$0xf]
        %v391 = vld [vmem:[%s273 + $0x9c] sm:$0xf]
        %v392 = vld [vmem:[%s273 + $0xa0] sm:$0xf]
        %v393 = vld [vmem:[%s273 + $0xa4] sm:$0xf]
        %v394 = vld [vmem:[%s273 + $0xa8] sm:$0xf]
        %v395 = vld [vmem:[%s273 + $0xac] sm:$0xf]
        %v396 = vld [vmem:[%s273 + $0xb0] sm:$0xf]
        %v397 = vld [vmem:[%s273 + $0xb4] sm:$0xf]
        %v398 = vld [vmem:[%s273 + $0xb8] sm:$0xf]
        %v399 = vld [vmem:[%s273 + $0xbc] sm:$0xf]
        %v400 = vld [vmem:[%s273 + $0xc0] sm:$0xf]
        %v401 = vld [vmem:[%s273 + $0xc4] sm:$0xf]
        %v402 = vld [vmem:[%s273 + $0xc8] sm:$0xf]
        %v403 = vld [vmem:[%s273 + $0xcc] sm:$0xf]
        %v404 = vld [vmem:[%s273 + $0xd0] sm:$0xf]
        %v405 = vld [vmem:[%s273 + $0xd4] sm:$0xf]
        %v406 = vld [vmem:[%s273 + $0xd8] sm:$0xf]
        %v407 = vld [vmem:[%s273 + $0xdc] sm:$0xf]
        %v408 = vld [vmem:[%s273 + $0xe0] sm:$0xf]
        %v409 = vld [vmem:[%s273 + $0xe4] sm:$0xf]
        %v410 = vld [vmem:[%s273 + $0xe8] sm:$0xf]
        %v411 = vld [vmem:[%s273 + $0xec] sm:$0xf]
        %v412 = vld [vmem:[%s273 + $0xf0] sm:$0xf]
        %v413 = vld [vmem:[%s273 + $0xf4] sm:$0xf]
        %v414 = vld [vmem:[%s273 + $0xf8] sm:$0xf]
        %v415 = vld [vmem:[%s273 + $0xfc] sm:$0xf]
        %v416 = vunpack.c.l.bf16 %v288
        %v417 = vunpack.c.l.bf16 %v289
        %v418 = vunpack.c.l.bf16 %v290
        %v419 = vunpack.c.l.bf16 %v291
        %v420 = vunpack.c.l.bf16 %v292
        %v421 = vunpack.c.l.bf16 %v293
        %v422 = vunpack.c.l.bf16 %v294
        %v423 = vunpack.c.l.bf16 %v295
        %v424 = vunpack.c.l.bf16 %v296
        %v425 = vunpack.c.l.bf16 %v297
        %v426 = vunpack.c.l.bf16 %v298
        %v427 = vunpack.c.l.bf16 %v299
        %v428 = vunpack.c.l.bf16 %v300
        %v429 = vunpack.c.l.bf16 %v301
        %v430 = vunpack.c.l.bf16 %v302
        %v431 = vunpack.c.l.bf16 %v303
        %v432 = vunpack.c.l.bf16 %v304
        %v433 = vunpack.c.l.bf16 %v305
        %v434 = vunpack.c.l.bf16 %v306
        %v435 = vunpack.c.l.bf16 %v307
        %v436 = vunpack.c.l.bf16 %v308
        %v437 = vunpack.c.l.bf16 %v309
        %v438 = vunpack.c.l.bf16 %v310
        %v439 = vunpack.c.l.bf16 %v311
        %v440 = vunpack.c.l.bf16 %v312
        %v441 = vunpack.c.l.bf16 %v313
        %v442 = vunpack.c.l.bf16 %v314
        %v443 = vunpack.c.l.bf16 %v315
        %v444 = vunpack.c.l.bf16 %v316
        %v445 = vunpack.c.l.bf16 %v317
        %v446 = vunpack.c.l.bf16 %v318
        %v447 = vunpack.c.l.bf16 %v319
        %v448 = vunpack.c.l.bf16 %v320
        %v449 = vunpack.c.l.bf16 %v321
        %v450 = vunpack.c.l.bf16 %v322
        %v451 = vunpack.c.l.bf16 %v323
        %v452 = vunpack.c.l.bf16 %v324
        %v453 = vunpack.c.l.bf16 %v325
        %v454 = vunpack.c.l.bf16 %v326
        %v455 = vunpack.c.l.bf16 %v327
        %v456 = vunpack.c.l.bf16 %v328
        %v457 = vunpack.c.l.bf16 %v329
        %v458 = vunpack.c.l.bf16 %v330
        %v459 = vunpack.c.l.bf16 %v331
        %v460 = vunpack.c.l.bf16 %v332
        %v461 = vunpack.c.l.bf16 %v333
        %v462 = vunpack.c.l.bf16 %v334
        %v463 = vunpack.c.l.bf16 %v335
        %v464 = vunpack.c.l.bf16 %v336
        %v465 = vunpack.c.l.bf16 %v337
        %v466 = vunpack.c.l.bf16 %v338
        %v467 = vunpack.c.l.bf16 %v339
        %v468 = vunpack.c.l.bf16 %v340
        %v469 = vunpack.c.l.bf16 %v341
        %v470 = vunpack.c.l.bf16 %v342
        %v471 = vunpack.c.l.bf16 %v343
        %v472 = vunpack.c.l.bf16 %v344
        %v473 = vunpack.c.l.bf16 %v345
        %v474 = vunpack.c.l.bf16 %v346
        %v475 = vunpack.c.l.bf16 %v347
        %v476 = vunpack.c.l.bf16 %v348
        %v477 = vunpack.c.l.bf16 %v349
        %v478 = vunpack.c.l.bf16 %v350
        %v479 = vunpack.c.l.bf16 %v351
        %v480 = vunpack.c.l.bf16 %v352
        %v481 = vunpack.c.l.bf16 %v353
        %v482 = vunpack.c.l.bf16 %v354
        %v483 = vunpack.c.l.bf16 %v355
        %v484 = vunpack.c.l.bf16 %v356
        %v485 = vunpack.c.l.bf16 %v357
        %v486 = vunpack.c.l.bf16 %v358
        %v487 = vunpack.c.l.bf16 %v359
        %v488 = vunpack.c.l.bf16 %v360
        %v489 = vunpack.c.l.bf16 %v361
        %v490 = vunpack.c.l.bf16 %v362
        %v491 = vunpack.c.l.bf16 %v363
        %v492 = vunpack.c.l.bf16 %v364
        %v493 = vunpack.c.l.bf16 %v365
        %v494 = vunpack.c.l.bf16 %v366
        %v495 = vunpack.c.l.bf16 %v367
        %v496 = vunpack.c.l.bf16 %v368
        %v497 = vunpack.c.l.bf16 %v369
        %v498 = vunpack.c.l.bf16 %v370
        %v499 = vunpack.c.l.bf16 %v371
        %v500 = vunpack.c.l.bf16 %v372
        %v501 = vunpack.c.l.bf16 %v373
        %v502 = vunpack.c.l.bf16 %v374
        %v503 = vunpack.c.l.bf16 %v375
        %v504 = vunpack.c.l.bf16 %v376
        %v505 = vunpack.c.l.bf16 %v377
        %v506 = vunpack.c.l.bf16 %v378
        %v507 = vunpack.c.l.bf16 %v379
        %v508 = vunpack.c.l.bf16 %v380
        %v509 = vunpack.c.l.bf16 %v381
        %v510 = vunpack.c.l.bf16 %v382
        %v511 = vunpack.c.l.bf16 %v383
        %v512 = vunpack.c.l.bf16 %v384
        %v513 = vunpack.c.l.bf16 %v385
        %v514 = vunpack.c.l.bf16 %v386
        %v515 = vunpack.c.l.bf16 %v387
        %v516 = vunpack.c.l.bf16 %v388
        %v517 = vunpack.c.l.bf16 %v389
        %v518 = vunpack.c.l.bf16 %v390
        %v519 = vunpack.c.l.bf16 %v391
        %v520 = vunpack.c.l.bf16 %v392
        %v521 = vunpack.c.l.bf16 %v393
        %v522 = vunpack.c.l.bf16 %v394
        %v523 = vunpack.c.l.bf16 %v395
        %v524 = vunpack.c.l.bf16 %v396
        %v525 = vunpack.c.l.bf16 %v397
        %v526 = vunpack.c.l.bf16 %v398
        %v527 = vunpack.c.l.bf16 %v399
        %v528 = vunpack.c.l.bf16 %v400
        %v529 = vunpack.c.l.bf16 %v401
        %v530 = vunpack.c.l.bf16 %v402
        %v531 = vunpack.c.l.bf16 %v403
        %v532 = vunpack.c.l.bf16 %v404
        %v533 = vunpack.c.l.bf16 %v405
        %v534 = vunpack.c.l.bf16 %v406
        %v535 = vunpack.c.l.bf16 %v407
        %v536 = vunpack.c.l.bf16 %v408
        %v537 = vunpack.c.l.bf16 %v409
        %v538 = vunpack.c.l.bf16 %v410
        %v539 = vunpack.c.l.bf16 %v411
        %v540 = vunpack.c.l.bf16 %v412
        %v541 = vunpack.c.l.bf16 %v413
        %v542 = vunpack.c.l.bf16 %v414
        %v543 = vunpack.c.l.bf16 %v415
        %v544 = vmax.f32 %v416, %v480
        %v545 = vmax.f32 %v417, %v481
        %v546 = vmax.f32 %v418, %v482
        %v547 = vmax.f32 %v419, %v483
        %v548 = vmax.f32 %v420, %v484
        %v549 = vmax.f32 %v421, %v485
        %v550 = vmax.f32 %v422, %v486
        %v551 = vmax.f32 %v423, %v487
        %v552 = vmax.f32 %v424, %v488
        %v553 = vmax.f32 %v425, %v489
        %v554 = vmax.f32 %v426, %v490
        %v555 = vmax.f32 %v427, %v491
        %v556 = vmax.f32 %v428, %v492
        %v557 = vmax.f32 %v429, %v493
        %v558 = vmax.f32 %v430, %v494
        %v559 = vmax.f32 %v431, %v495
        %v560 = vmax.f32 %v432, %v496
        %v561 = vmax.f32 %v433, %v497
        %v562 = vmax.f32 %v434, %v498
        %v563 = vmax.f32 %v435, %v499
        %v564 = vmax.f32 %v436, %v500
        %v565 = vmax.f32 %v437, %v501
        %v566 = vmax.f32 %v438, %v502
        %v567 = vmax.f32 %v439, %v503
        %v568 = vmax.f32 %v440, %v504
        %v569 = vmax.f32 %v441, %v505
        %v570 = vmax.f32 %v442, %v506
        %v571 = vmax.f32 %v443, %v507
        %v572 = vmax.f32 %v444, %v508
        %v573 = vmax.f32 %v445, %v509
        %v574 = vmax.f32 %v446, %v510
        %v575 = vmax.f32 %v447, %v511
        %v576 = vmax.f32 %v448, %v512
        %v577 = vmax.f32 %v449, %v513
        %v578 = vmax.f32 %v450, %v514
        %v579 = vmax.f32 %v451, %v515
        %v580 = vmax.f32 %v452, %v516
        %v581 = vmax.f32 %v453, %v517
        %v582 = vmax.f32 %v454, %v518
        %v583 = vmax.f32 %v455, %v519
        %v584 = vmax.f32 %v456, %v520
        %v585 = vmax.f32 %v457, %v521
        %v586 = vmax.f32 %v458, %v522
        %v587 = vmax.f32 %v459, %v523
        %v588 = vmax.f32 %v460, %v524
        %v589 = vmax.f32 %v461, %v525
        %v590 = vmax.f32 %v462, %v526
        %v591 = vmax.f32 %v463, %v527
        %v592 = vmax.f32 %v464, %v528
        %v593 = vmax.f32 %v465, %v529
        %v594 = vmax.f32 %v466, %v530
        %v595 = vmax.f32 %v467, %v531
        %v596 = vmax.f32 %v468, %v532
        %v597 = vmax.f32 %v469, %v533
        %v598 = vmax.f32 %v470, %v534
        %v599 = vmax.f32 %v471, %v535
        %v600 = vmax.f32 %v472, %v536
        %v601 = vmax.f32 %v473, %v537
        %v602 = vmax.f32 %v474, %v538
        %v603 = vmax.f32 %v475, %v539
        %v604 = vmax.f32 %v476, %v540
        %v605 = vmax.f32 %v477, %v541
        %v606 = vmax.f32 %v478, %v542
        %v607 = vmax.f32 %v479, %v543
        %v608 = vpack.c.bf16 %v544, %v544
        %v609 = vpack.c.bf16 %v545, %v545
        %v610 = vpack.c.bf16 %v546, %v546
        %v611 = vpack.c.bf16 %v547, %v547
        %v612 = vpack.c.bf16 %v548, %v548
        %v613 = vpack.c.bf16 %v549, %v549
        %v614 = vpack.c.bf16 %v550, %v550
        %v615 = vpack.c.bf16 %v551, %v551
        %v616 = vpack.c.bf16 %v552, %v552
        %v617 = vpack.c.bf16 %v553, %v553
        %v618 = vpack.c.bf16 %v554, %v554
        %v619 = vpack.c.bf16 %v555, %v555
        %v620 = vpack.c.bf16 %v556, %v556
        %v621 = vpack.c.bf16 %v557, %v557
        %v622 = vpack.c.bf16 %v558, %v558
        %v623 = vpack.c.bf16 %v559, %v559
        %v624 = vpack.c.bf16 %v560, %v560
        %v625 = vpack.c.bf16 %v561, %v561
        %v626 = vpack.c.bf16 %v562, %v562
        %v627 = vpack.c.bf16 %v563, %v563
        %v628 = vpack.c.bf16 %v564, %v564
        %v629 = vpack.c.bf16 %v565, %v565
        %v630 = vpack.c.bf16 %v566, %v566
        %v631 = vpack.c.bf16 %v567, %v567
        %v632 = vpack.c.bf16 %v568, %v568
        %v633 = vpack.c.bf16 %v569, %v569
        %v634 = vpack.c.bf16 %v570, %v570
        %v635 = vpack.c.bf16 %v571, %v571
        %v636 = vpack.c.bf16 %v572, %v572
        %v637 = vpack.c.bf16 %v573, %v573
        %v638 = vpack.c.bf16 %v574, %v574
        %v639 = vpack.c.bf16 %v575, %v575
        %v640 = vpack.c.bf16 %v576, %v576
        %v641 = vpack.c.bf16 %v577, %v577
        %v642 = vpack.c.bf16 %v578, %v578
        %v643 = vpack.c.bf16 %v579, %v579
        %v644 = vpack.c.bf16 %v580, %v580
        %v645 = vpack.c.bf16 %v581, %v581
        %v646 = vpack.c.bf16 %v582, %v582
        %v647 = vpack.c.bf16 %v583, %v583
        %v648 = vpack.c.bf16 %v584, %v584
        %v649 = vpack.c.bf16 %v585, %v585
        %v650 = vpack.c.bf16 %v586, %v586
        %v651 = vpack.c.bf16 %v587, %v587
        %v652 = vpack.c.bf16 %v588, %v588
        %v653 = vpack.c.bf16 %v589, %v589
        %v654 = vpack.c.bf16 %v590, %v590
        %v655 = vpack.c.bf16 %v591, %v591
        %v656 = vpack.c.bf16 %v592, %v592
        %v657 = vpack.c.bf16 %v593, %v593
        %v658 = vpack.c.bf16 %v594, %v594
        %v659 = vpack.c.bf16 %v595, %v595
        %v660 = vpack.c.bf16 %v596, %v596
        %v661 = vpack.c.bf16 %v597, %v597
        %v662 = vpack.c.bf16 %v598, %v598
        %v663 = vpack.c.bf16 %v599, %v599
        %v664 = vpack.c.bf16 %v600, %v600
        %v665 = vpack.c.bf16 %v601, %v601
        %v666 = vpack.c.bf16 %v602, %v602
        %v667 = vpack.c.bf16 %v603, %v603
        %v668 = vpack.c.bf16 %v604, %v604
        %v669 = vpack.c.bf16 %v605, %v605
        %v670 = vpack.c.bf16 %v606, %v606
        %v671 = vpack.c.bf16 %v607, %v607
        %v672 = vld [vmem:[%s222] sm:$0xf]
        %v673 = vld [vmem:[%s222 + $0x4] sm:$0xf]
        %v674 = vld [vmem:[%s222 + $0x8] sm:$0xf]
        %v675 = vld [vmem:[%s222 + $0xc] sm:$0xf]
        %v676 = vld [vmem:[%s222 + $0x10] sm:$0xf]
        %v677 = vld [vmem:[%s222 + $0x14] sm:$0xf]
        %v678 = vld [vmem:[%s222 + $0x18] sm:$0xf]
        %v679 = vld [vmem:[%s222 + $0x1c] sm:$0xf]
        %v680 = vld [vmem:[%s222 + $0x20] sm:$0xf]
        %v681 = vld [vmem:[%s222 + $0x24] sm:$0xf]
        %v682 = vld [vmem:[%s222 + $0x28] sm:$0xf]
        %v683 = vld [vmem:[%s222 + $0x2c] sm:$0xf]
        %v684 = vld [vmem:[%s222 + $0x30] sm:$0xf]
        %v685 = vld [vmem:[%s222 + $0x34] sm:$0xf]
        %v686 = vld [vmem:[%s222 + $0x38] sm:$0xf]
        %v687 = vld [vmem:[%s222 + $0x3c] sm:$0xf]
        %v688 = vld [vmem:[%s222 + $0x40] sm:$0xf]
        %v689 = vld [vmem:[%s222 + $0x44] sm:$0xf]
        %v690 = vld [vmem:[%s222 + $0x48] sm:$0xf]
        %v691 = vld [vmem:[%s222 + $0x4c] sm:$0xf]
        %v692 = vld [vmem:[%s222 + $0x50] sm:$0xf]
        %v693 = vld [vmem:[%s222 + $0x54] sm:$0xf]
        %v694 = vld [vmem:[%s222 + $0x58] sm:$0xf]
        %v695 = vld [vmem:[%s222 + $0x5c] sm:$0xf]
        %v696 = vld [vmem:[%s222 + $0x60] sm:$0xf]
        %v697 = vld [vmem:[%s222 + $0x64] sm:$0xf]
        %v698 = vld [vmem:[%s222 + $0x68] sm:$0xf]
        %v699 = vld [vmem:[%s222 + $0x6c] sm:$0xf]
        %v700 = vld [vmem:[%s222 + $0x70] sm:$0xf]
        %v701 = vld [vmem:[%s222 + $0x74] sm:$0xf]
        %v702 = vld [vmem:[%s222 + $0x78] sm:$0xf]
        %v703 = vld [vmem:[%s222 + $0x7c] sm:$0xf]
        %v704 = vld [vmem:[%s222 + $0x80] sm:$0xf]
        %v705 = vld [vmem:[%s222 + $0x84] sm:$0xf]
        %v706 = vld [vmem:[%s222 + $0x88] sm:$0xf]
        %v707 = vld [vmem:[%s222 + $0x8c] sm:$0xf]
        %v708 = vld [vmem:[%s222 + $0x90] sm:$0xf]
        %v709 = vld [vmem:[%s222 + $0x94] sm:$0xf]
        %v710 = vld [vmem:[%s222 + $0x98] sm:$0xf]
        %v711 = vld [vmem:[%s222 + $0x9c] sm:$0xf]
        %v712 = vld [vmem:[%s222 + $0xa0] sm:$0xf]
        %v713 = vld [vmem:[%s222 + $0xa4] sm:$0xf]
        %v714 = vld [vmem:[%s222 + $0xa8] sm:$0xf]
        %v715 = vld [vmem:[%s222 + $0xac] sm:$0xf]
        %v716 = vld [vmem:[%s222 + $0xb0] sm:$0xf]
        %v717 = vld [vmem:[%s222 + $0xb4] sm:$0xf]
        %v718 = vld [vmem:[%s222 + $0xb8] sm:$0xf]
        %v719 = vld [vmem:[%s222 + $0xbc] sm:$0xf]
        %v720 = vld [vmem:[%s222 + $0xc0] sm:$0xf]
        %v721 = vld [vmem:[%s222 + $0xc4] sm:$0xf]
        %v722 = vld [vmem:[%s222 + $0xc8] sm:$0xf]
        %v723 = vld [vmem:[%s222 + $0xcc] sm:$0xf]
        %v724 = vld [vmem:[%s222 + $0xd0] sm:$0xf]
        %v725 = vld [vmem:[%s222 + $0xd4] sm:$0xf]
        %v726 = vld [vmem:[%s222 + $0xd8] sm:$0xf]
        %v727 = vld [vmem:[%s222 + $0xdc] sm:$0xf]
        %v728 = vld [vmem:[%s222 + $0xe0] sm:$0xf]
        %v729 = vld [vmem:[%s222 + $0xe4] sm:$0xf]
        %v730 = vld [vmem:[%s222 + $0xe8] sm:$0xf]
        %v731 = vld [vmem:[%s222 + $0xec] sm:$0xf]
        %v732 = vld [vmem:[%s222 + $0xf0] sm:$0xf]
        %v733 = vld [vmem:[%s222 + $0xf4] sm:$0xf]
        %v734 = vld [vmem:[%s222 + $0xf8] sm:$0xf]
        %v735 = vld [vmem:[%s222 + $0xfc] sm:$0xf]
        %v736 = vld [vmem:[%s280] sm:$0xf]
        %v737 = vld [vmem:[%s280 + $0x4] sm:$0xf]
        %v738 = vld [vmem:[%s280 + $0x8] sm:$0xf]
        %v739 = vld [vmem:[%s280 + $0xc] sm:$0xf]
        %v740 = vld [vmem:[%s280 + $0x10] sm:$0xf]
        %v741 = vld [vmem:[%s280 + $0x14] sm:$0xf]
        %v742 = vld [vmem:[%s280 + $0x18] sm:$0xf]
        %v743 = vld [vmem:[%s280 + $0x1c] sm:$0xf]
        %v744 = vld [vmem:[%s280 + $0x20] sm:$0xf]
        %v745 = vld [vmem:[%s280 + $0x24] sm:$0xf]
        %v746 = vld [vmem:[%s280 + $0x28] sm:$0xf]
        %v747 = vld [vmem:[%s280 + $0x2c] sm:$0xf]
        %v748 = vld [vmem:[%s280 + $0x30] sm:$0xf]
        %v749 = vld [vmem:[%s280 + $0x34] sm:$0xf]
        %v750 = vld [vmem:[%s280 + $0x38] sm:$0xf]
        %v751 = vld [vmem:[%s280 + $0x3c] sm:$0xf]
        %v752 = vld [vmem:[%s280 + $0x40] sm:$0xf]
        %v753 = vld [vmem:[%s280 + $0x44] sm:$0xf]
        %v754 = vld [vmem:[%s280 + $0x48] sm:$0xf]
        %v755 = vld [vmem:[%s280 + $0x4c] sm:$0xf]
        %v756 = vld [vmem:[%s280 + $0x50] sm:$0xf]
        %v757 = vld [vmem:[%s280 + $0x54] sm:$0xf]
        %v758 = vld [vmem:[%s280 + $0x58] sm:$0xf]
        %v759 = vld [vmem:[%s280 + $0x5c] sm:$0xf]
        %v760 = vld [vmem:[%s280 + $0x60] sm:$0xf]
        %v761 = vld [vmem:[%s280 + $0x64] sm:$0xf]
        %v762 = vld [vmem:[%s280 + $0x68] sm:$0xf]
        %v763 = vld [vmem:[%s280 + $0x6c] sm:$0xf]
        %v764 = vld [vmem:[%s280 + $0x70] sm:$0xf]
        %v765 = vld [vmem:[%s280 + $0x74] sm:$0xf]
        %v766 = vld [vmem:[%s280 + $0x78] sm:$0xf]
        %v767 = vld [vmem:[%s280 + $0x7c] sm:$0xf]
        %v768 = vld [vmem:[%s280 + $0x80] sm:$0xf]
        %v769 = vld [vmem:[%s280 + $0x84] sm:$0xf]
        %v770 = vld [vmem:[%s280 + $0x88] sm:$0xf]
        %v771 = vld [vmem:[%s280 + $0x8c] sm:$0xf]
        %v772 = vld [vmem:[%s280 + $0x90] sm:$0xf]
        %v773 = vld [vmem:[%s280 + $0x94] sm:$0xf]
        %v774 = vld [vmem:[%s280 + $0x98] sm:$0xf]
        %v775 = vld [vmem:[%s280 + $0x9c] sm:$0xf]
        %v776 = vld [vmem:[%s280 + $0xa0] sm:$0xf]
        %v777 = vld [vmem:[%s280 + $0xa4] sm:$0xf]
        %v778 = vld [vmem:[%s280 + $0xa8] sm:$0xf]
        %v779 = vld [vmem:[%s280 + $0xac] sm:$0xf]
        %v780 = vld [vmem:[%s280 + $0xb0] sm:$0xf]
        %v781 = vld [vmem:[%s280 + $0xb4] sm:$0xf]
        %v782 = vld [vmem:[%s280 + $0xb8] sm:$0xf]
        %v783 = vld [vmem:[%s280 + $0xbc] sm:$0xf]
        %v784 = vld [vmem:[%s280 + $0xc0] sm:$0xf]
        %v785 = vld [vmem:[%s280 + $0xc4] sm:$0xf]
        %v786 = vld [vmem:[%s280 + $0xc8] sm:$0xf]
        %v787 = vld [vmem:[%s280 + $0xcc] sm:$0xf]
        %v788 = vld [vmem:[%s280 + $0xd0] sm:$0xf]
        %v789 = vld [vmem:[%s280 + $0xd4] sm:$0xf]
        %v790 = vld [vmem:[%s280 + $0xd8] sm:$0xf]
        %v791 = vld [vmem:[%s280 + $0xdc] sm:$0xf]
        %v792 = vld [vmem:[%s280 + $0xe0] sm:$0xf]
        %v793 = vld [vmem:[%s280 + $0xe4] sm:$0xf]
        %v794 = vld [vmem:[%s280 + $0xe8] sm:$0xf]
        %v795 = vld [vmem:[%s280 + $0xec] sm:$0xf]
        %v796 = vld [vmem:[%s280 + $0xf0] sm:$0xf]
        %v797 = vld [vmem:[%s280 + $0xf4] sm:$0xf]
        %v798 = vld [vmem:[%s280 + $0xf8] sm:$0xf]
        %v799 = vld [vmem:[%s280 + $0xfc] sm:$0xf]
        %v800 = vunpack.c.l.bf16 %v672
        %v801 = vunpack.c.l.bf16 %v673
        %v802 = vunpack.c.l.bf16 %v674
        %v803 = vunpack.c.l.bf16 %v675
        %v804 = vunpack.c.l.bf16 %v676
        %v805 = vunpack.c.l.bf16 %v677
        %v806 = vunpack.c.l.bf16 %v678
        %v807 = vunpack.c.l.bf16 %v679
        %v808 = vunpack.c.l.bf16 %v680
        %v809 = vunpack.c.l.bf16 %v681
        %v810 = vunpack.c.l.bf16 %v682
        %v811 = vunpack.c.l.bf16 %v683
        %v812 = vunpack.c.l.bf16 %v684
        %v813 = vunpack.c.l.bf16 %v685
        %v814 = vunpack.c.l.bf16 %v686
        %v815 = vunpack.c.l.bf16 %v687
        %v816 = vunpack.c.l.bf16 %v688
        %v817 = vunpack.c.l.bf16 %v689
        %v818 = vunpack.c.l.bf16 %v690
        %v819 = vunpack.c.l.bf16 %v691
        %v820 = vunpack.c.l.bf16 %v692
        %v821 = vunpack.c.l.bf16 %v693
        %v822 = vunpack.c.l.bf16 %v694
        %v823 = vunpack.c.l.bf16 %v695
        %v824 = vunpack.c.l.bf16 %v696
        %v825 = vunpack.c.l.bf16 %v697
        %v826 = vunpack.c.l.bf16 %v698
        %v827 = vunpack.c.l.bf16 %v699
        %v828 = vunpack.c.l.bf16 %v700
        %v829 = vunpack.c.l.bf16 %v701
        %v830 = vunpack.c.l.bf16 %v702
        %v831 = vunpack.c.l.bf16 %v703
        %v832 = vunpack.c.l.bf16 %v704
        %v833 = vunpack.c.l.bf16 %v705
        %v834 = vunpack.c.l.bf16 %v706
        %v835 = vunpack.c.l.bf16 %v707
        %v836 = vunpack.c.l.bf16 %v708
        %v837 = vunpack.c.l.bf16 %v709
        %v838 = vunpack.c.l.bf16 %v710
        %v839 = vunpack.c.l.bf16 %v711
        %v840 = vunpack.c.l.bf16 %v712
        %v841 = vunpack.c.l.bf16 %v713
        %v842 = vunpack.c.l.bf16 %v714
        %v843 = vunpack.c.l.bf16 %v715
        %v844 = vunpack.c.l.bf16 %v716
        %v845 = vunpack.c.l.bf16 %v717
        %v846 = vunpack.c.l.bf16 %v718
        %v847 = vunpack.c.l.bf16 %v719
        %v848 = vunpack.c.l.bf16 %v720
        %v849 = vunpack.c.l.bf16 %v721
        %v850 = vunpack.c.l.bf16 %v722
        %v851 = vunpack.c.l.bf16 %v723
        %v852 = vunpack.c.l.bf16 %v724
        %v853 = vunpack.c.l.bf16 %v725
        %v854 = vunpack.c.l.bf16 %v726
        %v855 = vunpack.c.l.bf16 %v727
        %v856 = vunpack.c.l.bf16 %v728
        %v857 = vunpack.c.l.bf16 %v729
        %v858 = vunpack.c.l.bf16 %v730
        %v859 = vunpack.c.l.bf16 %v731
        %v860 = vunpack.c.l.bf16 %v732
        %v861 = vunpack.c.l.bf16 %v733
        %v862 = vunpack.c.l.bf16 %v734
        %v863 = vunpack.c.l.bf16 %v735
        %v864 = vunpack.c.l.bf16 %v736
        %v865 = vunpack.c.l.bf16 %v737
        %v866 = vunpack.c.l.bf16 %v738
        %v867 = vunpack.c.l.bf16 %v739
        %v868 = vunpack.c.l.bf16 %v740
        %v869 = vunpack.c.l.bf16 %v741
        %v870 = vunpack.c.l.bf16 %v742
        %v871 = vunpack.c.l.bf16 %v743
        %v872 = vunpack.c.l.bf16 %v744
        %v873 = vunpack.c.l.bf16 %v745
        %v874 = vunpack.c.l.bf16 %v746
        %v875 = vunpack.c.l.bf16 %v747
        %v876 = vunpack.c.l.bf16 %v748
        %v877 = vunpack.c.l.bf16 %v749
        %v878 = vunpack.c.l.bf16 %v750
        %v879 = vunpack.c.l.bf16 %v751
        %v880 = vunpack.c.l.bf16 %v752
        %v881 = vunpack.c.l.bf16 %v753
        %v882 = vunpack.c.l.bf16 %v754
        %v883 = vunpack.c.l.bf16 %v755
        %v884 = vunpack.c.l.bf16 %v756
        %v885 = vunpack.c.l.bf16 %v757
        %v886 = vunpack.c.l.bf16 %v758
        %v887 = vunpack.c.l.bf16 %v759
        %v888 = vunpack.c.l.bf16 %v760
        %v889 = vunpack.c.l.bf16 %v761
        %v890 = vunpack.c.l.bf16 %v762
        %v891 = vunpack.c.l.bf16 %v763
        %v892 = vunpack.c.l.bf16 %v764
        %v893 = vunpack.c.l.bf16 %v765
        %v894 = vunpack.c.l.bf16 %v766
        %v895 = vunpack.c.l.bf16 %v767
        %v896 = vunpack.c.l.bf16 %v768
        %v897 = vunpack.c.l.bf16 %v769
        %v898 = vunpack.c.l.bf16 %v770
        %v899 = vunpack.c.l.bf16 %v771
        %v900 = vunpack.c.l.bf16 %v772
        %v901 = vunpack.c.l.bf16 %v773
        %v902 = vunpack.c.l.bf16 %v774
        %v903 = vunpack.c.l.bf16 %v775
        %v904 = vunpack.c.l.bf16 %v776
        %v905 = vunpack.c.l.bf16 %v777
        %v906 = vunpack.c.l.bf16 %v778
        %v907 = vunpack.c.l.bf16 %v779
        %v908 = vunpack.c.l.bf16 %v780
        %v909 = vunpack.c.l.bf16 %v781
        %v910 = vunpack.c.l.bf16 %v782
        %v911 = vunpack.c.l.bf16 %v783
        %v912 = vunpack.c.l.bf16 %v784
        %v913 = vunpack.c.l.bf16 %v785
        %v914 = vunpack.c.l.bf16 %v786
        %v915 = vunpack.c.l.bf16 %v787
        %v916 = vunpack.c.l.bf16 %v788
        %v917 = vunpack.c.l.bf16 %v789
        %v918 = vunpack.c.l.bf16 %v790
        %v919 = vunpack.c.l.bf16 %v791
        %v920 = vunpack.c.l.bf16 %v792
        %v921 = vunpack.c.l.bf16 %v793
        %v922 = vunpack.c.l.bf16 %v794
        %v923 = vunpack.c.l.bf16 %v795
        %v924 = vunpack.c.l.bf16 %v796
        %v925 = vunpack.c.l.bf16 %v797
        %v926 = vunpack.c.l.bf16 %v798
        %v927 = vunpack.c.l.bf16 %v799
        %v928 = vmax.f32 %v800, %v864
        %v929 = vmax.f32 %v801, %v865
        %v930 = vmax.f32 %v802, %v866
        %v931 = vmax.f32 %v803, %v867
        %v932 = vmax.f32 %v804, %v868
        %v933 = vmax.f32 %v805, %v869
        %v934 = vmax.f32 %v806, %v870
        %v935 = vmax.f32 %v807, %v871
        %v936 = vmax.f32 %v808, %v872
        %v937 = vmax.f32 %v809, %v873
        %v938 = vmax.f32 %v810, %v874
        %v939 = vmax.f32 %v811, %v875
        %v940 = vmax.f32 %v812, %v876
        %v941 = vmax.f32 %v813, %v877
        %v942 = vmax.f32 %v814, %v878
        %v943 = vmax.f32 %v815, %v879
        %v944 = vmax.f32 %v816, %v880
        %v945 = vmax.f32 %v817, %v881
        %v946 = vmax.f32 %v818, %v882
        %v947 = vmax.f32 %v819, %v883
        %v948 = vmax.f32 %v820, %v884
        %v949 = vmax.f32 %v821, %v885
        %v950 = vmax.f32 %v822, %v886
        %v951 = vmax.f32 %v823, %v887
        %v952 = vmax.f32 %v824, %v888
        %v953 = vmax.f32 %v825, %v889
        %v954 = vmax.f32 %v826, %v890
        %v955 = vmax.f32 %v827, %v891
        %v956 = vmax.f32 %v828, %v892
        %v957 = vmax.f32 %v829, %v893
        %v958 = vmax.f32 %v830, %v894
        %v959 = vmax.f32 %v831, %v895
        %v960 = vmax.f32 %v832, %v896
        %v961 = vmax.f32 %v833, %v897
        %v962 = vmax.f32 %v834, %v898
        %v963 = vmax.f32 %v835, %v899
        %v964 = vmax.f32 %v836, %v900
        %v965 = vmax.f32 %v837, %v901
        %v966 = vmax.f32 %v838, %v902
        %v967 = vmax.f32 %v839, %v903
        %v968 = vmax.f32 %v840, %v904
        %v969 = vmax.f32 %v841, %v905
        %v970 = vmax.f32 %v842, %v906
        %v971 = vmax.f32 %v843, %v907
        %v972 = vmax.f32 %v844, %v908
        %v973 = vmax.f32 %v845, %v909
        %v974 = vmax.f32 %v846, %v910
        %v975 = vmax.f32 %v847, %v911
        %v976 = vmax.f32 %v848, %v912
        %v977 = vmax.f32 %v849, %v913
        %v978 = vmax.f32 %v850, %v914
        %v979 = vmax.f32 %v851, %v915
        %v980 = vmax.f32 %v852, %v916
        %v981 = vmax.f32 %v853, %v917
        %v982 = vmax.f32 %v854, %v918
        %v983 = vmax.f32 %v855, %v919
        %v984 = vmax.f32 %v856, %v920
        %v985 = vmax.f32 %v857, %v921
        %v986 = vmax.f32 %v858, %v922
        %v987 = vmax.f32 %v859, %v923
        %v988 = vmax.f32 %v860, %v924
        %v989 = vmax.f32 %v861, %v925
        %v990 = vmax.f32 %v862, %v926
        %v991 = vmax.f32 %v863, %v927
        %v992 = vpack.c.bf16 %v928, %v928
        %v993 = vpack.c.bf16 %v929, %v929
        %v994 = vpack.c.bf16 %v930, %v930
        %v995 = vpack.c.bf16 %v931, %v931
        %v996 = vpack.c.bf16 %v932, %v932
        %v997 = vpack.c.bf16 %v933, %v933
        %v998 = vpack.c.bf16 %v934, %v934
        %v999 = vpack.c.bf16 %v935, %v935
        %v1000 = vpack.c.bf16 %v936, %v936
        %v1001 = vpack.c.bf16 %v937, %v937
        %v1002 = vpack.c.bf16 %v938, %v938
        %v1003 = vpack.c.bf16 %v939, %v939
        %v1004 = vpack.c.bf16 %v940, %v940
        %v1005 = vpack.c.bf16 %v941, %v941
        %v1006 = vpack.c.bf16 %v942, %v942
        %v1007 = vpack.c.bf16 %v943, %v943
        %v1008 = vpack.c.bf16 %v944, %v944
        %v1009 = vpack.c.bf16 %v945, %v945
        %v1010 = vpack.c.bf16 %v946, %v946
        %v1011 = vpack.c.bf16 %v947, %v947
        %v1012 = vpack.c.bf16 %v948, %v948
        %v1013 = vpack.c.bf16 %v949, %v949
        %v1014 = vpack.c.bf16 %v950, %v950
        %v1015 = vpack.c.bf16 %v951, %v951
        %v1016 = vpack.c.bf16 %v952, %v952
        %v1017 = vpack.c.bf16 %v953, %v953
        %v1018 = vpack.c.bf16 %v954, %v954
        %v1019 = vpack.c.bf16 %v955, %v955
        %v1020 = vpack.c.bf16 %v956, %v956
        %v1021 = vpack.c.bf16 %v957, %v957
        %v1022 = vpack.c.bf16 %v958, %v958
        %v1023 = vpack.c.bf16 %v959, %v959
        %v1024 = vpack.c.bf16 %v960, %v960
        %v1025 = vpack.c.bf16 %v961, %v961
        %v1026 = vpack.c.bf16 %v962, %v962
        %v1027 = vpack.c.bf16 %v963, %v963
        %v1028 = vpack.c.bf16 %v964, %v964
        %v1029 = vpack.c.bf16 %v965, %v965
        %v1030 = vpack.c.bf16 %v966, %v966
        %v1031 = vpack.c.bf16 %v967, %v967
        %v1032 = vpack.c.bf16 %v968, %v968
        %v1033 = vpack.c.bf16 %v969, %v969
        %v1034 = vpack.c.bf16 %v970, %v970
        %v1035 = vpack.c.bf16 %v971, %v971
        %v1036 = vpack.c.bf16 %v972, %v972
        %v1037 = vpack.c.bf16 %v973, %v973
        %v1038 = vpack.c.bf16 %v974, %v974
        %v1039 = vpack.c.bf16 %v975, %v975
        %v1040 = vpack.c.bf16 %v976, %v976
        %v1041 = vpack.c.bf16 %v977, %v977
        %v1042 = vpack.c.bf16 %v978, %v978
        %v1043 = vpack.c.bf16 %v979, %v979
        %v1044 = vpack.c.bf16 %v980, %v980
        %v1045 = vpack.c.bf16 %v981, %v981
        %v1046 = vpack.c.bf16 %v982, %v982
        %v1047 = vpack.c.bf16 %v983, %v983
        %v1048 = vpack.c.bf16 %v984, %v984
        %v1049 = vpack.c.bf16 %v985, %v985
        %v1050 = vpack.c.bf16 %v986, %v986
        %v1051 = vpack.c.bf16 %v987, %v987
        %v1052 = vpack.c.bf16 %v988, %v988
        %v1053 = vpack.c.bf16 %v989, %v989
        %v1054 = vpack.c.bf16 %v990, %v990
        %v1055 = vpack.c.bf16 %v991, %v991
        %v1056 = vunpack.c.l.bf16 %v608
        %v1057 = vunpack.c.l.bf16 %v609
        %v1058 = vunpack.c.l.bf16 %v610
        %v1059 = vunpack.c.l.bf16 %v611
        %v1060 = vunpack.c.l.bf16 %v612
        %v1061 = vunpack.c.l.bf16 %v613
        %v1062 = vunpack.c.l.bf16 %v614
        %v1063 = vunpack.c.l.bf16 %v615
        %v1064 = vunpack.c.l.bf16 %v616
        %v1065 = vunpack.c.l.bf16 %v617
        %v1066 = vunpack.c.l.bf16 %v618
        %v1067 = vunpack.c.l.bf16 %v619
        %v1068 = vunpack.c.l.bf16 %v620
        %v1069 = vunpack.c.l.bf16 %v621
        %v1070 = vunpack.c.l.bf16 %v622
        %v1071 = vunpack.c.l.bf16 %v623
        %v1072 = vunpack.c.l.bf16 %v624
        %v1073 = vunpack.c.l.bf16 %v625
        %v1074 = vunpack.c.l.bf16 %v626
        %v1075 = vunpack.c.l.bf16 %v627
        %v1076 = vunpack.c.l.bf16 %v628
        %v1077 = vunpack.c.l.bf16 %v629
        %v1078 = vunpack.c.l.bf16 %v630
        %v1079 = vunpack.c.l.bf16 %v631
        %v1080 = vunpack.c.l.bf16 %v632
        %v1081 = vunpack.c.l.bf16 %v633
        %v1082 = vunpack.c.l.bf16 %v634
        %v1083 = vunpack.c.l.bf16 %v635
        %v1084 = vunpack.c.l.bf16 %v636
        %v1085 = vunpack.c.l.bf16 %v637
        %v1086 = vunpack.c.l.bf16 %v638
        %v1087 = vunpack.c.l.bf16 %v639
        %v1088 = vunpack.c.l.bf16 %v640
        %v1089 = vunpack.c.l.bf16 %v641
        %v1090 = vunpack.c.l.bf16 %v642
        %v1091 = vunpack.c.l.bf16 %v643
        %v1092 = vunpack.c.l.bf16 %v644
        %v1093 = vunpack.c.l.bf16 %v645
        %v1094 = vunpack.c.l.bf16 %v646
        %v1095 = vunpack.c.l.bf16 %v647
        %v1096 = vunpack.c.l.bf16 %v648
        %v1097 = vunpack.c.l.bf16 %v649
        %v1098 = vunpack.c.l.bf16 %v650
        %v1099 = vunpack.c.l.bf16 %v651
        %v1100 = vunpack.c.l.bf16 %v652
        %v1101 = vunpack.c.l.bf16 %v653
        %v1102 = vunpack.c.l.bf16 %v654
        %v1103 = vunpack.c.l.bf16 %v655
        %v1104 = vunpack.c.l.bf16 %v656
        %v1105 = vunpack.c.l.bf16 %v657
        %v1106 = vunpack.c.l.bf16 %v658
        %v1107 = vunpack.c.l.bf16 %v659
        %v1108 = vunpack.c.l.bf16 %v660
        %v1109 = vunpack.c.l.bf16 %v661
        %v1110 = vunpack.c.l.bf16 %v662
        %v1111 = vunpack.c.l.bf16 %v663
        %v1112 = vunpack.c.l.bf16 %v664
        %v1113 = vunpack.c.l.bf16 %v665
        %v1114 = vunpack.c.l.bf16 %v666
        %v1115 = vunpack.c.l.bf16 %v667
        %v1116 = vunpack.c.l.bf16 %v668
        %v1117 = vunpack.c.l.bf16 %v669
        %v1118 = vunpack.c.l.bf16 %v670
        %v1119 = vunpack.c.l.bf16 %v671
        %v1120 = vunpack.c.l.bf16 %v992
        %v1121 = vunpack.c.l.bf16 %v993
        %v1122 = vunpack.c.l.bf16 %v994
        %v1123 = vunpack.c.l.bf16 %v995
        %v1124 = vunpack.c.l.bf16 %v996
        %v1125 = vunpack.c.l.bf16 %v997
        %v1126 = vunpack.c.l.bf16 %v998
        %v1127 = vunpack.c.l.bf16 %v999
        %v1128 = vunpack.c.l.bf16 %v1000
        %v1129 = vunpack.c.l.bf16 %v1001
        %v1130 = vunpack.c.l.bf16 %v1002
        %v1131 = vunpack.c.l.bf16 %v1003
        %v1132 = vunpack.c.l.bf16 %v1004
        %v1133 = vunpack.c.l.bf16 %v1005
        %v1134 = vunpack.c.l.bf16 %v1006
        %v1135 = vunpack.c.l.bf16 %v1007
        %v1136 = vunpack.c.l.bf16 %v1008
        %v1137 = vunpack.c.l.bf16 %v1009
        %v1138 = vunpack.c.l.bf16 %v1010
        %v1139 = vunpack.c.l.bf16 %v1011
        %v1140 = vunpack.c.l.bf16 %v1012
        %v1141 = vunpack.c.l.bf16 %v1013
        %v1142 = vunpack.c.l.bf16 %v1014
        %v1143 = vunpack.c.l.bf16 %v1015
        %v1144 = vunpack.c.l.bf16 %v1016
        %v1145 = vunpack.c.l.bf16 %v1017
        %v1146 = vunpack.c.l.bf16 %v1018
        %v1147 = vunpack.c.l.bf16 %v1019
        %v1148 = vunpack.c.l.bf16 %v1020
        %v1149 = vunpack.c.l.bf16 %v1021
        %v1150 = vunpack.c.l.bf16 %v1022
        %v1151 = vunpack.c.l.bf16 %v1023
        %v1152 = vunpack.c.l.bf16 %v1024
        %v1153 = vunpack.c.l.bf16 %v1025
        %v1154 = vunpack.c.l.bf16 %v1026
        %v1155 = vunpack.c.l.bf16 %v1027
        %v1156 = vunpack.c.l.bf16 %v1028
        %v1157 = vunpack.c.l.bf16 %v1029
        %v1158 = vunpack.c.l.bf16 %v1030
        %v1159 = vunpack.c.l.bf16 %v1031
        %v1160 = vunpack.c.l.bf16 %v1032
        %v1161 = vunpack.c.l.bf16 %v1033
        %v1162 = vunpack.c.l.bf16 %v1034
        %v1163 = vunpack.c.l.bf16 %v1035
        %v1164 = vunpack.c.l.bf16 %v1036
        %v1165 = vunpack.c.l.bf16 %v1037
        %v1166 = vunpack.c.l.bf16 %v1038
        %v1167 = vunpack.c.l.bf16 %v1039
        %v1168 = vunpack.c.l.bf16 %v1040
        %v1169 = vunpack.c.l.bf16 %v1041
        %v1170 = vunpack.c.l.bf16 %v1042
        %v1171 = vunpack.c.l.bf16 %v1043
        %v1172 = vunpack.c.l.bf16 %v1044
        %v1173 = vunpack.c.l.bf16 %v1045
        %v1174 = vunpack.c.l.bf16 %v1046
        %v1175 = vunpack.c.l.bf16 %v1047
        %v1176 = vunpack.c.l.bf16 %v1048
        %v1177 = vunpack.c.l.bf16 %v1049
        %v1178 = vunpack.c.l.bf16 %v1050
        %v1179 = vunpack.c.l.bf16 %v1051
        %v1180 = vunpack.c.l.bf16 %v1052
        %v1181 = vunpack.c.l.bf16 %v1053
        %v1182 = vunpack.c.l.bf16 %v1054
        %v1183 = vunpack.c.l.bf16 %v1055
        %v1184 = vmax.f32 %v1056, %v1120
        %v1185 = vmax.f32 %v1057, %v1121
        %v1186 = vmax.f32 %v1058, %v1122
        %v1187 = vmax.f32 %v1059, %v1123
        %v1188 = vmax.f32 %v1060, %v1124
        %v1189 = vmax.f32 %v1061, %v1125
        %v1190 = vmax.f32 %v1062, %v1126
        %v1191 = vmax.f32 %v1063, %v1127
        %v1192 = vmax.f32 %v1064, %v1128
        %v1193 = vmax.f32 %v1065, %v1129
        %v1194 = vmax.f32 %v1066, %v1130
        %v1195 = vmax.f32 %v1067, %v1131
        %v1196 = vmax.f32 %v1068, %v1132
        %v1197 = vmax.f32 %v1069, %v1133
        %v1198 = vmax.f32 %v1070, %v1134
        %v1199 = vmax.f32 %v1071, %v1135
        %v1200 = vmax.f32 %v1072, %v1136
        %v1201 = vmax.f32 %v1073, %v1137
        %v1202 = vmax.f32 %v1074, %v1138
        %v1203 = vmax.f32 %v1075, %v1139
        %v1204 = vmax.f32 %v1076, %v1140
        %v1205 = vmax.f32 %v1077, %v1141
        %v1206 = vmax.f32 %v1078, %v1142
        %v1207 = vmax.f32 %v1079, %v1143
        %v1208 = vmax.f32 %v1080, %v1144
        %v1209 = vmax.f32 %v1081, %v1145
        %v1210 = vmax.f32 %v1082, %v1146
        %v1211 = vmax.f32 %v1083, %v1147
        %v1212 = vmax.f32 %v1084, %v1148
        %v1213 = vmax.f32 %v1085, %v1149
        %v1214 = vmax.f32 %v1086, %v1150
        %v1215 = vmax.f32 %v1087, %v1151
        %v1216 = vmax.f32 %v1088, %v1152
        %v1217 = vmax.f32 %v1089, %v1153
        %v1218 = vmax.f32 %v1090, %v1154
        %v1219 = vmax.f32 %v1091, %v1155
        %v1220 = vmax.f32 %v1092, %v1156
        %v1221 = vmax.f32 %v1093, %v1157
        %v1222 = vmax.f32 %v1094, %v1158
        %v1223 = vmax.f32 %v1095, %v1159
        %v1224 = vmax.f32 %v1096, %v1160
        %v1225 = vmax.f32 %v1097, %v1161
        %v1226 = vmax.f32 %v1098, %v1162
        %v1227 = vmax.f32 %v1099, %v1163
        %v1228 = vmax.f32 %v1100, %v1164
        %v1229 = vmax.f32 %v1101, %v1165
        %v1230 = vmax.f32 %v1102, %v1166
        %v1231 = vmax.f32 %v1103, %v1167
        %v1232 = vmax.f32 %v1104, %v1168
        %v1233 = vmax.f32 %v1105, %v1169
        %v1234 = vmax.f32 %v1106, %v1170
        %v1235 = vmax.f32 %v1107, %v1171
        %v1236 = vmax.f32 %v1108, %v1172
        %v1237 = vmax.f32 %v1109, %v1173
        %v1238 = vmax.f32 %v1110, %v1174
        %v1239 = vmax.f32 %v1111, %v1175
        %v1240 = vmax.f32 %v1112, %v1176
        %v1241 = vmax.f32 %v1113, %v1177
        %v1242 = vmax.f32 %v1114, %v1178
        %v1243 = vmax.f32 %v1115, %v1179
        %v1244 = vmax.f32 %v1116, %v1180
        %v1245 = vmax.f32 %v1117, %v1181
        %v1246 = vmax.f32 %v1118, %v1182
        %v1247 = vmax.f32 %v1119, %v1183
        %v1248 = vpack.c.bf16 %v1184, %v1184
        %v1249 = vpack.c.bf16 %v1185, %v1185
        %v1250 = vpack.c.bf16 %v1186, %v1186
        %v1251 = vpack.c.bf16 %v1187, %v1187
        %v1252 = vpack.c.bf16 %v1188, %v1188
        %v1253 = vpack.c.bf16 %v1189, %v1189
        %v1254 = vpack.c.bf16 %v1190, %v1190
        %v1255 = vpack.c.bf16 %v1191, %v1191
        %v1256 = vpack.c.bf16 %v1192, %v1192
        %v1257 = vpack.c.bf16 %v1193, %v1193
        %v1258 = vpack.c.bf16 %v1194, %v1194
        %v1259 = vpack.c.bf16 %v1195, %v1195
        %v1260 = vpack.c.bf16 %v1196, %v1196
        %v1261 = vpack.c.bf16 %v1197, %v1197
        %v1262 = vpack.c.bf16 %v1198, %v1198
        %v1263 = vpack.c.bf16 %v1199, %v1199
        %v1264 = vpack.c.bf16 %v1200, %v1200
        %v1265 = vpack.c.bf16 %v1201, %v1201
        %v1266 = vpack.c.bf16 %v1202, %v1202
        %v1267 = vpack.c.bf16 %v1203, %v1203
        %v1268 = vpack.c.bf16 %v1204, %v1204
        %v1269 = vpack.c.bf16 %v1205, %v1205
        %v1270 = vpack.c.bf16 %v1206, %v1206
        %v1271 = vpack.c.bf16 %v1207, %v1207
        %v1272 = vpack.c.bf16 %v1208, %v1208
        %v1273 = vpack.c.bf16 %v1209, %v1209
        %v1274 = vpack.c.bf16 %v1210, %v1210
        %v1275 = vpack.c.bf16 %v1211, %v1211
        %v1276 = vpack.c.bf16 %v1212, %v1212
        %v1277 = vpack.c.bf16 %v1213, %v1213
        %v1278 = vpack.c.bf16 %v1214, %v1214
        %v1279 = vpack.c.bf16 %v1215, %v1215
        %v1280 = vpack.c.bf16 %v1216, %v1216
        %v1281 = vpack.c.bf16 %v1217, %v1217
        %v1282 = vpack.c.bf16 %v1218, %v1218
        %v1283 = vpack.c.bf16 %v1219, %v1219
        %v1284 = vpack.c.bf16 %v1220, %v1220
        %v1285 = vpack.c.bf16 %v1221, %v1221
        %v1286 = vpack.c.bf16 %v1222, %v1222
        %v1287 = vpack.c.bf16 %v1223, %v1223
        %v1288 = vpack.c.bf16 %v1224, %v1224
        %v1289 = vpack.c.bf16 %v1225, %v1225
        %v1290 = vpack.c.bf16 %v1226, %v1226
        %v1291 = vpack.c.bf16 %v1227, %v1227
        %v1292 = vpack.c.bf16 %v1228, %v1228
        %v1293 = vpack.c.bf16 %v1229, %v1229
        %v1294 = vpack.c.bf16 %v1230, %v1230
        %v1295 = vpack.c.bf16 %v1231, %v1231
        %v1296 = vpack.c.bf16 %v1232, %v1232
        %v1297 = vpack.c.bf16 %v1233, %v1233
        %v1298 = vpack.c.bf16 %v1234, %v1234
        %v1299 = vpack.c.bf16 %v1235, %v1235
        %v1300 = vpack.c.bf16 %v1236, %v1236
        %v1301 = vpack.c.bf16 %v1237, %v1237
        %v1302 = vpack.c.bf16 %v1238, %v1238
        %v1303 = vpack.c.bf16 %v1239, %v1239
        %v1304 = vpack.c.bf16 %v1240, %v1240
        %v1305 = vpack.c.bf16 %v1241, %v1241
        %v1306 = vpack.c.bf16 %v1242, %v1242
        %v1307 = vpack.c.bf16 %v1243, %v1243
        %v1308 = vpack.c.bf16 %v1244, %v1244
        %v1309 = vpack.c.bf16 %v1245, %v1245
        %v1310 = vpack.c.bf16 %v1246, %v1246
        %v1311 = vpack.c.bf16 %v1247, %v1247
        %vm1312 = vcmask 125952
        %1313 = vst.msk [vmem:[%s286] sm:$0xf] %vm1312, %v1248
        %1314 = vst.msk [vmem:[%s286 + $0x4] sm:$0xf] %vm1312, %v1249
        %1315 = vst.msk [vmem:[%s286 + $0x8] sm:$0xf] %vm1312, %v1250
        %1316 = vst.msk [vmem:[%s286 + $0xc] sm:$0xf] %vm1312, %v1251
        %1317 = vst.msk [vmem:[%s286 + $0x10] sm:$0xf] %vm1312, %v1252
        %1318 = vst.msk [vmem:[%s286 + $0x14] sm:$0xf] %vm1312, %v1253
        %1319 = vst.msk [vmem:[%s286 + $0x18] sm:$0xf] %vm1312, %v1254
        %1320 = vst.msk [vmem:[%s286 + $0x1c] sm:$0xf] %vm1312, %v1255
        %1321 = vst.msk [vmem:[%s286 + $0x20] sm:$0xf] %vm1312, %v1256
        %1322 = vst.msk [vmem:[%s286 + $0x24] sm:$0xf] %vm1312, %v1257
        %1323 = vst.msk [vmem:[%s286 + $0x28] sm:$0xf] %vm1312, %v1258
        %1324 = vst.msk [vmem:[%s286 + $0x2c] sm:$0xf] %vm1312, %v1259
        %1325 = vst.msk [vmem:[%s286 + $0x30] sm:$0xf] %vm1312, %v1260
        %1326 = vst.msk [vmem:[%s286 + $0x34] sm:$0xf] %vm1312, %v1261
        %1327 = vst.msk [vmem:[%s286 + $0x38] sm:$0xf] %vm1312, %v1262
        %1328 = vst.msk [vmem:[%s286 + $0x3c] sm:$0xf] %vm1312, %v1263
        %1329 = vst.msk [vmem:[%s286 + $0x40] sm:$0xf] %vm1312, %v1264
        %1330 = vst.msk [vmem:[%s286 + $0x44] sm:$0xf] %vm1312, %v1265
        %1331 = vst.msk [vmem:[%s286 + $0x48] sm:$0xf] %vm1312, %v1266
        %1332 = vst.msk [vmem:[%s286 + $0x4c] sm:$0xf] %vm1312, %v1267
        %1333 = vst.msk [vmem:[%s286 + $0x50] sm:$0xf] %vm1312, %v1268
        %1334 = vst.msk [vmem:[%s286 + $0x54] sm:$0xf] %vm1312, %v1269
        %1335 = vst.msk [vmem:[%s286 + $0x58] sm:$0xf] %vm1312, %v1270
        %1336 = vst.msk [vmem:[%s286 + $0x5c] sm:$0xf] %vm1312, %v1271
        %1337 = vst.msk [vmem:[%s286 + $0x60] sm:$0xf] %vm1312, %v1272
        %1338 = vst.msk [vmem:[%s286 + $0x64] sm:$0xf] %vm1312, %v1273
        %1339 = vst.msk [vmem:[%s286 + $0x68] sm:$0xf] %vm1312, %v1274
        %1340 = vst.msk [vmem:[%s286 + $0x6c] sm:$0xf] %vm1312, %v1275
        %1341 = vst.msk [vmem:[%s286 + $0x70] sm:$0xf] %vm1312, %v1276
        %1342 = vst.msk [vmem:[%s286 + $0x74] sm:$0xf] %vm1312, %v1277
        %1343 = vst.msk [vmem:[%s286 + $0x78] sm:$0xf] %vm1312, %v1278
        %1344 = vst.msk [vmem:[%s286 + $0x7c] sm:$0xf] %vm1312, %v1279
        %1345 = vst.msk [vmem:[%s286 + $0x80] sm:$0xf] %vm1312, %v1280
        %1346 = vst.msk [vmem:[%s286 + $0x84] sm:$0xf] %vm1312, %v1281
        %1347 = vst.msk [vmem:[%s286 + $0x88] sm:$0xf] %vm1312, %v1282
        %1348 = vst.msk [vmem:[%s286 + $0x8c] sm:$0xf] %vm1312, %v1283
        %1349 = vst.msk [vmem:[%s286 + $0x90] sm:$0xf] %vm1312, %v1284
        %1350 = vst.msk [vmem:[%s286 + $0x94] sm:$0xf] %vm1312, %v1285
        %1351 = vst.msk [vmem:[%s286 + $0x98] sm:$0xf] %vm1312, %v1286
        %1352 = vst.msk [vmem:[%s286 + $0x9c] sm:$0xf] %vm1312, %v1287
        %1353 = vst.msk [vmem:[%s286 + $0xa0] sm:$0xf] %vm1312, %v1288
        %1354 = vst.msk [vmem:[%s286 + $0xa4] sm:$0xf] %vm1312, %v1289
        %1355 = vst.msk [vmem:[%s286 + $0xa8] sm:$0xf] %vm1312, %v1290
        %1356 = vst.msk [vmem:[%s286 + $0xac] sm:$0xf] %vm1312, %v1291
        %1357 = vst.msk [vmem:[%s286 + $0xb0] sm:$0xf] %vm1312, %v1292
        %1358 = vst.msk [vmem:[%s286 + $0xb4] sm:$0xf] %vm1312, %v1293
        %1359 = vst.msk [vmem:[%s286 + $0xb8] sm:$0xf] %vm1312, %v1294
        %1360 = vst.msk [vmem:[%s286 + $0xbc] sm:$0xf] %vm1312, %v1295
        %1361 = vst.msk [vmem:[%s286 + $0xc0] sm:$0xf] %vm1312, %v1296
        %1362 = vst.msk [vmem:[%s286 + $0xc4] sm:$0xf] %vm1312, %v1297
        %1363 = vst.msk [vmem:[%s286 + $0xc8] sm:$0xf] %vm1312, %v1298
        %1364 = vst.msk [vmem:[%s286 + $0xcc] sm:$0xf] %vm1312, %v1299
        %1365 = vst.msk [vmem:[%s286 + $0xd0] sm:$0xf] %vm1312, %v1300
        %1366 = vst.msk [vmem:[%s286 + $0xd4] sm:$0xf] %vm1312, %v1301
        %1367 = vst.msk [vmem:[%s286 + $0xd8] sm:$0xf] %vm1312, %v1302
        %1368 = vst.msk [vmem:[%s286 + $0xdc] sm:$0xf] %vm1312, %v1303
        %1369 = vst.msk [vmem:[%s286 + $0xe0] sm:$0xf] %vm1312, %v1304
        %1370 = vst.msk [vmem:[%s286 + $0xe4] sm:$0xf] %vm1312, %v1305
        %1371 = vst.msk [vmem:[%s286 + $0xe8] sm:$0xf] %vm1312, %v1306
        %1372 = vst.msk [vmem:[%s286 + $0xec] sm:$0xf] %vm1312, %v1307
        %1373 = vst.msk [vmem:[%s286 + $0xf0] sm:$0xf] %vm1312, %v1308
        %1374 = vst.msk [vmem:[%s286 + $0xf4] sm:$0xf] %vm1312, %v1309
        %1375 = vst.msk [vmem:[%s286 + $0xf8] sm:$0xf] %vm1312, %v1310
        %1376 = vst.msk [vmem:[%s286 + $0xfc] sm:$0xf] %vm1312, %v1311
        %s1377 = smul.u32 64, %s18
        %p1378 = scmp.lt.s32.totalorder %s1377, 10047
        %s1379 = scalar_select %p1378, %s1377, 10047
        %s1380 = smul.addr %s1379, 4
        %s1381 = scalar_lea.vmem %s4, %s1380
        // Predicated region
        $region41: #{net_forward.8} parent=35 // pred_check
          %p1382 = pneg %p140
        $region42: #{net_forward.8} parent=35 // pred_check_branch
          %1384 = sbr.rel (%p1382) target = $region44
        $region43: #{net_forward.8} parent=35 // pred_region
          %s1385 = smul.u32 64, %s18
        $region44: #{net_forward.8} parent=35 // pred_fallthru
          _
      $region36: #{net_forward.8} parent=5 // pred_fallthru
        _
      %p1386 = scmp.le.s32.totalorder 2, %s13
      // Predicated region
      $region45: #{net_forward.8} parent=5 // pred_check
        %p1387 = pneg %p1386
      $region46: #{net_forward.8} parent=5 // pred_check_branch
        %1389 = sbr.rel (%p1387) target = $region48
      $region47: #{net_forward.8} parent=5 // pred_region
        %s1390 = ssub.s32 %s13, 2
        // Predicated region
        $region49: #{net_forward.8} parent=47 // pred_check
          %p1391 = pneg %p146
        $region50: #{net_forward.8} parent=47 // pred_check_branch
          %1393 = sbr.rel (%p1391) target = $region52
        $region51: #{net_forward.8} parent=47 // pred_region
          %s1394 = smul.u32 64, %s19
          %p1395 = scmp.lt.s32.totalorder %s1394, 10047
          %s1396 = scalar_select %p1395, %s1394, 10047
          %s1397 = smul.addr %s1396, 4
          %s1398 = scalar_lea.vmem %s4, %s1397
        $region52: #{net_forward.8} parent=47 // pred_fallthru
          _
      $region48: #{net_forward.8} parent=5 // pred_fallthru
        _
    $region6: #{net_forward.8} parent=1 // loop_footer
      %s17 = sadd.s32 1, %s13
    $region7: #{net_forward.8} parent=1 // loop_footer_branch
      %12 = sbr.rel target = $region3
    $region8: #{net_forward.8} parent=1 // loop_exit
      _
    %1399 = vsyncpa [#allocation3], 1
    %s1400 = scalar_lea.sflag [#allocation3], 1
    %1401 = vsyncpa %s1400, 1

// kernel: net_forward.9
$region0: #{net_forward.9}
  #allocation0 [shape = 'u32[]', space=smem, size = 0x4, offset = 0x4, fixed_abs, tag = 'smem constant byte address 0x4 - core index']
  #allocation1 [shape = 'u32[72,128]{1,0:T(1,128)}', space=vmem, size = 0x9000, scoped, tag = 'internal scratch']
  #allocation2 [shape = 'f32[512,128]{1,0:T(8,128)}', space=vmem, size = 0x40000, scoped, tag = 'scratch operand']
  %s0 = inlined_call_operand.vmem [shape: bf16[80384,256], index: 0, kind: input, shape index: {}]
  %s1 = inlined_call_operand.vmem [shape: bf16[256,128], index: 1, kind: input, shape index: {}]
  %s2 = inlined_call_operand.vmem [shape: f32[1,128], index: 2, kind: input, shape index: {}]
  %s3 = inlined_call_operand.vmem [shape: f32[1,128], index: 3, kind: input, shape index: {}]
  %s4 = inlined_call_operand.vmem [shape: bf16[80384,128], index: 4, kind: output, shape index: {}]
  %s5 = sld [smem:[#allocation0]]
  $region57: #{net_forward.9} parent=0
    _
  %s7 = ssub.s32 1, %s5
  %s8 = scalar_select 0, %s7, %s5
  loop: start=0, step=1, limit=159
  $region2: #{net_forward.9} parent=0 // loop_pre_header
    _
  $region3: #{net_forward.9} parent=0 // loop_header
    %s10 = sphi 0, %s14
    %p11 = scmp.ge.s32.totalorder %s10, 159
    %s17 = sphi 0, %s36
    %s18 = sphi 0, %s32
    %s19 = sphi 0, %s28
    %s20 = sphi 0, %s17
    %s21 = sphi 0, %s18
    %s22 = sphi 0, %s19
    %s23 = sphi 0, %s20
    %s24 = sphi 0, %s21
    %s25 = sphi 0, %s22
    %s41 = sphi 0, %s43
    %s44 = sphi 0, %s41
    %s45 = sphi 0, %s44
    %s61 = sphi 0, %s45
    %s69 = sphi 0, %s71
    %s72 = sphi 0, %s69
    %s73 = sphi 0, %s72
    %s89 = sphi 0, %s73
    %s95 = sphi 0, %s97
    %s98 = sphi 0, %s95
    %s99 = sphi 0, %s98
    %s115 = sphi 0, %s99
    %s121 = sphi 0, %s123
    %s124 = sphi 0, %s121
    %s125 = sphi 0, %s124
    %s141 = sphi 0, %s125
    %s149 = sphi 0, %s151
    %s152 = sphi 0, %s149
    %s153 = sphi 0, %s152
    %s169 = sphi 0, %s153
  $region4: #{net_forward.9} parent=0 // loop_header_branch
    %13 = sbr.rel (%p11) target = $region8
  $region5: #{net_forward.9} parent=0 // loop_body
    %s15 = ssub.s32 %s10, 1
    %s16 = ssub.s32 %s10, 2
    %s26 = sadd.s32 1, %s19
    %p27 = scmp.ge.s32.totalorder %s26, 1
    %s28 = scalar_select %p27, 0, %s26
    %s29 = sadd.s32 1, %s18
    %s30 = scalar_select %p27, %s29, %s18
    %p31 = scmp.ge.s32.totalorder %s30, 1
    %s32 = scalar_select %p31, 0, %s30
    %s33 = sadd.s32 1, %s17
    %s34 = scalar_select %p31, %s33, %s17
    %p35 = scmp.ge.s32.totalorder %s34, 157
    %s36 = scalar_select %p35, 0, %s34
    %s37 = ssub.s32 %s17, %s36
    %s38 = ssub.s32 %s19, %s28
    %s39 = sor.u32 %s37, %s38
    %p40 = scmp.eq.s32.totalorder %s39, 0
    %s42 = sadd.s32 %s41, 1
    %s43 = scalar_select %p40, %s41, %s42
    %p46 = pneg %p40
    %p47 = scmp.eq.s32.totalorder %s10, 156
    %p48 = por %p46, %p47
    %p49 = scmp.ne.s32.totalorder %s41, %s44
    %p50 = scmp.eq.s32.totalorder %s10, 0
    %p51 = por %p49, %p50
    %p52 = scmp.ne.s32.totalorder %s41, %s44
    %p53 = scmp.eq.s32.totalorder %s15, 156
    %p54 = por %p52, %p53
    %p55 = scmp.ne.s32.totalorder %s44, %s45
    %p56 = scmp.eq.s32.totalorder %s15, 0
    %p57 = por %p55, %p56
    %p58 = scmp.ne.s32.totalorder %s44, %s45
    %p59 = scmp.eq.s32.totalorder %s16, 156
    %p60 = por %p58, %p59
    %p62 = scmp.ne.s32.totalorder %s45, %s61
    %p63 = scmp.eq.s32.totalorder %s16, 0
    %p64 = por %p62, %p63
    %s65 = ssub.s32 %s19, %s28
    %s66 = ssub.s32 %s18, %s32
    %s67 = sor.u32 %s65, %s66
    %p68 = scmp.eq.s32.totalorder %s67, 0
    %s70 = sadd.s32 %s69, 1
    %s71 = scalar_select %p68, %s69, %s70
    %p74 = pneg %p68
    %p75 = scmp.eq.s32.totalorder %s10, 156
    %p76 = por %p74, %p75
    %p77 = scmp.ne.s32.totalorder %s69, %s72
    %p78 = scmp.eq.s32.totalorder %s10, 0
    %p79 = por %p77, %p78
    %p80 = scmp.ne.s32.totalorder %s69, %s72
    %p81 = scmp.eq.s32.totalorder %s15, 156
    %p82 = por %p80, %p81
    %p83 = scmp.ne.s32.totalorder %s72, %s73
    %p84 = scmp.eq.s32.totalorder %s15, 0
    %p85 = por %p83, %p84
    %p86 = scmp.ne.s32.totalorder %s72, %s73
    %p87 = scmp.eq.s32.totalorder %s16, 156
    %p88 = por %p86, %p87
    %p90 = scmp.ne.s32.totalorder %s73, %s89
    %p91 = scmp.eq.s32.totalorder %s16, 0
    %p92 = por %p90, %p91
    %s93 = ssub.s32 %s18, %s32
    %p94 = scmp.eq.s32.totalorder %s93, 0
    %s96 = sadd.s32 %s95, 1
    %s97 = scalar_select %p94, %s95, %s96
    %p100 = pneg %p94
    %p101 = scmp.eq.s32.totalorder %s10, 156
    %p102 = por %p100, %p101
    %p103 = scmp.ne.s32.totalorder %s95, %s98
    %p104 = scmp.eq.s32.totalorder %s10, 0
    %p105 = por %p103, %p104
    %p106 = scmp.ne.s32.totalorder %s95, %s98
    %p107 = scmp.eq.s32.totalorder %s15, 156
    %p108 = por %p106, %p107
    %p109 = scmp.ne.s32.totalorder %s98, %s99
    %p110 = scmp.eq.s32.totalorder %s15, 0
    %p111 = por %p109, %p110
    %p112 = scmp.ne.s32.totalorder %s98, %s99
    %p113 = scmp.eq.s32.totalorder %s16, 156
    %p114 = por %p112, %p113
    %p116 = scmp.ne.s32.totalorder %s99, %s115
    %p117 = scmp.eq.s32.totalorder %s16, 0
    %p118 = por %p116, %p117
    %s119 = ssub.s32 %s18, %s32
    %p120 = scmp.eq.s32.totalorder %s119, 0
    %s122 = sadd.s32 %s121, 1
    %s123 = scalar_select %p120, %s121, %s122
    %p126 = pneg %p120
    %p127 = scmp.eq.s32.totalorder %s10, 156
    %p128 = por %p126, %p127
    %p129 = scmp.ne.s32.totalorder %s121, %s124
    %p130 = scmp.eq.s32.totalorder %s10, 0
    %p131 = por %p129, %p130
    %p132 = scmp.ne.s32.totalorder %s121, %s124
    %p133 = scmp.eq.s32.totalorder %s15, 156
    %p134 = por %p132, %p133
    %p135 = scmp.ne.s32.totalorder %s124, %s125
    %p136 = scmp.eq.s32.totalorder %s15, 0
    %p137 = por %p135, %p136
    %p138 = scmp.ne.s32.totalorder %s124, %s125
    %p139 = scmp.eq.s32.totalorder %s16, 156
    %p140 = por %p138, %p139
    %p142 = scmp.ne.s32.totalorder %s125, %s141
    %p143 = scmp.eq.s32.totalorder %s16, 0
    %p144 = por %p142, %p143
    %s145 = ssub.s32 %s17, %s36
    %s146 = ssub.s32 %s18, %s32
    %s147 = sor.u32 %s145, %s146
    %p148 = scmp.eq.s32.totalorder %s147, 0
    %s150 = sadd.s32 %s149, 1
    %s151 = scalar_select %p148, %s149, %s150
    %p154 = pneg %p148
    %p155 = scmp.eq.s32.totalorder %s10, 156
    %p156 = por %p154, %p155
    %p157 = scmp.ne.s32.totalorder %s149, %s152
    %p158 = scmp.eq.s32.totalorder %s10, 0
    %p159 = por %p157, %p158
    %p160 = scmp.ne.s32.totalorder %s149, %s152
    %p161 = scmp.eq.s32.totalorder %s15, 156
    %p162 = por %p160, %p161
    %p163 = scmp.ne.s32.totalorder %s152, %s153
    %p164 = scmp.eq.s32.totalorder %s15, 0
    %p165 = por %p163, %p164
    %p166 = scmp.ne.s32.totalorder %s152, %s153
    %p167 = scmp.eq.s32.totalorder %s16, 156
    %p168 = por %p166, %p167
    %p170 = scmp.ne.s32.totalorder %s153, %s169
    %p171 = scmp.eq.s32.totalorder %s16, 0
    %p172 = por %p170, %p171
    %p173 = scmp.le.s32.totalorder 1, %s10
    %p174 = scmp.lt.s32.totalorder %s10, 158
    %p175 = pnand %p173, %p174
    %p176 = pneg %p175
    // Predicated region
    $region9: #{net_forward.9} parent=5 // pred_check
      _
    $region10: #{net_forward.9} parent=5 // pred_check_branch
      %178 = sbr.rel (%p175) target = $region12
    $region11: #{net_forward.9} parent=5 // pred_region
      %s179 = ssub.s32 %s10, 1
      // Predicated region
      $region13: #{net_forward.9} parent=11 // pred_check
        %p180 = pneg %p85
      $region14: #{net_forward.9} parent=11 // pred_check_branch
        %182 = sbr.rel (%p180) target = $region16
      $region15: #{net_forward.9} parent=11 // pred_region
        %s183 = smul.u32 32, %s22
        %p184 = scmp.lt.s32.totalorder %s183, 31
        %s185 = scalar_select %p184, %s183, 31
        %p186 = scmp.lt.s32.totalorder %s21, 0
        %s187 = scalar_select %p186, %s21, 0
        %s188 = sadd.s32 %s187, %s185
        %s189 = smul.addr %s188, 4
        %s190 = scalar_lea.vmem %s1, %s189
        %s191 = smul.u32 32, %s22
      $region16: #{net_forward.9} parent=11 // pred_fallthru
        _
      // Predicated region
      $region17: #{net_forward.9} parent=11 // pred_check
        %p192 = pneg %p111
      $region18: #{net_forward.9} parent=11 // pred_check_branch
        %194 = sbr.rel (%p192) target = $region20
      $region19: #{net_forward.9} parent=11 // pred_region
        %p195 = scmp.lt.s32.totalorder %s21, 0
        %s196 = scalar_select %p195, %s21, 0
        %s197 = scalar_lea.vmem %s2, %s196
      $region20: #{net_forward.9} parent=11 // pred_fallthru
        _
      // Predicated region
      $region21: #{net_forward.9} parent=11 // pred_check
        %p198 = pneg %p137
      $region22: #{net_forward.9} parent=11 // pred_check_branch
        %200 = sbr.rel (%p198) target = $region24
      $region23: #{net_forward.9} parent=11 // pred_region
        %p201 = scmp.lt.s32.totalorder %s21, 0
        %s202 = scalar_select %p201, %s21, 0
        %s203 = scalar_lea.vmem %s3, %s202
      $region24: #{net_forward.9} parent=11 // pred_fallthru
        _
    $region12: #{net_forward.9} parent=5 // pred_fallthru
      _
    %p204 = scmp.lt.s32.totalorder %s10, 157
    // Predicated region
    $region25: #{net_forward.9} parent=5 // pred_check
      %p205 = pneg %p204
    $region26: #{net_forward.9} parent=5 // pred_check_branch
      %207 = sbr.rel (%p205) target = $region28
    $region27: #{net_forward.9} parent=5 // pred_region
      // Predicated region
      $region29: #{net_forward.9} parent=27 // pred_check
        %p208 = pneg %p51
      $region30: #{net_forward.9} parent=27 // pred_check_branch
        %210 = sbr.rel (%p208) target = $region32
      $region31: #{net_forward.9} parent=27 // pred_region
        %s211 = smul.u32 64, %s17
        %s212 = smul.u32 2, %s19
        %p213 = scmp.lt.s32.totalorder %s211, 10047
        %s214 = scalar_select %p213, %s211, 10047
        %p215 = scmp.lt.s32.totalorder %s212, 1
        %s216 = scalar_select %p215, %s212, 1
        %s217 = smul.addr %s214, 2
        %s218 = sadd.s32 %s216, %s217
        %s219 = smul.addr %s218, 4
        %s220 = scalar_lea.vmem %s0, %s219
        %s221 = smul.u32 64, %s17
        %s222 = smul.u32 2, %s19
      $region32: #{net_forward.9} parent=27 // pred_fallthru
        _
    $region28: #{net_forward.9} parent=5 // pred_fallthru
      _
    %p223 = scmp.le.s32.totalorder 1, %s10
    %p224 = scmp.lt.s32.totalorder %s10, 158
    %p225 = pnand %p223, %p224
    %p226 = pneg %p225
    // Predicated region
    $region33: #{net_forward.9} parent=5 // pred_check
      _
    $region34: #{net_forward.9} parent=5 // pred_check_branch
      %228 = sbr.rel (%p225) target = $region36
    $region35: #{net_forward.9} parent=5 // pred_region
      %s229 = ssub.s32 %s10, 1
      %s230 = smul.u32 64, %s20
      %s231 = smul.u32 2, %s22
      %p232 = scmp.lt.s32.totalorder %s230, 10047
      %s233 = scalar_select %p232, %s230, 10047
      %p234 = scmp.lt.s32.totalorder %s231, 1
      %s235 = scalar_select %p234, %s231, 1
      %s236 = smul.addr %s233, 2
      %s237 = sadd.s32 %s235, %s236
      %s238 = smul.addr %s237, 4
      %s239 = scalar_lea.vmem %s0, %s238
      %p240 = pneg %p57
      %p241 = pneg %p54
      %s242 = smul.u32 32, %s22
      %p243 = scmp.lt.s32.totalorder %s242, 31
      %s244 = scalar_select %p243, %s242, 31
      %p245 = scmp.lt.s32.totalorder %s21, 0
      %s246 = scalar_select %p245, %s21, 0
      %s247 = sadd.s32 %s246, %s244
      %s248 = smul.addr %s247, 4
      %s249 = scalar_lea.vmem %s1, %s248
      %p250 = pneg %p85
      %p251 = pneg %p82
      %p252 = scmp.lt.s32.totalorder %s21, 0
      %s253 = scalar_select %p252, %s21, 0
      %s254 = scalar_lea.vmem %s2, %s253
      %p255 = pneg %p111
      %p256 = pneg %p108
      %p257 = scmp.lt.s32.totalorder %s21, 0
      %s258 = scalar_select %p257, %s21, 0
      %s259 = scalar_lea.vmem %s3, %s258
      %p260 = pneg %p137
      %p261 = pneg %p134
      %p262 = pneg %p165
      %p263 = pneg %p162
      %s264 = smul.u32 64, %s20
      %p265 = scmp.lt.s32.totalorder %s264, 10047
      %s266 = scalar_select %p265, %s264, 10047
      %p267 = scmp.lt.s32.totalorder %s21, 0
      %s268 = scalar_select %p267, %s21, 0
      %s269 = sadd.s32 %s268, %s266
      %s270 = smul.addr %s269, 4
      %s271 = scalar_lea.vmem %s4, %s270
      %s272 = smul.u32 64, %s20
      %s273 = smul.u32 2, %s22
      %p274 = scmp.lt.s32.totalorder %s272, 10047
      %s275 = scalar_select %p274, %s272, 10047
      %p276 = scmp.lt.s32.totalorder %s273, 1
      %s277 = scalar_select %p276, %s273, 1
      %s278 = smul.addr %s275, 2
      %s279 = sadd.s32 %s277, %s278
      %s280 = smul.addr %s279, 4
      %s281 = scalar_lea.vmem %s0, %s280
      %s282 = smul.u32 64, %s20
      %s283 = smul.u32 2, %s22
      %s284 = smul.u32 32, %s22
      %p285 = scmp.lt.s32.totalorder %s284, 31
      %s286 = scalar_select %p285, %s284, 31
      %p287 = scmp.lt.s32.totalorder %s21, 0
      %s288 = scalar_select %p287, %s21, 0
      %s289 = sadd.s32 %s288, %s286
      %s290 = smul.addr %s289, 4
      %s291 = scalar_lea.vmem %s1, %s290
      %s292 = smul.u32 32, %s22
      %p293 = scmp.lt.s32.totalorder %s21, 0
      %s294 = scalar_select %p293, %s21, 0
      %s295 = scalar_lea.vmem %s2, %s294
      %p296 = scmp.lt.s32.totalorder %s21, 0
      %s297 = scalar_select %p296, %s21, 0
      %s298 = scalar_lea.vmem %s3, %s297
      %s299 = smul.u32 64, %s20
      %p300 = scmp.lt.s32.totalorder %s299, 10047
      %s301 = scalar_select %p300, %s299, 10047
      %p302 = scmp.lt.s32.totalorder %s21, 0
      %s303 = scalar_select %p302, %s21, 0
      %s304 = sadd.s32 %s303, %s301
      %s305 = smul.addr %s304, 4
      %s306 = scalar_lea.vmem %s4, %s305
      %s307 = smul.u32 64, %s20
      %p308 = scmp.eq.s32.totalorder %s22, 0
      // Predicated region
      $region37: #{net_forward.9} parent=35 // pred_check
        %p309 = pneg %p308
      $region38: #{net_forward.9} parent=35 // pred_check_branch
        %311 = sbr.rel (%p309) target = $region40
      $region39: #{net_forward.9} parent=35 // pred_region
        %312 = vst [vmem:[#allocation2] sm:$0xff] 0.0
        %313 = vst [vmem:[#allocation2 + $0x8] sm:$0xff] 0.0
        %314 = vst [vmem:[#allocation2 + $0x10] sm:$0xff] 0.0
        %315 = vst [vmem:[#allocation2 + $0x18] sm:$0xff] 0.0
        %316 = vst [vmem:[#allocation2 + $0x20] sm:$0xff] 0.0
        %317 = vst [vmem:[#allocation2 + $0x28] sm:$0xff] 0.0
        %318 = vst [vmem:[#allocation2 + $0x30] sm:$0xff] 0.0
        %319 = vst [vmem:[#allocation2 + $0x38] sm:$0xff] 0.0
        %320 = vst [vmem:[#allocation2 + $0x40] sm:$0xff] 0.0
        %321 = vst [vmem:[#allocation2 + $0x48] sm:$0xff] 0.0
        %322 = vst [vmem:[#allocation2 + $0x50] sm:$0xff] 0.0
        %323 = vst [vmem:[#allocation2 + $0x58] sm:$0xff] 0.0
        %324 = vst [vmem:[#allocation2 + $0x60] sm:$0xff] 0.0
        %325 = vst [vmem:[#allocation2 + $0x68] sm:$0xff] 0.0
        %326 = vst [vmem:[#allocation2 + $0x70] sm:$0xff] 0.0
        %327 = vst [vmem:[#allocation2 + $0x78] sm:$0xff] 0.0
        %328 = vst [vmem:[#allocation2 + $0x80] sm:$0xff] 0.0
        %329 = vst [vmem:[#allocation2 + $0x88] sm:$0xff] 0.0
        %330 = vst [vmem:[#allocation2 + $0x90] sm:$0xff] 0.0
        %331 = vst [vmem:[#allocation2 + $0x98] sm:$0xff] 0.0
        %332 = vst [vmem:[#allocation2 + $0xa0] sm:$0xff] 0.0
        %333 = vst [vmem:[#allocation2 + $0xa8] sm:$0xff] 0.0
        %334 = vst [vmem:[#allocation2 + $0xb0] sm:$0xff] 0.0
        %335 = vst [vmem:[#allocation2 + $0xb8] sm:$0xff] 0.0
        %336 = vst [vmem:[#allocation2 + $0xc0] sm:$0xff] 0.0
        %337 = vst [vmem:[#allocation2 + $0xc8] sm:$0xff] 0.0
        %338 = vst [vmem:[#allocation2 + $0xd0] sm:$0xff] 0.0
        %339 = vst [vmem:[#allocation2 + $0xd8] sm:$0xff] 0.0
        %340 = vst [vmem:[#allocation2 + $0xe0] sm:$0xff] 0.0
        %341 = vst [vmem:[#allocation2 + $0xe8] sm:$0xff] 0.0
        %342 = vst [vmem:[#allocation2 + $0xf0] sm:$0xff] 0.0
        %343 = vst [vmem:[#allocation2 + $0xf8] sm:$0xff] 0.0
        %344 = vst [vmem:[#allocation2 + $0x100] sm:$0xff] 0.0
        %345 = vst [vmem:[#allocation2 + $0x108] sm:$0xff] 0.0
        %346 = vst [vmem:[#allocation2 + $0x110] sm:$0xff] 0.0
        %347 = vst [vmem:[#allocation2 + $0x118] sm:$0xff] 0.0
        %348 = vst [vmem:[#allocation2 + $0x120] sm:$0xff] 0.0
        %349 = vst [vmem:[#allocation2 + $0x128] sm:$0xff] 0.0
        %350 = vst [vmem:[#allocation2 + $0x130] sm:$0xff] 0.0
        %351 = vst [vmem:[#allocation2 + $0x138] sm:$0xff] 0.0
        %352 = vst [vmem:[#allocation2 + $0x140] sm:$0xff] 0.0
        %353 = vst [vmem:[#allocation2 + $0x148] sm:$0xff] 0.0
        %354 = vst [vmem:[#allocation2 + $0x150] sm:$0xff] 0.0
        %355 = vst [vmem:[#allocation2 + $0x158] sm:$0xff] 0.0
        %356 = vst [vmem:[#allocation2 + $0x160] sm:$0xff] 0.0
        %357 = vst [vmem:[#allocation2 + $0x168] sm:$0xff] 0.0
        %358 = vst [vmem:[#allocation2 + $0x170] sm:$0xff] 0.0
        %359 = vst [vmem:[#allocation2 + $0x178] sm:$0xff] 0.0
        %360 = vst [vmem:[#allocation2 + $0x180] sm:$0xff] 0.0
        %361 = vst [vmem:[#allocation2 + $0x188] sm:$0xff] 0.0
        %362 = vst [vmem:[#allocation2 + $0x190] sm:$0xff] 0.0
        %363 = vst [vmem:[#allocation2 + $0x198] sm:$0xff] 0.0
        %364 = vst [vmem:[#allocation2 + $0x1a0] sm:$0xff] 0.0
        %365 = vst [vmem:[#allocation2 + $0x1a8] sm:$0xff] 0.0
        %366 = vst [vmem:[#allocation2 + $0x1b0] sm:$0xff] 0.0
        %367 = vst [vmem:[#allocation2 + $0x1b8] sm:$0xff] 0.0
        %368 = vst [vmem:[#allocation2 + $0x1c0] sm:$0xff] 0.0
        %369 = vst [vmem:[#allocation2 + $0x1c8] sm:$0xff] 0.0
        %370 = vst [vmem:[#allocation2 + $0x1d0] sm:$0xff] 0.0
        %371 = vst [vmem:[#allocation2 + $0x1d8] sm:$0xff] 0.0
        %372 = vst [vmem:[#allocation2 + $0x1e0] sm:$0xff] 0.0
        %373 = vst [vmem:[#allocation2 + $0x1e8] sm:$0xff] 0.0
        %374 = vst [vmem:[#allocation2 + $0x1f0] sm:$0xff] 0.0
        %375 = vst [vmem:[#allocation2 + $0x1f8] sm:$0xff] 0.0
      $region40: #{net_forward.9} parent=35 // pred_fallthru
        _
      %v376 = vld [vmem:[#allocation2] sm:$0xff]
      %v377 = vld [vmem:[#allocation2 + $0x8] sm:$0xff]
      %v378 = vld [vmem:[#allocation2 + $0x10] sm:$0xff]
      %v379 = vld [vmem:[#allocation2 + $0x18] sm:$0xff]
      %v380 = vld [vmem:[#allocation2 + $0x20] sm:$0xff]
      %v381 = vld [vmem:[#allocation2 + $0x28] sm:$0xff]
      %v382 = vld [vmem:[#allocation2 + $0x30] sm:$0xff]
      %v383 = vld [vmem:[#allocation2 + $0x38] sm:$0xff]
      %v384 = vld [vmem:[#allocation2 + $0x40] sm:$0xff]
      %v385 = vld [vmem:[#allocation2 + $0x48] sm:$0xff]
      %v386 = vld [vmem:[#allocation2 + $0x50] sm:$0xff]
      %v387 = vld [vmem:[#allocation2 + $0x58] sm:$0xff]
      %v388 = vld [vmem:[#allocation2 + $0x60] sm:$0xff]
      %v389 = vld [vmem:[#allocation2 + $0x68] sm:$0xff]
      %v390 = vld [vmem:[#allocation2 + $0x70] sm:$0xff]
      %v391 = vld [vmem:[#allocation2 + $0x78] sm:$0xff]
      %v392 = vld [vmem:[#allocation2 + $0x80] sm:$0xff]
      %v393 = vld [vmem:[#allocation2 + $0x88] sm:$0xff]
      %v394 = vld [vmem:[#allocation2 + $0x90] sm:$0xff]
      %v395 = vld [vmem:[#allocation2 + $0x98] sm:$0xff]
      %v396 = vld [vmem:[#allocation2 + $0xa0] sm:$0xff]
      %v397 = vld [vmem:[#allocation2 + $0xa8] sm:$0xff]
      %v398 = vld [vmem:[#allocation2 + $0xb0] sm:$0xff]
      %v399 = vld [vmem:[#allocation2 + $0xb8] sm:$0xff]
      %v400 = vld [vmem:[#allocation2 + $0xc0] sm:$0xff]
      %v401 = vld [vmem:[#allocation2 + $0xc8] sm:$0xff]
      %v402 = vld [vmem:[#allocation2 + $0xd0] sm:$0xff]
      %v403 = vld [vmem:[#allocation2 + $0xd8] sm:$0xff]
      %v404 = vld [vmem:[#allocation2 + $0xe0] sm:$0xff]
      %v405 = vld [vmem:[#allocation2 + $0xe8] sm:$0xff]
      %v406 = vld [vmem:[#allocation2 + $0xf0] sm:$0xff]
      %v407 = vld [vmem:[#allocation2 + $0xf8] sm:$0xff]
      %v408 = vld [vmem:[#allocation2 + $0x100] sm:$0xff]
      %v409 = vld [vmem:[#allocation2 + $0x108] sm:$0xff]
      %v410 = vld [vmem:[#allocation2 + $0x110] sm:$0xff]
      %v411 = vld [vmem:[#allocation2 + $0x118] sm:$0xff]
      %v412 = vld [vmem:[#allocation2 + $0x120] sm:$0xff]
      %v413 = vld [vmem:[#allocation2 + $0x128] sm:$0xff]
      %v414 = vld [vmem:[#allocation2 + $0x130] sm:$0xff]
      %v415 = vld [vmem:[#allocation2 + $0x138] sm:$0xff]
      %v416 = vld [vmem:[#allocation2 + $0x140] sm:$0xff]
      %v417 = vld [vmem:[#allocation2 + $0x148] sm:$0xff]
      %v418 = vld [vmem:[#allocation2 + $0x150] sm:$0xff]
      %v419 = vld [vmem:[#allocation2 + $0x158] sm:$0xff]
      %v420 = vld [vmem:[#allocation2 + $0x160] sm:$0xff]
      %v421 = vld [vmem:[#allocation2 + $0x168] sm:$0xff]
      %v422 = vld [vmem:[#allocation2 + $0x170] sm:$0xff]
      %v423 = vld [vmem:[#allocation2 + $0x178] sm:$0xff]
      %v424 = vld [vmem:[#allocation2 + $0x180] sm:$0xff]
      %v425 = vld [vmem:[#allocation2 + $0x188] sm:$0xff]
      %v426 = vld [vmem:[#allocation2 + $0x190] sm:$0xff]
      %v427 = vld [vmem:[#allocation2 + $0x198] sm:$0xff]
      %v428 = vld [vmem:[#allocation2 + $0x1a0] sm:$0xff]
      %v429 = vld [vmem:[#allocation2 + $0x1a8] sm:$0xff]
      %v430 = vld [vmem:[#allocation2 + $0x1b0] sm:$0xff]
      %v431 = vld [vmem:[#allocation2 + $0x1b8] sm:$0xff]
      %v432 = vld [vmem:[#allocation2 + $0x1c0] sm:$0xff]
      %v433 = vld [vmem:[#allocation2 + $0x1c8] sm:$0xff]
      %v434 = vld [vmem:[#allocation2 + $0x1d0] sm:$0xff]
      %v435 = vld [vmem:[#allocation2 + $0x1d8] sm:$0xff]
      %v436 = vld [vmem:[#allocation2 + $0x1e0] sm:$0xff]
      %v437 = vld [vmem:[#allocation2 + $0x1e8] sm:$0xff]
      %v438 = vld [vmem:[#allocation2 + $0x1f0] sm:$0xff]
      %v439 = vld [vmem:[#allocation2 + $0x1f8] sm:$0xff]
      %v440 = vld [vmem:[%s281] sm:$0xff]
      %v441 = vld [vmem:[%s281 + $0x8] sm:$0xff]
      %v442 = vld [vmem:[%s281 + $0x10] sm:$0xff]
      %v443 = vld [vmem:[%s281 + $0x18] sm:$0xff]
      %v444 = vld [vmem:[%s281 + $0x20] sm:$0xff]
      %v445 = vld [vmem:[%s281 + $0x28] sm:$0xff]
      %v446 = vld [vmem:[%s281 + $0x30] sm:$0xff]
      %v447 = vld [vmem:[%s281 + $0x38] sm:$0xff]
      %v448 = vld [vmem:[%s281 + $0x40] sm:$0xff]
      %v449 = vld [vmem:[%s281 + $0x48] sm:$0xff]
      %v450 = vld [vmem:[%s281 + $0x50] sm:$0xff]
      %v451 = vld [vmem:[%s281 + $0x58] sm:$0xff]
      %v452 = vld [vmem:[%s281 + $0x60] sm:$0xff]
      %v453 = vld [vmem:[%s281 + $0x68] sm:$0xff]
      %v454 = vld [vmem:[%s281 + $0x70] sm:$0xff]
      %v455 = vld [vmem:[%s281 + $0x78] sm:$0xff]
      %v456 = vld [vmem:[%s281 + $0x80] sm:$0xff]
      %v457 = vld [vmem:[%s281 + $0x88] sm:$0xff]
      %v458 = vld [vmem:[%s281 + $0x90] sm:$0xff]
      %v459 = vld [vmem:[%s281 + $0x98] sm:$0xff]
      %v460 = vld [vmem:[%s281 + $0xa0] sm:$0xff]
      %v461 = vld [vmem:[%s281 + $0xa8] sm:$0xff]
      %v462 = vld [vmem:[%s281 + $0xb0] sm:$0xff]
      %v463 = vld [vmem:[%s281 + $0xb8] sm:$0xff]
      %v464 = vld [vmem:[%s281 + $0xc0] sm:$0xff]
      %v465 = vld [vmem:[%s281 + $0xc8] sm:$0xff]
      %v466 = vld [vmem:[%s281 + $0xd0] sm:$0xff]
      %v467 = vld [vmem:[%s281 + $0xd8] sm:$0xff]
      %v468 = vld [vmem:[%s281 + $0xe0] sm:$0xff]
      %v469 = vld [vmem:[%s281 + $0xe8] sm:$0xff]
      %v470 = vld [vmem:[%s281 + $0xf0] sm:$0xff]
      %v471 = vld [vmem:[%s281 + $0xf8] sm:$0xff]
      %v472 = vld [vmem:[%s281 + $0x100] sm:$0xff]
      %v473 = vld [vmem:[%s281 + $0x108] sm:$0xff]
      %v474 = vld [vmem:[%s281 + $0x110] sm:$0xff]
      %v475 = vld [vmem:[%s281 + $0x118] sm:$0xff]
      %v476 = vld [vmem:[%s281 + $0x120] sm:$0xff]
      %v477 = vld [vmem:[%s281 + $0x128] sm:$0xff]
      %v478 = vld [vmem:[%s281 + $0x130] sm:$0xff]
      %v479 = vld [vmem:[%s281 + $0x138] sm:$0xff]
      %v480 = vld [vmem:[%s281 + $0x140] sm:$0xff]
      %v481 = vld [vmem:[%s281 + $0x148] sm:$0xff]
      %v482 = vld [vmem:[%s281 + $0x150] sm:$0xff]
      %v483 = vld [vmem:[%s281 + $0x158] sm:$0xff]
      %v484 = vld [vmem:[%s281 + $0x160] sm:$0xff]
      %v485 = vld [vmem:[%s281 + $0x168] sm:$0xff]
      %v486 = vld [vmem:[%s281 + $0x170] sm:$0xff]
      %v487 = vld [vmem:[%s281 + $0x178] sm:$0xff]
      %v488 = vld [vmem:[%s281 + $0x180] sm:$0xff]
      %v489 = vld [vmem:[%s281 + $0x188] sm:$0xff]
      %v490 = vld [vmem:[%s281 + $0x190] sm:$0xff]
      %v491 = vld [vmem:[%s281 + $0x198] sm:$0xff]
      %v492 = vld [vmem:[%s281 + $0x1a0] sm:$0xff]
      %v493 = vld [vmem:[%s281 + $0x1a8] sm:$0xff]
      %v494 = vld [vmem:[%s281 + $0x1b0] sm:$0xff]
      %v495 = vld [vmem:[%s281 + $0x1b8] sm:$0xff]
      %v496 = vld [vmem:[%s281 + $0x1c0] sm:$0xff]
      %v497 = vld [vmem:[%s281 + $0x1c8] sm:$0xff]
      %v498 = vld [vmem:[%s281 + $0x1d0] sm:$0xff]
      %v499 = vld [vmem:[%s281 + $0x1d8] sm:$0xff]
      %v500 = vld [vmem:[%s281 + $0x1e0] sm:$0xff]
      %v501 = vld [vmem:[%s281 + $0x1e8] sm:$0xff]
      %v502 = vld [vmem:[%s281 + $0x1f0] sm:$0xff]
      %v503 = vld [vmem:[%s281 + $0x1f8] sm:$0xff]
      %v504 = vld [vmem:[%s291] sm:$0xf]
      %v505 = vld [vmem:[%s291 + $0x4] sm:$0xf]
      %v506 = vld [vmem:[%s291 + $0x8] sm:$0xf]
      %v507 = vld [vmem:[%s291 + $0xc] sm:$0xf]
      %v508 = vld [vmem:[%s291 + $0x10] sm:$0xf]
      %v509 = vld [vmem:[%s291 + $0x14] sm:$0xf]
      %v510 = vld [vmem:[%s291 + $0x18] sm:$0xf]
      %v511 = vld [vmem:[%s291 + $0x1c] sm:$0xf]
      %v512 = vld [vmem:[%s291 + $0x20] sm:$0xf]
      %v513 = vld [vmem:[%s291 + $0x24] sm:$0xf]
      %v514 = vld [vmem:[%s291 + $0x28] sm:$0xf]
      %v515 = vld [vmem:[%s291 + $0x2c] sm:$0xf]
      %v516 = vld [vmem:[%s291 + $0x30] sm:$0xf]
      %v517 = vld [vmem:[%s291 + $0x34] sm:$0xf]
      %v518 = vld [vmem:[%s291 + $0x38] sm:$0xf]
      %v519 = vld [vmem:[%s291 + $0x3c] sm:$0xf]
      %v520 = vld [vmem:[%s291 + $0x40] sm:$0xf]
      %v521 = vld [vmem:[%s291 + $0x44] sm:$0xf]
      %v522 = vld [vmem:[%s291 + $0x48] sm:$0xf]
      %v523 = vld [vmem:[%s291 + $0x4c] sm:$0xf]
      %v524 = vld [vmem:[%s291 + $0x50] sm:$0xf]
      %v525 = vld [vmem:[%s291 + $0x54] sm:$0xf]
      %v526 = vld [vmem:[%s291 + $0x58] sm:$0xf]
      %v527 = vld [vmem:[%s291 + $0x5c] sm:$0xf]
      %v528 = vld [vmem:[%s291 + $0x60] sm:$0xf]
      %v529 = vld [vmem:[%s291 + $0x64] sm:$0xf]
      %v530 = vld [vmem:[%s291 + $0x68] sm:$0xf]
      %v531 = vld [vmem:[%s291 + $0x6c] sm:$0xf]
      %v532 = vld [vmem:[%s291 + $0x70] sm:$0xf]
      %v533 = vld [vmem:[%s291 + $0x74] sm:$0xf]
      %v534 = vld [vmem:[%s291 + $0x78] sm:$0xf]
      %v535 = vld [vmem:[%s291 + $0x7c] sm:$0xf]
      %v600 = vunpack.c.l.b16 %v440
      %v601 = vunpack.c.h.b16 %v440
      %v602 = vunpack.c.l.b16 %v441
      %v603 = vunpack.c.h.b16 %v441
      %v604 = vunpack.c.l.b16 %v442
      %v605 = vunpack.c.h.b16 %v442
      %v606 = vunpack.c.l.b16 %v443
      %v607 = vunpack.c.h.b16 %v443
      %v608 = vunpack.c.l.b16 %v444
      %v609 = vunpack.c.h.b16 %v444
      %v610 = vunpack.c.l.b16 %v445
      %v611 = vunpack.c.h.b16 %v445
      %v612 = vunpack.c.l.b16 %v446
      %v613 = vunpack.c.h.b16 %v446
      %v614 = vunpack.c.l.b16 %v447
      %v615 = vunpack.c.h.b16 %v447
      %v616 = vunpack.c.l.b16 %v448
      %v617 = vunpack.c.h.b16 %v448
      %v618 = vunpack.c.l.b16 %v449
      %v619 = vunpack.c.h.b16 %v449
      %v620 = vunpack.c.l.b16 %v450
      %v621 = vunpack.c.h.b16 %v450
      %v622 = vunpack.c.l.b16 %v451
      %v623 = vunpack.c.h.b16 %v451
      %v624 = vunpack.c.l.b16 %v452
      %v625 = vunpack.c.h.b16 %v452
      %v626 = vunpack.c.l.b16 %v453
      %v627 = vunpack.c.h.b16 %v453
      %v628 = vunpack.c.l.b16 %v454
      %v629 = vunpack.c.h.b16 %v454
      %v630 = vunpack.c.l.b16 %v455
      %v631 = vunpack.c.h.b16 %v455
      %v632 = vunpack.c.l.b16 %v456
      %v633 = vunpack.c.h.b16 %v456
      %v634 = vunpack.c.l.b16 %v457
      %v635 = vunpack.c.h.b16 %v457
      %v636 = vunpack.c.l.b16 %v458
      %v637 = vunpack.c.h.b16 %v458
      %v638 = vunpack.c.l.b16 %v459
      %v639 = vunpack.c.h.b16 %v459
      %v640 = vunpack.c.l.b16 %v460
      %v641 = vunpack.c.h.b16 %v460
      %v642 = vunpack.c.l.b16 %v461
      %v643 = vunpack.c.h.b16 %v461
      %v644 = vunpack.c.l.b16 %v462
      %v645 = vunpack.c.h.b16 %v462
      %v646 = vunpack.c.l.b16 %v463
      %v647 = vunpack.c.h.b16 %v463
      %v648 = vunpack.c.l.b16 %v464
      %v649 = vunpack.c.h.b16 %v464
      %v650 = vunpack.c.l.b16 %v465
      %v651 = vunpack.c.h.b16 %v465
      %v652 = vunpack.c.l.b16 %v466
      %v653 = vunpack.c.h.b16 %v466
      %v654 = vunpack.c.l.b16 %v467
      %v655 = vunpack.c.h.b16 %v467
      %v656 = vunpack.c.l.b16 %v468
      %v657 = vunpack.c.h.b16 %v468
      %v658 = vunpack.c.l.b16 %v469
      %v659 = vunpack.c.h.b16 %v469
      %v660 = vunpack.c.l.b16 %v470
      %v661 = vunpack.c.h.b16 %v470
      %v662 = vunpack.c.l.b16 %v471
      %v663 = vunpack.c.h.b16 %v471
      %v664 = vunpack.c.l.b16 %v472
      %v665 = vunpack.c.h.b16 %v472
      %v666 = vunpack.c.l.b16 %v473
      %v667 = vunpack.c.h.b16 %v473
      %v668 = vunpack.c.l.b16 %v474
      %v669 = vunpack.c.h.b16 %v474
      %v670 = vunpack.c.l.b16 %v475
      %v671 = vunpack.c.h.b16 %v475
      %v672 = vunpack.c.l.b16 %v476
      %v673 = vunpack.c.h.b16 %v476
      %v674 = vunpack.c.l.b16 %v477
      %v675 = vunpack.c.h.b16 %v477
      %v676 = vunpack.c.l.b16 %v478
      %v677 = vunpack.c.h.b16 %v478
      %v678 = vunpack.c.l.b16 %v479
      %v679 = vunpack.c.h.b16 %v479
      %v680 = vunpack.c.l.b16 %v480
      %v681 = vunpack.c.h.b16 %v480
      %v682 = vunpack.c.l.b16 %v481
      %v683 = vunpack.c.h.b16 %v481
      %v684 = vunpack.c.l.b16 %v482
      %v685 = vunpack.c.h.b16 %v482
      %v686 = vunpack.c.l.b16 %v483
      %v687 = vunpack.c.h.b16 %v483
      %v688 = vunpack.c.l.b16 %v484
      %v689 = vunpack.c.h.b16 %v484
      %v690 = vunpack.c.l.b16 %v485
      %v691 = vunpack.c.h.b16 %v485
      %v692 = vunpack.c.l.b16 %v486
      %v693 = vunpack.c.h.b16 %v486
      %v694 = vunpack.c.l.b16 %v487
      %v695 = vunpack.c.h.b16 %v487
      %v696 = vunpack.c.l.b16 %v488
      %v697 = vunpack.c.h.b16 %v488
      %v698 = vunpack.c.l.b16 %v489
      %v699 = vunpack.c.h.b16 %v489
      %v700 = vunpack.c.l.b16 %v490
      %v701 = vunpack.c.h.b16 %v490
      %v702 = vunpack.c.l.b16 %v491
      %v703 = vunpack.c.h.b16 %v491
      %v704 = vunpack.c.l.b16 %v492
      %v705 = vunpack.c.h.b16 %v492
      %v706 = vunpack.c.l.b16 %v493
      %v707 = vunpack.c.h.b16 %v493
      %v708 = vunpack.c.l.b16 %v494
      %v709 = vunpack.c.h.b16 %v494
      %v710 = vunpack.c.l.b16 %v495
      %v711 = vunpack.c.h.b16 %v495
      %v712 = vunpack.c.l.b16 %v496
      %v713 = vunpack.c.h.b16 %v496
      %v714 = vunpack.c.l.b16 %v497
      %v715 = vunpack.c.h.b16 %v497
      %v716 = vunpack.c.l.b16 %v498
      %v717 = vunpack.c.h.b16 %v498
      %v718 = vunpack.c.l.b16 %v499
      %v719 = vunpack.c.h.b16 %v499
      %v720 = vunpack.c.l.b16 %v500
      %v721 = vunpack.c.h.b16 %v500
      %v722 = vunpack.c.l.b16 %v501
      %v723 = vunpack.c.h.b16 %v501
      %v724 = vunpack.c.l.b16 %v502
      %v725 = vunpack.c.h.b16 %v502
      %v726 = vunpack.c.l.b16 %v503
      %v727 = vunpack.c.h.b16 %v503
      %v728 = vpack.c.b16 %v602, %v600
      %v729 = vpack.c.b16 %v603, %v601
      %v730 = vpack.c.b16 %v606, %v604
      %v731 = vpack.c.b16 %v607, %v605
      %v732 = vpack.c.b16 %v610, %v608
      %v733 = vpack.c.b16 %v611, %v609
      %v734 = vpack.c.b16 %v614, %v612
      %v735 = vpack.c.b16 %v615, %v613
      %v736 = vpack.c.b16 %v618, %v616
      %v737 = vpack.c.b16 %v619, %v617
      %v738 = vpack.c.b16 %v622, %v620
      %v739 = vpack.c.b16 %v623, %v621
      %v740 = vpack.c.b16 %v626, %v624
      %v741 = vpack.c.b16 %v627, %v625
      %v742 = vpack.c.b16 %v630, %v628
      %v743 = vpack.c.b16 %v631, %v629
      %v744 = vpack.c.b16 %v634, %v632
      %v745 = vpack.c.b16 %v635, %v633
      %v746 = vpack.c.b16 %v638, %v636
      %v747 = vpack.c.b16 %v639, %v637
      %v748 = vpack.c.b16 %v642, %v640
      %v749 = vpack.c.b16 %v643, %v641
      %v750 = vpack.c.b16 %v646, %v644
      %v751 = vpack.c.b16 %v647, %v645
      %v752 = vpack.c.b16 %v650, %v648
      %v753 = vpack.c.b16 %v651, %v649
      %v754 = vpack.c.b16 %v654, %v652
      %v755 = vpack.c.b16 %v655, %v653
      %v756 = vpack.c.b16 %v658, %v656
      %v757 = vpack.c.b16 %v659, %v657
      %v758 = vpack.c.b16 %v662, %v660
      %v759 = vpack.c.b16 %v663, %v661
      %v760 = vpack.c.b16 %v666, %v664
      %v761 = vpack.c.b16 %v667, %v665
      %v762 = vpack.c.b16 %v670, %v668
      %v763 = vpack.c.b16 %v671, %v669
      %v764 = vpack.c.b16 %v674, %v672
      %v765 = vpack.c.b16 %v675, %v673
      %v766 = vpack.c.b16 %v678, %v676
      %v767 = vpack.c.b16 %v679, %v677
      %v768 = vpack.c.b16 %v682, %v680
      %v769 = vpack.c.b16 %v683, %v681
      %v770 = vpack.c.b16 %v686, %v684
      %v771 = vpack.c.b16 %v687, %v685
      %v772 = vpack.c.b16 %v690, %v688
      %v773 = vpack.c.b16 %v691, %v689
      %v774 = vpack.c.b16 %v694, %v692
      %v775 = vpack.c.b16 %v695, %v693
      %v776 = vpack.c.b16 %v698, %v696
      %v777 = vpack.c.b16 %v699, %v697
      %v778 = vpack.c.b16 %v702, %v700
      %v779 = vpack.c.b16 %v703, %v701
      %v780 = vpack.c.b16 %v706, %v704
      %v781 = vpack.c.b16 %v707, %v705
      %v782 = vpack.c.b16 %v710, %v708
      %v783 = vpack.c.b16 %v711, %v709
      %v784 = vpack.c.b16 %v714, %v712
      %v785 = vpack.c.b16 %v715, %v713
      %v786 = vpack.c.b16 %v718, %v716
      %v787 = vpack.c.b16 %v719, %v717
      %v788 = vpack.c.b16 %v722, %v720
      %v789 = vpack.c.b16 %v723, %v721
      %v790 = vpack.c.b16 %v726, %v724
      %v791 = vpack.c.b16 %v727, %v725
      %v888 = vunpack.c.l.b16 %v504
      %v889 = vunpack.c.l.b16 %v505
      %v890 = vunpack.c.l.b16 %v506
      %v891 = vunpack.c.l.b16 %v507
      %v892 = vunpack.c.l.b16 %v508
      %v893 = vunpack.c.l.b16 %v509
      %v894 = vunpack.c.l.b16 %v510
      %v895 = vunpack.c.l.b16 %v511
      %v896 = vunpack.c.l.b16 %v512
      %v897 = vunpack.c.l.b16 %v513
      %v898 = vunpack.c.l.b16 %v514
      %v899 = vunpack.c.l.b16 %v515
      %v900 = vunpack.c.l.b16 %v516
      %v901 = vunpack.c.l.b16 %v517
      %v902 = vunpack.c.l.b16 %v518
      %v903 = vunpack.c.l.b16 %v519
      %v904 = vunpack.c.l.b16 %v520
      %v905 = vunpack.c.l.b16 %v521
      %v906 = vunpack.c.l.b16 %v522
      %v907 = vunpack.c.l.b16 %v523
      %v908 = vunpack.c.l.b16 %v524
      %v909 = vunpack.c.l.b16 %v525
      %v910 = vunpack.c.l.b16 %v526
      %v911 = vunpack.c.l.b16 %v527
      %v912 = vunpack.c.l.b16 %v528
      %v913 = vunpack.c.l.b16 %v529
      %v914 = vunpack.c.l.b16 %v530
      %v915 = vunpack.c.l.b16 %v531
      %v916 = vunpack.c.l.b16 %v532
      %v917 = vunpack.c.l.b16 %v533
      %v918 = vunpack.c.l.b16 %v534
      %v919 = vunpack.c.l.b16 %v535
      %v920 = vpack.c.b16 %v889, %v888
      %v921 = vpack.c.b16 %v891, %v890
      %v922 = vpack.c.b16 %v893, %v892
      %v923 = vpack.c.b16 %v895, %v894
      %v924 = vpack.c.b16 %v897, %v896
      %v925 = vpack.c.b16 %v899, %v898
      %v926 = vpack.c.b16 %v901, %v900
      %v927 = vpack.c.b16 %v903, %v902
      %v928 = vpack.c.b16 %v905, %v904
      %v929 = vpack.c.b16 %v907, %v906
      %v930 = vpack.c.b16 %v909, %v908
      %v931 = vpack.c.b16 %v911, %v910
      %v932 = vpack.c.b16 %v913, %v912
      %v933 = vpack.c.b16 %v915, %v914
      %v934 = vpack.c.b16 %v917, %v916
      %v935 = vpack.c.b16 %v919, %v918
      %952 = vmatpush.bf16.msra.mxu0 %v927
      %953 = vmatpush.bf16.msra.mxu0 %v926
      %954 = vmatpush.bf16.msra.mxu0 %v925
      %955 = vmatpush.bf16.msra.mxu0 %v924
      %956 = vmatpush.bf16.msra.mxu0 %v923
      %957 = vmatpush.bf16.msra.mxu0 %v922
      %958 = vmatpush.bf16.msra.mxu0 %v921
      %959 = vmatpush.bf16.msra.mxu0 %v920
      %960 = vmatmul.bf16.gmra.mxu0 %v728
      %v961 = vpop.f32.mrf.mxu0
      %v962 = vadd.f32 0.0, %v961
      %v963 = vpop.f32.mrf.mxu0
      %v964 = vadd.f32 0.0, %v963
      %965 = vmatmul.bf16.gmra.mxu0 %v730
      %v966 = vpop.f32.mrf.mxu0
      %v967 = vadd.f32 0.0, %v966
      %v968 = vpop.f32.mrf.mxu0
      %v969 = vadd.f32 0.0, %v968
      %970 = vmatmul.bf16.gmra.mxu0 %v732
      %v971 = vpop.f32.mrf.mxu0
      %v972 = vadd.f32 0.0, %v971
      %v973 = vpop.f32.mrf.mxu0
      %v974 = vadd.f32 0.0, %v973
      %975 = vmatmul.bf16.gmra.mxu0 %v734
      %v976 = vpop.f32.mrf.mxu0
      %v977 = vadd.f32 0.0, %v976
      %v978 = vpop.f32.mrf.mxu0
      %v979 = vadd.f32 0.0, %v978
      %980 = vmatmul.bf16.gmra.mxu0 %v736
      %v981 = vpop.f32.mrf.mxu0
      %v982 = vadd.f32 0.0, %v981
      %v983 = vpop.f32.mrf.mxu0
      %v984 = vadd.f32 0.0, %v983
      %985 = vmatmul.bf16.gmra.mxu0 %v738
      %v986 = vpop.f32.mrf.mxu0
      %v987 = vadd.f32 0.0, %v986
      %v988 = vpop.f32.mrf.mxu0
      %v989 = vadd.f32 0.0, %v988
      %990 = vmatmul.bf16.gmra.mxu0 %v740
      %v991 = vpop.f32.mrf.mxu0
      %v992 = vadd.f32 0.0, %v991
      %v993 = vpop.f32.mrf.mxu0
      %v994 = vadd.f32 0.0, %v993
      %995 = vmatmul.bf16.gmra.mxu0 %v742
      %v996 = vpop.f32.mrf.mxu0
      %v997 = vadd.f32 0.0, %v996
      %v998 = vpop.f32.mrf.mxu0
      %v999 = vadd.f32 0.0, %v998
      %1000 = vmatmul.bf16.gmra.mxu0 %v744
      %v1001 = vpop.f32.mrf.mxu0
      %v1002 = vadd.f32 0.0, %v1001
      %v1003 = vpop.f32.mrf.mxu0
      %v1004 = vadd.f32 0.0, %v1003
      %1005 = vmatmul.bf16.gmra.mxu0 %v746
      %v1006 = vpop.f32.mrf.mxu0
      %v1007 = vadd.f32 0.0, %v1006
      %v1008 = vpop.f32.mrf.mxu0
      %v1009 = vadd.f32 0.0, %v1008
      %1010 = vmatmul.bf16.gmra.mxu0 %v748
      %v1011 = vpop.f32.mrf.mxu0
      %v1012 = vadd.f32 0.0, %v1011
      %v1013 = vpop.f32.mrf.mxu0
      %v1014 = vadd.f32 0.0, %v1013
      %1015 = vmatmul.bf16.gmra.mxu0 %v750
      %v1016 = vpop.f32.mrf.mxu0
      %v1017 = vadd.f32 0.0, %v1016
      %v1018 = vpop.f32.mrf.mxu0
      %v1019 = vadd.f32 0.0, %v1018
      %1020 = vmatmul.bf16.gmra.mxu0 %v752
      %v1021 = vpop.f32.mrf.mxu0
      %v1022 = vadd.f32 0.0, %v1021
      %v1023 = vpop.f32.mrf.mxu0
      %v1024 = vadd.f32 0.0, %v1023
      %1025 = vmatmul.bf16.gmra.mxu0 %v754
      %v1026 = vpop.f32.mrf.mxu0
      %v1027 = vadd.f32 0.0, %v1026
      %v1028 = vpop.f32.mrf.mxu0
      %v1029 = vadd.f32 0.0, %v1028
      %1030 = vmatmul.bf16.gmra.mxu0 %v756
      %v1031 = vpop.f32.mrf.mxu0
      %v1032 = vadd.f32 0.0, %v1031
      %v1033 = vpop.f32.mrf.mxu0
      %v1034 = vadd.f32 0.0, %v1033
      %1035 = vmatmul.bf16.gmra.mxu0 %v758
      %v1036 = vpop.f32.mrf.mxu0
      %v1037 = vadd.f32 0.0, %v1036
      %v1038 = vpop.f32.mrf.mxu0
      %v1039 = vadd.f32 0.0, %v1038
      %1040 = vmatmul.bf16.gmra.mxu0 %v760
      %v1041 = vpop.f32.mrf.mxu0
      %v1042 = vadd.f32 0.0, %v1041
      %v1043 = vpop.f32.mrf.mxu0
      %v1044 = vadd.f32 0.0, %v1043
      %1045 = vmatmul.bf16.gmra.mxu0 %v762
      %v1046 = vpop.f32.mrf.mxu0
      %v1047 = vadd.f32 0.0, %v1046
      %v1048 = vpop.f32.mrf.mxu0
      %v1049 = vadd.f32 0.0, %v1048
      %1050 = vmatmul.bf16.gmra.mxu0 %v764
      %v1051 = vpop.f32.mrf.mxu0
      %v1052 = vadd.f32 0.0, %v1051
      %v1053 = vpop.f32.mrf.mxu0
      %v1054 = vadd.f32 0.0, %v1053
      %1055 = vmatmul.bf16.gmra.mxu0 %v766
      %v1056 = vpop.f32.mrf.mxu0
      %v1057 = vadd.f32 0.0, %v1056
      %v1058 = vpop.f32.mrf.mxu0
      %v1059 = vadd.f32 0.0, %v1058
      %1060 = vmatmul.bf16.gmra.mxu0 %v768
      %v1061 = vpop.f32.mrf.mxu0
      %v1062 = vadd.f32 0.0, %v1061
      %v1063 = vpop.f32.mrf.mxu0
      %v1064 = vadd.f32 0.0, %v1063
      %1065 = vmatmul.bf16.gmra.mxu0 %v770
      %v1066 = vpop.f32.mrf.mxu0
      %v1067 = vadd.f32 0.0, %v1066
      %v1068 = vpop.f32.mrf.mxu0
      %v1069 = vadd.f32 0.0, %v1068
      %1070 = vmatmul.bf16.gmra.mxu0 %v772
      %v1071 = vpop.f32.mrf.mxu0
      %v1072 = vadd.f32 0.0, %v1071
      %v1073 = vpop.f32.mrf.mxu0
      %v1074 = vadd.f32 0.0, %v1073
      %1075 = vmatmul.bf16.gmra.mxu0 %v774
      %v1076 = vpop.f32.mrf.mxu0
      %v1077 = vadd.f32 0.0, %v1076
      %v1078 = vpop.f32.mrf.mxu0
      %v1079 = vadd.f32 0.0, %v1078
      %1080 = vmatmul.bf16.gmra.mxu0 %v776
      %v1081 = vpop.f32.mrf.mxu0
      %v1082 = vadd.f32 0.0, %v1081
      %v1083 = vpop.f32.mrf.mxu0
      %v1084 = vadd.f32 0.0, %v1083
      %1085 = vmatmul.bf16.gmra.mxu0 %v778
      %v1086 = vpop.f32.mrf.mxu0
      %v1087 = vadd.f32 0.0, %v1086
      %v1088 = vpop.f32.mrf.mxu0
      %v1089 = vadd.f32 0.0, %v1088
      %1090 = vmatmul.bf16.gmra.mxu0 %v780
      %v1091 = vpop.f32.mrf.mxu0
      %v1092 = vadd.f32 0.0, %v1091
      %v1093 = vpop.f32.mrf.mxu0
      %v1094 = vadd.f32 0.0, %v1093
      %1095 = vmatmul.bf16.gmra.mxu0 %v782
      %v1096 = vpop.f32.mrf.mxu0
      %v1097 = vadd.f32 0.0, %v1096
      %v1098 = vpop.f32.mrf.mxu0
      %v1099 = vadd.f32 0.0, %v1098
      %1100 = vmatmul.bf16.gmra.mxu0 %v784
      %v1101 = vpop.f32.mrf.mxu0
      %v1102 = vadd.f32 0.0, %v1101
      %v1103 = vpop.f32.mrf.mxu0
      %v1104 = vadd.f32 0.0, %v1103
      %1105 = vmatmul.bf16.gmra.mxu0 %v786
      %v1106 = vpop.f32.mrf.mxu0
      %v1107 = vadd.f32 0.0, %v1106
      %v1108 = vpop.f32.mrf.mxu0
      %v1109 = vadd.f32 0.0, %v1108
      %1110 = vmatmul.bf16.gmra.mxu0 %v788
      %v1111 = vpop.f32.mrf.mxu0
      %v1112 = vadd.f32 0.0, %v1111
      %v1113 = vpop.f32.mrf.mxu0
      %v1114 = vadd.f32 0.0, %v1113
      %1115 = vmatmul.bf16.gmra.mxu0 %v790
      %v1116 = vpop.f32.mrf.mxu0
      %v1117 = vadd.f32 0.0, %v1116
      %v1118 = vpop.f32.mrf.mxu0
      %v1119 = vadd.f32 0.0, %v1118
      %1120 = vdwg.mxu0
      %1121 = vmatpush.bf16.msra.mxu0 %v935
      %1122 = vmatpush.bf16.msra.mxu0 %v934
      %1123 = vmatpush.bf16.msra.mxu0 %v933
      %1124 = vmatpush.bf16.msra.mxu0 %v932
      %1125 = vmatpush.bf16.msra.mxu0 %v931
      %1126 = vmatpush.bf16.msra.mxu0 %v930
      %1127 = vmatpush.bf16.msra.mxu0 %v929
      %1128 = vmatpush.bf16.msra.mxu0 %v928
      %1129 = vmatmul.bf16.gmra.mxu0 %v729
      %v1130 = vpop.f32.mrf.mxu0
      %v1131 = vadd.f32 %v962, %v1130
      %v1132 = vpop.f32.mrf.mxu0
      %v1133 = vadd.f32 %v964, %v1132
      %1134 = vmatmul.bf16.gmra.mxu0 %v731
      %v1135 = vpop.f32.mrf.mxu0
      %v1136 = vadd.f32 %v967, %v1135
      %v1137 = vpop.f32.mrf.mxu0
      %v1138 = vadd.f32 %v969, %v1137
      %1139 = vmatmul.bf16.gmra.mxu0 %v733
      %v1140 = vpop.f32.mrf.mxu0
      %v1141 = vadd.f32 %v972, %v1140
      %v1142 = vpop.f32.mrf.mxu0
      %v1143 = vadd.f32 %v974, %v1142
      %1144 = vmatmul.bf16.gmra.mxu0 %v735
      %v1145 = vpop.f32.mrf.mxu0
      %v1146 = vadd.f32 %v977, %v1145
      %v1147 = vpop.f32.mrf.mxu0
      %v1148 = vadd.f32 %v979, %v1147
      %1149 = vmatmul.bf16.gmra.mxu0 %v737
      %v1150 = vpop.f32.mrf.mxu0
      %v1151 = vadd.f32 %v982, %v1150
      %v1152 = vpop.f32.mrf.mxu0
      %v1153 = vadd.f32 %v984, %v1152
      %1154 = vmatmul.bf16.gmra.mxu0 %v739
      %v1155 = vpop.f32.mrf.mxu0
      %v1156 = vadd.f32 %v987, %v1155
      %v1157 = vpop.f32.mrf.mxu0
      %v1158 = vadd.f32 %v989, %v1157
      %1159 = vmatmul.bf16.gmra.mxu0 %v741
      %v1160 = vpop.f32.mrf.mxu0
      %v1161 = vadd.f32 %v992, %v1160
      %v1162 = vpop.f32.mrf.mxu0
      %v1163 = vadd.f32 %v994, %v1162
      %1164 = vmatmul.bf16.gmra.mxu0 %v743
      %v1165 = vpop.f32.mrf.mxu0
      %v1166 = vadd.f32 %v997, %v1165
      %v1167 = vpop.f32.mrf.mxu0
      %v1168 = vadd.f32 %v999, %v1167
      %1169 = vmatmul.bf16.gmra.mxu0 %v745
      %v1170 = vpop.f32.mrf.mxu0
      %v1171 = vadd.f32 %v1002, %v1170
      %v1172 = vpop.f32.mrf.mxu0
      %v1173 = vadd.f32 %v1004, %v1172
      %1174 = vmatmul.bf16.gmra.mxu0 %v747
      %v1175 = vpop.f32.mrf.mxu0
      %v1176 = vadd.f32 %v1007, %v1175
      %v1177 = vpop.f32.mrf.mxu0
      %v1178 = vadd.f32 %v1009, %v1177
      %1179 = vmatmul.bf16.gmra.mxu0 %v749
      %v1180 = vpop.f32.mrf.mxu0
      %v1181 = vadd.f32 %v1012, %v1180
      %v1182 = vpop.f32.mrf.mxu0
      %v1183 = vadd.f32 %v1014, %v1182
      %1184 = vmatmul.bf16.gmra.mxu0 %v751
      %v1185 = vpop.f32.mrf.mxu0
      %v1186 = vadd.f32 %v1017, %v1185
      %v1187 = vpop.f32.mrf.mxu0
      %v1188 = vadd.f32 %v1019, %v1187
      %1189 = vmatmul.bf16.gmra.mxu0 %v753
      %v1190 = vpop.f32.mrf.mxu0
      %v1191 = vadd.f32 %v1022, %v1190
      %v1192 = vpop.f32.mrf.mxu0
      %v1193 = vadd.f32 %v1024, %v1192
      %1194 = vmatmul.bf16.gmra.mxu0 %v755
      %v1195 = vpop.f32.mrf.mxu0
      %v1196 = vadd.f32 %v1027, %v1195
      %v1197 = vpop.f32.mrf.mxu0
      %v1198 = vadd.f32 %v1029, %v1197
      %1199 = vmatmul.bf16.gmra.mxu0 %v757
      %v1200 = vpop.f32.mrf.mxu0
      %v1201 = vadd.f32 %v1032, %v1200
      %v1202 = vpop.f32.mrf.mxu0
      %v1203 = vadd.f32 %v1034, %v1202
      %1204 = vmatmul.bf16.gmra.mxu0 %v759
      %v1205 = vpop.f32.mrf.mxu0
      %v1206 = vadd.f32 %v1037, %v1205
      %v1207 = vpop.f32.mrf.mxu0
      %v1208 = vadd.f32 %v1039, %v1207
      %1209 = vmatmul.bf16.gmra.mxu0 %v761
      %v1210 = vpop.f32.mrf.mxu0
      %v1211 = vadd.f32 %v1042, %v1210
      %v1212 = vpop.f32.mrf.mxu0
      %v1213 = vadd.f32 %v1044, %v1212
      %1214 = vmatmul.bf16.gmra.mxu0 %v763
      %v1215 = vpop.f32.mrf.mxu0
      %v1216 = vadd.f32 %v1047, %v1215
      %v1217 = vpop.f32.mrf.mxu0
      %v1218 = vadd.f32 %v1049, %v1217
      %1219 = vmatmul.bf16.gmra.mxu0 %v765
      %v1220 = vpop.f32.mrf.mxu0
      %v1221 = vadd.f32 %v1052, %v1220
      %v1222 = vpop.f32.mrf.mxu0
      %v1223 = vadd.f32 %v1054, %v1222
      %1224 = vmatmul.bf16.gmra.mxu0 %v767
      %v1225 = vpop.f32.mrf.mxu0
      %v1226 = vadd.f32 %v1057, %v1225
      %v1227 = vpop.f32.mrf.mxu0
      %v1228 = vadd.f32 %v1059, %v1227
      %1229 = vmatmul.bf16.gmra.mxu0 %v769
      %v1230 = vpop.f32.mrf.mxu0
      %v1231 = vadd.f32 %v1062, %v1230
      %v1232 = vpop.f32.mrf.mxu0
      %v1233 = vadd.f32 %v1064, %v1232
      %1234 = vmatmul.bf16.gmra.mxu0 %v771
      %v1235 = vpop.f32.mrf.mxu0
      %v1236 = vadd.f32 %v1067, %v1235
      %v1237 = vpop.f32.mrf.mxu0
      %v1238 = vadd.f32 %v1069, %v1237
      %1239 = vmatmul.bf16.gmra.mxu0 %v773
      %v1240 = vpop.f32.mrf.mxu0
      %v1241 = vadd.f32 %v1072, %v1240
      %v1242 = vpop.f32.mrf.mxu0
      %v1243 = vadd.f32 %v1074, %v1242
      %1244 = vmatmul.bf16.gmra.mxu0 %v775
      %v1245 = vpop.f32.mrf.mxu0
      %v1246 = vadd.f32 %v1077, %v1245
      %v1247 = vpop.f32.mrf.mxu0
      %v1248 = vadd.f32 %v1079, %v1247
      %1249 = vmatmul.bf16.gmra.mxu0 %v777
      %v1250 = vpop.f32.mrf.mxu0
      %v1251 = vadd.f32 %v1082, %v1250
      %v1252 = vpop.f32.mrf.mxu0
      %v1253 = vadd.f32 %v1084, %v1252
      %1254 = vmatmul.bf16.gmra.mxu0 %v779
      %v1255 = vpop.f32.mrf.mxu0
      %v1256 = vadd.f32 %v1087, %v1255
      %v1257 = vpop.f32.mrf.mxu0
      %v1258 = vadd.f32 %v1089, %v1257
      %1259 = vmatmul.bf16.gmra.mxu0 %v781
      %v1260 = vpop.f32.mrf.mxu0
      %v1261 = vadd.f32 %v1092, %v1260
      %v1262 = vpop.f32.mrf.mxu0
      %v1263 = vadd.f32 %v1094, %v1262
      %1264 = vmatmul.bf16.gmra.mxu0 %v783
      %v1265 = vpop.f32.mrf.mxu0
      %v1266 = vadd.f32 %v1097, %v1265
      %v1267 = vpop.f32.mrf.mxu0
      %v1268 = vadd.f32 %v1099, %v1267
      %1269 = vmatmul.bf16.gmra.mxu0 %v785
      %v1270 = vpop.f32.mrf.mxu0
      %v1271 = vadd.f32 %v1102, %v1270
      %v1272 = vpop.f32.mrf.mxu0
      %v1273 = vadd.f32 %v1104, %v1272
      %1274 = vmatmul.bf16.gmra.mxu0 %v787
      %v1275 = vpop.f32.mrf.mxu0
      %v1276 = vadd.f32 %v1107, %v1275
      %v1277 = vpop.f32.mrf.mxu0
      %v1278 = vadd.f32 %v1109, %v1277
      %1279 = vmatmul.bf16.gmra.mxu0 %v789
      %v1280 = vpop.f32.mrf.mxu0
      %v1281 = vadd.f32 %v1112, %v1280
      %v1282 = vpop.f32.mrf.mxu0
      %v1283 = vadd.f32 %v1114, %v1282
      %1284 = vmatmul.bf16.gmra.mxu0 %v791
      %v1285 = vpop.f32.mrf.mxu0
      %v1286 = vadd.f32 %v1117, %v1285
      %v1287 = vpop.f32.mrf.mxu0
      %v1288 = vadd.f32 %v1119, %v1287
      %1289 = vdwg.mxu0
      %v1290 = vadd.f32 %v376, %v1131
      %v1291 = vadd.f32 %v377, %v1133
      %v1292 = vadd.f32 %v378, %v1136
      %v1293 = vadd.f32 %v379, %v1138
      %v1294 = vadd.f32 %v380, %v1141
      %v1295 = vadd.f32 %v381, %v1143
      %v1296 = vadd.f32 %v382, %v1146
      %v1297 = vadd.f32 %v383, %v1148
      %v1298 = vadd.f32 %v384, %v1151
      %v1299 = vadd.f32 %v385, %v1153
      %v1300 = vadd.f32 %v386, %v1156
      %v1301 = vadd.f32 %v387, %v1158
      %v1302 = vadd.f32 %v388, %v1161
      %v1303 = vadd.f32 %v389, %v1163
      %v1304 = vadd.f32 %v390, %v1166
      %v1305 = vadd.f32 %v391, %v1168
      %v1306 = vadd.f32 %v392, %v1171
      %v1307 = vadd.f32 %v393, %v1173
      %v1308 = vadd.f32 %v394, %v1176
      %v1309 = vadd.f32 %v395, %v1178
      %v1310 = vadd.f32 %v396, %v1181
      %v1311 = vadd.f32 %v397, %v1183
      %v1312 = vadd.f32 %v398, %v1186
      %v1313 = vadd.f32 %v399, %v1188
      %v1314 = vadd.f32 %v400, %v1191
      %v1315 = vadd.f32 %v401, %v1193
      %v1316 = vadd.f32 %v402, %v1196
      %v1317 = vadd.f32 %v403, %v1198
      %v1318 = vadd.f32 %v404, %v1201
      %v1319 = vadd.f32 %v405, %v1203
      %v1320 = vadd.f32 %v406, %v1206
      %v1321 = vadd.f32 %v407, %v1208
      %v1322 = vadd.f32 %v408, %v1211
      %v1323 = vadd.f32 %v409, %v1213
      %v1324 = vadd.f32 %v410, %v1216
      %v1325 = vadd.f32 %v411, %v1218
      %v1326 = vadd.f32 %v412, %v1221
      %v1327 = vadd.f32 %v413, %v1223
      %v1328 = vadd.f32 %v414, %v1226
      %v1329 = vadd.f32 %v415, %v1228
      %v1330 = vadd.f32 %v416, %v1231
      %v1331 = vadd.f32 %v417, %v1233
      %v1332 = vadd.f32 %v418, %v1236
      %v1333 = vadd.f32 %v419, %v1238
      %v1334 = vadd.f32 %v420, %v1241
      %v1335 = vadd.f32 %v421, %v1243
      %v1336 = vadd.f32 %v422, %v1246
      %v1337 = vadd.f32 %v423, %v1248
      %v1338 = vadd.f32 %v424, %v1251
      %v1339 = vadd.f32 %v425, %v1253
      %v1340 = vadd.f32 %v426, %v1256
      %v1341 = vadd.f32 %v427, %v1258
      %v1342 = vadd.f32 %v428, %v1261
      %v1343 = vadd.f32 %v429, %v1263
      %v1344 = vadd.f32 %v430, %v1266
      %v1345 = vadd.f32 %v431, %v1268
      %v1346 = vadd.f32 %v432, %v1271
      %v1347 = vadd.f32 %v433, %v1273
      %v1348 = vadd.f32 %v434, %v1276
      %v1349 = vadd.f32 %v435, %v1278
      %v1350 = vadd.f32 %v436, %v1281
      %v1351 = vadd.f32 %v437, %v1283
      %v1352 = vadd.f32 %v438, %v1286
      %v1353 = vadd.f32 %v439, %v1288
      %1354 = vst [vmem:[#allocation2] sm:$0xff] %v1290
      %1355 = vst [vmem:[#allocation2 + $0x8] sm:$0xff] %v1291
      %1356 = vst [vmem:[#allocation2 + $0x10] sm:$0xff] %v1292
      %1357 = vst [vmem:[#allocation2 + $0x18] sm:$0xff] %v1293
      %1358 = vst [vmem:[#allocation2 + $0x20] sm:$0xff] %v1294
      %1359 = vst [vmem:[#allocation2 + $0x28] sm:$0xff] %v1295
      %1360 = vst [vmem:[#allocation2 + $0x30] sm:$0xff] %v1296
      %1361 = vst [vmem:[#allocation2 + $0x38] sm:$0xff] %v1297
      %1362 = vst [vmem:[#allocation2 + $0x40] sm:$0xff] %v1298
      %1363 = vst [vmem:[#allocation2 + $0x48] sm:$0xff] %v1299
      %1364 = vst [vmem:[#allocation2 + $0x50] sm:$0xff] %v1300
      %1365 = vst [vmem:[#allocation2 + $0x58] sm:$0xff] %v1301
      %1366 = vst [vmem:[#allocation2 + $0x60] sm:$0xff] %v1302
      %1367 = vst [vmem:[#allocation2 + $0x68] sm:$0xff] %v1303
      %1368 = vst [vmem:[#allocation2 + $0x70] sm:$0xff] %v1304
      %1369 = vst [vmem:[#allocation2 + $0x78] sm:$0xff] %v1305
      %1370 = vst [vmem:[#allocation2 + $0x80] sm:$0xff] %v1306
      %1371 = vst [vmem:[#allocation2 + $0x88] sm:$0xff] %v1307
      %1372 = vst [vmem:[#allocation2 + $0x90] sm:$0xff] %v1308
      %1373 = vst [vmem:[#allocation2 + $0x98] sm:$0xff] %v1309
      %1374 = vst [vmem:[#allocation2 + $0xa0] sm:$0xff] %v1310
      %1375 = vst [vmem:[#allocation2 + $0xa8] sm:$0xff] %v1311
      %1376 = vst [vmem:[#allocation2 + $0xb0] sm:$0xff] %v1312
      %1377 = vst [vmem:[#allocation2 + $0xb8] sm:$0xff] %v1313
      %1378 = vst [vmem:[#allocation2 + $0xc0] sm:$0xff] %v1314
      %1379 = vst [vmem:[#allocation2 + $0xc8] sm:$0xff] %v1315
      %1380 = vst [vmem:[#allocation2 + $0xd0] sm:$0xff] %v1316
      %1381 = vst [vmem:[#allocation2 + $0xd8] sm:$0xff] %v1317
      %1382 = vst [vmem:[#allocation2 + $0xe0] sm:$0xff] %v1318
      %1383 = vst [vmem:[#allocation2 + $0xe8] sm:$0xff] %v1319
      %1384 = vst [vmem:[#allocation2 + $0xf0] sm:$0xff] %v1320
      %1385 = vst [vmem:[#allocation2 + $0xf8] sm:$0xff] %v1321
      %1386 = vst [vmem:[#allocation2 + $0x100] sm:$0xff] %v1322
      %1387 = vst [vmem:[#allocation2 + $0x108] sm:$0xff] %v1323
      %1388 = vst [vmem:[#allocation2 + $0x110] sm:$0xff] %v1324
      %1389 = vst [vmem:[#allocation2 + $0x118] sm:$0xff] %v1325
      %1390 = vst [vmem:[#allocation2 + $0x120] sm:$0xff] %v1326
      %1391 = vst [vmem:[#allocation2 + $0x128] sm:$0xff] %v1327
      %1392 = vst [vmem:[#allocation2 + $0x130] sm:$0xff] %v1328
      %1393 = vst [vmem:[#allocation2 + $0x138] sm:$0xff] %v1329
      %1394 = vst [vmem:[#allocation2 + $0x140] sm:$0xff] %v1330
      %1395 = vst [vmem:[#allocation2 + $0x148] sm:$0xff] %v1331
      %1396 = vst [vmem:[#allocation2 + $0x150] sm:$0xff] %v1332
      %1397 = vst [vmem:[#allocation2 + $0x158] sm:$0xff] %v1333
      %1398 = vst [vmem:[#allocation2 + $0x160] sm:$0xff] %v1334
      %1399 = vst [vmem:[#allocation2 + $0x168] sm:$0xff] %v1335
      %1400 = vst [vmem:[#allocation2 + $0x170] sm:$0xff] %v1336
      %1401 = vst [vmem:[#allocation2 + $0x178] sm:$0xff] %v1337
      %1402 = vst [vmem:[#allocation2 + $0x180] sm:$0xff] %v1338
      %1403 = vst [vmem:[#allocation2 + $0x188] sm:$0xff] %v1339
      %1404 = vst [vmem:[#allocation2 + $0x190] sm:$0xff] %v1340
      %1405 = vst [vmem:[#allocation2 + $0x198] sm:$0xff] %v1341
      %1406 = vst [vmem:[#allocation2 + $0x1a0] sm:$0xff] %v1342
      %1407 = vst [vmem:[#allocation2 + $0x1a8] sm:$0xff] %v1343
      %1408 = vst [vmem:[#allocation2 + $0x1b0] sm:$0xff] %v1344
      %1409 = vst [vmem:[#allocation2 + $0x1b8] sm:$0xff] %v1345
      %1410 = vst [vmem:[#allocation2 + $0x1c0] sm:$0xff] %v1346
      %1411 = vst [vmem:[#allocation2 + $0x1c8] sm:$0xff] %v1347
      %1412 = vst [vmem:[#allocation2 + $0x1d0] sm:$0xff] %v1348
      %1413 = vst [vmem:[#allocation2 + $0x1d8] sm:$0xff] %v1349
      %1414 = vst [vmem:[#allocation2 + $0x1e0] sm:$0xff] %v1350
      %1415 = vst [vmem:[#allocation2 + $0x1e8] sm:$0xff] %v1351
      %1416 = vst [vmem:[#allocation2 + $0x1f0] sm:$0xff] %v1352
      %1417 = vst [vmem:[#allocation2 + $0x1f8] sm:$0xff] %v1353
      // Predicated region
      $region41: #{net_forward.9} parent=35 // pred_check
        %p1418 = pneg %p308
      $region42: #{net_forward.9} parent=35 // pred_check_branch
        %1420 = sbr.rel (%p1418) target = $region44
      $region43: #{net_forward.9} parent=35 // pred_region
        %v1421 = vld [vmem:[#allocation2] sm:$0xff]
        %v1422 = vld [vmem:[#allocation2 + $0x8] sm:$0xff]
        %v1423 = vld [vmem:[#allocation2 + $0x10] sm:$0xff]
        %v1424 = vld [vmem:[#allocation2 + $0x18] sm:$0xff]
        %v1425 = vld [vmem:[#allocation2 + $0x20] sm:$0xff]
        %v1426 = vld [vmem:[#allocation2 + $0x28] sm:$0xff]
        %v1427 = vld [vmem:[#allocation2 + $0x30] sm:$0xff]
        %v1428 = vld [vmem:[#allocation2 + $0x38] sm:$0xff]
        %v1429 = vld [vmem:[#allocation2 + $0x40] sm:$0xff]
        %v1430 = vld [vmem:[#allocation2 + $0x48] sm:$0xff]
        %v1431 = vld [vmem:[#allocation2 + $0x50] sm:$0xff]
        %v1432 = vld [vmem:[#allocation2 + $0x58] sm:$0xff]
        %v1433 = vld [vmem:[#allocation2 + $0x60] sm:$0xff]
        %v1434 = vld [vmem:[#allocation2 + $0x68] sm:$0xff]
        %v1435 = vld [vmem:[#allocation2 + $0x70] sm:$0xff]
        %v1436 = vld [vmem:[#allocation2 + $0x78] sm:$0xff]
        %v1437 = vld [vmem:[#allocation2 + $0x80] sm:$0xff]
        %v1438 = vld [vmem:[#allocation2 + $0x88] sm:$0xff]
        %v1439 = vld [vmem:[#allocation2 + $0x90] sm:$0xff]
        %v1440 = vld [vmem:[#allocation2 + $0x98] sm:$0xff]
        %v1441 = vld [vmem:[#allocation2 + $0xa0] sm:$0xff]
        %v1442 = vld [vmem:[#allocation2 + $0xa8] sm:$0xff]
        %v1443 = vld [vmem:[#allocation2 + $0xb0] sm:$0xff]
        %v1444 = vld [vmem:[#allocation2 + $0xb8] sm:$0xff]
        %v1445 = vld [vmem:[#allocation2 + $0xc0] sm:$0xff]
        %v1446 = vld [vmem:[#allocation2 + $0xc8] sm:$0xff]
        %v1447 = vld [vmem:[#allocation2 + $0xd0] sm:$0xff]
        %v1448 = vld [vmem:[#allocation2 + $0xd8] sm:$0xff]
        %v1449 = vld [vmem:[#allocation2 + $0xe0] sm:$0xff]
        %v1450 = vld [vmem:[#allocation2 + $0xe8] sm:$0xff]
        %v1451 = vld [vmem:[#allocation2 + $0xf0] sm:$0xff]
        %v1452 = vld [vmem:[#allocation2 + $0xf8] sm:$0xff]
        %v1453 = vld [vmem:[#allocation2 + $0x100] sm:$0xff]
        %v1454 = vld [vmem:[#allocation2 + $0x108] sm:$0xff]
        %v1455 = vld [vmem:[#allocation2 + $0x110] sm:$0xff]
        %v1456 = vld [vmem:[#allocation2 + $0x118] sm:$0xff]
        %v1457 = vld [vmem:[#allocation2 + $0x120] sm:$0xff]
        %v1458 = vld [vmem:[#allocation2 + $0x128] sm:$0xff]
        %v1459 = vld [vmem:[#allocation2 + $0x130] sm:$0xff]
        %v1460 = vld [vmem:[#allocation2 + $0x138] sm:$0xff]
        %v1461 = vld [vmem:[#allocation2 + $0x140] sm:$0xff]
        %v1462 = vld [vmem:[#allocation2 + $0x148] sm:$0xff]
        %v1463 = vld [vmem:[#allocation2 + $0x150] sm:$0xff]
        %v1464 = vld [vmem:[#allocation2 + $0x158] sm:$0xff]
        %v1465 = vld [vmem:[#allocation2 + $0x160] sm:$0xff]
        %v1466 = vld [vmem:[#allocation2 + $0x168] sm:$0xff]
        %v1467 = vld [vmem:[#allocation2 + $0x170] sm:$0xff]
        %v1468 = vld [vmem:[#allocation2 + $0x178] sm:$0xff]
        %v1469 = vld [vmem:[#allocation2 + $0x180] sm:$0xff]
        %v1470 = vld [vmem:[#allocation2 + $0x188] sm:$0xff]
        %v1471 = vld [vmem:[#allocation2 + $0x190] sm:$0xff]
        %v1472 = vld [vmem:[#allocation2 + $0x198] sm:$0xff]
        %v1473 = vld [vmem:[#allocation2 + $0x1a0] sm:$0xff]
        %v1474 = vld [vmem:[#allocation2 + $0x1a8] sm:$0xff]
        %v1475 = vld [vmem:[#allocation2 + $0x1b0] sm:$0xff]
        %v1476 = vld [vmem:[#allocation2 + $0x1b8] sm:$0xff]
        %v1477 = vld [vmem:[#allocation2 + $0x1c0] sm:$0xff]
        %v1478 = vld [vmem:[#allocation2 + $0x1c8] sm:$0xff]
        %v1479 = vld [vmem:[#allocation2 + $0x1d0] sm:$0xff]
        %v1480 = vld [vmem:[#allocation2 + $0x1d8] sm:$0xff]
        %v1481 = vld [vmem:[#allocation2 + $0x1e0] sm:$0xff]
        %v1482 = vld [vmem:[#allocation2 + $0x1e8] sm:$0xff]
        %v1483 = vld [vmem:[#allocation2 + $0x1f0] sm:$0xff]
        %v1484 = vld [vmem:[#allocation2 + $0x1f8] sm:$0xff]
        %v1485 = vld [vmem:[%s295] sm:$0x1]
        %v1487 = vperm.slane %v1485, 0
        %v1489 = vmul.f32 %v1421, %v1487
        %v1490 = vmul.f32 %v1422, %v1487
        %v1491 = vmul.f32 %v1423, %v1487
        %v1492 = vmul.f32 %v1424, %v1487
        %v1493 = vmul.f32 %v1425, %v1487
        %v1494 = vmul.f32 %v1426, %v1487
        %v1495 = vmul.f32 %v1427, %v1487
        %v1496 = vmul.f32 %v1428, %v1487
        %v1497 = vmul.f32 %v1429, %v1487
        %v1498 = vmul.f32 %v1430, %v1487
        %v1499 = vmul.f32 %v1431, %v1487
        %v1500 = vmul.f32 %v1432, %v1487
        %v1501 = vmul.f32 %v1433, %v1487
        %v1502 = vmul.f32 %v1434, %v1487
        %v1503 = vmul.f32 %v1435, %v1487
        %v1504 = vmul.f32 %v1436, %v1487
        %v1505 = vmul.f32 %v1437, %v1487
        %v1506 = vmul.f32 %v1438, %v1487
        %v1507 = vmul.f32 %v1439, %v1487
        %v1508 = vmul.f32 %v1440, %v1487
        %v1509 = vmul.f32 %v1441, %v1487
        %v1510 = vmul.f32 %v1442, %v1487
        %v1511 = vmul.f32 %v1443, %v1487
        %v1512 = vmul.f32 %v1444, %v1487
        %v1513 = vmul.f32 %v1445, %v1487
        %v1514 = vmul.f32 %v1446, %v1487
        %v1515 = vmul.f32 %v1447, %v1487
        %v1516 = vmul.f32 %v1448, %v1487
        %v1517 = vmul.f32 %v1449, %v1487
        %v1518 = vmul.f32 %v1450, %v1487
        %v1519 = vmul.f32 %v1451, %v1487
        %v1520 = vmul.f32 %v1452, %v1487
        %v1521 = vmul.f32 %v1453, %v1487
        %v1522 = vmul.f32 %v1454, %v1487
        %v1523 = vmul.f32 %v1455, %v1487
        %v1524 = vmul.f32 %v1456, %v1487
        %v1525 = vmul.f32 %v1457, %v1487
        %v1526 = vmul.f32 %v1458, %v1487
        %v1527 = vmul.f32 %v1459, %v1487
        %v1528 = vmul.f32 %v1460, %v1487
        %v1529 = vmul.f32 %v1461, %v1487
        %v1530 = vmul.f32 %v1462, %v1487
        %v1531 = vmul.f32 %v1463, %v1487
        %v1532 = vmul.f32 %v1464, %v1487
        %v1533 = vmul.f32 %v1465, %v1487
        %v1534 = vmul.f32 %v1466, %v1487
        %v1535 = vmul.f32 %v1467, %v1487
        %v1536 = vmul.f32 %v1468, %v1487
        %v1537 = vmul.f32 %v1469, %v1487
        %v1538 = vmul.f32 %v1470, %v1487
        %v1539 = vmul.f32 %v1471, %v1487
        %v1540 = vmul.f32 %v1472, %v1487
        %v1541 = vmul.f32 %v1473, %v1487
        %v1542 = vmul.f32 %v1474, %v1487
        %v1543 = vmul.f32 %v1475, %v1487
        %v1544 = vmul.f32 %v1476, %v1487
        %v1545 = vmul.f32 %v1477, %v1487
        %v1546 = vmul.f32 %v1478, %v1487
        %v1547 = vmul.f32 %v1479, %v1487
        %v1548 = vmul.f32 %v1480, %v1487
        %v1549 = vmul.f32 %v1481, %v1487
        %v1550 = vmul.f32 %v1482, %v1487
        %v1551 = vmul.f32 %v1483, %v1487
        %v1552 = vmul.f32 %v1484, %v1487
        %v1553 = vld [vmem:[%s298] sm:$0x1]
        %v1555 = vperm.slane %v1553, 0
        %v1557 = vadd.f32 %v1489, %v1555
        %v1558 = vadd.f32 %v1490, %v1555
        %v1559 = vadd.f32 %v1491, %v1555
        %v1560 = vadd.f32 %v1492, %v1555
        %v1561 = vadd.f32 %v1493, %v1555
        %v1562 = vadd.f32 %v1494, %v1555
        %v1563 = vadd.f32 %v1495, %v1555
        %v1564 = vadd.f32 %v1496, %v1555
        %v1565 = vadd.f32 %v1497, %v1555
        %v1566 = vadd.f32 %v1498, %v1555
        %v1567 = vadd.f32 %v1499, %v1555
        %v1568 = vadd.f32 %v1500, %v1555
        %v1569 = vadd.f32 %v1501, %v1555
        %v1570 = vadd.f32 %v1502, %v1555
        %v1571 = vadd.f32 %v1503, %v1555
        %v1572 = vadd.f32 %v1504, %v1555
        %v1573 = vadd.f32 %v1505, %v1555
        %v1574 = vadd.f32 %v1506, %v1555
        %v1575 = vadd.f32 %v1507, %v1555
        %v1576 = vadd.f32 %v1508, %v1555
        %v1577 = vadd.f32 %v1509, %v1555
        %v1578 = vadd.f32 %v1510, %v1555
        %v1579 = vadd.f32 %v1511, %v1555
        %v1580 = vadd.f32 %v1512, %v1555
        %v1581 = vadd.f32 %v1513, %v1555
        %v1582 = vadd.f32 %v1514, %v1555
        %v1583 = vadd.f32 %v1515, %v1555
        %v1584 = vadd.f32 %v1516, %v1555
        %v1585 = vadd.f32 %v1517, %v1555
        %v1586 = vadd.f32 %v1518, %v1555
        %v1587 = vadd.f32 %v1519, %v1555
        %v1588 = vadd.f32 %v1520, %v1555
        %v1589 = vadd.f32 %v1521, %v1555
        %v1590 = vadd.f32 %v1522, %v1555
        %v1591 = vadd.f32 %v1523, %v1555
        %v1592 = vadd.f32 %v1524, %v1555
        %v1593 = vadd.f32 %v1525, %v1555
        %v1594 = vadd.f32 %v1526, %v1555
        %v1595 = vadd.f32 %v1527, %v1555
        %v1596 = vadd.f32 %v1528, %v1555
        %v1597 = vadd.f32 %v1529, %v1555
        %v1598 = vadd.f32 %v1530, %v1555
        %v1599 = vadd.f32 %v1531, %v1555
        %v1600 = vadd.f32 %v1532, %v1555
        %v1601 = vadd.f32 %v1533, %v1555
        %v1602 = vadd.f32 %v1534, %v1555
        %v1603 = vadd.f32 %v1535, %v1555
        %v1604 = vadd.f32 %v1536, %v1555
        %v1605 = vadd.f32 %v1537, %v1555
        %v1606 = vadd.f32 %v1538, %v1555
        %v1607 = vadd.f32 %v1539, %v1555
        %v1608 = vadd.f32 %v1540, %v1555
        %v1609 = vadd.f32 %v1541, %v1555
        %v1610 = vadd.f32 %v1542, %v1555
        %v1611 = vadd.f32 %v1543, %v1555
        %v1612 = vadd.f32 %v1544, %v1555
        %v1613 = vadd.f32 %v1545, %v1555
        %v1614 = vadd.f32 %v1546, %v1555
        %v1615 = vadd.f32 %v1547, %v1555
        %v1616 = vadd.f32 %v1548, %v1555
        %v1617 = vadd.f32 %v1549, %v1555
        %v1618 = vadd.f32 %v1550, %v1555
        %v1619 = vadd.f32 %v1551, %v1555
        %v1620 = vadd.f32 %v1552, %v1555
        %v1621 = vmax.f32 %v1557, 0.0
        %v1622 = vmax.f32 %v1558, 0.0
        %v1623 = vmax.f32 %v1559, 0.0
        %v1624 = vmax.f32 %v1560, 0.0
        %v1625 = vmax.f32 %v1561, 0.0
        %v1626 = vmax.f32 %v1562, 0.0
        %v1627 = vmax.f32 %v1563, 0.0
        %v1628 = vmax.f32 %v1564, 0.0
        %v1629 = vmax.f32 %v1565, 0.0
        %v1630 = vmax.f32 %v1566, 0.0
        %v1631 = vmax.f32 %v1567, 0.0
        %v1632 = vmax.f32 %v1568, 0.0
        %v1633 = vmax.f32 %v1569, 0.0
        %v1634 = vmax.f32 %v1570, 0.0
        %v1635 = vmax.f32 %v1571, 0.0
        %v1636 = vmax.f32 %v1572, 0.0
        %v1637 = vmax.f32 %v1573, 0.0
        %v1638 = vmax.f32 %v1574, 0.0
        %v1639 = vmax.f32 %v1575, 0.0
        %v1640 = vmax.f32 %v1576, 0.0
        %v1641 = vmax.f32 %v1577, 0.0
        %v1642 = vmax.f32 %v1578, 0.0
        %v1643 = vmax.f32 %v1579, 0.0
        %v1644 = vmax.f32 %v1580, 0.0
        %v1645 = vmax.f32 %v1581, 0.0
        %v1646 = vmax.f32 %v1582, 0.0
        %v1647 = vmax.f32 %v1583, 0.0
        %v1648 = vmax.f32 %v1584, 0.0
        %v1649 = vmax.f32 %v1585, 0.0
        %v1650 = vmax.f32 %v1586, 0.0
        %v1651 = vmax.f32 %v1587, 0.0
        %v1652 = vmax.f32 %v1588, 0.0
        %v1653 = vmax.f32 %v1589, 0.0
        %v1654 = vmax.f32 %v1590, 0.0
        %v1655 = vmax.f32 %v1591, 0.0
        %v1656 = vmax.f32 %v1592, 0.0
        %v1657 = vmax.f32 %v1593, 0.0
        %v1658 = vmax.f32 %v1594, 0.0
        %v1659 = vmax.f32 %v1595, 0.0
        %v1660 = vmax.f32 %v1596, 0.0
        %v1661 = vmax.f32 %v1597, 0.0
        %v1662 = vmax.f32 %v1598, 0.0
        %v1663 = vmax.f32 %v1599, 0.0
        %v1664 = vmax.f32 %v1600, 0.0
        %v1665 = vmax.f32 %v1601, 0.0
        %v1666 = vmax.f32 %v1602, 0.0
        %v1667 = vmax.f32 %v1603, 0.0
        %v1668 = vmax.f32 %v1604, 0.0
        %v1669 = vmax.f32 %v1605, 0.0
        %v1670 = vmax.f32 %v1606, 0.0
        %v1671 = vmax.f32 %v1607, 0.0
        %v1672 = vmax.f32 %v1608, 0.0
        %v1673 = vmax.f32 %v1609, 0.0
        %v1674 = vmax.f32 %v1610, 0.0
        %v1675 = vmax.f32 %v1611, 0.0
        %v1676 = vmax.f32 %v1612, 0.0
        %v1677 = vmax.f32 %v1613, 0.0
        %v1678 = vmax.f32 %v1614, 0.0
        %v1679 = vmax.f32 %v1615, 0.0
        %v1680 = vmax.f32 %v1616, 0.0
        %v1681 = vmax.f32 %v1617, 0.0
        %v1682 = vmax.f32 %v1618, 0.0
        %v1683 = vmax.f32 %v1619, 0.0
        %v1684 = vmax.f32 %v1620, 0.0
        %v1685 = vpack.c.bf16 %v1621, %v1621
        %v1686 = vpack.c.bf16 %v1622, %v1622
        %v1687 = vpack.c.bf16 %v1623, %v1623
        %v1688 = vpack.c.bf16 %v1624, %v1624
        %v1689 = vpack.c.bf16 %v1625, %v1625
        %v1690 = vpack.c.bf16 %v1626, %v1626
        %v1691 = vpack.c.bf16 %v1627, %v1627
        %v1692 = vpack.c.bf16 %v1628, %v1628
        %v1693 = vpack.c.bf16 %v1629, %v1629
        %v1694 = vpack.c.bf16 %v1630, %v1630
        %v1695 = vpack.c.bf16 %v1631, %v1631
        %v1696 = vpack.c.bf16 %v1632, %v1632
        %v1697 = vpack.c.bf16 %v1633, %v1633
        %v1698 = vpack.c.bf16 %v1634, %v1634
        %v1699 = vpack.c.bf16 %v1635, %v1635
        %v1700 = vpack.c.bf16 %v1636, %v1636
        %v1701 = vpack.c.bf16 %v1637, %v1637
        %v1702 = vpack.c.bf16 %v1638, %v1638
        %v1703 = vpack.c.bf16 %v1639, %v1639
        %v1704 = vpack.c.bf16 %v1640, %v1640
        %v1705 = vpack.c.bf16 %v1641, %v1641
        %v1706 = vpack.c.bf16 %v1642, %v1642
        %v1707 = vpack.c.bf16 %v1643, %v1643
        %v1708 = vpack.c.bf16 %v1644, %v1644
        %v1709 = vpack.c.bf16 %v1645, %v1645
        %v1710 = vpack.c.bf16 %v1646, %v1646
        %v1711 = vpack.c.bf16 %v1647, %v1647
        %v1712 = vpack.c.bf16 %v1648, %v1648
        %v1713 = vpack.c.bf16 %v1649, %v1649
        %v1714 = vpack.c.bf16 %v1650, %v1650
        %v1715 = vpack.c.bf16 %v1651, %v1651
        %v1716 = vpack.c.bf16 %v1652, %v1652
        %v1717 = vpack.c.bf16 %v1653, %v1653
        %v1718 = vpack.c.bf16 %v1654, %v1654
        %v1719 = vpack.c.bf16 %v1655, %v1655
        %v1720 = vpack.c.bf16 %v1656, %v1656
        %v1721 = vpack.c.bf16 %v1657, %v1657
        %v1722 = vpack.c.bf16 %v1658, %v1658
        %v1723 = vpack.c.bf16 %v1659, %v1659
        %v1724 = vpack.c.bf16 %v1660, %v1660
        %v1725 = vpack.c.bf16 %v1661, %v1661
        %v1726 = vpack.c.bf16 %v1662, %v1662
        %v1727 = vpack.c.bf16 %v1663, %v1663
        %v1728 = vpack.c.bf16 %v1664, %v1664
        %v1729 = vpack.c.bf16 %v1665, %v1665
        %v1730 = vpack.c.bf16 %v1666, %v1666
        %v1731 = vpack.c.bf16 %v1667, %v1667
        %v1732 = vpack.c.bf16 %v1668, %v1668
        %v1733 = vpack.c.bf16 %v1669, %v1669
        %v1734 = vpack.c.bf16 %v1670, %v1670
        %v1735 = vpack.c.bf16 %v1671, %v1671
        %v1736 = vpack.c.bf16 %v1672, %v1672
        %v1737 = vpack.c.bf16 %v1673, %v1673
        %v1738 = vpack.c.bf16 %v1674, %v1674
        %v1739 = vpack.c.bf16 %v1675, %v1675
        %v1740 = vpack.c.bf16 %v1676, %v1676
        %v1741 = vpack.c.bf16 %v1677, %v1677
        %v1742 = vpack.c.bf16 %v1678, %v1678
        %v1743 = vpack.c.bf16 %v1679, %v1679
        %v1744 = vpack.c.bf16 %v1680, %v1680
        %v1745 = vpack.c.bf16 %v1681, %v1681
        %v1746 = vpack.c.bf16 %v1682, %v1682
        %v1747 = vpack.c.bf16 %v1683, %v1683
        %v1748 = vpack.c.bf16 %v1684, %v1684
        %1749 = vst [vmem:[%s306] sm:$0xf] %v1685
        %1750 = vst [vmem:[%s306 + $0x4] sm:$0xf] %v1686
        %1751 = vst [vmem:[%s306 + $0x8] sm:$0xf] %v1687
        %1752 = vst [vmem:[%s306 + $0xc] sm:$0xf] %v1688
        %1753 = vst [vmem:[%s306 + $0x10] sm:$0xf] %v1689
        %1754 = vst [vmem:[%s306 + $0x14] sm:$0xf] %v1690
        %1755 = vst [vmem:[%s306 + $0x18] sm:$0xf] %v1691
        %1756 = vst [vmem:[%s306 + $0x1c] sm:$0xf] %v1692
        %1757 = vst [vmem:[%s306 + $0x20] sm:$0xf] %v1693
        %1758 = vst [vmem:[%s306 + $0x24] sm:$0xf] %v1694
        %1759 = vst [vmem:[%s306 + $0x28] sm:$0xf] %v1695
        %1760 = vst [vmem:[%s306 + $0x2c] sm:$0xf] %v1696
        %1761 = vst [vmem:[%s306 + $0x30] sm:$0xf] %v1697
        %1762 = vst [vmem:[%s306 + $0x34] sm:$0xf] %v1698
        %1763 = vst [vmem:[%s306 + $0x38] sm:$0xf] %v1699
        %1764 = vst [vmem:[%s306 + $0x3c] sm:$0xf] %v1700
        %1765 = vst [vmem:[%s306 + $0x40] sm:$0xf] %v1701
        %1766 = vst [vmem:[%s306 + $0x44] sm:$0xf] %v1702
        %1767 = vst [vmem:[%s306 + $0x48] sm:$0xf] %v1703
        %1768 = vst [vmem:[%s306 + $0x4c] sm:$0xf] %v1704
        %1769 = vst [vmem:[%s306 + $0x50] sm:$0xf] %v1705
        %1770 = vst [vmem:[%s306 + $0x54] sm:$0xf] %v1706
        %1771 = vst [vmem:[%s306 + $0x58] sm:$0xf] %v1707
        %1772 = vst [vmem:[%s306 + $0x5c] sm:$0xf] %v1708
        %1773 = vst [vmem:[%s306 + $0x60] sm:$0xf] %v1709
        %1774 = vst [vmem:[%s306 + $0x64] sm:$0xf] %v1710
        %1775 = vst [vmem:[%s306 + $0x68] sm:$0xf] %v1711
        %1776 = vst [vmem:[%s306 + $0x6c] sm:$0xf] %v1712
        %1777 = vst [vmem:[%s306 + $0x70] sm:$0xf] %v1713
        %1778 = vst [vmem:[%s306 + $0x74] sm:$0xf] %v1714
        %1779 = vst [vmem:[%s306 + $0x78] sm:$0xf] %v1715
        %1780 = vst [vmem:[%s306 + $0x7c] sm:$0xf] %v1716
        %1781 = vst [vmem:[%s306 + $0x80] sm:$0xf] %v1717
        %1782 = vst [vmem:[%s306 + $0x84] sm:$0xf] %v1718
        %1783 = vst [vmem:[%s306 + $0x88] sm:$0xf] %v1719
        %1784 = vst [vmem:[%s306 + $0x8c] sm:$0xf] %v1720
        %1785 = vst [vmem:[%s306 + $0x90] sm:$0xf] %v1721
        %1786 = vst [vmem:[%s306 + $0x94] sm:$0xf] %v1722
        %1787 = vst [vmem:[%s306 + $0x98] sm:$0xf] %v1723
        %1788 = vst [vmem:[%s306 + $0x9c] sm:$0xf] %v1724
        %1789 = vst [vmem:[%s306 + $0xa0] sm:$0xf] %v1725
        %1790 = vst [vmem:[%s306 + $0xa4] sm:$0xf] %v1726
        %1791 = vst [vmem:[%s306 + $0xa8] sm:$0xf] %v1727
        %1792 = vst [vmem:[%s306 + $0xac] sm:$0xf] %v1728
        %1793 = vst [vmem:[%s306 + $0xb0] sm:$0xf] %v1729
        %1794 = vst [vmem:[%s306 + $0xb4] sm:$0xf] %v1730
        %1795 = vst [vmem:[%s306 + $0xb8] sm:$0xf] %v1731
        %1796 = vst [vmem:[%s306 + $0xbc] sm:$0xf] %v1732
        %1797 = vst [vmem:[%s306 + $0xc0] sm:$0xf] %v1733
        %1798 = vst [vmem:[%s306 + $0xc4] sm:$0xf] %v1734
        %1799 = vst [vmem:[%s306 + $0xc8] sm:$0xf] %v1735
        %1800 = vst [vmem:[%s306 + $0xcc] sm:$0xf] %v1736
        %1801 = vst [vmem:[%s306 + $0xd0] sm:$0xf] %v1737
        %1802 = vst [vmem:[%s306 + $0xd4] sm:$0xf] %v1738
        %1803 = vst [vmem:[%s306 + $0xd8] sm:$0xf] %v1739
        %1804 = vst [vmem:[%s306 + $0xdc] sm:$0xf] %v1740
        %1805 = vst [vmem:[%s306 + $0xe0] sm:$0xf] %v1741
        %1806 = vst [vmem:[%s306 + $0xe4] sm:$0xf] %v1742
        %1807 = vst [vmem:[%s306 + $0xe8] sm:$0xf] %v1743
        %1808 = vst [vmem:[%s306 + $0xec] sm:$0xf] %v1744
        %1809 = vst [vmem:[%s306 + $0xf0] sm:$0xf] %v1745
        %1810 = vst [vmem:[%s306 + $0xf4] sm:$0xf] %v1746
        %1811 = vst [vmem:[%s306 + $0xf8] sm:$0xf] %v1747
        %1812 = vst [vmem:[%s306 + $0xfc] sm:$0xf] %v1748
      $region44: #{net_forward.9} parent=35 // pred_fallthru
        _
      %s1813 = smul.u32 64, %s20
      %p1814 = scmp.lt.s32.totalorder %s1813, 10047
      %s1815 = scalar_select %p1814, %s1813, 10047
      %p1816 = scmp.lt.s32.totalorder %s21, 0
      %s1817 = scalar_select %p1816, %s21, 0
      %s1818 = sadd.s32 %s1817, %s1815
      %s1819 = smul.addr %s1818, 4
      %s1820 = scalar_lea.vmem %s4, %s1819
      // Predicated region
      $region45: #{net_forward.9} parent=35 // pred_check
        %p1821 = pneg %p162
      $region46: #{net_forward.9} parent=35 // pred_check_branch
        %1823 = sbr.rel (%p1821) target = $region48
      $region47: #{net_forward.9} parent=35 // pred_region
        %s1824 = smul.u32 64, %s20
      $region48: #{net_forward.9} parent=35 // pred_fallthru
        _
    $region36: #{net_forward.9} parent=5 // pred_fallthru
      _
    %p1825 = scmp.le.s32.totalorder 2, %s10
    // Predicated region
    $region49: #{net_forward.9} parent=5 // pred_check
      %p1826 = pneg %p1825
    $region50: #{net_forward.9} parent=5 // pred_check_branch
      %1828 = sbr.rel (%p1826) target = $region52
    $region51: #{net_forward.9} parent=5 // pred_region
      %s1829 = ssub.s32 %s10, 2
      // Predicated region
      $region53: #{net_forward.9} parent=51 // pred_check
        %p1830 = pneg %p168
      $region54: #{net_forward.9} parent=51 // pred_check_branch
        %1832 = sbr.rel (%p1830) target = $region56
      $region55: #{net_forward.9} parent=51 // pred_region
        %s1833 = smul.u32 64, %s23
        %p1834 = scmp.lt.s32.totalorder %s1833, 10047
        %s1835 = scalar_select %p1834, %s1833, 10047
        %p1836 = scmp.lt.s32.totalorder %s24, 0
        %s1837 = scalar_select %p1836, %s24, 0
        %s1838 = sadd.s32 %s1837, %s1835
        %s1839 = smul.addr %s1838, 4
        %s1840 = scalar_lea.vmem %s4, %s1839
      $region56: #{net_forward.9} parent=51 // pred_fallthru
        _
    $region52: #{net_forward.9} parent=5 // pred_fallthru
      _
  $region6: #{net_forward.9} parent=0 // loop_footer
    %s14 = sadd.s32 1, %s10
  $region7: #{net_forward.9} parent=0 // loop_footer_branch
    %9 = sbr.rel target = $region3
  $region8: #{net_forward.9} parent=0 // loop_exit
    _

// kernel: net_forward.10
$region0: #{net_forward.10}
  #allocation0 [shape = 'u32[]', space=smem, size = 0x4, offset = 0x4, fixed_abs, tag = 'smem constant byte address 0x4 - core index']
  #allocation1 [shape = 'u32[72,128]{1,0:T(1,128)}', space=vmem, size = 0x9000, scoped, tag = 'internal scratch']
  %s0 = inlined_call_operand.vmem [shape: bf16[20480,64], index: 0, kind: input, shape index: {}]
  %s1 = inlined_call_operand.vmem [shape: bf16[20480,64], index: 1, kind: input, shape index: {}]
  %s2 = inlined_call_operand.vmem [shape: bf16[20480,64], index: 2, kind: input, shape index: {}]
  %s3 = inlined_call_operand.vmem [shape: bf16[20480,64], index: 3, kind: input, shape index: {}]
  %s4 = inlined_call_operand.vmem [shape: bf16[20480,64], index: 4, kind: output, shape index: {}]
  %s5 = sld [smem:[#allocation0]]
  $region49: #{net_forward.10} parent=0
    _
  %s7 = ssub.s32 1, %s5
  %s8 = scalar_select 0, %s7, %s5
  loop: start=0, step=1, limit=42
  $region2: #{net_forward.10} parent=0 // loop_pre_header
    _
  $region3: #{net_forward.10} parent=0 // loop_header
    %s10 = sphi 0, %s14
    %p11 = scmp.ge.s32.totalorder %s10, 42
    %s20 = sphi 0, %s22
    %s23 = sphi 0, %s20
    %s24 = sphi 0, %s23
    %s40 = sphi 0, %s24
    %s46 = sphi 0, %s48
    %s49 = sphi 0, %s46
    %s50 = sphi 0, %s49
    %s66 = sphi 0, %s50
    %s72 = sphi 0, %s74
    %s75 = sphi 0, %s72
    %s76 = sphi 0, %s75
    %s92 = sphi 0, %s76
    %s98 = sphi 0, %s100
    %s101 = sphi 0, %s98
    %s102 = sphi 0, %s101
    %s118 = sphi 0, %s102
    %s124 = sphi 0, %s126
    %s127 = sphi 0, %s124
    %s128 = sphi 0, %s127
    %s144 = sphi 0, %s128
  $region4: #{net_forward.10} parent=0 // loop_header_branch
    %13 = sbr.rel (%p11) target = $region8
  $region5: #{net_forward.10} parent=0 // loop_body
    %s15 = ssub.s32 %s10, 1
    %s16 = ssub.s32 %s10, 2
    %s17 = sadd.s32 %s10, 1
    %s18 = ssub.s32 %s10, %s17
    %p19 = scmp.eq.s32.totalorder %s18, 0
    %s21 = sadd.s32 %s20, 1
    %s22 = scalar_select %p19, %s20, %s21
    %p25 = pneg %p19
    %p26 = scmp.eq.s32.totalorder %s10, 39
    %p27 = por %p25, %p26
    %p28 = scmp.ne.s32.totalorder %s20, %s23
    %p29 = scmp.eq.s32.totalorder %s10, 0
    %p30 = por %p28, %p29
    %p31 = scmp.ne.s32.totalorder %s20, %s23
    %p32 = scmp.eq.s32.totalorder %s15, 39
    %p33 = por %p31, %p32
    %p34 = scmp.ne.s32.totalorder %s23, %s24
    %p35 = scmp.eq.s32.totalorder %s15, 0
    %p36 = por %p34, %p35
    %p37 = scmp.ne.s32.totalorder %s23, %s24
    %p38 = scmp.eq.s32.totalorder %s16, 39
    %p39 = por %p37, %p38
    %p41 = scmp.ne.s32.totalorder %s24, %s40
    %p42 = scmp.eq.s32.totalorder %s16, 0
    %p43 = por %p41, %p42
    %s44 = ssub.s32 %s10, %s17
    %p45 = scmp.eq.s32.totalorder %s44, 0
    %s47 = sadd.s32 %s46, 1
    %s48 = scalar_select %p45, %s46, %s47
    %p51 = pneg %p45
    %p52 = scmp.eq.s32.totalorder %s10, 39
    %p53 = por %p51, %p52
    %p54 = scmp.ne.s32.totalorder %s46, %s49
    %p55 = scmp.eq.s32.totalorder %s10, 0
    %p56 = por %p54, %p55
    %p57 = scmp.ne.s32.totalorder %s46, %s49
    %p58 = scmp.eq.s32.totalorder %s15, 39
    %p59 = por %p57, %p58
    %p60 = scmp.ne.s32.totalorder %s49, %s50
    %p61 = scmp.eq.s32.totalorder %s15, 0
    %p62 = por %p60, %p61
    %p63 = scmp.ne.s32.totalorder %s49, %s50
    %p64 = scmp.eq.s32.totalorder %s16, 39
    %p65 = por %p63, %p64
    %p67 = scmp.ne.s32.totalorder %s50, %s66
    %p68 = scmp.eq.s32.totalorder %s16, 0
    %p69 = por %p67, %p68
    %s70 = ssub.s32 %s10, %s17
    %p71 = scmp.eq.s32.totalorder %s70, 0
    %s73 = sadd.s32 %s72, 1
    %s74 = scalar_select %p71, %s72, %s73
    %p77 = pneg %p71
    %p78 = scmp.eq.s32.totalorder %s10, 39
    %p79 = por %p77, %p78
    %p80 = scmp.ne.s32.totalorder %s72, %s75
    %p81 = scmp.eq.s32.totalorder %s10, 0
    %p82 = por %p80, %p81
    %p83 = scmp.ne.s32.totalorder %s72, %s75
    %p84 = scmp.eq.s32.totalorder %s15, 39
    %p85 = por %p83, %p84
    %p86 = scmp.ne.s32.totalorder %s75, %s76
    %p87 = scmp.eq.s32.totalorder %s15, 0
    %p88 = por %p86, %p87
    %p89 = scmp.ne.s32.totalorder %s75, %s76
    %p90 = scmp.eq.s32.totalorder %s16, 39
    %p91 = por %p89, %p90
    %p93 = scmp.ne.s32.totalorder %s76, %s92
    %p94 = scmp.eq.s32.totalorder %s16, 0
    %p95 = por %p93, %p94
    %s96 = ssub.s32 %s10, %s17
    %p97 = scmp.eq.s32.totalorder %s96, 0
    %s99 = sadd.s32 %s98, 1
    %s100 = scalar_select %p97, %s98, %s99
    %p103 = pneg %p97
    %p104 = scmp.eq.s32.totalorder %s10, 39
    %p105 = por %p103, %p104
    %p106 = scmp.ne.s32.totalorder %s98, %s101
    %p107 = scmp.eq.s32.totalorder %s10, 0
    %p108 = por %p106, %p107
    %p109 = scmp.ne.s32.totalorder %s98, %s101
    %p110 = scmp.eq.s32.totalorder %s15, 39
    %p111 = por %p109, %p110
    %p112 = scmp.ne.s32.totalorder %s101, %s102
    %p113 = scmp.eq.s32.totalorder %s15, 0
    %p114 = por %p112, %p113
    %p115 = scmp.ne.s32.totalorder %s101, %s102
    %p116 = scmp.eq.s32.totalorder %s16, 39
    %p117 = por %p115, %p116
    %p119 = scmp.ne.s32.totalorder %s102, %s118
    %p120 = scmp.eq.s32.totalorder %s16, 0
    %p121 = por %p119, %p120
    %s122 = ssub.s32 %s10, %s17
    %p123 = scmp.eq.s32.totalorder %s122, 0
    %s125 = sadd.s32 %s124, 1
    %s126 = scalar_select %p123, %s124, %s125
    %p129 = pneg %p123
    %p130 = scmp.eq.s32.totalorder %s10, 39
    %p131 = por %p129, %p130
    %p132 = scmp.ne.s32.totalorder %s124, %s127
    %p133 = scmp.eq.s32.totalorder %s10, 0
    %p134 = por %p132, %p133
    %p135 = scmp.ne.s32.totalorder %s124, %s127
    %p136 = scmp.eq.s32.totalorder %s15, 39
    %p137 = por %p135, %p136
    %p138 = scmp.ne.s32.totalorder %s127, %s128
    %p139 = scmp.eq.s32.totalorder %s15, 0
    %p140 = por %p138, %p139
    %p141 = scmp.ne.s32.totalorder %s127, %s128
    %p142 = scmp.eq.s32.totalorder %s16, 39
    %p143 = por %p141, %p142
    %p145 = scmp.ne.s32.totalorder %s128, %s144
    %p146 = scmp.eq.s32.totalorder %s16, 0
    %p147 = por %p145, %p146
    %p148 = scmp.le.s32.totalorder 1, %s10
    %p149 = scmp.lt.s32.totalorder %s10, 41
    %p150 = pnand %p148, %p149
    %p151 = pneg %p150
    // Predicated region
    $region9: #{net_forward.10} parent=5 // pred_check
      _
    $region10: #{net_forward.10} parent=5 // pred_check_branch
      %153 = sbr.rel (%p150) target = $region12
    $region11: #{net_forward.10} parent=5 // pred_region
      %s154 = ssub.s32 %s10, 1
    $region12: #{net_forward.10} parent=5 // pred_fallthru
      _
    %p155 = scmp.lt.s32.totalorder %s10, 40
    // Predicated region
    $region13: #{net_forward.10} parent=5 // pred_check
      %p156 = pneg %p155
    $region14: #{net_forward.10} parent=5 // pred_check_branch
      %158 = sbr.rel (%p156) target = $region16
    $region15: #{net_forward.10} parent=5 // pred_region
      // Predicated region
      $region17: #{net_forward.10} parent=15 // pred_check
        %p159 = pneg %p30
      $region18: #{net_forward.10} parent=15 // pred_check_branch
        %161 = sbr.rel (%p159) target = $region20
      $region19: #{net_forward.10} parent=15 // pred_region
        %s162 = smul.u32 64, %s10
        %p163 = scmp.lt.s32.totalorder %s162, 2559
        %s164 = scalar_select %p163, %s162, 2559
        %s165 = smul.addr %s164, 4
        %s166 = scalar_lea.vmem %s0, %s165
        %s167 = smul.u32 64, %s10
      $region20: #{net_forward.10} parent=15 // pred_fallthru
        _
      // Predicated region
      $region21: #{net_forward.10} parent=15 // pred_check
        %p168 = pneg %p56
      $region22: #{net_forward.10} parent=15 // pred_check_branch
        %170 = sbr.rel (%p168) target = $region24
      $region23: #{net_forward.10} parent=15 // pred_region
        %s171 = smul.u32 64, %s10
        %p172 = scmp.lt.s32.totalorder %s171, 2559
        %s173 = scalar_select %p172, %s171, 2559
        %s174 = smul.addr %s173, 4
        %s175 = scalar_lea.vmem %s1, %s174
        %s176 = smul.u32 64, %s10
      $region24: #{net_forward.10} parent=15 // pred_fallthru
        _
      // Predicated region
      $region25: #{net_forward.10} parent=15 // pred_check
        %p177 = pneg %p82
      $region26: #{net_forward.10} parent=15 // pred_check_branch
        %179 = sbr.rel (%p177) target = $region28
      $region27: #{net_forward.10} parent=15 // pred_region
        %s180 = smul.u32 64, %s10
        %p181 = scmp.lt.s32.totalorder %s180, 2559
        %s182 = scalar_select %p181, %s180, 2559
        %s183 = smul.addr %s182, 4
        %s184 = scalar_lea.vmem %s2, %s183
        %s185 = smul.u32 64, %s10
      $region28: #{net_forward.10} parent=15 // pred_fallthru
        _
      // Predicated region
      $region29: #{net_forward.10} parent=15 // pred_check
        %p186 = pneg %p108
      $region30: #{net_forward.10} parent=15 // pred_check_branch
        %188 = sbr.rel (%p186) target = $region32
      $region31: #{net_forward.10} parent=15 // pred_region
        %s189 = smul.u32 64, %s10
        %p190 = scmp.lt.s32.totalorder %s189, 2559
        %s191 = scalar_select %p190, %s189, 2559
        %s192 = smul.addr %s191, 4
        %s193 = scalar_lea.vmem %s3, %s192
        %s194 = smul.u32 64, %s10
      $region32: #{net_forward.10} parent=15 // pred_fallthru
        _
    $region16: #{net_forward.10} parent=5 // pred_fallthru
      _
    %p195 = scmp.le.s32.totalorder 1, %s10
    %p196 = scmp.lt.s32.totalorder %s10, 41
    %p197 = pnand %p195, %p196
    %p198 = pneg %p197
    // Predicated region
    $region33: #{net_forward.10} parent=5 // pred_check
      _
    $region34: #{net_forward.10} parent=5 // pred_check_branch
      %200 = sbr.rel (%p197) target = $region36
    $region35: #{net_forward.10} parent=5 // pred_region
      %s201 = ssub.s32 %s10, 1
      %s202 = smul.u32 64, %s15
      %p203 = scmp.lt.s32.totalorder %s202, 2559
      %s204 = scalar_select %p203, %s202, 2559
      %s205 = smul.addr %s204, 4
      %s206 = scalar_lea.vmem %s0, %s205
      %p207 = pneg %p36
      %p208 = pneg %p33
      %s209 = smul.u32 64, %s15
      %p210 = scmp.lt.s32.totalorder %s209, 2559
      %s211 = scalar_select %p210, %s209, 2559
      %s212 = smul.addr %s211, 4
      %s213 = scalar_lea.vmem %s1, %s212
      %p214 = pneg %p62
      %p215 = pneg %p59
      %s216 = smul.u32 64, %s15
      %p217 = scmp.lt.s32.totalorder %s216, 2559
      %s218 = scalar_select %p217, %s216, 2559
      %s219 = smul.addr %s218, 4
      %s220 = scalar_lea.vmem %s2, %s219
      %p221 = pneg %p88
      %p222 = pneg %p85
      %s223 = smul.u32 64, %s15
      %p224 = scmp.lt.s32.totalorder %s223, 2559
      %s225 = scalar_select %p224, %s223, 2559
      %s226 = smul.addr %s225, 4
      %s227 = scalar_lea.vmem %s3, %s226
      %p228 = pneg %p114
      %p229 = pneg %p111
      %p230 = pneg %p140
      %p231 = pneg %p137
      %s232 = smul.u32 64, %s15
      %p233 = scmp.lt.s32.totalorder %s232, 2559
      %s234 = scalar_select %p233, %s232, 2559
      %s235 = smul.addr %s234, 4
      %s236 = scalar_lea.vmem %s4, %s235
      %s237 = smul.u32 64, %s15
      %p238 = scmp.lt.s32.totalorder %s237, 2559
      %s239 = scalar_select %p238, %s237, 2559
      %s240 = smul.addr %s239, 4
      %s241 = scalar_lea.vmem %s0, %s240
      %s242 = smul.u32 64, %s15
      %s243 = smul.u32 64, %s15
      %p244 = scmp.lt.s32.totalorder %s243, 2559
      %s245 = scalar_select %p244, %s243, 2559
      %s246 = smul.addr %s245, 4
      %s247 = scalar_lea.vmem %s1, %s246
      %s248 = smul.u32 64, %s15
      %s249 = smul.u32 64, %s15
      %p250 = scmp.lt.s32.totalorder %s249, 2559
      %s251 = scalar_select %p250, %s249, 2559
      %s252 = smul.addr %s251, 4
      %s253 = scalar_lea.vmem %s2, %s252
      %s254 = smul.u32 64, %s15
      %s255 = smul.u32 64, %s15
      %p256 = scmp.lt.s32.totalorder %s255, 2559
      %s257 = scalar_select %p256, %s255, 2559
      %s258 = smul.addr %s257, 4
      %s259 = scalar_lea.vmem %s3, %s258
      %s260 = smul.u32 64, %s15
      %s261 = smul.u32 64, %s15
      %p262 = scmp.lt.s32.totalorder %s261, 2559
      %s263 = scalar_select %p262, %s261, 2559
      %s264 = smul.addr %s263, 4
      %s265 = scalar_lea.vmem %s4, %s264
      %s266 = smul.u32 64, %s15
      %v267 = vld [vmem:[%s241] sm:$0xf]
      %v268 = vld [vmem:[%s241 + $0x4] sm:$0xf]
      %v269 = vld [vmem:[%s241 + $0x8] sm:$0xf]
      %v270 = vld [vmem:[%s241 + $0xc] sm:$0xf]
      %v271 = vld [vmem:[%s241 + $0x10] sm:$0xf]
      %v272 = vld [vmem:[%s241 + $0x14] sm:$0xf]
      %v273 = vld [vmem:[%s241 + $0x18] sm:$0xf]
      %v274 = vld [vmem:[%s241 + $0x1c] sm:$0xf]
      %v275 = vld [vmem:[%s241 + $0x20] sm:$0xf]
      %v276 = vld [vmem:[%s241 + $0x24] sm:$0xf]
      %v277 = vld [vmem:[%s241 + $0x28] sm:$0xf]
      %v278 = vld [vmem:[%s241 + $0x2c] sm:$0xf]
      %v279 = vld [vmem:[%s241 + $0x30] sm:$0xf]
      %v280 = vld [vmem:[%s241 + $0x34] sm:$0xf]
      %v281 = vld [vmem:[%s241 + $0x38] sm:$0xf]
      %v282 = vld [vmem:[%s241 + $0x3c] sm:$0xf]
      %v283 = vld [vmem:[%s241 + $0x40] sm:$0xf]
      %v284 = vld [vmem:[%s241 + $0x44] sm:$0xf]
      %v285 = vld [vmem:[%s241 + $0x48] sm:$0xf]
      %v286 = vld [vmem:[%s241 + $0x4c] sm:$0xf]
      %v287 = vld [vmem:[%s241 + $0x50] sm:$0xf]
      %v288 = vld [vmem:[%s241 + $0x54] sm:$0xf]
      %v289 = vld [vmem:[%s241 + $0x58] sm:$0xf]
      %v290 = vld [vmem:[%s241 + $0x5c] sm:$0xf]
      %v291 = vld [vmem:[%s241 + $0x60] sm:$0xf]
      %v292 = vld [vmem:[%s241 + $0x64] sm:$0xf]
      %v293 = vld [vmem:[%s241 + $0x68] sm:$0xf]
      %v294 = vld [vmem:[%s241 + $0x6c] sm:$0xf]
      %v295 = vld [vmem:[%s241 + $0x70] sm:$0xf]
      %v296 = vld [vmem:[%s241 + $0x74] sm:$0xf]
      %v297 = vld [vmem:[%s241 + $0x78] sm:$0xf]
      %v298 = vld [vmem:[%s241 + $0x7c] sm:$0xf]
      %v299 = vld [vmem:[%s241 + $0x80] sm:$0xf]
      %v300 = vld [vmem:[%s241 + $0x84] sm:$0xf]
      %v301 = vld [vmem:[%s241 + $0x88] sm:$0xf]
      %v302 = vld [vmem:[%s241 + $0x8c] sm:$0xf]
      %v303 = vld [vmem:[%s241 + $0x90] sm:$0xf]
      %v304 = vld [vmem:[%s241 + $0x94] sm:$0xf]
      %v305 = vld [vmem:[%s241 + $0x98] sm:$0xf]
      %v306 = vld [vmem:[%s241 + $0x9c] sm:$0xf]
      %v307 = vld [vmem:[%s241 + $0xa0] sm:$0xf]
      %v308 = vld [vmem:[%s241 + $0xa4] sm:$0xf]
      %v309 = vld [vmem:[%s241 + $0xa8] sm:$0xf]
      %v310 = vld [vmem:[%s241 + $0xac] sm:$0xf]
      %v311 = vld [vmem:[%s241 + $0xb0] sm:$0xf]
      %v312 = vld [vmem:[%s241 + $0xb4] sm:$0xf]
      %v313 = vld [vmem:[%s241 + $0xb8] sm:$0xf]
      %v314 = vld [vmem:[%s241 + $0xbc] sm:$0xf]
      %v315 = vld [vmem:[%s241 + $0xc0] sm:$0xf]
      %v316 = vld [vmem:[%s241 + $0xc4] sm:$0xf]
      %v317 = vld [vmem:[%s241 + $0xc8] sm:$0xf]
      %v318 = vld [vmem:[%s241 + $0xcc] sm:$0xf]
      %v319 = vld [vmem:[%s241 + $0xd0] sm:$0xf]
      %v320 = vld [vmem:[%s241 + $0xd4] sm:$0xf]
      %v321 = vld [vmem:[%s241 + $0xd8] sm:$0xf]
      %v322 = vld [vmem:[%s241 + $0xdc] sm:$0xf]
      %v323 = vld [vmem:[%s241 + $0xe0] sm:$0xf]
      %v324 = vld [vmem:[%s241 + $0xe4] sm:$0xf]
      %v325 = vld [vmem:[%s241 + $0xe8] sm:$0xf]
      %v326 = vld [vmem:[%s241 + $0xec] sm:$0xf]
      %v327 = vld [vmem:[%s241 + $0xf0] sm:$0xf]
      %v328 = vld [vmem:[%s241 + $0xf4] sm:$0xf]
      %v329 = vld [vmem:[%s241 + $0xf8] sm:$0xf]
      %v330 = vld [vmem:[%s241 + $0xfc] sm:$0xf]
      %v331 = vld [vmem:[%s247] sm:$0xf]
      %v332 = vld [vmem:[%s247 + $0x4] sm:$0xf]
      %v333 = vld [vmem:[%s247 + $0x8] sm:$0xf]
      %v334 = vld [vmem:[%s247 + $0xc] sm:$0xf]
      %v335 = vld [vmem:[%s247 + $0x10] sm:$0xf]
      %v336 = vld [vmem:[%s247 + $0x14] sm:$0xf]
      %v337 = vld [vmem:[%s247 + $0x18] sm:$0xf]
      %v338 = vld [vmem:[%s247 + $0x1c] sm:$0xf]
      %v339 = vld [vmem:[%s247 + $0x20] sm:$0xf]
      %v340 = vld [vmem:[%s247 + $0x24] sm:$0xf]
      %v341 = vld [vmem:[%s247 + $0x28] sm:$0xf]
      %v342 = vld [vmem:[%s247 + $0x2c] sm:$0xf]
      %v343 = vld [vmem:[%s247 + $0x30] sm:$0xf]
      %v344 = vld [vmem:[%s247 + $0x34] sm:$0xf]
      %v345 = vld [vmem:[%s247 + $0x38] sm:$0xf]
      %v346 = vld [vmem:[%s247 + $0x3c] sm:$0xf]
      %v347 = vld [vmem:[%s247 + $0x40] sm:$0xf]
      %v348 = vld [vmem:[%s247 + $0x44] sm:$0xf]
      %v349 = vld [vmem:[%s247 + $0x48] sm:$0xf]
      %v350 = vld [vmem:[%s247 + $0x4c] sm:$0xf]
      %v351 = vld [vmem:[%s247 + $0x50] sm:$0xf]
      %v352 = vld [vmem:[%s247 + $0x54] sm:$0xf]
      %v353 = vld [vmem:[%s247 + $0x58] sm:$0xf]
      %v354 = vld [vmem:[%s247 + $0x5c] sm:$0xf]
      %v355 = vld [vmem:[%s247 + $0x60] sm:$0xf]
      %v356 = vld [vmem:[%s247 + $0x64] sm:$0xf]
      %v357 = vld [vmem:[%s247 + $0x68] sm:$0xf]
      %v358 = vld [vmem:[%s247 + $0x6c] sm:$0xf]
      %v359 = vld [vmem:[%s247 + $0x70] sm:$0xf]
      %v360 = vld [vmem:[%s247 + $0x74] sm:$0xf]
      %v361 = vld [vmem:[%s247 + $0x78] sm:$0xf]
      %v362 = vld [vmem:[%s247 + $0x7c] sm:$0xf]
      %v363 = vld [vmem:[%s247 + $0x80] sm:$0xf]
      %v364 = vld [vmem:[%s247 + $0x84] sm:$0xf]
      %v365 = vld [vmem:[%s247 + $0x88] sm:$0xf]
      %v366 = vld [vmem:[%s247 + $0x8c] sm:$0xf]
      %v367 = vld [vmem:[%s247 + $0x90] sm:$0xf]
      %v368 = vld [vmem:[%s247 + $0x94] sm:$0xf]
      %v369 = vld [vmem:[%s247 + $0x98] sm:$0xf]
      %v370 = vld [vmem:[%s247 + $0x9c] sm:$0xf]
      %v371 = vld [vmem:[%s247 + $0xa0] sm:$0xf]
      %v372 = vld [vmem:[%s247 + $0xa4] sm:$0xf]
      %v373 = vld [vmem:[%s247 + $0xa8] sm:$0xf]
      %v374 = vld [vmem:[%s247 + $0xac] sm:$0xf]
      %v375 = vld [vmem:[%s247 + $0xb0] sm:$0xf]
      %v376 = vld [vmem:[%s247 + $0xb4] sm:$0xf]
      %v377 = vld [vmem:[%s247 + $0xb8] sm:$0xf]
      %v378 = vld [vmem:[%s247 + $0xbc] sm:$0xf]
      %v379 = vld [vmem:[%s247 + $0xc0] sm:$0xf]
      %v380 = vld [vmem:[%s247 + $0xc4] sm:$0xf]
      %v381 = vld [vmem:[%s247 + $0xc8] sm:$0xf]
      %v382 = vld [vmem:[%s247 + $0xcc] sm:$0xf]
      %v383 = vld [vmem:[%s247 + $0xd0] sm:$0xf]
      %v384 = vld [vmem:[%s247 + $0xd4] sm:$0xf]
      %v385 = vld [vmem:[%s247 + $0xd8] sm:$0xf]
      %v386 = vld [vmem:[%s247 + $0xdc] sm:$0xf]
      %v387 = vld [vmem:[%s247 + $0xe0] sm:$0xf]
      %v388 = vld [vmem:[%s247 + $0xe4] sm:$0xf]
      %v389 = vld [vmem:[%s247 + $0xe8] sm:$0xf]
      %v390 = vld [vmem:[%s247 + $0xec] sm:$0xf]
      %v391 = vld [vmem:[%s247 + $0xf0] sm:$0xf]
      %v392 = vld [vmem:[%s247 + $0xf4] sm:$0xf]
      %v393 = vld [vmem:[%s247 + $0xf8] sm:$0xf]
      %v394 = vld [vmem:[%s247 + $0xfc] sm:$0xf]
      %v395 = vunpack.c.l.bf16 %v267
      %v396 = vunpack.c.l.bf16 %v268
      %v397 = vunpack.c.l.bf16 %v269
      %v398 = vunpack.c.l.bf16 %v270
      %v399 = vunpack.c.l.bf16 %v271
      %v400 = vunpack.c.l.bf16 %v272
      %v401 = vunpack.c.l.bf16 %v273
      %v402 = vunpack.c.l.bf16 %v274
      %v403 = vunpack.c.l.bf16 %v275
      %v404 = vunpack.c.l.bf16 %v276
      %v405 = vunpack.c.l.bf16 %v277
      %v406 = vunpack.c.l.bf16 %v278
      %v407 = vunpack.c.l.bf16 %v279
      %v408 = vunpack.c.l.bf16 %v280
      %v409 = vunpack.c.l.bf16 %v281
      %v410 = vunpack.c.l.bf16 %v282
      %v411 = vunpack.c.l.bf16 %v283
      %v412 = vunpack.c.l.bf16 %v284
      %v413 = vunpack.c.l.bf16 %v285
      %v414 = vunpack.c.l.bf16 %v286
      %v415 = vunpack.c.l.bf16 %v287
      %v416 = vunpack.c.l.bf16 %v288
      %v417 = vunpack.c.l.bf16 %v289
      %v418 = vunpack.c.l.bf16 %v290
      %v419 = vunpack.c.l.bf16 %v291
      %v420 = vunpack.c.l.bf16 %v292
      %v421 = vunpack.c.l.bf16 %v293
      %v422 = vunpack.c.l.bf16 %v294
      %v423 = vunpack.c.l.bf16 %v295
      %v424 = vunpack.c.l.bf16 %v296
      %v425 = vunpack.c.l.bf16 %v297
      %v426 = vunpack.c.l.bf16 %v298
      %v427 = vunpack.c.l.bf16 %v299
      %v428 = vunpack.c.l.bf16 %v300
      %v429 = vunpack.c.l.bf16 %v301
      %v430 = vunpack.c.l.bf16 %v302
      %v431 = vunpack.c.l.bf16 %v303
      %v432 = vunpack.c.l.bf16 %v304
      %v433 = vunpack.c.l.bf16 %v305
      %v434 = vunpack.c.l.bf16 %v306
      %v435 = vunpack.c.l.bf16 %v307
      %v436 = vunpack.c.l.bf16 %v308
      %v437 = vunpack.c.l.bf16 %v309
      %v438 = vunpack.c.l.bf16 %v310
      %v439 = vunpack.c.l.bf16 %v311
      %v440 = vunpack.c.l.bf16 %v312
      %v441 = vunpack.c.l.bf16 %v313
      %v442 = vunpack.c.l.bf16 %v314
      %v443 = vunpack.c.l.bf16 %v315
      %v444 = vunpack.c.l.bf16 %v316
      %v445 = vunpack.c.l.bf16 %v317
      %v446 = vunpack.c.l.bf16 %v318
      %v447 = vunpack.c.l.bf16 %v319
      %v448 = vunpack.c.l.bf16 %v320
      %v449 = vunpack.c.l.bf16 %v321
      %v450 = vunpack.c.l.bf16 %v322
      %v451 = vunpack.c.l.bf16 %v323
      %v452 = vunpack.c.l.bf16 %v324
      %v453 = vunpack.c.l.bf16 %v325
      %v454 = vunpack.c.l.bf16 %v326
      %v455 = vunpack.c.l.bf16 %v327
      %v456 = vunpack.c.l.bf16 %v328
      %v457 = vunpack.c.l.bf16 %v329
      %v458 = vunpack.c.l.bf16 %v330
      %v459 = vunpack.c.l.bf16 %v331
      %v460 = vunpack.c.l.bf16 %v332
      %v461 = vunpack.c.l.bf16 %v333
      %v462 = vunpack.c.l.bf16 %v334
      %v463 = vunpack.c.l.bf16 %v335
      %v464 = vunpack.c.l.bf16 %v336
      %v465 = vunpack.c.l.bf16 %v337
      %v466 = vunpack.c.l.bf16 %v338
      %v467 = vunpack.c.l.bf16 %v339
      %v468 = vunpack.c.l.bf16 %v340
      %v469 = vunpack.c.l.bf16 %v341
      %v470 = vunpack.c.l.bf16 %v342
      %v471 = vunpack.c.l.bf16 %v343
      %v472 = vunpack.c.l.bf16 %v344
      %v473 = vunpack.c.l.bf16 %v345
      %v474 = vunpack.c.l.bf16 %v346
      %v475 = vunpack.c.l.bf16 %v347
      %v476 = vunpack.c.l.bf16 %v348
      %v477 = vunpack.c.l.bf16 %v349
      %v478 = vunpack.c.l.bf16 %v350
      %v479 = vunpack.c.l.bf16 %v351
      %v480 = vunpack.c.l.bf16 %v352
      %v481 = vunpack.c.l.bf16 %v353
      %v482 = vunpack.c.l.bf16 %v354
      %v483 = vunpack.c.l.bf16 %v355
      %v484 = vunpack.c.l.bf16 %v356
      %v485 = vunpack.c.l.bf16 %v357
      %v486 = vunpack.c.l.bf16 %v358
      %v487 = vunpack.c.l.bf16 %v359
      %v488 = vunpack.c.l.bf16 %v360
      %v489 = vunpack.c.l.bf16 %v361
      %v490 = vunpack.c.l.bf16 %v362
      %v491 = vunpack.c.l.bf16 %v363
      %v492 = vunpack.c.l.bf16 %v364
      %v493 = vunpack.c.l.bf16 %v365
      %v494 = vunpack.c.l.bf16 %v366
      %v495 = vunpack.c.l.bf16 %v367
      %v496 = vunpack.c.l.bf16 %v368
      %v497 = vunpack.c.l.bf16 %v369
      %v498 = vunpack.c.l.bf16 %v370
      %v499 = vunpack.c.l.bf16 %v371
      %v500 = vunpack.c.l.bf16 %v372
      %v501 = vunpack.c.l.bf16 %v373
      %v502 = vunpack.c.l.bf16 %v374
      %v503 = vunpack.c.l.bf16 %v375
      %v504 = vunpack.c.l.bf16 %v376
      %v505 = vunpack.c.l.bf16 %v377
      %v506 = vunpack.c.l.bf16 %v378
      %v507 = vunpack.c.l.bf16 %v379
      %v508 = vunpack.c.l.bf16 %v380
      %v509 = vunpack.c.l.bf16 %v381
      %v510 = vunpack.c.l.bf16 %v382
      %v511 = vunpack.c.l.bf16 %v383
      %v512 = vunpack.c.l.bf16 %v384
      %v513 = vunpack.c.l.bf16 %v385
      %v514 = vunpack.c.l.bf16 %v386
      %v515 = vunpack.c.l.bf16 %v387
      %v516 = vunpack.c.l.bf16 %v388
      %v517 = vunpack.c.l.bf16 %v389
      %v518 = vunpack.c.l.bf16 %v390
      %v519 = vunpack.c.l.bf16 %v391
      %v520 = vunpack.c.l.bf16 %v392
      %v521 = vunpack.c.l.bf16 %v393
      %v522 = vunpack.c.l.bf16 %v394
      %v523 = vmax.f32 %v395, %v459
      %v524 = vmax.f32 %v396, %v460
      %v525 = vmax.f32 %v397, %v461
      %v526 = vmax.f32 %v398, %v462
      %v527 = vmax.f32 %v399, %v463
      %v528 = vmax.f32 %v400, %v464
      %v529 = vmax.f32 %v401, %v465
      %v530 = vmax.f32 %v402, %v466
      %v531 = vmax.f32 %v403, %v467
      %v532 = vmax.f32 %v404, %v468
      %v533 = vmax.f32 %v405, %v469
      %v534 = vmax.f32 %v406, %v470
      %v535 = vmax.f32 %v407, %v471
      %v536 = vmax.f32 %v408, %v472
      %v537 = vmax.f32 %v409, %v473
      %v538 = vmax.f32 %v410, %v474
      %v539 = vmax.f32 %v411, %v475
      %v540 = vmax.f32 %v412, %v476
      %v541 = vmax.f32 %v413, %v477
      %v542 = vmax.f32 %v414, %v478
      %v543 = vmax.f32 %v415, %v479
      %v544 = vmax.f32 %v416, %v480
      %v545 = vmax.f32 %v417, %v481
      %v546 = vmax.f32 %v418, %v482
      %v547 = vmax.f32 %v419, %v483
      %v548 = vmax.f32 %v420, %v484
      %v549 = vmax.f32 %v421, %v485
      %v550 = vmax.f32 %v422, %v486
      %v551 = vmax.f32 %v423, %v487
      %v552 = vmax.f32 %v424, %v488
      %v553 = vmax.f32 %v425, %v489
      %v554 = vmax.f32 %v426, %v490
      %v555 = vmax.f32 %v427, %v491
      %v556 = vmax.f32 %v428, %v492
      %v557 = vmax.f32 %v429, %v493
      %v558 = vmax.f32 %v430, %v494
      %v559 = vmax.f32 %v431, %v495
      %v560 = vmax.f32 %v432, %v496
      %v561 = vmax.f32 %v433, %v497
      %v562 = vmax.f32 %v434, %v498
      %v563 = vmax.f32 %v435, %v499
      %v564 = vmax.f32 %v436, %v500
      %v565 = vmax.f32 %v437, %v501
      %v566 = vmax.f32 %v438, %v502
      %v567 = vmax.f32 %v439, %v503
      %v568 = vmax.f32 %v440, %v504
      %v569 = vmax.f32 %v441, %v505
      %v570 = vmax.f32 %v442, %v506
      %v571 = vmax.f32 %v443, %v507
      %v572 = vmax.f32 %v444, %v508
      %v573 = vmax.f32 %v445, %v509
      %v574 = vmax.f32 %v446, %v510
      %v575 = vmax.f32 %v447, %v511
      %v576 = vmax.f32 %v448, %v512
      %v577 = vmax.f32 %v449, %v513
      %v578 = vmax.f32 %v450, %v514
      %v579 = vmax.f32 %v451, %v515
      %v580 = vmax.f32 %v452, %v516
      %v581 = vmax.f32 %v453, %v517
      %v582 = vmax.f32 %v454, %v518
      %v583 = vmax.f32 %v455, %v519
      %v584 = vmax.f32 %v456, %v520
      %v585 = vmax.f32 %v457, %v521
      %v586 = vmax.f32 %v458, %v522
      %v587 = vpack.c.bf16 %v523, %v523
      %v588 = vpack.c.bf16 %v524, %v524
      %v589 = vpack.c.bf16 %v525, %v525
      %v590 = vpack.c.bf16 %v526, %v526
      %v591 = vpack.c.bf16 %v527, %v527
      %v592 = vpack.c.bf16 %v528, %v528
      %v593 = vpack.c.bf16 %v529, %v529
      %v594 = vpack.c.bf16 %v530, %v530
      %v595 = vpack.c.bf16 %v531, %v531
      %v596 = vpack.c.bf16 %v532, %v532
      %v597 = vpack.c.bf16 %v533, %v533
      %v598 = vpack.c.bf16 %v534, %v534
      %v599 = vpack.c.bf16 %v535, %v535
      %v600 = vpack.c.bf16 %v536, %v536
      %v601 = vpack.c.bf16 %v537, %v537
      %v602 = vpack.c.bf16 %v538, %v538
      %v603 = vpack.c.bf16 %v539, %v539
      %v604 = vpack.c.bf16 %v540, %v540
      %v605 = vpack.c.bf16 %v541, %v541
      %v606 = vpack.c.bf16 %v542, %v542
      %v607 = vpack.c.bf16 %v543, %v543
      %v608 = vpack.c.bf16 %v544, %v544
      %v609 = vpack.c.bf16 %v545, %v545
      %v610 = vpack.c.bf16 %v546, %v546
      %v611 = vpack.c.bf16 %v547, %v547
      %v612 = vpack.c.bf16 %v548, %v548
      %v613 = vpack.c.bf16 %v549, %v549
      %v614 = vpack.c.bf16 %v550, %v550
      %v615 = vpack.c.bf16 %v551, %v551
      %v616 = vpack.c.bf16 %v552, %v552
      %v617 = vpack.c.bf16 %v553, %v553
      %v618 = vpack.c.bf16 %v554, %v554
      %v619 = vpack.c.bf16 %v555, %v555
      %v620 = vpack.c.bf16 %v556, %v556
      %v621 = vpack.c.bf16 %v557, %v557
      %v622 = vpack.c.bf16 %v558, %v558
      %v623 = vpack.c.bf16 %v559, %v559
      %v624 = vpack.c.bf16 %v560, %v560
      %v625 = vpack.c.bf16 %v561, %v561
      %v626 = vpack.c.bf16 %v562, %v562
      %v627 = vpack.c.bf16 %v563, %v563
      %v628 = vpack.c.bf16 %v564, %v564
      %v629 = vpack.c.bf16 %v565, %v565
      %v630 = vpack.c.bf16 %v566, %v566
      %v631 = vpack.c.bf16 %v567, %v567
      %v632 = vpack.c.bf16 %v568, %v568
      %v633 = vpack.c.bf16 %v569, %v569
      %v634 = vpack.c.bf16 %v570, %v570
      %v635 = vpack.c.bf16 %v571, %v571
      %v636 = vpack.c.bf16 %v572, %v572
      %v637 = vpack.c.bf16 %v573, %v573
      %v638 = vpack.c.bf16 %v574, %v574
      %v639 = vpack.c.bf16 %v575, %v575
      %v640 = vpack.c.bf16 %v576, %v576
      %v641 = vpack.c.bf16 %v577, %v577
      %v642 = vpack.c.bf16 %v578, %v578
      %v643 = vpack.c.bf16 %v579, %v579
      %v644 = vpack.c.bf16 %v580, %v580
      %v645 = vpack.c.bf16 %v581, %v581
      %v646 = vpack.c.bf16 %v582, %v582
      %v647 = vpack.c.bf16 %v583, %v583
      %v648 = vpack.c.bf16 %v584, %v584
      %v649 = vpack.c.bf16 %v585, %v585
      %v650 = vpack.c.bf16 %v586, %v586
      %v651 = vld [vmem:[%s253] sm:$0xf]
      %v652 = vld [vmem:[%s253 + $0x4] sm:$0xf]
      %v653 = vld [vmem:[%s253 + $0x8] sm:$0xf]
      %v654 = vld [vmem:[%s253 + $0xc] sm:$0xf]
      %v655 = vld [vmem:[%s253 + $0x10] sm:$0xf]
      %v656 = vld [vmem:[%s253 + $0x14] sm:$0xf]
      %v657 = vld [vmem:[%s253 + $0x18] sm:$0xf]
      %v658 = vld [vmem:[%s253 + $0x1c] sm:$0xf]
      %v659 = vld [vmem:[%s253 + $0x20] sm:$0xf]
      %v660 = vld [vmem:[%s253 + $0x24] sm:$0xf]
      %v661 = vld [vmem:[%s253 + $0x28] sm:$0xf]
      %v662 = vld [vmem:[%s253 + $0x2c] sm:$0xf]
      %v663 = vld [vmem:[%s253 + $0x30] sm:$0xf]
      %v664 = vld [vmem:[%s253 + $0x34] sm:$0xf]
      %v665 = vld [vmem:[%s253 + $0x38] sm:$0xf]
      %v666 = vld [vmem:[%s253 + $0x3c] sm:$0xf]
      %v667 = vld [vmem:[%s253 + $0x40] sm:$0xf]
      %v668 = vld [vmem:[%s253 + $0x44] sm:$0xf]
      %v669 = vld [vmem:[%s253 + $0x48] sm:$0xf]
      %v670 = vld [vmem:[%s253 + $0x4c] sm:$0xf]
      %v671 = vld [vmem:[%s253 + $0x50] sm:$0xf]
      %v672 = vld [vmem:[%s253 + $0x54] sm:$0xf]
      %v673 = vld [vmem:[%s253 + $0x58] sm:$0xf]
      %v674 = vld [vmem:[%s253 + $0x5c] sm:$0xf]
      %v675 = vld [vmem:[%s253 + $0x60] sm:$0xf]
      %v676 = vld [vmem:[%s253 + $0x64] sm:$0xf]
      %v677 = vld [vmem:[%s253 + $0x68] sm:$0xf]
      %v678 = vld [vmem:[%s253 + $0x6c] sm:$0xf]
      %v679 = vld [vmem:[%s253 + $0x70] sm:$0xf]
      %v680 = vld [vmem:[%s253 + $0x74] sm:$0xf]
      %v681 = vld [vmem:[%s253 + $0x78] sm:$0xf]
      %v682 = vld [vmem:[%s253 + $0x7c] sm:$0xf]
      %v683 = vld [vmem:[%s253 + $0x80] sm:$0xf]
      %v684 = vld [vmem:[%s253 + $0x84] sm:$0xf]
      %v685 = vld [vmem:[%s253 + $0x88] sm:$0xf]
      %v686 = vld [vmem:[%s253 + $0x8c] sm:$0xf]
      %v687 = vld [vmem:[%s253 + $0x90] sm:$0xf]
      %v688 = vld [vmem:[%s253 + $0x94] sm:$0xf]
      %v689 = vld [vmem:[%s253 + $0x98] sm:$0xf]
      %v690 = vld [vmem:[%s253 + $0x9c] sm:$0xf]
      %v691 = vld [vmem:[%s253 + $0xa0] sm:$0xf]
      %v692 = vld [vmem:[%s253 + $0xa4] sm:$0xf]
      %v693 = vld [vmem:[%s253 + $0xa8] sm:$0xf]
      %v694 = vld [vmem:[%s253 + $0xac] sm:$0xf]
      %v695 = vld [vmem:[%s253 + $0xb0] sm:$0xf]
      %v696 = vld [vmem:[%s253 + $0xb4] sm:$0xf]
      %v697 = vld [vmem:[%s253 + $0xb8] sm:$0xf]
      %v698 = vld [vmem:[%s253 + $0xbc] sm:$0xf]
      %v699 = vld [vmem:[%s253 + $0xc0] sm:$0xf]
      %v700 = vld [vmem:[%s253 + $0xc4] sm:$0xf]
      %v701 = vld [vmem:[%s253 + $0xc8] sm:$0xf]
      %v702 = vld [vmem:[%s253 + $0xcc] sm:$0xf]
      %v703 = vld [vmem:[%s253 + $0xd0] sm:$0xf]
      %v704 = vld [vmem:[%s253 + $0xd4] sm:$0xf]
      %v705 = vld [vmem:[%s253 + $0xd8] sm:$0xf]
      %v706 = vld [vmem:[%s253 + $0xdc] sm:$0xf]
      %v707 = vld [vmem:[%s253 + $0xe0] sm:$0xf]
      %v708 = vld [vmem:[%s253 + $0xe4] sm:$0xf]
      %v709 = vld [vmem:[%s253 + $0xe8] sm:$0xf]
      %v710 = vld [vmem:[%s253 + $0xec] sm:$0xf]
      %v711 = vld [vmem:[%s253 + $0xf0] sm:$0xf]
      %v712 = vld [vmem:[%s253 + $0xf4] sm:$0xf]
      %v713 = vld [vmem:[%s253 + $0xf8] sm:$0xf]
      %v714 = vld [vmem:[%s253 + $0xfc] sm:$0xf]
      %v715 = vld [vmem:[%s259] sm:$0xf]
      %v716 = vld [vmem:[%s259 + $0x4] sm:$0xf]
      %v717 = vld [vmem:[%s259 + $0x8] sm:$0xf]
      %v718 = vld [vmem:[%s259 + $0xc] sm:$0xf]
      %v719 = vld [vmem:[%s259 + $0x10] sm:$0xf]
      %v720 = vld [vmem:[%s259 + $0x14] sm:$0xf]
      %v721 = vld [vmem:[%s259 + $0x18] sm:$0xf]
      %v722 = vld [vmem:[%s259 + $0x1c] sm:$0xf]
      %v723 = vld [vmem:[%s259 + $0x20] sm:$0xf]
      %v724 = vld [vmem:[%s259 + $0x24] sm:$0xf]
      %v725 = vld [vmem:[%s259 + $0x28] sm:$0xf]
      %v726 = vld [vmem:[%s259 + $0x2c] sm:$0xf]
      %v727 = vld [vmem:[%s259 + $0x30] sm:$0xf]
      %v728 = vld [vmem:[%s259 + $0x34] sm:$0xf]
      %v729 = vld [vmem:[%s259 + $0x38] sm:$0xf]
      %v730 = vld [vmem:[%s259 + $0x3c] sm:$0xf]
      %v731 = vld [vmem:[%s259 + $0x40] sm:$0xf]
      %v732 = vld [vmem:[%s259 + $0x44] sm:$0xf]
      %v733 = vld [vmem:[%s259 + $0x48] sm:$0xf]
      %v734 = vld [vmem:[%s259 + $0x4c] sm:$0xf]
      %v735 = vld [vmem:[%s259 + $0x50] sm:$0xf]
      %v736 = vld [vmem:[%s259 + $0x54] sm:$0xf]
      %v737 = vld [vmem:[%s259 + $0x58] sm:$0xf]
      %v738 = vld [vmem:[%s259 + $0x5c] sm:$0xf]
      %v739 = vld [vmem:[%s259 + $0x60] sm:$0xf]
      %v740 = vld [vmem:[%s259 + $0x64] sm:$0xf]
      %v741 = vld [vmem:[%s259 + $0x68] sm:$0xf]
      %v742 = vld [vmem:[%s259 + $0x6c] sm:$0xf]
      %v743 = vld [vmem:[%s259 + $0x70] sm:$0xf]
      %v744 = vld [vmem:[%s259 + $0x74] sm:$0xf]
      %v745 = vld [vmem:[%s259 + $0x78] sm:$0xf]
      %v746 = vld [vmem:[%s259 + $0x7c] sm:$0xf]
      %v747 = vld [vmem:[%s259 + $0x80] sm:$0xf]
      %v748 = vld [vmem:[%s259 + $0x84] sm:$0xf]
      %v749 = vld [vmem:[%s259 + $0x88] sm:$0xf]
      %v750 = vld [vmem:[%s259 + $0x8c] sm:$0xf]
      %v751 = vld [vmem:[%s259 + $0x90] sm:$0xf]
      %v752 = vld [vmem:[%s259 + $0x94] sm:$0xf]
      %v753 = vld [vmem:[%s259 + $0x98] sm:$0xf]
      %v754 = vld [vmem:[%s259 + $0x9c] sm:$0xf]
      %v755 = vld [vmem:[%s259 + $0xa0] sm:$0xf]
      %v756 = vld [vmem:[%s259 + $0xa4] sm:$0xf]
      %v757 = vld [vmem:[%s259 + $0xa8] sm:$0xf]
      %v758 = vld [vmem:[%s259 + $0xac] sm:$0xf]
      %v759 = vld [vmem:[%s259 + $0xb0] sm:$0xf]
      %v760 = vld [vmem:[%s259 + $0xb4] sm:$0xf]
      %v761 = vld [vmem:[%s259 + $0xb8] sm:$0xf]
      %v762 = vld [vmem:[%s259 + $0xbc] sm:$0xf]
      %v763 = vld [vmem:[%s259 + $0xc0] sm:$0xf]
      %v764 = vld [vmem:[%s259 + $0xc4] sm:$0xf]
      %v765 = vld [vmem:[%s259 + $0xc8] sm:$0xf]
      %v766 = vld [vmem:[%s259 + $0xcc] sm:$0xf]
      %v767 = vld [vmem:[%s259 + $0xd0] sm:$0xf]
      %v768 = vld [vmem:[%s259 + $0xd4] sm:$0xf]
      %v769 = vld [vmem:[%s259 + $0xd8] sm:$0xf]
      %v770 = vld [vmem:[%s259 + $0xdc] sm:$0xf]
      %v771 = vld [vmem:[%s259 + $0xe0] sm:$0xf]
      %v772 = vld [vmem:[%s259 + $0xe4] sm:$0xf]
      %v773 = vld [vmem:[%s259 + $0xe8] sm:$0xf]
      %v774 = vld [vmem:[%s259 + $0xec] sm:$0xf]
      %v775 = vld [vmem:[%s259 + $0xf0] sm:$0xf]
      %v776 = vld [vmem:[%s259 + $0xf4] sm:$0xf]
      %v777 = vld [vmem:[%s259 + $0xf8] sm:$0xf]
      %v778 = vld [vmem:[%s259 + $0xfc] sm:$0xf]
      %v779 = vunpack.c.l.bf16 %v651
      %v780 = vunpack.c.l.bf16 %v652
      %v781 = vunpack.c.l.bf16 %v653
      %v782 = vunpack.c.l.bf16 %v654
      %v783 = vunpack.c.l.bf16 %v655
      %v784 = vunpack.c.l.bf16 %v656
      %v785 = vunpack.c.l.bf16 %v657
      %v786 = vunpack.c.l.bf16 %v658
      %v787 = vunpack.c.l.bf16 %v659
      %v788 = vunpack.c.l.bf16 %v660
      %v789 = vunpack.c.l.bf16 %v661
      %v790 = vunpack.c.l.bf16 %v662
      %v791 = vunpack.c.l.bf16 %v663
      %v792 = vunpack.c.l.bf16 %v664
      %v793 = vunpack.c.l.bf16 %v665
      %v794 = vunpack.c.l.bf16 %v666
      %v795 = vunpack.c.l.bf16 %v667
      %v796 = vunpack.c.l.bf16 %v668
      %v797 = vunpack.c.l.bf16 %v669
      %v798 = vunpack.c.l.bf16 %v670
      %v799 = vunpack.c.l.bf16 %v671
      %v800 = vunpack.c.l.bf16 %v672
      %v801 = vunpack.c.l.bf16 %v673
      %v802 = vunpack.c.l.bf16 %v674
      %v803 = vunpack.c.l.bf16 %v675
      %v804 = vunpack.c.l.bf16 %v676
      %v805 = vunpack.c.l.bf16 %v677
      %v806 = vunpack.c.l.bf16 %v678
      %v807 = vunpack.c.l.bf16 %v679
      %v808 = vunpack.c.l.bf16 %v680
      %v809 = vunpack.c.l.bf16 %v681
      %v810 = vunpack.c.l.bf16 %v682
      %v811 = vunpack.c.l.bf16 %v683
      %v812 = vunpack.c.l.bf16 %v684
      %v813 = vunpack.c.l.bf16 %v685
      %v814 = vunpack.c.l.bf16 %v686
      %v815 = vunpack.c.l.bf16 %v687
      %v816 = vunpack.c.l.bf16 %v688
      %v817 = vunpack.c.l.bf16 %v689
      %v818 = vunpack.c.l.bf16 %v690
      %v819 = vunpack.c.l.bf16 %v691
      %v820 = vunpack.c.l.bf16 %v692
      %v821 = vunpack.c.l.bf16 %v693
      %v822 = vunpack.c.l.bf16 %v694
      %v823 = vunpack.c.l.bf16 %v695
      %v824 = vunpack.c.l.bf16 %v696
      %v825 = vunpack.c.l.bf16 %v697
      %v826 = vunpack.c.l.bf16 %v698
      %v827 = vunpack.c.l.bf16 %v699
      %v828 = vunpack.c.l.bf16 %v700
      %v829 = vunpack.c.l.bf16 %v701
      %v830 = vunpack.c.l.bf16 %v702
      %v831 = vunpack.c.l.bf16 %v703
      %v832 = vunpack.c.l.bf16 %v704
      %v833 = vunpack.c.l.bf16 %v705
      %v834 = vunpack.c.l.bf16 %v706
      %v835 = vunpack.c.l.bf16 %v707
      %v836 = vunpack.c.l.bf16 %v708
      %v837 = vunpack.c.l.bf16 %v709
      %v838 = vunpack.c.l.bf16 %v710
      %v839 = vunpack.c.l.bf16 %v711
      %v840 = vunpack.c.l.bf16 %v712
      %v841 = vunpack.c.l.bf16 %v713
      %v842 = vunpack.c.l.bf16 %v714
      %v843 = vunpack.c.l.bf16 %v715
      %v844 = vunpack.c.l.bf16 %v716
      %v845 = vunpack.c.l.bf16 %v717
      %v846 = vunpack.c.l.bf16 %v718
      %v847 = vunpack.c.l.bf16 %v719
      %v848 = vunpack.c.l.bf16 %v720
      %v849 = vunpack.c.l.bf16 %v721
      %v850 = vunpack.c.l.bf16 %v722
      %v851 = vunpack.c.l.bf16 %v723
      %v852 = vunpack.c.l.bf16 %v724
      %v853 = vunpack.c.l.bf16 %v725
      %v854 = vunpack.c.l.bf16 %v726
      %v855 = vunpack.c.l.bf16 %v727
      %v856 = vunpack.c.l.bf16 %v728
      %v857 = vunpack.c.l.bf16 %v729
      %v858 = vunpack.c.l.bf16 %v730
      %v859 = vunpack.c.l.bf16 %v731
      %v860 = vunpack.c.l.bf16 %v732
      %v861 = vunpack.c.l.bf16 %v733
      %v862 = vunpack.c.l.bf16 %v734
      %v863 = vunpack.c.l.bf16 %v735
      %v864 = vunpack.c.l.bf16 %v736
      %v865 = vunpack.c.l.bf16 %v737
      %v866 = vunpack.c.l.bf16 %v738
      %v867 = vunpack.c.l.bf16 %v739
      %v868 = vunpack.c.l.bf16 %v740
      %v869 = vunpack.c.l.bf16 %v741
      %v870 = vunpack.c.l.bf16 %v742
      %v871 = vunpack.c.l.bf16 %v743
      %v872 = vunpack.c.l.bf16 %v744
      %v873 = vunpack.c.l.bf16 %v745
      %v874 = vunpack.c.l.bf16 %v746
      %v875 = vunpack.c.l.bf16 %v747
      %v876 = vunpack.c.l.bf16 %v748
      %v877 = vunpack.c.l.bf16 %v749
      %v878 = vunpack.c.l.bf16 %v750
      %v879 = vunpack.c.l.bf16 %v751
      %v880 = vunpack.c.l.bf16 %v752
      %v881 = vunpack.c.l.bf16 %v753
      %v882 = vunpack.c.l.bf16 %v754
      %v883 = vunpack.c.l.bf16 %v755
      %v884 = vunpack.c.l.bf16 %v756
      %v885 = vunpack.c.l.bf16 %v757
      %v886 = vunpack.c.l.bf16 %v758
      %v887 = vunpack.c.l.bf16 %v759
      %v888 = vunpack.c.l.bf16 %v760
      %v889 = vunpack.c.l.bf16 %v761
      %v890 = vunpack.c.l.bf16 %v762
      %v891 = vunpack.c.l.bf16 %v763
      %v892 = vunpack.c.l.bf16 %v764
      %v893 = vunpack.c.l.bf16 %v765
      %v894 = vunpack.c.l.bf16 %v766
      %v895 = vunpack.c.l.bf16 %v767
      %v896 = vunpack.c.l.bf16 %v768
      %v897 = vunpack.c.l.bf16 %v769
      %v898 = vunpack.c.l.bf16 %v770
      %v899 = vunpack.c.l.bf16 %v771
      %v900 = vunpack.c.l.bf16 %v772
      %v901 = vunpack.c.l.bf16 %v773
      %v902 = vunpack.c.l.bf16 %v774
      %v903 = vunpack.c.l.bf16 %v775
      %v904 = vunpack.c.l.bf16 %v776
      %v905 = vunpack.c.l.bf16 %v777
      %v906 = vunpack.c.l.bf16 %v778
      %v907 = vmax.f32 %v779, %v843
      %v908 = vmax.f32 %v780, %v844
      %v909 = vmax.f32 %v781, %v845
      %v910 = vmax.f32 %v782, %v846
      %v911 = vmax.f32 %v783, %v847
      %v912 = vmax.f32 %v784, %v848
      %v913 = vmax.f32 %v785, %v849
      %v914 = vmax.f32 %v786, %v850
      %v915 = vmax.f32 %v787, %v851
      %v916 = vmax.f32 %v788, %v852
      %v917 = vmax.f32 %v789, %v853
      %v918 = vmax.f32 %v790, %v854
      %v919 = vmax.f32 %v791, %v855
      %v920 = vmax.f32 %v792, %v856
      %v921 = vmax.f32 %v793, %v857
      %v922 = vmax.f32 %v794, %v858
      %v923 = vmax.f32 %v795, %v859
      %v924 = vmax.f32 %v796, %v860
      %v925 = vmax.f32 %v797, %v861
      %v926 = vmax.f32 %v798, %v862
      %v927 = vmax.f32 %v799, %v863
      %v928 = vmax.f32 %v800, %v864
      %v929 = vmax.f32 %v801, %v865
      %v930 = vmax.f32 %v802, %v866
      %v931 = vmax.f32 %v803, %v867
      %v932 = vmax.f32 %v804, %v868
      %v933 = vmax.f32 %v805, %v869
      %v934 = vmax.f32 %v806, %v870
      %v935 = vmax.f32 %v807, %v871
      %v936 = vmax.f32 %v808, %v872
      %v937 = vmax.f32 %v809, %v873
      %v938 = vmax.f32 %v810, %v874
      %v939 = vmax.f32 %v811, %v875
      %v940 = vmax.f32 %v812, %v876
      %v941 = vmax.f32 %v813, %v877
      %v942 = vmax.f32 %v814, %v878
      %v943 = vmax.f32 %v815, %v879
      %v944 = vmax.f32 %v816, %v880
      %v945 = vmax.f32 %v817, %v881
      %v946 = vmax.f32 %v818, %v882
      %v947 = vmax.f32 %v819, %v883
      %v948 = vmax.f32 %v820, %v884
      %v949 = vmax.f32 %v821, %v885
      %v950 = vmax.f32 %v822, %v886
      %v951 = vmax.f32 %v823, %v887
      %v952 = vmax.f32 %v824, %v888
      %v953 = vmax.f32 %v825, %v889
      %v954 = vmax.f32 %v826, %v890
      %v955 = vmax.f32 %v827, %v891
      %v956 = vmax.f32 %v828, %v892
      %v957 = vmax.f32 %v829, %v893
      %v958 = vmax.f32 %v830, %v894
      %v959 = vmax.f32 %v831, %v895
      %v960 = vmax.f32 %v832, %v896
      %v961 = vmax.f32 %v833, %v897
      %v962 = vmax.f32 %v834, %v898
      %v963 = vmax.f32 %v835, %v899
      %v964 = vmax.f32 %v836, %v900
      %v965 = vmax.f32 %v837, %v901
      %v966 = vmax.f32 %v838, %v902
      %v967 = vmax.f32 %v839, %v903
      %v968 = vmax.f32 %v840, %v904
      %v969 = vmax.f32 %v841, %v905
      %v970 = vmax.f32 %v842, %v906
      %v971 = vpack.c.bf16 %v907, %v907
      %v972 = vpack.c.bf16 %v908, %v908
      %v973 = vpack.c.bf16 %v909, %v909
      %v974 = vpack.c.bf16 %v910, %v910
      %v975 = vpack.c.bf16 %v911, %v911
      %v976 = vpack.c.bf16 %v912, %v912
      %v977 = vpack.c.bf16 %v913, %v913
      %v978 = vpack.c.bf16 %v914, %v914
      %v979 = vpack.c.bf16 %v915, %v915
      %v980 = vpack.c.bf16 %v916, %v916
      %v981 = vpack.c.bf16 %v917, %v917
      %v982 = vpack.c.bf16 %v918, %v918
      %v983 = vpack.c.bf16 %v919, %v919
      %v984 = vpack.c.bf16 %v920, %v920
      %v985 = vpack.c.bf16 %v921, %v921
      %v986 = vpack.c.bf16 %v922, %v922
      %v987 = vpack.c.bf16 %v923, %v923
      %v988 = vpack.c.bf16 %v924, %v924
      %v989 = vpack.c.bf16 %v925, %v925
      %v990 = vpack.c.bf16 %v926, %v926
      %v991 = vpack.c.bf16 %v927, %v927
      %v992 = vpack.c.bf16 %v928, %v928
      %v993 = vpack.c.bf16 %v929, %v929
      %v994 = vpack.c.bf16 %v930, %v930
      %v995 = vpack.c.bf16 %v931, %v931
      %v996 = vpack.c.bf16 %v932, %v932
      %v997 = vpack.c.bf16 %v933, %v933
      %v998 = vpack.c.bf16 %v934, %v934
      %v999 = vpack.c.bf16 %v935, %v935
      %v1000 = vpack.c.bf16 %v936, %v936
      %v1001 = vpack.c.bf16 %v937, %v937
      %v1002 = vpack.c.bf16 %v938, %v938
      %v1003 = vpack.c.bf16 %v939, %v939
      %v1004 = vpack.c.bf16 %v940, %v940
      %v1005 = vpack.c.bf16 %v941, %v941
      %v1006 = vpack.c.bf16 %v942, %v942
      %v1007 = vpack.c.bf16 %v943, %v943
      %v1008 = vpack.c.bf16 %v944, %v944
      %v1009 = vpack.c.bf16 %v945, %v945
      %v1010 = vpack.c.bf16 %v946, %v946
      %v1011 = vpack.c.bf16 %v947, %v947
      %v1012 = vpack.c.bf16 %v948, %v948
      %v1013 = vpack.c.bf16 %v949, %v949
      %v1014 = vpack.c.bf16 %v950, %v950
      %v1015 = vpack.c.bf16 %v951, %v951
      %v1016 = vpack.c.bf16 %v952, %v952
      %v1017 = vpack.c.bf16 %v953, %v953
      %v1018 = vpack.c.bf16 %v954, %v954
      %v1019 = vpack.c.bf16 %v955, %v955
      %v1020 = vpack.c.bf16 %v956, %v956
      %v1021 = vpack.c.bf16 %v957, %v957
      %v1022 = vpack.c.bf16 %v958, %v958
      %v1023 = vpack.c.bf16 %v959, %v959
      %v1024 = vpack.c.bf16 %v960, %v960
      %v1025 = vpack.c.bf16 %v961, %v961
      %v1026 = vpack.c.bf16 %v962, %v962
      %v1027 = vpack.c.bf16 %v963, %v963
      %v1028 = vpack.c.bf16 %v964, %v964
      %v1029 = vpack.c.bf16 %v965, %v965
      %v1030 = vpack.c.bf16 %v966, %v966
      %v1031 = vpack.c.bf16 %v967, %v967
      %v1032 = vpack.c.bf16 %v968, %v968
      %v1033 = vpack.c.bf16 %v969, %v969
      %v1034 = vpack.c.bf16 %v970, %v970
      %v1035 = vunpack.c.l.bf16 %v587
      %v1036 = vunpack.c.l.bf16 %v588
      %v1037 = vunpack.c.l.bf16 %v589
      %v1038 = vunpack.c.l.bf16 %v590
      %v1039 = vunpack.c.l.bf16 %v591
      %v1040 = vunpack.c.l.bf16 %v592
      %v1041 = vunpack.c.l.bf16 %v593
      %v1042 = vunpack.c.l.bf16 %v594
      %v1043 = vunpack.c.l.bf16 %v595
      %v1044 = vunpack.c.l.bf16 %v596
      %v1045 = vunpack.c.l.bf16 %v597
      %v1046 = vunpack.c.l.bf16 %v598
      %v1047 = vunpack.c.l.bf16 %v599
      %v1048 = vunpack.c.l.bf16 %v600
      %v1049 = vunpack.c.l.bf16 %v601
      %v1050 = vunpack.c.l.bf16 %v602
      %v1051 = vunpack.c.l.bf16 %v603
      %v1052 = vunpack.c.l.bf16 %v604
      %v1053 = vunpack.c.l.bf16 %v605
      %v1054 = vunpack.c.l.bf16 %v606
      %v1055 = vunpack.c.l.bf16 %v607
      %v1056 = vunpack.c.l.bf16 %v608
      %v1057 = vunpack.c.l.bf16 %v609
      %v1058 = vunpack.c.l.bf16 %v610
      %v1059 = vunpack.c.l.bf16 %v611
      %v1060 = vunpack.c.l.bf16 %v612
      %v1061 = vunpack.c.l.bf16 %v613
      %v1062 = vunpack.c.l.bf16 %v614
      %v1063 = vunpack.c.l.bf16 %v615
      %v1064 = vunpack.c.l.bf16 %v616
      %v1065 = vunpack.c.l.bf16 %v617
      %v1066 = vunpack.c.l.bf16 %v618
      %v1067 = vunpack.c.l.bf16 %v619
      %v1068 = vunpack.c.l.bf16 %v620
      %v1069 = vunpack.c.l.bf16 %v621
      %v1070 = vunpack.c.l.bf16 %v622
      %v1071 = vunpack.c.l.bf16 %v623
      %v1072 = vunpack.c.l.bf16 %v624
      %v1073 = vunpack.c.l.bf16 %v625
      %v1074 = vunpack.c.l.bf16 %v626
      %v1075 = vunpack.c.l.bf16 %v627
      %v1076 = vunpack.c.l.bf16 %v628
      %v1077 = vunpack.c.l.bf16 %v629
      %v1078 = vunpack.c.l.bf16 %v630
      %v1079 = vunpack.c.l.bf16 %v631
      %v1080 = vunpack.c.l.bf16 %v632
      %v1081 = vunpack.c.l.bf16 %v633
      %v1082 = vunpack.c.l.bf16 %v634
      %v1083 = vunpack.c.l.bf16 %v635
      %v1084 = vunpack.c.l.bf16 %v636
      %v1085 = vunpack.c.l.bf16 %v637
      %v1086 = vunpack.c.l.bf16 %v638
      %v1087 = vunpack.c.l.bf16 %v639
      %v1088 = vunpack.c.l.bf16 %v640
      %v1089 = vunpack.c.l.bf16 %v641
      %v1090 = vunpack.c.l.bf16 %v642
      %v1091 = vunpack.c.l.bf16 %v643
      %v1092 = vunpack.c.l.bf16 %v644
      %v1093 = vunpack.c.l.bf16 %v645
      %v1094 = vunpack.c.l.bf16 %v646
      %v1095 = vunpack.c.l.bf16 %v647
      %v1096 = vunpack.c.l.bf16 %v648
      %v1097 = vunpack.c.l.bf16 %v649
      %v1098 = vunpack.c.l.bf16 %v650
      %v1099 = vunpack.c.l.bf16 %v971
      %v1100 = vunpack.c.l.bf16 %v972
      %v1101 = vunpack.c.l.bf16 %v973
      %v1102 = vunpack.c.l.bf16 %v974
      %v1103 = vunpack.c.l.bf16 %v975
      %v1104 = vunpack.c.l.bf16 %v976
      %v1105 = vunpack.c.l.bf16 %v977
      %v1106 = vunpack.c.l.bf16 %v978
      %v1107 = vunpack.c.l.bf16 %v979
      %v1108 = vunpack.c.l.bf16 %v980
      %v1109 = vunpack.c.l.bf16 %v981
      %v1110 = vunpack.c.l.bf16 %v982
      %v1111 = vunpack.c.l.bf16 %v983
      %v1112 = vunpack.c.l.bf16 %v984
      %v1113 = vunpack.c.l.bf16 %v985
      %v1114 = vunpack.c.l.bf16 %v986
      %v1115 = vunpack.c.l.bf16 %v987
      %v1116 = vunpack.c.l.bf16 %v988
      %v1117 = vunpack.c.l.bf16 %v989
      %v1118 = vunpack.c.l.bf16 %v990
      %v1119 = vunpack.c.l.bf16 %v991
      %v1120 = vunpack.c.l.bf16 %v992
      %v1121 = vunpack.c.l.bf16 %v993
      %v1122 = vunpack.c.l.bf16 %v994
      %v1123 = vunpack.c.l.bf16 %v995
      %v1124 = vunpack.c.l.bf16 %v996
      %v1125 = vunpack.c.l.bf16 %v997
      %v1126 = vunpack.c.l.bf16 %v998
      %v1127 = vunpack.c.l.bf16 %v999
      %v1128 = vunpack.c.l.bf16 %v1000
      %v1129 = vunpack.c.l.bf16 %v1001
      %v1130 = vunpack.c.l.bf16 %v1002
      %v1131 = vunpack.c.l.bf16 %v1003
      %v1132 = vunpack.c.l.bf16 %v1004
      %v1133 = vunpack.c.l.bf16 %v1005
      %v1134 = vunpack.c.l.bf16 %v1006
      %v1135 = vunpack.c.l.bf16 %v1007
      %v1136 = vunpack.c.l.bf16 %v1008
      %v1137 = vunpack.c.l.bf16 %v1009
      %v1138 = vunpack.c.l.bf16 %v1010
      %v1139 = vunpack.c.l.bf16 %v1011
      %v1140 = vunpack.c.l.bf16 %v1012
      %v1141 = vunpack.c.l.bf16 %v1013
      %v1142 = vunpack.c.l.bf16 %v1014
      %v1143 = vunpack.c.l.bf16 %v1015
      %v1144 = vunpack.c.l.bf16 %v1016
      %v1145 = vunpack.c.l.bf16 %v1017
      %v1146 = vunpack.c.l.bf16 %v1018
      %v1147 = vunpack.c.l.bf16 %v1019
      %v1148 = vunpack.c.l.bf16 %v1020
      %v1149 = vunpack.c.l.bf16 %v1021
      %v1150 = vunpack.c.l.bf16 %v1022
      %v1151 = vunpack.c.l.bf16 %v1023
      %v1152 = vunpack.c.l.bf16 %v1024
      %v1153 = vunpack.c.l.bf16 %v1025
      %v1154 = vunpack.c.l.bf16 %v1026
      %v1155 = vunpack.c.l.bf16 %v1027
      %v1156 = vunpack.c.l.bf16 %v1028
      %v1157 = vunpack.c.l.bf16 %v1029
      %v1158 = vunpack.c.l.bf16 %v1030
      %v1159 = vunpack.c.l.bf16 %v1031
      %v1160 = vunpack.c.l.bf16 %v1032
      %v1161 = vunpack.c.l.bf16 %v1033
      %v1162 = vunpack.c.l.bf16 %v1034
      %v1163 = vmax.f32 %v1035, %v1099
      %v1164 = vmax.f32 %v1036, %v1100
      %v1165 = vmax.f32 %v1037, %v1101
      %v1166 = vmax.f32 %v1038, %v1102
      %v1167 = vmax.f32 %v1039, %v1103
      %v1168 = vmax.f32 %v1040, %v1104
      %v1169 = vmax.f32 %v1041, %v1105
      %v1170 = vmax.f32 %v1042, %v1106
      %v1171 = vmax.f32 %v1043, %v1107
      %v1172 = vmax.f32 %v1044, %v1108
      %v1173 = vmax.f32 %v1045, %v1109
      %v1174 = vmax.f32 %v1046, %v1110
      %v1175 = vmax.f32 %v1047, %v1111
      %v1176 = vmax.f32 %v1048, %v1112
      %v1177 = vmax.f32 %v1049, %v1113
      %v1178 = vmax.f32 %v1050, %v1114
      %v1179 = vmax.f32 %v1051, %v1115
      %v1180 = vmax.f32 %v1052, %v1116
      %v1181 = vmax.f32 %v1053, %v1117
      %v1182 = vmax.f32 %v1054, %v1118
      %v1183 = vmax.f32 %v1055, %v1119
      %v1184 = vmax.f32 %v1056, %v1120
      %v1185 = vmax.f32 %v1057, %v1121
      %v1186 = vmax.f32 %v1058, %v1122
      %v1187 = vmax.f32 %v1059, %v1123
      %v1188 = vmax.f32 %v1060, %v1124
      %v1189 = vmax.f32 %v1061, %v1125
      %v1190 = vmax.f32 %v1062, %v1126
      %v1191 = vmax.f32 %v1063, %v1127
      %v1192 = vmax.f32 %v1064, %v1128
      %v1193 = vmax.f32 %v1065, %v1129
      %v1194 = vmax.f32 %v1066, %v1130
      %v1195 = vmax.f32 %v1067, %v1131
      %v1196 = vmax.f32 %v1068, %v1132
      %v1197 = vmax.f32 %v1069, %v1133
      %v1198 = vmax.f32 %v1070, %v1134
      %v1199 = vmax.f32 %v1071, %v1135
      %v1200 = vmax.f32 %v1072, %v1136
      %v1201 = vmax.f32 %v1073, %v1137
      %v1202 = vmax.f32 %v1074, %v1138
      %v1203 = vmax.f32 %v1075, %v1139
      %v1204 = vmax.f32 %v1076, %v1140
      %v1205 = vmax.f32 %v1077, %v1141
      %v1206 = vmax.f32 %v1078, %v1142
      %v1207 = vmax.f32 %v1079, %v1143
      %v1208 = vmax.f32 %v1080, %v1144
      %v1209 = vmax.f32 %v1081, %v1145
      %v1210 = vmax.f32 %v1082, %v1146
      %v1211 = vmax.f32 %v1083, %v1147
      %v1212 = vmax.f32 %v1084, %v1148
      %v1213 = vmax.f32 %v1085, %v1149
      %v1214 = vmax.f32 %v1086, %v1150
      %v1215 = vmax.f32 %v1087, %v1151
      %v1216 = vmax.f32 %v1088, %v1152
      %v1217 = vmax.f32 %v1089, %v1153
      %v1218 = vmax.f32 %v1090, %v1154
      %v1219 = vmax.f32 %v1091, %v1155
      %v1220 = vmax.f32 %v1092, %v1156
      %v1221 = vmax.f32 %v1093, %v1157
      %v1222 = vmax.f32 %v1094, %v1158
      %v1223 = vmax.f32 %v1095, %v1159
      %v1224 = vmax.f32 %v1096, %v1160
      %v1225 = vmax.f32 %v1097, %v1161
      %v1226 = vmax.f32 %v1098, %v1162
      %v1227 = vpack.c.bf16 %v1163, %v1163
      %v1228 = vpack.c.bf16 %v1164, %v1164
      %v1229 = vpack.c.bf16 %v1165, %v1165
      %v1230 = vpack.c.bf16 %v1166, %v1166
      %v1231 = vpack.c.bf16 %v1167, %v1167
      %v1232 = vpack.c.bf16 %v1168, %v1168
      %v1233 = vpack.c.bf16 %v1169, %v1169
      %v1234 = vpack.c.bf16 %v1170, %v1170
      %v1235 = vpack.c.bf16 %v1171, %v1171
      %v1236 = vpack.c.bf16 %v1172, %v1172
      %v1237 = vpack.c.bf16 %v1173, %v1173
      %v1238 = vpack.c.bf16 %v1174, %v1174
      %v1239 = vpack.c.bf16 %v1175, %v1175
      %v1240 = vpack.c.bf16 %v1176, %v1176
      %v1241 = vpack.c.bf16 %v1177, %v1177
      %v1242 = vpack.c.bf16 %v1178, %v1178
      %v1243 = vpack.c.bf16 %v1179, %v1179
      %v1244 = vpack.c.bf16 %v1180, %v1180
      %v1245 = vpack.c.bf16 %v1181, %v1181
      %v1246 = vpack.c.bf16 %v1182, %v1182
      %v1247 = vpack.c.bf16 %v1183, %v1183
      %v1248 = vpack.c.bf16 %v1184, %v1184
      %v1249 = vpack.c.bf16 %v1185, %v1185
      %v1250 = vpack.c.bf16 %v1186, %v1186
      %v1251 = vpack.c.bf16 %v1187, %v1187
      %v1252 = vpack.c.bf16 %v1188, %v1188
      %v1253 = vpack.c.bf16 %v1189, %v1189
      %v1254 = vpack.c.bf16 %v1190, %v1190
      %v1255 = vpack.c.bf16 %v1191, %v1191
      %v1256 = vpack.c.bf16 %v1192, %v1192
      %v1257 = vpack.c.bf16 %v1193, %v1193
      %v1258 = vpack.c.bf16 %v1194, %v1194
      %v1259 = vpack.c.bf16 %v1195, %v1195
      %v1260 = vpack.c.bf16 %v1196, %v1196
      %v1261 = vpack.c.bf16 %v1197, %v1197
      %v1262 = vpack.c.bf16 %v1198, %v1198
      %v1263 = vpack.c.bf16 %v1199, %v1199
      %v1264 = vpack.c.bf16 %v1200, %v1200
      %v1265 = vpack.c.bf16 %v1201, %v1201
      %v1266 = vpack.c.bf16 %v1202, %v1202
      %v1267 = vpack.c.bf16 %v1203, %v1203
      %v1268 = vpack.c.bf16 %v1204, %v1204
      %v1269 = vpack.c.bf16 %v1205, %v1205
      %v1270 = vpack.c.bf16 %v1206, %v1206
      %v1271 = vpack.c.bf16 %v1207, %v1207
      %v1272 = vpack.c.bf16 %v1208, %v1208
      %v1273 = vpack.c.bf16 %v1209, %v1209
      %v1274 = vpack.c.bf16 %v1210, %v1210
      %v1275 = vpack.c.bf16 %v1211, %v1211
      %v1276 = vpack.c.bf16 %v1212, %v1212
      %v1277 = vpack.c.bf16 %v1213, %v1213
      %v1278 = vpack.c.bf16 %v1214, %v1214
      %v1279 = vpack.c.bf16 %v1215, %v1215
      %v1280 = vpack.c.bf16 %v1216, %v1216
      %v1281 = vpack.c.bf16 %v1217, %v1217
      %v1282 = vpack.c.bf16 %v1218, %v1218
      %v1283 = vpack.c.bf16 %v1219, %v1219
      %v1284 = vpack.c.bf16 %v1220, %v1220
      %v1285 = vpack.c.bf16 %v1221, %v1221
      %v1286 = vpack.c.bf16 %v1222, %v1222
      %v1287 = vpack.c.bf16 %v1223, %v1223
      %v1288 = vpack.c.bf16 %v1224, %v1224
      %v1289 = vpack.c.bf16 %v1225, %v1225
      %v1290 = vpack.c.bf16 %v1226, %v1226
      %vm1291 = vcmask 519168
      %1292 = vst.msk [vmem:[%s265] sm:$0xf] %vm1291, %v1227
      %1293 = vst.msk [vmem:[%s265 + $0x4] sm:$0xf] %vm1291, %v1228
      %1294 = vst.msk [vmem:[%s265 + $0x8] sm:$0xf] %vm1291, %v1229
      %1295 = vst.msk [vmem:[%s265 + $0xc] sm:$0xf] %vm1291, %v1230
      %1296 = vst.msk [vmem:[%s265 + $0x10] sm:$0xf] %vm1291, %v1231
      %1297 = vst.msk [vmem:[%s265 + $0x14] sm:$0xf] %vm1291, %v1232
      %1298 = vst.msk [vmem:[%s265 + $0x18] sm:$0xf] %vm1291, %v1233
      %1299 = vst.msk [vmem:[%s265 + $0x1c] sm:$0xf] %vm1291, %v1234
      %1300 = vst.msk [vmem:[%s265 + $0x20] sm:$0xf] %vm1291, %v1235
      %1301 = vst.msk [vmem:[%s265 + $0x24] sm:$0xf] %vm1291, %v1236
      %1302 = vst.msk [vmem:[%s265 + $0x28] sm:$0xf] %vm1291, %v1237
      %1303 = vst.msk [vmem:[%s265 + $0x2c] sm:$0xf] %vm1291, %v1238
      %1304 = vst.msk [vmem:[%s265 + $0x30] sm:$0xf] %vm1291, %v1239
      %1305 = vst.msk [vmem:[%s265 + $0x34] sm:$0xf] %vm1291, %v1240
      %1306 = vst.msk [vmem:[%s265 + $0x38] sm:$0xf] %vm1291, %v1241
      %1307 = vst.msk [vmem:[%s265 + $0x3c] sm:$0xf] %vm1291, %v1242
      %1308 = vst.msk [vmem:[%s265 + $0x40] sm:$0xf] %vm1291, %v1243
      %1309 = vst.msk [vmem:[%s265 + $0x44] sm:$0xf] %vm1291, %v1244
      %1310 = vst.msk [vmem:[%s265 + $0x48] sm:$0xf] %vm1291, %v1245
      %1311 = vst.msk [vmem:[%s265 + $0x4c] sm:$0xf] %vm1291, %v1246
      %1312 = vst.msk [vmem:[%s265 + $0x50] sm:$0xf] %vm1291, %v1247
      %1313 = vst.msk [vmem:[%s265 + $0x54] sm:$0xf] %vm1291, %v1248
      %1314 = vst.msk [vmem:[%s265 + $0x58] sm:$0xf] %vm1291, %v1249
      %1315 = vst.msk [vmem:[%s265 + $0x5c] sm:$0xf] %vm1291, %v1250
      %1316 = vst.msk [vmem:[%s265 + $0x60] sm:$0xf] %vm1291, %v1251
      %1317 = vst.msk [vmem:[%s265 + $0x64] sm:$0xf] %vm1291, %v1252
      %1318 = vst.msk [vmem:[%s265 + $0x68] sm:$0xf] %vm1291, %v1253
      %1319 = vst.msk [vmem:[%s265 + $0x6c] sm:$0xf] %vm1291, %v1254
      %1320 = vst.msk [vmem:[%s265 + $0x70] sm:$0xf] %vm1291, %v1255
      %1321 = vst.msk [vmem:[%s265 + $0x74] sm:$0xf] %vm1291, %v1256
      %1322 = vst.msk [vmem:[%s265 + $0x78] sm:$0xf] %vm1291, %v1257
      %1323 = vst.msk [vmem:[%s265 + $0x7c] sm:$0xf] %vm1291, %v1258
      %1324 = vst.msk [vmem:[%s265 + $0x80] sm:$0xf] %vm1291, %v1259
      %1325 = vst.msk [vmem:[%s265 + $0x84] sm:$0xf] %vm1291, %v1260
      %1326 = vst.msk [vmem:[%s265 + $0x88] sm:$0xf] %vm1291, %v1261
      %1327 = vst.msk [vmem:[%s265 + $0x8c] sm:$0xf] %vm1291, %v1262
      %1328 = vst.msk [vmem:[%s265 + $0x90] sm:$0xf] %vm1291, %v1263
      %1329 = vst.msk [vmem:[%s265 + $0x94] sm:$0xf] %vm1291, %v1264
      %1330 = vst.msk [vmem:[%s265 + $0x98] sm:$0xf] %vm1291, %v1265
      %1331 = vst.msk [vmem:[%s265 + $0x9c] sm:$0xf] %vm1291, %v1266
      %1332 = vst.msk [vmem:[%s265 + $0xa0] sm:$0xf] %vm1291, %v1267
      %1333 = vst.msk [vmem:[%s265 + $0xa4] sm:$0xf] %vm1291, %v1268
      %1334 = vst.msk [vmem:[%s265 + $0xa8] sm:$0xf] %vm1291, %v1269
      %1335 = vst.msk [vmem:[%s265 + $0xac] sm:$0xf] %vm1291, %v1270
      %1336 = vst.msk [vmem:[%s265 + $0xb0] sm:$0xf] %vm1291, %v1271
      %1337 = vst.msk [vmem:[%s265 + $0xb4] sm:$0xf] %vm1291, %v1272
      %1338 = vst.msk [vmem:[%s265 + $0xb8] sm:$0xf] %vm1291, %v1273
      %1339 = vst.msk [vmem:[%s265 + $0xbc] sm:$0xf] %vm1291, %v1274
      %1340 = vst.msk [vmem:[%s265 + $0xc0] sm:$0xf] %vm1291, %v1275
      %1341 = vst.msk [vmem:[%s265 + $0xc4] sm:$0xf] %vm1291, %v1276
      %1342 = vst.msk [vmem:[%s265 + $0xc8] sm:$0xf] %vm1291, %v1277
      %1343 = vst.msk [vmem:[%s265 + $0xcc] sm:$0xf] %vm1291, %v1278
      %1344 = vst.msk [vmem:[%s265 + $0xd0] sm:$0xf] %vm1291, %v1279
      %1345 = vst.msk [vmem:[%s265 + $0xd4] sm:$0xf] %vm1291, %v1280
      %1346 = vst.msk [vmem:[%s265 + $0xd8] sm:$0xf] %vm1291, %v1281
      %1347 = vst.msk [vmem:[%s265 + $0xdc] sm:$0xf] %vm1291, %v1282
      %1348 = vst.msk [vmem:[%s265 + $0xe0] sm:$0xf] %vm1291, %v1283
      %1349 = vst.msk [vmem:[%s265 + $0xe4] sm:$0xf] %vm1291, %v1284
      %1350 = vst.msk [vmem:[%s265 + $0xe8] sm:$0xf] %vm1291, %v1285
      %1351 = vst.msk [vmem:[%s265 + $0xec] sm:$0xf] %vm1291, %v1286
      %1352 = vst.msk [vmem:[%s265 + $0xf0] sm:$0xf] %vm1291, %v1287
      %1353 = vst.msk [vmem:[%s265 + $0xf4] sm:$0xf] %vm1291, %v1288
      %1354 = vst.msk [vmem:[%s265 + $0xf8] sm:$0xf] %vm1291, %v1289
      %1355 = vst.msk [vmem:[%s265 + $0xfc] sm:$0xf] %vm1291, %v1290
      %s1356 = smul.u32 64, %s15
      %p1357 = scmp.lt.s32.totalorder %s1356, 2559
      %s1358 = scalar_select %p1357, %s1356, 2559
      %s1359 = smul.addr %s1358, 4
      %s1360 = scalar_lea.vmem %s4, %s1359
      // Predicated region
      $region37: #{net_forward.10} parent=35 // pred_check
        %p1361 = pneg %p137
      $region38: #{net_forward.10} parent=35 // pred_check_branch
        %1363 = sbr.rel (%p1361) target = $region40
      $region39: #{net_forward.10} parent=35 // pred_region
        %s1364 = smul.u32 64, %s15
      $region40: #{net_forward.10} parent=35 // pred_fallthru
        _
    $region36: #{net_forward.10} parent=5 // pred_fallthru
      _
    %p1365 = scmp.le.s32.totalorder 2, %s10
    // Predicated region
    $region41: #{net_forward.10} parent=5 // pred_check
      %p1366 = pneg %p1365
    $region42: #{net_forward.10} parent=5 // pred_check_branch
      %1368 = sbr.rel (%p1366) target = $region44
    $region43: #{net_forward.10} parent=5 // pred_region
      %s1369 = ssub.s32 %s10, 2
      // Predicated region
      $region45: #{net_forward.10} parent=43 // pred_check
        %p1370 = pneg %p143
      $region46: #{net_forward.10} parent=43 // pred_check_branch
        %1372 = sbr.rel (%p1370) target = $region48
      $region47: #{net_forward.10} parent=43 // pred_region
        %s1373 = smul.u32 64, %s16
        %p1374 = scmp.lt.s32.totalorder %s1373, 2559
        %s1375 = scalar_select %p1374, %s1373, 2559
        %s1376 = smul.addr %s1375, 4
        %s1377 = scalar_lea.vmem %s4, %s1376
      $region48: #{net_forward.10} parent=43 // pred_fallthru
        _
    $region44: #{net_forward.10} parent=5 // pred_fallthru
      _
  $region6: #{net_forward.10} parent=0 // loop_footer
    %s14 = sadd.s32 1, %s10
  $region7: #{net_forward.10} parent=0 // loop_footer_branch
    %9 = sbr.rel target = $region3
  $region8: #{net_forward.10} parent=0 // loop_exit
    _

// kernel: net_forward.11
$region0: #{net_forward.11}
  #allocation0 [shape = 'u32[]', space=smem, size = 0x4, offset = 0x4, fixed_abs, tag = 'smem constant byte address 0x4 - core index']
  #allocation1 [shape = 'u32[72,128]{1,0:T(1,128)}', space=vmem, size = 0x9000, scoped, tag = 'internal scratch']
  #allocation2 [shape = 'f32[512,128]{1,0:T(8,128)}', space=vmem, size = 0x40000, scoped, tag = 'scratch operand']
  %s0 = inlined_call_operand.vmem [shape: bf16[20480,640], index: 0, kind: input, shape index: {}]
  %s1 = inlined_call_operand.vmem [shape: bf16[640,128], index: 1, kind: input, shape index: {}]
  %s2 = inlined_call_operand.vmem [shape: f32[1,128], index: 2, kind: input, shape index: {}]
  %s3 = inlined_call_operand.vmem [shape: f32[1,128], index: 3, kind: input, shape index: {}]
  %s4 = inlined_call_operand.vmem [shape: bf16[20480,128], index: 4, kind: output, shape index: {}]
  %s5 = sld [smem:[#allocation0]]
  $region98: #{net_forward.11} parent=0
    _
  %s7 = ssub.s32 1, %s5
  %s8 = scalar_select 0, %s7, %s5
  $region1: #{net_forward.11} parent=0
    #allocation3 [shape = 'u8[262144]{0}', space=vmem, size = 0x40000, scoped, tag = 'input window, operand 0']
    loop: start=0, step=1, limit=202
    $region2: #{net_forward.11} parent=1 // loop_pre_header
      _
    $region3: #{net_forward.11} parent=1 // loop_header
      %s10 = sphi 0, %s14
      %p11 = scmp.ge.s32.totalorder %s10, 202
      %s17 = sphi 0, %s36
      %s18 = sphi 0, %s32
      %s19 = sphi 0, %s28
      %s20 = sphi 0, %s17
      %s21 = sphi 0, %s18
      %s22 = sphi 0, %s19
      %s23 = sphi 0, %s20
      %s24 = sphi 0, %s21
      %s25 = sphi 0, %s22
      %s41 = sphi 0, %s43
      %s44 = sphi 0, %s41
      %s45 = sphi 0, %s44
      %s61 = sphi 0, %s45
      %s69 = sphi 0, %s71
      %s72 = sphi 0, %s69
      %s73 = sphi 0, %s72
      %s89 = sphi 0, %s73
      %s95 = sphi 0, %s97
      %s98 = sphi 0, %s95
      %s99 = sphi 0, %s98
      %s115 = sphi 0, %s99
      %s121 = sphi 0, %s123
      %s124 = sphi 0, %s121
      %s125 = sphi 0, %s124
      %s141 = sphi 0, %s125
      %s149 = sphi 0, %s151
      %s152 = sphi 0, %s149
      %s153 = sphi 0, %s152
      %s169 = sphi 0, %s153
    $region4: #{net_forward.11} parent=1 // loop_header_branch
      %13 = sbr.rel (%p11) target = $region8
    $region5: #{net_forward.11} parent=1 // loop_body
      %s15 = ssub.s32 %s10, 1
      %s16 = ssub.s32 %s10, 2
      %s26 = sadd.s32 1, %s19
      %p27 = scmp.ge.s32.totalorder %s26, 5
      %s28 = scalar_select %p27, 0, %s26
      %s29 = sadd.s32 1, %s18
      %s30 = scalar_select %p27, %s29, %s18
      %p31 = scmp.ge.s32.totalorder %s30, 1
      %s32 = scalar_select %p31, 0, %s30
      %s33 = sadd.s32 1, %s17
      %s34 = scalar_select %p31, %s33, %s17
      %p35 = scmp.ge.s32.totalorder %s34, 40
      %s36 = scalar_select %p35, 0, %s34
      %s37 = ssub.s32 %s17, %s36
      %s38 = ssub.s32 %s19, %s28
      %s39 = sor.u32 %s37, %s38
      %p40 = scmp.eq.s32.totalorder %s39, 0
      %s42 = sadd.s32 %s41, 1
      %s43 = scalar_select %p40, %s41, %s42
      %p46 = pneg %p40
      %p47 = scmp.eq.s32.totalorder %s10, 199
      %p48 = por %p46, %p47
      %p49 = scmp.ne.s32.totalorder %s41, %s44
      %p50 = scmp.eq.s32.totalorder %s10, 0
      %p51 = por %p49, %p50
      %p52 = scmp.ne.s32.totalorder %s41, %s44
      %p53 = scmp.eq.s32.totalorder %s15, 199
      %p54 = por %p52, %p53
      %p55 = scmp.ne.s32.totalorder %s44, %s45
      %p56 = scmp.eq.s32.totalorder %s15, 0
      %p57 = por %p55, %p56
      %p58 = scmp.ne.s32.totalorder %s44, %s45
      %p59 = scmp.eq.s32.totalorder %s16, 199
      %p60 = por %p58, %p59
      %p62 = scmp.ne.s32.totalorder %s45, %s61
      %p63 = scmp.eq.s32.totalorder %s16, 0
      %p64 = por %p62, %p63
      %s65 = ssub.s32 %s19, %s28
      %s66 = ssub.s32 %s18, %s32
      %s67 = sor.u32 %s65, %s66
      %p68 = scmp.eq.s32.totalorder %s67, 0
      %s70 = sadd.s32 %s69, 1
      %s71 = scalar_select %p68, %s69, %s70
      %p74 = pneg %p68
      %p75 = scmp.eq.s32.totalorder %s10, 199
      %p76 = por %p74, %p75
      %p77 = scmp.ne.s32.totalorder %s69, %s72
      %p78 = scmp.eq.s32.totalorder %s10, 0
      %p79 = por %p77, %p78
      %p80 = scmp.ne.s32.totalorder %s69, %s72
      %p81 = scmp.eq.s32.totalorder %s15, 199
      %p82 = por %p80, %p81
      %p83 = scmp.ne.s32.totalorder %s72, %s73
      %p84 = scmp.eq.s32.totalorder %s15, 0
      %p85 = por %p83, %p84
      %p86 = scmp.ne.s32.totalorder %s72, %s73
      %p87 = scmp.eq.s32.totalorder %s16, 199
      %p88 = por %p86, %p87
      %p90 = scmp.ne.s32.totalorder %s73, %s89
      %p91 = scmp.eq.s32.totalorder %s16, 0
      %p92 = por %p90, %p91
      %s93 = ssub.s32 %s18, %s32
      %p94 = scmp.eq.s32.totalorder %s93, 0
      %s96 = sadd.s32 %s95, 1
      %s97 = scalar_select %p94, %s95, %s96
      %p100 = pneg %p94
      %p101 = scmp.eq.s32.totalorder %s10, 199
      %p102 = por %p100, %p101
      %p103 = scmp.ne.s32.totalorder %s95, %s98
      %p104 = scmp.eq.s32.totalorder %s10, 0
      %p105 = por %p103, %p104
      %p106 = scmp.ne.s32.totalorder %s95, %s98
      %p107 = scmp.eq.s32.totalorder %s15, 199
      %p108 = por %p106, %p107
      %p109 = scmp.ne.s32.totalorder %s98, %s99
      %p110 = scmp.eq.s32.totalorder %s15, 0
      %p111 = por %p109, %p110
      %p112 = scmp.ne.s32.totalorder %s98, %s99
      %p113 = scmp.eq.s32.totalorder %s16, 199
      %p114 = por %p112, %p113
      %p116 = scmp.ne.s32.totalorder %s99, %s115
      %p117 = scmp.eq.s32.totalorder %s16, 0
      %p118 = por %p116, %p117
      %s119 = ssub.s32 %s18, %s32
      %p120 = scmp.eq.s32.totalorder %s119, 0
      %s122 = sadd.s32 %s121, 1
      %s123 = scalar_select %p120, %s121, %s122
      %p126 = pneg %p120
      %p127 = scmp.eq.s32.totalorder %s10, 199
      %p128 = por %p126, %p127
      %p129 = scmp.ne.s32.totalorder %s121, %s124
      %p130 = scmp.eq.s32.totalorder %s10, 0
      %p131 = por %p129, %p130
      %p132 = scmp.ne.s32.totalorder %s121, %s124
      %p133 = scmp.eq.s32.totalorder %s15, 199
      %p134 = por %p132, %p133
      %p135 = scmp.ne.s32.totalorder %s124, %s125
      %p136 = scmp.eq.s32.totalorder %s15, 0
      %p137 = por %p135, %p136
      %p138 = scmp.ne.s32.totalorder %s124, %s125
      %p139 = scmp.eq.s32.totalorder %s16, 199
      %p140 = por %p138, %p139
      %p142 = scmp.ne.s32.totalorder %s125, %s141
      %p143 = scmp.eq.s32.totalorder %s16, 0
      %p144 = por %p142, %p143
      %s145 = ssub.s32 %s17, %s36
      %s146 = ssub.s32 %s18, %s32
      %s147 = sor.u32 %s145, %s146
      %p148 = scmp.eq.s32.totalorder %s147, 0
      %s150 = sadd.s32 %s149, 1
      %s151 = scalar_select %p148, %s149, %s150
      %p154 = pneg %p148
      %p155 = scmp.eq.s32.totalorder %s10, 199
      %p156 = por %p154, %p155
      %p157 = scmp.ne.s32.totalorder %s149, %s152
      %p158 = scmp.eq.s32.totalorder %s10, 0
      %p159 = por %p157, %p158
      %p160 = scmp.ne.s32.totalorder %s149, %s152
      %p161 = scmp.eq.s32.totalorder %s15, 199
      %p162 = por %p160, %p161
      %p163 = scmp.ne.s32.totalorder %s152, %s153
      %p164 = scmp.eq.s32.totalorder %s15, 0
      %p165 = por %p163, %p164
      %p166 = scmp.ne.s32.totalorder %s152, %s153
      %p167 = scmp.eq.s32.totalorder %s16, 199
      %p168 = por %p166, %p167
      %p170 = scmp.ne.s32.totalorder %s153, %s169
      %p171 = scmp.eq.s32.totalorder %s16, 0
      %p172 = por %p170, %p171
      %p173 = scmp.le.s32.totalorder 1, %s10
      %p174 = scmp.lt.s32.totalorder %s10, 201
      %p175 = pnand %p173, %p174
      %p176 = pneg %p175
      // Predicated region
      $region9: #{net_forward.11} parent=5 // pred_check
        _
      $region10: #{net_forward.11} parent=5 // pred_check_branch
        %178 = sbr.rel (%p175) target = $region12
      $region11: #{net_forward.11} parent=5 // pred_region
        %s179 = ssub.s32 %s10, 1
        // Predicated region
        $region13: #{net_forward.11} parent=11 // pred_check
          %p180 = pneg %p111
        $region14: #{net_forward.11} parent=11 // pred_check_branch
          %182 = sbr.rel (%p180) target = $region16
        $region15: #{net_forward.11} parent=11 // pred_region
          %p183 = scmp.lt.s32.totalorder %s21, 0
          %s184 = scalar_select %p183, %s21, 0
          %s185 = scalar_lea.vmem %s2, %s184
        $region16: #{net_forward.11} parent=11 // pred_fallthru
          _
        // Predicated region
        $region17: #{net_forward.11} parent=11 // pred_check
          %p186 = pneg %p137
        $region18: #{net_forward.11} parent=11 // pred_check_branch
          %188 = sbr.rel (%p186) target = $region20
        $region19: #{net_forward.11} parent=11 // pred_region
          %p189 = scmp.lt.s32.totalorder %s21, 0
          %s190 = scalar_select %p189, %s21, 0
          %s191 = scalar_lea.vmem %s3, %s190
        $region20: #{net_forward.11} parent=11 // pred_fallthru
          _
      $region12: #{net_forward.11} parent=5 // pred_fallthru
        _
      %p192 = scmp.lt.s32.totalorder %s10, 200
      // Predicated region
      $region21: #{net_forward.11} parent=5 // pred_check
        %p193 = pneg %p192
      $region22: #{net_forward.11} parent=5 // pred_check_branch
        %195 = sbr.rel (%p193) target = $region24
      $region23: #{net_forward.11} parent=5 // pred_region
        // Predicated region
        $region25: #{net_forward.11} parent=23 // pred_check
          %p196 = pneg %p51
        $region26: #{net_forward.11} parent=23 // pred_check_branch
          %198 = sbr.rel (%p196) target = $region28
        $region27: #{net_forward.11} parent=23 // pred_region
          %s199 = sand.u32 %s41, 1
          %s200 = sand.u32 %s41, 1
          %s201 = smul.addr %s200, 256
          %s202 = scalar_lea.vmem [#allocation3], %s201
          %s203 = smul.u32 64, %s17
          %s204 = smul.addr %s203, 5
          %s205 = sadd.s32 %s19, %s204
          %s206 = smul.addr %s205, 4
          %s207 = scalar_lea.vmem %s0, %s206
          // Predicated region
          $region29: #{net_forward.11} parent=27 // pred_check
            _
          $region30: #{net_forward.11} parent=27 // pred_check_branch
            %209 = sbr.rel (0) target = $region32
          $region31: #{net_forward.11} parent=27 // pred_region
            // Predicated region
            $region33: #{net_forward.11} parent=31 // pred_check
              _
            $region34: #{net_forward.11} parent=31 // pred_check_branch
              %211 = sbr.rel target = $region36
            $region35: #{net_forward.11} parent=31 // pred_region
              // Predicated region
              $region48: #{net_forward.11} parent=35 // pred_check
                _
              $region49: #{net_forward.11} parent=35 // pred_check_branch
                %353 = sbr.rel (0) target = $region51
              $region50: #{net_forward.11} parent=35 // pred_region
                loop: start=0, step=1, limit=1
                $region52: #{net_forward.11} parent=50 // loop_pre_header
                  _
                $region53: #{net_forward.11} parent=50 // loop_header
                  %s355 = sphi 0, %s359
                  %p356 = scmp.ge.s32.totalorder %s355, 1
                  %s360 = sphi %s207, %s207
                  %s361 = sphi %s202, %s202
                $region54: #{net_forward.11} parent=50 // loop_header_branch
                  %358 = sbr.rel (%p356) target = $region58
                $region55: #{net_forward.11} parent=50 // loop_body
                  _
                $region56: #{net_forward.11} parent=50 // loop_footer
                  %s359 = sadd.s32 1, %s355
                $region57: #{net_forward.11} parent=50 // loop_footer_branch
                  %354 = sbr.rel target = $region53
                $region58: #{net_forward.11} parent=50 // loop_exit
                  _
                %s363 = ssub.s32 16, 1
                loop: start=0, step=1, limit=1
                $region59: #{net_forward.11} parent=50 // loop_pre_header
                  _
                $region60: #{net_forward.11} parent=50 // loop_header
                  %s365 = sphi 0, %s369
                  %p366 = scmp.ge.s32.totalorder %s365, 1
                  %s370 = sphi %s207, %s207
                  %s371 = sphi %s202, %s202
                $region61: #{net_forward.11} parent=50 // loop_header_branch
                  %368 = sbr.rel (%p366) target = $region65
                $region62: #{net_forward.11} parent=50 // loop_body
                  %v372 = vld [vmem:[%s370] sm:%s363]
                  %373 = vst [vmem:[%s371] sm:%s363] %v372
                  %v374 = vld [vmem:[%s370 + $0x14] sm:%s363]
                  %375 = vst [vmem:[%s371 + $0x4] sm:%s363] %v374
                  %v376 = vld [vmem:[%s370 + $0x28] sm:%s363]
                  %377 = vst [vmem:[%s371 + $0x8] sm:%s363] %v376
                  %v378 = vld [vmem:[%s370 + $0x3c] sm:%s363]
                  %379 = vst [vmem:[%s371 + $0xc] sm:%s363] %v378
                  %v380 = vld [vmem:[%s370 + $0x50] sm:%s363]
                  %381 = vst [vmem:[%s371 + $0x10] sm:%s363] %v380
                  %v382 = vld [vmem:[%s370 + $0x64] sm:%s363]
                  %383 = vst [vmem:[%s371 + $0x14] sm:%s363] %v382
                  %v384 = vld [vmem:[%s370 + $0x78] sm:%s363]
                  %385 = vst [vmem:[%s371 + $0x18] sm:%s363] %v384
                  %v386 = vld [vmem:[%s370 + $0x8c] sm:%s363]
                  %387 = vst [vmem:[%s371 + $0x1c] sm:%s363] %v386
                  %v388 = vld [vmem:[%s370 + $0xa0] sm:%s363]
                  %389 = vst [vmem:[%s371 + $0x20] sm:%s363] %v388
                  %v390 = vld [vmem:[%s370 + $0xb4] sm:%s363]
                  %391 = vst [vmem:[%s371 + $0x24] sm:%s363] %v390
                  %v392 = vld [vmem:[%s370 + $0xc8] sm:%s363]
                  %393 = vst [vmem:[%s371 + $0x28] sm:%s363] %v392
                  %v394 = vld [vmem:[%s370 + $0xdc] sm:%s363]
                  %395 = vst [vmem:[%s371 + $0x2c] sm:%s363] %v394
                  %v396 = vld [vmem:[%s370 + $0xf0] sm:%s363]
                  %397 = vst [vmem:[%s371 + $0x30] sm:%s363] %v396
                  %v398 = vld [vmem:[%s370 + $0x104] sm:%s363]
                  %399 = vst [vmem:[%s371 + $0x34] sm:%s363] %v398
                  %v400 = vld [vmem:[%s370 + $0x118] sm:%s363]
                  %401 = vst [vmem:[%s371 + $0x38] sm:%s363] %v400
                  %v402 = vld [vmem:[%s370 + $0x12c] sm:%s363]
                  %403 = vst [vmem:[%s371 + $0x3c] sm:%s363] %v402
                  %v404 = vld [vmem:[%s370 + $0x140] sm:%s363]
                  %405 = vst [vmem:[%s371 + $0x40] sm:%s363] %v404
                  %v406 = vld [vmem:[%s370 + $0x154] sm:%s363]
                  %407 = vst [vmem:[%s371 + $0x44] sm:%s363] %v406
                  %v408 = vld [vmem:[%s370 + $0x168] sm:%s363]
                  %409 = vst [vmem:[%s371 + $0x48] sm:%s363] %v408
                  %v410 = vld [vmem:[%s370 + $0x17c] sm:%s363]
                  %411 = vst [vmem:[%s371 + $0x4c] sm:%s363] %v410
                  %v412 = vld [vmem:[%s370 + $0x190] sm:%s363]
                  %413 = vst [vmem:[%s371 + $0x50] sm:%s363] %v412
                  %v414 = vld [vmem:[%s370 + $0x1a4] sm:%s363]
                  %415 = vst [vmem:[%s371 + $0x54] sm:%s363] %v414
                  %v416 = vld [vmem:[%s370 + $0x1b8] sm:%s363]
                  %417 = vst [vmem:[%s371 + $0x58] sm:%s363] %v416
                  %v418 = vld [vmem:[%s370 + $0x1cc] sm:%s363]
                  %419 = vst [vmem:[%s371 + $0x5c] sm:%s363] %v418
                  %v420 = vld [vmem:[%s370 + $0x1e0] sm:%s363]
                  %421 = vst [vmem:[%s371 + $0x60] sm:%s363] %v420
                  %v422 = vld [vmem:[%s370 + $0x1f4] sm:%s363]
                  %423 = vst [vmem:[%s371 + $0x64] sm:%s363] %v422
                  %v424 = vld [vmem:[%s370 + $0x208] sm:%s363]
                  %425 = vst [vmem:[%s371 + $0x68] sm:%s363] %v424
                  %v426 = vld [vmem:[%s370 + $0x21c] sm:%s363]
                  %427 = vst [vmem:[%s371 + $0x6c] sm:%s363] %v426
                  %v428 = vld [vmem:[%s370 + $0x230] sm:%s363]
                  %429 = vst [vmem:[%s371 + $0x70] sm:%s363] %v428
                  %v430 = vld [vmem:[%s370 + $0x244] sm:%s363]
                  %431 = vst [vmem:[%s371 + $0x74] sm:%s363] %v430
                  %v432 = vld [vmem:[%s370 + $0x258] sm:%s363]
                  %433 = vst [vmem:[%s371 + $0x78] sm:%s363] %v432
                  %v434 = vld [vmem:[%s370 + $0x26c] sm:%s363]
                  %435 = vst [vmem:[%s371 + $0x7c] sm:%s363] %v434
                  %v436 = vld [vmem:[%s370 + $0x280] sm:%s363]
                  %437 = vst [vmem:[%s371 + $0x80] sm:%s363] %v436
                  %v438 = vld [vmem:[%s370 + $0x294] sm:%s363]
                  %439 = vst [vmem:[%s371 + $0x84] sm:%s363] %v438
                  %v440 = vld [vmem:[%s370 + $0x2a8] sm:%s363]
                  %441 = vst [vmem:[%s371 + $0x88] sm:%s363] %v440
                  %v442 = vld [vmem:[%s370 + $0x2bc] sm:%s363]
                  %443 = vst [vmem:[%s371 + $0x8c] sm:%s363] %v442
                  %v444 = vld [vmem:[%s370 + $0x2d0] sm:%s363]
                  %445 = vst [vmem:[%s371 + $0x90] sm:%s363] %v444
                  %v446 = vld [vmem:[%s370 + $0x2e4] sm:%s363]
                  %447 = vst [vmem:[%s371 + $0x94] sm:%s363] %v446
                  %v448 = vld [vmem:[%s370 + $0x2f8] sm:%s363]
                  %449 = vst [vmem:[%s371 + $0x98] sm:%s363] %v448
                  %v450 = vld [vmem:[%s370 + $0x30c] sm:%s363]
                  %451 = vst [vmem:[%s371 + $0x9c] sm:%s363] %v450
                  %v452 = vld [vmem:[%s370 + $0x320] sm:%s363]
                  %453 = vst [vmem:[%s371 + $0xa0] sm:%s363] %v452
                  %v454 = vld [vmem:[%s370 + $0x334] sm:%s363]
                  %455 = vst [vmem:[%s371 + $0xa4] sm:%s363] %v454
                  %v456 = vld [vmem:[%s370 + $0x348] sm:%s363]
                  %457 = vst [vmem:[%s371 + $0xa8] sm:%s363] %v456
                  %v458 = vld [vmem:[%s370 + $0x35c] sm:%s363]
                  %459 = vst [vmem:[%s371 + $0xac] sm:%s363] %v458
                  %v460 = vld [vmem:[%s370 + $0x370] sm:%s363]
                  %461 = vst [vmem:[%s371 + $0xb0] sm:%s363] %v460
                  %v462 = vld [vmem:[%s370 + $0x384] sm:%s363]
                  %463 = vst [vmem:[%s371 + $0xb4] sm:%s363] %v462
                  %v464 = vld [vmem:[%s370 + $0x398] sm:%s363]
                  %465 = vst [vmem:[%s371 + $0xb8] sm:%s363] %v464
                  %v466 = vld [vmem:[%s370 + $0x3ac] sm:%s363]
                  %467 = vst [vmem:[%s371 + $0xbc] sm:%s363] %v466
                  %v468 = vld [vmem:[%s370 + $0x3c0] sm:%s363]
                  %469 = vst [vmem:[%s371 + $0xc0] sm:%s363] %v468
                  %v470 = vld [vmem:[%s370 + $0x3d4] sm:%s363]
                  %471 = vst [vmem:[%s371 + $0xc4] sm:%s363] %v470
                  %v472 = vld [vmem:[%s370 + $0x3e8] sm:%s363]
                  %473 = vst [vmem:[%s371 + $0xc8] sm:%s363] %v472
                  %v474 = vld [vmem:[%s370 + $0x3fc] sm:%s363]
                  %475 = vst [vmem:[%s371 + $0xcc] sm:%s363] %v474
                  %v476 = vld [vmem:[%s370 + $0x410] sm:%s363]
                  %477 = vst [vmem:[%s371 + $0xd0] sm:%s363] %v476
                  %v478 = vld [vmem:[%s370 + $0x424] sm:%s363]
                  %479 = vst [vmem:[%s371 + $0xd4] sm:%s363] %v478
                  %v480 = vld [vmem:[%s370 + $0x438] sm:%s363]
                  %481 = vst [vmem:[%s371 + $0xd8] sm:%s363] %v480
                  %v482 = vld [vmem:[%s370 + $0x44c] sm:%s363]
                  %483 = vst [vmem:[%s371 + $0xdc] sm:%s363] %v482
                  %v484 = vld [vmem:[%s370 + $0x460] sm:%s363]
                  %485 = vst [vmem:[%s371 + $0xe0] sm:%s363] %v484
                  %v486 = vld [vmem:[%s370 + $0x474] sm:%s363]
                  %487 = vst [vmem:[%s371 + $0xe4] sm:%s363] %v486
                  %v488 = vld [vmem:[%s370 + $0x488] sm:%s363]
                  %489 = vst [vmem:[%s371 + $0xe8] sm:%s363] %v488
                  %v490 = vld [vmem:[%s370 + $0x49c] sm:%s363]
                  %491 = vst [vmem:[%s371 + $0xec] sm:%s363] %v490
                  %v492 = vld [vmem:[%s370 + $0x4b0] sm:%s363]
                  %493 = vst [vmem:[%s371 + $0xf0] sm:%s363] %v492
                  %v494 = vld [vmem:[%s370 + $0x4c4] sm:%s363]
                  %495 = vst [vmem:[%s371 + $0xf4] sm:%s363] %v494
                  %v496 = vld [vmem:[%s370 + $0x4d8] sm:%s363]
                  %497 = vst [vmem:[%s371 + $0xf8] sm:%s363] %v496
                  %v498 = vld [vmem:[%s370 + $0x4ec] sm:%s363]
                  %499 = vst [vmem:[%s371 + $0xfc] sm:%s363] %v498
                $region63: #{net_forward.11} parent=50 // loop_footer
                  %s369 = sadd.s32 1, %s365
                $region64: #{net_forward.11} parent=50 // loop_footer_branch
                  %364 = sbr.rel target = $region60
                $region65: #{net_forward.11} parent=50 // loop_exit
                  _
              $region51: #{net_forward.11} parent=35 // pred_fallthru
                _
            $region36: #{net_forward.11} parent=31 // pred_fallthru
              _
            // Predicated region
            $region37: #{net_forward.11} parent=31 // pred_check
              _
            $region38: #{net_forward.11} parent=31 // pred_check_branch
              %213 = sbr.rel (0) target = $region40
            $region39: #{net_forward.11} parent=31 // pred_region
              %s215 = ssub.s32 16, 1
              loop: start=0, step=1, limit=1
              $region41: #{net_forward.11} parent=39 // loop_pre_header
                _
              $region42: #{net_forward.11} parent=39 // loop_header
                %s217 = sphi 0, %s221
                %p218 = scmp.ge.s32.totalorder %s217, 1
                %s222 = sphi %s207, %s207
                %s223 = sphi %s202, %s202
              $region43: #{net_forward.11} parent=39 // loop_header_branch
                %220 = sbr.rel (%p218) target = $region47
              $region44: #{net_forward.11} parent=39 // loop_body
                %v224 = vld [vmem:[%s222] sm:%s215]
                %225 = vst [vmem:[%s223] sm:%s215] %v224
                %v226 = vld [vmem:[%s222 + $0x14] sm:%s215]
                %227 = vst [vmem:[%s223 + $0x4] sm:%s215] %v226
                %v228 = vld [vmem:[%s222 + $0x28] sm:%s215]
                %229 = vst [vmem:[%s223 + $0x8] sm:%s215] %v228
                %v230 = vld [vmem:[%s222 + $0x3c] sm:%s215]
                %231 = vst [vmem:[%s223 + $0xc] sm:%s215] %v230
                %v232 = vld [vmem:[%s222 + $0x50] sm:%s215]
                %233 = vst [vmem:[%s223 + $0x10] sm:%s215] %v232
                %v234 = vld [vmem:[%s222 + $0x64] sm:%s215]
                %235 = vst [vmem:[%s223 + $0x14] sm:%s215] %v234
                %v236 = vld [vmem:[%s222 + $0x78] sm:%s215]
                %237 = vst [vmem:[%s223 + $0x18] sm:%s215] %v236
                %v238 = vld [vmem:[%s222 + $0x8c] sm:%s215]
                %239 = vst [vmem:[%s223 + $0x1c] sm:%s215] %v238
                %v240 = vld [vmem:[%s222 + $0xa0] sm:%s215]
                %241 = vst [vmem:[%s223 + $0x20] sm:%s215] %v240
                %v242 = vld [vmem:[%s222 + $0xb4] sm:%s215]
                %243 = vst [vmem:[%s223 + $0x24] sm:%s215] %v242
                %v244 = vld [vmem:[%s222 + $0xc8] sm:%s215]
                %245 = vst [vmem:[%s223 + $0x28] sm:%s215] %v244
                %v246 = vld [vmem:[%s222 + $0xdc] sm:%s215]
                %247 = vst [vmem:[%s223 + $0x2c] sm:%s215] %v246
                %v248 = vld [vmem:[%s222 + $0xf0] sm:%s215]
                %249 = vst [vmem:[%s223 + $0x30] sm:%s215] %v248
                %v250 = vld [vmem:[%s222 + $0x104] sm:%s215]
                %251 = vst [vmem:[%s223 + $0x34] sm:%s215] %v250
                %v252 = vld [vmem:[%s222 + $0x118] sm:%s215]
                %253 = vst [vmem:[%s223 + $0x38] sm:%s215] %v252
                %v254 = vld [vmem:[%s222 + $0x12c] sm:%s215]
                %255 = vst [vmem:[%s223 + $0x3c] sm:%s215] %v254
                %v256 = vld [vmem:[%s222 + $0x140] sm:%s215]
                %257 = vst [vmem:[%s223 + $0x40] sm:%s215] %v256
                %v258 = vld [vmem:[%s222 + $0x154] sm:%s215]
                %259 = vst [vmem:[%s223 + $0x44] sm:%s215] %v258
                %v260 = vld [vmem:[%s222 + $0x168] sm:%s215]
                %261 = vst [vmem:[%s223 + $0x48] sm:%s215] %v260
                %v262 = vld [vmem:[%s222 + $0x17c] sm:%s215]
                %263 = vst [vmem:[%s223 + $0x4c] sm:%s215] %v262
                %v264 = vld [vmem:[%s222 + $0x190] sm:%s215]
                %265 = vst [vmem:[%s223 + $0x50] sm:%s215] %v264
                %v266 = vld [vmem:[%s222 + $0x1a4] sm:%s215]
                %267 = vst [vmem:[%s223 + $0x54] sm:%s215] %v266
                %v268 = vld [vmem:[%s222 + $0x1b8] sm:%s215]
                %269 = vst [vmem:[%s223 + $0x58] sm:%s215] %v268
                %v270 = vld [vmem:[%s222 + $0x1cc] sm:%s215]
                %271 = vst [vmem:[%s223 + $0x5c] sm:%s215] %v270
                %v272 = vld [vmem:[%s222 + $0x1e0] sm:%s215]
                %273 = vst [vmem:[%s223 + $0x60] sm:%s215] %v272
                %v274 = vld [vmem:[%s222 + $0x1f4] sm:%s215]
                %275 = vst [vmem:[%s223 + $0x64] sm:%s215] %v274
                %v276 = vld [vmem:[%s222 + $0x208] sm:%s215]
                %277 = vst [vmem:[%s223 + $0x68] sm:%s215] %v276
                %v278 = vld [vmem:[%s222 + $0x21c] sm:%s215]
                %279 = vst [vmem:[%s223 + $0x6c] sm:%s215] %v278
                %v280 = vld [vmem:[%s222 + $0x230] sm:%s215]
                %281 = vst [vmem:[%s223 + $0x70] sm:%s215] %v280
                %v282 = vld [vmem:[%s222 + $0x244] sm:%s215]
                %283 = vst [vmem:[%s223 + $0x74] sm:%s215] %v282
                %v284 = vld [vmem:[%s222 + $0x258] sm:%s215]
                %285 = vst [vmem:[%s223 + $0x78] sm:%s215] %v284
                %v286 = vld [vmem:[%s222 + $0x26c] sm:%s215]
                %287 = vst [vmem:[%s223 + $0x7c] sm:%s215] %v286
                %v288 = vld [vmem:[%s222 + $0x280] sm:%s215]
                %289 = vst [vmem:[%s223 + $0x80] sm:%s215] %v288
                %v290 = vld [vmem:[%s222 + $0x294] sm:%s215]
                %291 = vst [vmem:[%s223 + $0x84] sm:%s215] %v290
                %v292 = vld [vmem:[%s222 + $0x2a8] sm:%s215]
                %293 = vst [vmem:[%s223 + $0x88] sm:%s215] %v292
                %v294 = vld [vmem:[%s222 + $0x2bc] sm:%s215]
                %295 = vst [vmem:[%s223 + $0x8c] sm:%s215] %v294
                %v296 = vld [vmem:[%s222 + $0x2d0] sm:%s215]
                %297 = vst [vmem:[%s223 + $0x90] sm:%s215] %v296
                %v298 = vld [vmem:[%s222 + $0x2e4] sm:%s215]
                %299 = vst [vmem:[%s223 + $0x94] sm:%s215] %v298
                %v300 = vld [vmem:[%s222 + $0x2f8] sm:%s215]
                %301 = vst [vmem:[%s223 + $0x98] sm:%s215] %v300
                %v302 = vld [vmem:[%s222 + $0x30c] sm:%s215]
                %303 = vst [vmem:[%s223 + $0x9c] sm:%s215] %v302
                %v304 = vld [vmem:[%s222 + $0x320] sm:%s215]
                %305 = vst [vmem:[%s223 + $0xa0] sm:%s215] %v304
                %v306 = vld [vmem:[%s222 + $0x334] sm:%s215]
                %307 = vst [vmem:[%s223 + $0xa4] sm:%s215] %v306
                %v308 = vld [vmem:[%s222 + $0x348] sm:%s215]
                %309 = vst [vmem:[%s223 + $0xa8] sm:%s215] %v308
                %v310 = vld [vmem:[%s222 + $0x35c] sm:%s215]
                %311 = vst [vmem:[%s223 + $0xac] sm:%s215] %v310
                %v312 = vld [vmem:[%s222 + $0x370] sm:%s215]
                %313 = vst [vmem:[%s223 + $0xb0] sm:%s215] %v312
                %v314 = vld [vmem:[%s222 + $0x384] sm:%s215]
                %315 = vst [vmem:[%s223 + $0xb4] sm:%s215] %v314
                %v316 = vld [vmem:[%s222 + $0x398] sm:%s215]
                %317 = vst [vmem:[%s223 + $0xb8] sm:%s215] %v316
                %v318 = vld [vmem:[%s222 + $0x3ac] sm:%s215]
                %319 = vst [vmem:[%s223 + $0xbc] sm:%s215] %v318
                %v320 = vld [vmem:[%s222 + $0x3c0] sm:%s215]
                %321 = vst [vmem:[%s223 + $0xc0] sm:%s215] %v320
                %v322 = vld [vmem:[%s222 + $0x3d4] sm:%s215]
                %323 = vst [vmem:[%s223 + $0xc4] sm:%s215] %v322
                %v324 = vld [vmem:[%s222 + $0x3e8] sm:%s215]
                %325 = vst [vmem:[%s223 + $0xc8] sm:%s215] %v324
                %v326 = vld [vmem:[%s222 + $0x3fc] sm:%s215]
                %327 = vst [vmem:[%s223 + $0xcc] sm:%s215] %v326
                %v328 = vld [vmem:[%s222 + $0x410] sm:%s215]
                %329 = vst [vmem:[%s223 + $0xd0] sm:%s215] %v328
                %v330 = vld [vmem:[%s222 + $0x424] sm:%s215]
                %331 = vst [vmem:[%s223 + $0xd4] sm:%s215] %v330
                %v332 = vld [vmem:[%s222 + $0x438] sm:%s215]
                %333 = vst [vmem:[%s223 + $0xd8] sm:%s215] %v332
                %v334 = vld [vmem:[%s222 + $0x44c] sm:%s215]
                %335 = vst [vmem:[%s223 + $0xdc] sm:%s215] %v334
                %v336 = vld [vmem:[%s222 + $0x460] sm:%s215]
                %337 = vst [vmem:[%s223 + $0xe0] sm:%s215] %v336
                %v338 = vld [vmem:[%s222 + $0x474] sm:%s215]
                %339 = vst [vmem:[%s223 + $0xe4] sm:%s215] %v338
                %v340 = vld [vmem:[%s222 + $0x488] sm:%s215]
                %341 = vst [vmem:[%s223 + $0xe8] sm:%s215] %v340
                %v342 = vld [vmem:[%s222 + $0x49c] sm:%s215]
                %343 = vst [vmem:[%s223 + $0xec] sm:%s215] %v342
                %v344 = vld [vmem:[%s222 + $0x4b0] sm:%s215]
                %345 = vst [vmem:[%s223 + $0xf0] sm:%s215] %v344
                %v346 = vld [vmem:[%s222 + $0x4c4] sm:%s215]
                %347 = vst [vmem:[%s223 + $0xf4] sm:%s215] %v346
                %v348 = vld [vmem:[%s222 + $0x4d8] sm:%s215]
                %349 = vst [vmem:[%s223 + $0xf8] sm:%s215] %v348
                %v350 = vld [vmem:[%s222 + $0x4ec] sm:%s215]
                %351 = vst [vmem:[%s223 + $0xfc] sm:%s215] %v350
              $region45: #{net_forward.11} parent=39 // loop_footer
                %s221 = sadd.s32 1, %s217
              $region46: #{net_forward.11} parent=39 // loop_footer_branch
                %216 = sbr.rel target = $region42
              $region47: #{net_forward.11} parent=39 // loop_exit
                _
            $region40: #{net_forward.11} parent=31 // pred_fallthru
              _
          $region32: #{net_forward.11} parent=27 // pred_fallthru
            _
          %500 = vnop
        $region28: #{net_forward.11} parent=23 // pred_fallthru
          _
        // Predicated region
        $region66: #{net_forward.11} parent=23 // pred_check
          %p501 = pneg %p79
        $region67: #{net_forward.11} parent=23 // pred_check_branch
          %503 = sbr.rel (%p501) target = $region69
        $region68: #{net_forward.11} parent=23 // pred_region
          %s504 = smul.u32 16, %s19
          %p505 = scmp.lt.s32.totalorder %s504, 79
          %s506 = scalar_select %p505, %s504, 79
          %p507 = scmp.lt.s32.totalorder %s18, 0
          %s508 = scalar_select %p507, %s18, 0
          %s509 = sadd.s32 %s508, %s506
          %s510 = smul.addr %s509, 4
          %s511 = scalar_lea.vmem %s1, %s510
          %s512 = smul.u32 16, %s19
        $region69: #{net_forward.11} parent=23 // pred_fallthru
          _
      $region24: #{net_forward.11} parent=5 // pred_fallthru
        _
      %p513 = scmp.le.s32.totalorder 1, %s10
      %p514 = scmp.lt.s32.totalorder %s10, 201
      %p515 = pnand %p513, %p514
      %p516 = pneg %p515
      // Predicated region
      $region70: #{net_forward.11} parent=5 // pred_check
        _
      $region71: #{net_forward.11} parent=5 // pred_check_branch
        %518 = sbr.rel (%p515) target = $region73
      $region72: #{net_forward.11} parent=5 // pred_region
        %s519 = ssub.s32 %s10, 1
        %s520 = sand.u32 %s44, 1
        %s521 = sand.u32 %s44, 1
        %s522 = smul.addr %s521, 256
        %s523 = scalar_lea.vmem [#allocation3], %s522
        // Predicated region
        $region74: #{net_forward.11} parent=72 // pred_check
          %p524 = pneg %p57
        $region75: #{net_forward.11} parent=72 // pred_check_branch
          %526 = sbr.rel (%p524) target = $region77
        $region76: #{net_forward.11} parent=72 // pred_region
          _
        $region77: #{net_forward.11} parent=72 // pred_fallthru
          _
        %s527 = sand.u32 %s44, 1
        %s528 = sand.u32 %s44, 1
        %s529 = smul.addr %s528, 256
        %s530 = scalar_lea.vmem [#allocation3], %s529
        %p531 = pneg %p57
        %p532 = pneg %p54
        %s533 = smul.u32 16, %s22
        %p534 = scmp.lt.s32.totalorder %s533, 79
        %s535 = scalar_select %p534, %s533, 79
        %p536 = scmp.lt.s32.totalorder %s21, 0
        %s537 = scalar_select %p536, %s21, 0
        %s538 = sadd.s32 %s537, %s535
        %s539 = smul.addr %s538, 4
        %s540 = scalar_lea.vmem %s1, %s539
        %p541 = pneg %p85
        %p542 = pneg %p82
        %p543 = scmp.lt.s32.totalorder %s21, 0
        %s544 = scalar_select %p543, %s21, 0
        %s545 = scalar_lea.vmem %s2, %s544
        %p546 = pneg %p111
        %p547 = pneg %p108
        %p548 = scmp.lt.s32.totalorder %s21, 0
        %s549 = scalar_select %p548, %s21, 0
        %s550 = scalar_lea.vmem %s3, %s549
        %p551 = pneg %p137
        %p552 = pneg %p134
        %p553 = pneg %p165
        %p554 = pneg %p162
        %s555 = smul.u32 64, %s20
        %p556 = scmp.lt.s32.totalorder %s555, 2559
        %s557 = scalar_select %p556, %s555, 2559
        %p558 = scmp.lt.s32.totalorder %s21, 0
        %s559 = scalar_select %p558, %s21, 0
        %s560 = sadd.s32 %s559, %s557
        %s561 = smul.addr %s560, 4
        %s562 = scalar_lea.vmem %s4, %s561
        %s563 = smul.u32 64, %s20
        %s564 = smul.u32 16, %s22
        %p565 = scmp.lt.s32.totalorder %s564, 79
        %s566 = scalar_select %p565, %s564, 79
        %p567 = scmp.lt.s32.totalorder %s21, 0
        %s568 = scalar_select %p567, %s21, 0
        %s569 = sadd.s32 %s568, %s566
        %s570 = smul.addr %s569, 4
        %s571 = scalar_lea.vmem %s1, %s570
        %s572 = smul.u32 16, %s22
        %p573 = scmp.lt.s32.totalorder %s21, 0
        %s574 = scalar_select %p573, %s21, 0
        %s575 = scalar_lea.vmem %s2, %s574
        %p576 = scmp.lt.s32.totalorder %s21, 0
        %s577 = scalar_select %p576, %s21, 0
        %s578 = scalar_lea.vmem %s3, %s577
        %s579 = smul.u32 64, %s20
        %p580 = scmp.lt.s32.totalorder %s579, 2559
        %s581 = scalar_select %p580, %s579, 2559
        %p582 = scmp.lt.s32.totalorder %s21, 0
        %s583 = scalar_select %p582, %s21, 0
        %s584 = sadd.s32 %s583, %s581
        %s585 = smul.addr %s584, 4
        %s586 = scalar_lea.vmem %s4, %s585
        %s587 = smul.u32 64, %s20
        %p588 = scmp.eq.s32.totalorder %s22, 0
        // Predicated region
        $region78: #{net_forward.11} parent=72 // pred_check
          %p589 = pneg %p588
        $region79: #{net_forward.11} parent=72 // pred_check_branch
          %591 = sbr.rel (%p589) target = $region81
        $region80: #{net_forward.11} parent=72 // pred_region
          %592 = vst [vmem:[#allocation2] sm:$0xff] 0.0
          %593 = vst [vmem:[#allocation2 + $0x8] sm:$0xff] 0.0
          %594 = vst [vmem:[#allocation2 + $0x10] sm:$0xff] 0.0
          %595 = vst [vmem:[#allocation2 + $0x18] sm:$0xff] 0.0
          %596 = vst [vmem:[#allocation2 + $0x20] sm:$0xff] 0.0
          %597 = vst [vmem:[#allocation2 + $0x28] sm:$0xff] 0.0
          %598 = vst [vmem:[#allocation2 + $0x30] sm:$0xff] 0.0
          %599 = vst [vmem:[#allocation2 + $0x38] sm:$0xff] 0.0
          %600 = vst [vmem:[#allocation2 + $0x40] sm:$0xff] 0.0
          %601 = vst [vmem:[#allocation2 + $0x48] sm:$0xff] 0.0
          %602 = vst [vmem:[#allocation2 + $0x50] sm:$0xff] 0.0
          %603 = vst [vmem:[#allocation2 + $0x58] sm:$0xff] 0.0
          %604 = vst [vmem:[#allocation2 + $0x60] sm:$0xff] 0.0
          %605 = vst [vmem:[#allocation2 + $0x68] sm:$0xff] 0.0
          %606 = vst [vmem:[#allocation2 + $0x70] sm:$0xff] 0.0
          %607 = vst [vmem:[#allocation2 + $0x78] sm:$0xff] 0.0
          %608 = vst [vmem:[#allocation2 + $0x80] sm:$0xff] 0.0
          %609 = vst [vmem:[#allocation2 + $0x88] sm:$0xff] 0.0
          %610 = vst [vmem:[#allocation2 + $0x90] sm:$0xff] 0.0
          %611 = vst [vmem:[#allocation2 + $0x98] sm:$0xff] 0.0
          %612 = vst [vmem:[#allocation2 + $0xa0] sm:$0xff] 0.0
          %613 = vst [vmem:[#allocation2 + $0xa8] sm:$0xff] 0.0
          %614 = vst [vmem:[#allocation2 + $0xb0] sm:$0xff] 0.0
          %615 = vst [vmem:[#allocation2 + $0xb8] sm:$0xff] 0.0
          %616 = vst [vmem:[#allocation2 + $0xc0] sm:$0xff] 0.0
          %617 = vst [vmem:[#allocation2 + $0xc8] sm:$0xff] 0.0
          %618 = vst [vmem:[#allocation2 + $0xd0] sm:$0xff] 0.0
          %619 = vst [vmem:[#allocation2 + $0xd8] sm:$0xff] 0.0
          %620 = vst [vmem:[#allocation2 + $0xe0] sm:$0xff] 0.0
          %621 = vst [vmem:[#allocation2 + $0xe8] sm:$0xff] 0.0
          %622 = vst [vmem:[#allocation2 + $0xf0] sm:$0xff] 0.0
          %623 = vst [vmem:[#allocation2 + $0xf8] sm:$0xff] 0.0
          %624 = vst [vmem:[#allocation2 + $0x100] sm:$0xff] 0.0
          %625 = vst [vmem:[#allocation2 + $0x108] sm:$0xff] 0.0
          %626 = vst [vmem:[#allocation2 + $0x110] sm:$0xff] 0.0
          %627 = vst [vmem:[#allocation2 + $0x118] sm:$0xff] 0.0
          %628 = vst [vmem:[#allocation2 + $0x120] sm:$0xff] 0.0
          %629 = vst [vmem:[#allocation2 + $0x128] sm:$0xff] 0.0
          %630 = vst [vmem:[#allocation2 + $0x130] sm:$0xff] 0.0
          %631 = vst [vmem:[#allocation2 + $0x138] sm:$0xff] 0.0
          %632 = vst [vmem:[#allocation2 + $0x140] sm:$0xff] 0.0
          %633 = vst [vmem:[#allocation2 + $0x148] sm:$0xff] 0.0
          %634 = vst [vmem:[#allocation2 + $0x150] sm:$0xff] 0.0
          %635 = vst [vmem:[#allocation2 + $0x158] sm:$0xff] 0.0
          %636 = vst [vmem:[#allocation2 + $0x160] sm:$0xff] 0.0
          %637 = vst [vmem:[#allocation2 + $0x168] sm:$0xff] 0.0
          %638 = vst [vmem:[#allocation2 + $0x170] sm:$0xff] 0.0
          %639 = vst [vmem:[#allocation2 + $0x178] sm:$0xff] 0.0
          %640 = vst [vmem:[#allocation2 + $0x180] sm:$0xff] 0.0
          %641 = vst [vmem:[#allocation2 + $0x188] sm:$0xff] 0.0
          %642 = vst [vmem:[#allocation2 + $0x190] sm:$0xff] 0.0
          %643 = vst [vmem:[#allocation2 + $0x198] sm:$0xff] 0.0
          %644 = vst [vmem:[#allocation2 + $0x1a0] sm:$0xff] 0.0
          %645 = vst [vmem:[#allocation2 + $0x1a8] sm:$0xff] 0.0
          %646 = vst [vmem:[#allocation2 + $0x1b0] sm:$0xff] 0.0
          %647 = vst [vmem:[#allocation2 + $0x1b8] sm:$0xff] 0.0
          %648 = vst [vmem:[#allocation2 + $0x1c0] sm:$0xff] 0.0
          %649 = vst [vmem:[#allocation2 + $0x1c8] sm:$0xff] 0.0
          %650 = vst [vmem:[#allocation2 + $0x1d0] sm:$0xff] 0.0
          %651 = vst [vmem:[#allocation2 + $0x1d8] sm:$0xff] 0.0
          %652 = vst [vmem:[#allocation2 + $0x1e0] sm:$0xff] 0.0
          %653 = vst [vmem:[#allocation2 + $0x1e8] sm:$0xff] 0.0
          %654 = vst [vmem:[#allocation2 + $0x1f0] sm:$0xff] 0.0
          %655 = vst [vmem:[#allocation2 + $0x1f8] sm:$0xff] 0.0
        $region81: #{net_forward.11} parent=72 // pred_fallthru
          _
        %v656 = vld [vmem:[#allocation2] sm:$0xff]
        %v657 = vld [vmem:[#allocation2 + $0x8] sm:$0xff]
        %v658 = vld [vmem:[#allocation2 + $0x10] sm:$0xff]
        %v659 = vld [vmem:[#allocation2 + $0x18] sm:$0xff]
        %v660 = vld [vmem:[#allocation2 + $0x20] sm:$0xff]
        %v661 = vld [vmem:[#allocation2 + $0x28] sm:$0xff]
        %v662 = vld [vmem:[#allocation2 + $0x30] sm:$0xff]
        %v663 = vld [vmem:[#allocation2 + $0x38] sm:$0xff]
        %v664 = vld [vmem:[#allocation2 + $0x40] sm:$0xff]
        %v665 = vld [vmem:[#allocation2 + $0x48] sm:$0xff]
        %v666 = vld [vmem:[#allocation2 + $0x50] sm:$0xff]
        %v667 = vld [vmem:[#allocation2 + $0x58] sm:$0xff]
        %v668 = vld [vmem:[#allocation2 + $0x60] sm:$0xff]
        %v669 = vld [vmem:[#allocation2 + $0x68] sm:$0xff]
        %v670 = vld [vmem:[#allocation2 + $0x70] sm:$0xff]
        %v671 = vld [vmem:[#allocation2 + $0x78] sm:$0xff]
        %v672 = vld [vmem:[#allocation2 + $0x80] sm:$0xff]
        %v673 = vld [vmem:[#allocation2 + $0x88] sm:$0xff]
        %v674 = vld [vmem:[#allocation2 + $0x90] sm:$0xff]
        %v675 = vld [vmem:[#allocation2 + $0x98] sm:$0xff]
        %v676 = vld [vmem:[#allocation2 + $0xa0] sm:$0xff]
        %v677 = vld [vmem:[#allocation2 + $0xa8] sm:$0xff]
        %v678 = vld [vmem:[#allocation2 + $0xb0] sm:$0xff]
        %v679 = vld [vmem:[#allocation2 + $0xb8] sm:$0xff]
        %v680 = vld [vmem:[#allocation2 + $0xc0] sm:$0xff]
        %v681 = vld [vmem:[#allocation2 + $0xc8] sm:$0xff]
        %v682 = vld [vmem:[#allocation2 + $0xd0] sm:$0xff]
        %v683 = vld [vmem:[#allocation2 + $0xd8] sm:$0xff]
        %v684 = vld [vmem:[#allocation2 + $0xe0] sm:$0xff]
        %v685 = vld [vmem:[#allocation2 + $0xe8] sm:$0xff]
        %v686 = vld [vmem:[#allocation2 + $0xf0] sm:$0xff]
        %v687 = vld [vmem:[#allocation2 + $0xf8] sm:$0xff]
        %v688 = vld [vmem:[#allocation2 + $0x100] sm:$0xff]
        %v689 = vld [vmem:[#allocation2 + $0x108] sm:$0xff]
        %v690 = vld [vmem:[#allocation2 + $0x110] sm:$0xff]
        %v691 = vld [vmem:[#allocation2 + $0x118] sm:$0xff]
        %v692 = vld [vmem:[#allocation2 + $0x120] sm:$0xff]
        %v693 = vld [vmem:[#allocation2 + $0x128] sm:$0xff]
        %v694 = vld [vmem:[#allocation2 + $0x130] sm:$0xff]
        %v695 = vld [vmem:[#allocation2 + $0x138] sm:$0xff]
        %v696 = vld [vmem:[#allocation2 + $0x140] sm:$0xff]
        %v697 = vld [vmem:[#allocation2 + $0x148] sm:$0xff]
        %v698 = vld [vmem:[#allocation2 + $0x150] sm:$0xff]
        %v699 = vld [vmem:[#allocation2 + $0x158] sm:$0xff]
        %v700 = vld [vmem:[#allocation2 + $0x160] sm:$0xff]
        %v701 = vld [vmem:[#allocation2 + $0x168] sm:$0xff]
        %v702 = vld [vmem:[#allocation2 + $0x170] sm:$0xff]
        %v703 = vld [vmem:[#allocation2 + $0x178] sm:$0xff]
        %v704 = vld [vmem:[#allocation2 + $0x180] sm:$0xff]
        %v705 = vld [vmem:[#allocation2 + $0x188] sm:$0xff]
        %v706 = vld [vmem:[#allocation2 + $0x190] sm:$0xff]
        %v707 = vld [vmem:[#allocation2 + $0x198] sm:$0xff]
        %v708 = vld [vmem:[#allocation2 + $0x1a0] sm:$0xff]
        %v709 = vld [vmem:[#allocation2 + $0x1a8] sm:$0xff]
        %v710 = vld [vmem:[#allocation2 + $0x1b0] sm:$0xff]
        %v711 = vld [vmem:[#allocation2 + $0x1b8] sm:$0xff]
        %v712 = vld [vmem:[#allocation2 + $0x1c0] sm:$0xff]
        %v713 = vld [vmem:[#allocation2 + $0x1c8] sm:$0xff]
        %v714 = vld [vmem:[#allocation2 + $0x1d0] sm:$0xff]
        %v715 = vld [vmem:[#allocation2 + $0x1d8] sm:$0xff]
        %v716 = vld [vmem:[#allocation2 + $0x1e0] sm:$0xff]
        %v717 = vld [vmem:[#allocation2 + $0x1e8] sm:$0xff]
        %v718 = vld [vmem:[#allocation2 + $0x1f0] sm:$0xff]
        %v719 = vld [vmem:[#allocation2 + $0x1f8] sm:$0xff]
        %v720 = vld [vmem:[%s523] sm:$0xf]
        %v721 = vld [vmem:[%s523 + $0x4] sm:$0xf]
        %v722 = vld [vmem:[%s523 + $0x8] sm:$0xf]
        %v723 = vld [vmem:[%s523 + $0xc] sm:$0xf]
        %v724 = vld [vmem:[%s523 + $0x10] sm:$0xf]
        %v725 = vld [vmem:[%s523 + $0x14] sm:$0xf]
        %v726 = vld [vmem:[%s523 + $0x18] sm:$0xf]
        %v727 = vld [vmem:[%s523 + $0x1c] sm:$0xf]
        %v728 = vld [vmem:[%s523 + $0x20] sm:$0xf]
        %v729 = vld [vmem:[%s523 + $0x24] sm:$0xf]
        %v730 = vld [vmem:[%s523 + $0x28] sm:$0xf]
        %v731 = vld [vmem:[%s523 + $0x2c] sm:$0xf]
        %v732 = vld [vmem:[%s523 + $0x30] sm:$0xf]
        %v733 = vld [vmem:[%s523 + $0x34] sm:$0xf]
        %v734 = vld [vmem:[%s523 + $0x38] sm:$0xf]
        %v735 = vld [vmem:[%s523 + $0x3c] sm:$0xf]
        %v736 = vld [vmem:[%s523 + $0x40] sm:$0xf]
        %v737 = vld [vmem:[%s523 + $0x44] sm:$0xf]
        %v738 = vld [vmem:[%s523 + $0x48] sm:$0xf]
        %v739 = vld [vmem:[%s523 + $0x4c] sm:$0xf]
        %v740 = vld [vmem:[%s523 + $0x50] sm:$0xf]
        %v741 = vld [vmem:[%s523 + $0x54] sm:$0xf]
        %v742 = vld [vmem:[%s523 + $0x58] sm:$0xf]
        %v743 = vld [vmem:[%s523 + $0x5c] sm:$0xf]
        %v744 = vld [vmem:[%s523 + $0x60] sm:$0xf]
        %v745 = vld [vmem:[%s523 + $0x64] sm:$0xf]
        %v746 = vld [vmem:[%s523 + $0x68] sm:$0xf]
        %v747 = vld [vmem:[%s523 + $0x6c] sm:$0xf]
        %v748 = vld [vmem:[%s523 + $0x70] sm:$0xf]
        %v749 = vld [vmem:[%s523 + $0x74] sm:$0xf]
        %v750 = vld [vmem:[%s523 + $0x78] sm:$0xf]
        %v751 = vld [vmem:[%s523 + $0x7c] sm:$0xf]
        %v752 = vld [vmem:[%s523 + $0x80] sm:$0xf]
        %v753 = vld [vmem:[%s523 + $0x84] sm:$0xf]
        %v754 = vld [vmem:[%s523 + $0x88] sm:$0xf]
        %v755 = vld [vmem:[%s523 + $0x8c] sm:$0xf]
        %v756 = vld [vmem:[%s523 + $0x90] sm:$0xf]
        %v757 = vld [vmem:[%s523 + $0x94] sm:$0xf]
        %v758 = vld [vmem:[%s523 + $0x98] sm:$0xf]
        %v759 = vld [vmem:[%s523 + $0x9c] sm:$0xf]
        %v760 = vld [vmem:[%s523 + $0xa0] sm:$0xf]
        %v761 = vld [vmem:[%s523 + $0xa4] sm:$0xf]
        %v762 = vld [vmem:[%s523 + $0xa8] sm:$0xf]
        %v763 = vld [vmem:[%s523 + $0xac] sm:$0xf]
        %v764 = vld [vmem:[%s523 + $0xb0] sm:$0xf]
        %v765 = vld [vmem:[%s523 + $0xb4] sm:$0xf]
        %v766 = vld [vmem:[%s523 + $0xb8] sm:$0xf]
        %v767 = vld [vmem:[%s523 + $0xbc] sm:$0xf]
        %v768 = vld [vmem:[%s523 + $0xc0] sm:$0xf]
        %v769 = vld [vmem:[%s523 + $0xc4] sm:$0xf]
        %v770 = vld [vmem:[%s523 + $0xc8] sm:$0xf]
        %v771 = vld [vmem:[%s523 + $0xcc] sm:$0xf]
        %v772 = vld [vmem:[%s523 + $0xd0] sm:$0xf]
        %v773 = vld [vmem:[%s523 + $0xd4] sm:$0xf]
        %v774 = vld [vmem:[%s523 + $0xd8] sm:$0xf]
        %v775 = vld [vmem:[%s523 + $0xdc] sm:$0xf]
        %v776 = vld [vmem:[%s523 + $0xe0] sm:$0xf]
        %v777 = vld [vmem:[%s523 + $0xe4] sm:$0xf]
        %v778 = vld [vmem:[%s523 + $0xe8] sm:$0xf]
        %v779 = vld [vmem:[%s523 + $0xec] sm:$0xf]
        %v780 = vld [vmem:[%s523 + $0xf0] sm:$0xf]
        %v781 = vld [vmem:[%s523 + $0xf4] sm:$0xf]
        %v782 = vld [vmem:[%s523 + $0xf8] sm:$0xf]
        %v783 = vld [vmem:[%s523 + $0xfc] sm:$0xf]
        %v784 = vld [vmem:[%s571] sm:$0xf]
        %v785 = vld [vmem:[%s571 + $0x4] sm:$0xf]
        %v786 = vld [vmem:[%s571 + $0x8] sm:$0xf]
        %v787 = vld [vmem:[%s571 + $0xc] sm:$0xf]
        %v788 = vld [vmem:[%s571 + $0x10] sm:$0xf]
        %v789 = vld [vmem:[%s571 + $0x14] sm:$0xf]
        %v790 = vld [vmem:[%s571 + $0x18] sm:$0xf]
        %v791 = vld [vmem:[%s571 + $0x1c] sm:$0xf]
        %v792 = vld [vmem:[%s571 + $0x20] sm:$0xf]
        %v793 = vld [vmem:[%s571 + $0x24] sm:$0xf]
        %v794 = vld [vmem:[%s571 + $0x28] sm:$0xf]
        %v795 = vld [vmem:[%s571 + $0x2c] sm:$0xf]
        %v796 = vld [vmem:[%s571 + $0x30] sm:$0xf]
        %v797 = vld [vmem:[%s571 + $0x34] sm:$0xf]
        %v798 = vld [vmem:[%s571 + $0x38] sm:$0xf]
        %v799 = vld [vmem:[%s571 + $0x3c] sm:$0xf]
        %v864 = vunpack.c.l.b16 %v720
        %v865 = vunpack.c.l.b16 %v721
        %v866 = vunpack.c.l.b16 %v722
        %v867 = vunpack.c.l.b16 %v723
        %v868 = vunpack.c.l.b16 %v724
        %v869 = vunpack.c.l.b16 %v725
        %v870 = vunpack.c.l.b16 %v726
        %v871 = vunpack.c.l.b16 %v727
        %v872 = vunpack.c.l.b16 %v728
        %v873 = vunpack.c.l.b16 %v729
        %v874 = vunpack.c.l.b16 %v730
        %v875 = vunpack.c.l.b16 %v731
        %v876 = vunpack.c.l.b16 %v732
        %v877 = vunpack.c.l.b16 %v733
        %v878 = vunpack.c.l.b16 %v734
        %v879 = vunpack.c.l.b16 %v735
        %v880 = vunpack.c.l.b16 %v736
        %v881 = vunpack.c.l.b16 %v737
        %v882 = vunpack.c.l.b16 %v738
        %v883 = vunpack.c.l.b16 %v739
        %v884 = vunpack.c.l.b16 %v740
        %v885 = vunpack.c.l.b16 %v741
        %v886 = vunpack.c.l.b16 %v742
        %v887 = vunpack.c.l.b16 %v743
        %v888 = vunpack.c.l.b16 %v744
        %v889 = vunpack.c.l.b16 %v745
        %v890 = vunpack.c.l.b16 %v746
        %v891 = vunpack.c.l.b16 %v747
        %v892 = vunpack.c.l.b16 %v748
        %v893 = vunpack.c.l.b16 %v749
        %v894 = vunpack.c.l.b16 %v750
        %v895 = vunpack.c.l.b16 %v751
        %v896 = vunpack.c.l.b16 %v752
        %v897 = vunpack.c.l.b16 %v753
        %v898 = vunpack.c.l.b16 %v754
        %v899 = vunpack.c.l.b16 %v755
        %v900 = vunpack.c.l.b16 %v756
        %v901 = vunpack.c.l.b16 %v757
        %v902 = vunpack.c.l.b16 %v758
        %v903 = vunpack.c.l.b16 %v759
        %v904 = vunpack.c.l.b16 %v760
        %v905 = vunpack.c.l.b16 %v761
        %v906 = vunpack.c.l.b16 %v762
        %v907 = vunpack.c.l.b16 %v763
        %v908 = vunpack.c.l.b16 %v764
        %v909 = vunpack.c.l.b16 %v765
        %v910 = vunpack.c.l.b16 %v766
        %v911 = vunpack.c.l.b16 %v767
        %v912 = vunpack.c.l.b16 %v768
        %v913 = vunpack.c.l.b16 %v769
        %v914 = vunpack.c.l.b16 %v770
        %v915 = vunpack.c.l.b16 %v771
        %v916 = vunpack.c.l.b16 %v772
        %v917 = vunpack.c.l.b16 %v773
        %v918 = vunpack.c.l.b16 %v774
        %v919 = vunpack.c.l.b16 %v775
        %v920 = vunpack.c.l.b16 %v776
        %v921 = vunpack.c.l.b16 %v777
        %v922 = vunpack.c.l.b16 %v778
        %v923 = vunpack.c.l.b16 %v779
        %v924 = vunpack.c.l.b16 %v780
        %v925 = vunpack.c.l.b16 %v781
        %v926 = vunpack.c.l.b16 %v782
        %v927 = vunpack.c.l.b16 %v783
        %v928 = vpack.c.b16 %v865, %v864
        %v929 = vpack.c.b16 %v867, %v866
        %v930 = vpack.c.b16 %v869, %v868
        %v931 = vpack.c.b16 %v871, %v870
        %v932 = vpack.c.b16 %v873, %v872
        %v933 = vpack.c.b16 %v875, %v874
        %v934 = vpack.c.b16 %v877, %v876
        %v935 = vpack.c.b16 %v879, %v878
        %v936 = vpack.c.b16 %v881, %v880
        %v937 = vpack.c.b16 %v883, %v882
        %v938 = vpack.c.b16 %v885, %v884
        %v939 = vpack.c.b16 %v887, %v886
        %v940 = vpack.c.b16 %v889, %v888
        %v941 = vpack.c.b16 %v891, %v890
        %v942 = vpack.c.b16 %v893, %v892
        %v943 = vpack.c.b16 %v895, %v894
        %v944 = vpack.c.b16 %v897, %v896
        %v945 = vpack.c.b16 %v899, %v898
        %v946 = vpack.c.b16 %v901, %v900
        %v947 = vpack.c.b16 %v903, %v902
        %v948 = vpack.c.b16 %v905, %v904
        %v949 = vpack.c.b16 %v907, %v906
        %v950 = vpack.c.b16 %v909, %v908
        %v951 = vpack.c.b16 %v911, %v910
        %v952 = vpack.c.b16 %v913, %v912
        %v953 = vpack.c.b16 %v915, %v914
        %v954 = vpack.c.b16 %v917, %v916
        %v955 = vpack.c.b16 %v919, %v918
        %v956 = vpack.c.b16 %v921, %v920
        %v957 = vpack.c.b16 %v923, %v922
        %v958 = vpack.c.b16 %v925, %v924
        %v959 = vpack.c.b16 %v927, %v926
        %v1008 = vunpack.c.l.b16 %v784
        %v1009 = vunpack.c.l.b16 %v785
        %v1010 = vunpack.c.l.b16 %v786
        %v1011 = vunpack.c.l.b16 %v787
        %v1012 = vunpack.c.l.b16 %v788
        %v1013 = vunpack.c.l.b16 %v789
        %v1014 = vunpack.c.l.b16 %v790
        %v1015 = vunpack.c.l.b16 %v791
        %v1016 = vunpack.c.l.b16 %v792
        %v1017 = vunpack.c.l.b16 %v793
        %v1018 = vunpack.c.l.b16 %v794
        %v1019 = vunpack.c.l.b16 %v795
        %v1020 = vunpack.c.l.b16 %v796
        %v1021 = vunpack.c.l.b16 %v797
        %v1022 = vunpack.c.l.b16 %v798
        %v1023 = vunpack.c.l.b16 %v799
        %v1024 = vpack.c.b16 %v1009, %v1008
        %v1025 = vpack.c.b16 %v1011, %v1010
        %v1026 = vpack.c.b16 %v1013, %v1012
        %v1027 = vpack.c.b16 %v1015, %v1014
        %v1028 = vpack.c.b16 %v1017, %v1016
        %v1029 = vpack.c.b16 %v1019, %v1018
        %v1030 = vpack.c.b16 %v1021, %v1020
        %v1031 = vpack.c.b16 %v1023, %v1022
        %1040 = vmatpush.bf16.msra.mxu0 %v1031
        %1041 = vmatpush.bf16.msra.mxu0 %v1030
        %1042 = vmatpush.bf16.msra.mxu0 %v1029
        %1043 = vmatpush.bf16.msra.mxu0 %v1028
        %1044 = vmatpush.bf16.msra.mxu0 %v1027
        %1045 = vmatpush.bf16.msra.mxu0 %v1026
        %1046 = vmatpush.bf16.msra.mxu0 %v1025
        %1047 = vmatpush.bf16.msra.mxu0 %v1024
        %1048 = vmatmul.bf16.gmra.mxu0 %v928
        %v1049 = vpop.f32.mrf.mxu0
        %v1050 = vadd.f32 0.0, %v1049
        %v1051 = vpop.f32.mrf.mxu0
        %v1052 = vadd.f32 0.0, %v1051
        %1053 = vmatmul.bf16.gmra.mxu0 %v929
        %v1054 = vpop.f32.mrf.mxu0
        %v1055 = vadd.f32 0.0, %v1054
        %v1056 = vpop.f32.mrf.mxu0
        %v1057 = vadd.f32 0.0, %v1056
        %1058 = vmatmul.bf16.gmra.mxu0 %v930
        %v1059 = vpop.f32.mrf.mxu0
        %v1060 = vadd.f32 0.0, %v1059
        %v1061 = vpop.f32.mrf.mxu0
        %v1062 = vadd.f32 0.0, %v1061
        %1063 = vmatmul.bf16.gmra.mxu0 %v931
        %v1064 = vpop.f32.mrf.mxu0
        %v1065 = vadd.f32 0.0, %v1064
        %v1066 = vpop.f32.mrf.mxu0
        %v1067 = vadd.f32 0.0, %v1066
        %1068 = vmatmul.bf16.gmra.mxu0 %v932
        %v1069 = vpop.f32.mrf.mxu0
        %v1070 = vadd.f32 0.0, %v1069
        %v1071 = vpop.f32.mrf.mxu0
        %v1072 = vadd.f32 0.0, %v1071
        %1073 = vmatmul.bf16.gmra.mxu0 %v933
        %v1074 = vpop.f32.mrf.mxu0
        %v1075 = vadd.f32 0.0, %v1074
        %v1076 = vpop.f32.mrf.mxu0
        %v1077 = vadd.f32 0.0, %v1076
        %1078 = vmatmul.bf16.gmra.mxu0 %v934
        %v1079 = vpop.f32.mrf.mxu0
        %v1080 = vadd.f32 0.0, %v1079
        %v1081 = vpop.f32.mrf.mxu0
        %v1082 = vadd.f32 0.0, %v1081
        %1083 = vmatmul.bf16.gmra.mxu0 %v935
        %v1084 = vpop.f32.mrf.mxu0
        %v1085 = vadd.f32 0.0, %v1084
        %v1086 = vpop.f32.mrf.mxu0
        %v1087 = vadd.f32 0.0, %v1086
        %1088 = vmatmul.bf16.gmra.mxu0 %v936
        %v1089 = vpop.f32.mrf.mxu0
        %v1090 = vadd.f32 0.0, %v1089
        %v1091 = vpop.f32.mrf.mxu0
        %v1092 = vadd.f32 0.0, %v1091
        %1093 = vmatmul.bf16.gmra.mxu0 %v937
        %v1094 = vpop.f32.mrf.mxu0
        %v1095 = vadd.f32 0.0, %v1094
        %v1096 = vpop.f32.mrf.mxu0
        %v1097 = vadd.f32 0.0, %v1096
        %1098 = vmatmul.bf16.gmra.mxu0 %v938
        %v1099 = vpop.f32.mrf.mxu0
        %v1100 = vadd.f32 0.0, %v1099
        %v1101 = vpop.f32.mrf.mxu0
        %v1102 = vadd.f32 0.0, %v1101
        %1103 = vmatmul.bf16.gmra.mxu0 %v939
        %v1104 = vpop.f32.mrf.mxu0
        %v1105 = vadd.f32 0.0, %v1104
        %v1106 = vpop.f32.mrf.mxu0
        %v1107 = vadd.f32 0.0, %v1106
        %1108 = vmatmul.bf16.gmra.mxu0 %v940
        %v1109 = vpop.f32.mrf.mxu0
        %v1110 = vadd.f32 0.0, %v1109
        %v1111 = vpop.f32.mrf.mxu0
        %v1112 = vadd.f32 0.0, %v1111
        %1113 = vmatmul.bf16.gmra.mxu0 %v941
        %v1114 = vpop.f32.mrf.mxu0
        %v1115 = vadd.f32 0.0, %v1114
        %v1116 = vpop.f32.mrf.mxu0
        %v1117 = vadd.f32 0.0, %v1116
        %1118 = vmatmul.bf16.gmra.mxu0 %v942
        %v1119 = vpop.f32.mrf.mxu0
        %v1120 = vadd.f32 0.0, %v1119
        %v1121 = vpop.f32.mrf.mxu0
        %v1122 = vadd.f32 0.0, %v1121
        %1123 = vmatmul.bf16.gmra.mxu0 %v943
        %v1124 = vpop.f32.mrf.mxu0
        %v1125 = vadd.f32 0.0, %v1124
        %v1126 = vpop.f32.mrf.mxu0
        %v1127 = vadd.f32 0.0, %v1126
        %1128 = vmatmul.bf16.gmra.mxu0 %v944
        %v1129 = vpop.f32.mrf.mxu0
        %v1130 = vadd.f32 0.0, %v1129
        %v1131 = vpop.f32.mrf.mxu0
        %v1132 = vadd.f32 0.0, %v1131
        %1133 = vmatmul.bf16.gmra.mxu0 %v945
        %v1134 = vpop.f32.mrf.mxu0
        %v1135 = vadd.f32 0.0, %v1134
        %v1136 = vpop.f32.mrf.mxu0
        %v1137 = vadd.f32 0.0, %v1136
        %1138 = vmatmul.bf16.gmra.mxu0 %v946
        %v1139 = vpop.f32.mrf.mxu0
        %v1140 = vadd.f32 0.0, %v1139
        %v1141 = vpop.f32.mrf.mxu0
        %v1142 = vadd.f32 0.0, %v1141
        %1143 = vmatmul.bf16.gmra.mxu0 %v947
        %v1144 = vpop.f32.mrf.mxu0
        %v1145 = vadd.f32 0.0, %v1144
        %v1146 = vpop.f32.mrf.mxu0
        %v1147 = vadd.f32 0.0, %v1146
        %1148 = vmatmul.bf16.gmra.mxu0 %v948
        %v1149 = vpop.f32.mrf.mxu0
        %v1150 = vadd.f32 0.0, %v1149
        %v1151 = vpop.f32.mrf.mxu0
        %v1152 = vadd.f32 0.0, %v1151
        %1153 = vmatmul.bf16.gmra.mxu0 %v949
        %v1154 = vpop.f32.mrf.mxu0
        %v1155 = vadd.f32 0.0, %v1154
        %v1156 = vpop.f32.mrf.mxu0
        %v1157 = vadd.f32 0.0, %v1156
        %1158 = vmatmul.bf16.gmra.mxu0 %v950
        %v1159 = vpop.f32.mrf.mxu0
        %v1160 = vadd.f32 0.0, %v1159
        %v1161 = vpop.f32.mrf.mxu0
        %v1162 = vadd.f32 0.0, %v1161
        %1163 = vmatmul.bf16.gmra.mxu0 %v951
        %v1164 = vpop.f32.mrf.mxu0
        %v1165 = vadd.f32 0.0, %v1164
        %v1166 = vpop.f32.mrf.mxu0
        %v1167 = vadd.f32 0.0, %v1166
        %1168 = vmatmul.bf16.gmra.mxu0 %v952
        %v1169 = vpop.f32.mrf.mxu0
        %v1170 = vadd.f32 0.0, %v1169
        %v1171 = vpop.f32.mrf.mxu0
        %v1172 = vadd.f32 0.0, %v1171
        %1173 = vmatmul.bf16.gmra.mxu0 %v953
        %v1174 = vpop.f32.mrf.mxu0
        %v1175 = vadd.f32 0.0, %v1174
        %v1176 = vpop.f32.mrf.mxu0
        %v1177 = vadd.f32 0.0, %v1176
        %1178 = vmatmul.bf16.gmra.mxu0 %v954
        %v1179 = vpop.f32.mrf.mxu0
        %v1180 = vadd.f32 0.0, %v1179
        %v1181 = vpop.f32.mrf.mxu0
        %v1182 = vadd.f32 0.0, %v1181
        %1183 = vmatmul.bf16.gmra.mxu0 %v955
        %v1184 = vpop.f32.mrf.mxu0
        %v1185 = vadd.f32 0.0, %v1184
        %v1186 = vpop.f32.mrf.mxu0
        %v1187 = vadd.f32 0.0, %v1186
        %1188 = vmatmul.bf16.gmra.mxu0 %v956
        %v1189 = vpop.f32.mrf.mxu0
        %v1190 = vadd.f32 0.0, %v1189
        %v1191 = vpop.f32.mrf.mxu0
        %v1192 = vadd.f32 0.0, %v1191
        %1193 = vmatmul.bf16.gmra.mxu0 %v957
        %v1194 = vpop.f32.mrf.mxu0
        %v1195 = vadd.f32 0.0, %v1194
        %v1196 = vpop.f32.mrf.mxu0
        %v1197 = vadd.f32 0.0, %v1196
        %1198 = vmatmul.bf16.gmra.mxu0 %v958
        %v1199 = vpop.f32.mrf.mxu0
        %v1200 = vadd.f32 0.0, %v1199
        %v1201 = vpop.f32.mrf.mxu0
        %v1202 = vadd.f32 0.0, %v1201
        %1203 = vmatmul.bf16.gmra.mxu0 %v959
        %v1204 = vpop.f32.mrf.mxu0
        %v1205 = vadd.f32 0.0, %v1204
        %v1206 = vpop.f32.mrf.mxu0
        %v1207 = vadd.f32 0.0, %v1206
        %1208 = vdwg.mxu0
        %v1209 = vadd.f32 %v656, %v1050
        %v1210 = vadd.f32 %v657, %v1052
        %v1211 = vadd.f32 %v658, %v1055
        %v1212 = vadd.f32 %v659, %v1057
        %v1213 = vadd.f32 %v660, %v1060
        %v1214 = vadd.f32 %v661, %v1062
        %v1215 = vadd.f32 %v662, %v1065
        %v1216 = vadd.f32 %v663, %v1067
        %v1217 = vadd.f32 %v664, %v1070
        %v1218 = vadd.f32 %v665, %v1072
        %v1219 = vadd.f32 %v666, %v1075
        %v1220 = vadd.f32 %v667, %v1077
        %v1221 = vadd.f32 %v668, %v1080
        %v1222 = vadd.f32 %v669, %v1082
        %v1223 = vadd.f32 %v670, %v1085
        %v1224 = vadd.f32 %v671, %v1087
        %v1225 = vadd.f32 %v672, %v1090
        %v1226 = vadd.f32 %v673, %v1092
        %v1227 = vadd.f32 %v674, %v1095
        %v1228 = vadd.f32 %v675, %v1097
        %v1229 = vadd.f32 %v676, %v1100
        %v1230 = vadd.f32 %v677, %v1102
        %v1231 = vadd.f32 %v678, %v1105
        %v1232 = vadd.f32 %v679, %v1107
        %v1233 = vadd.f32 %v680, %v1110
        %v1234 = vadd.f32 %v681, %v1112
        %v1235 = vadd.f32 %v682, %v1115
        %v1236 = vadd.f32 %v683, %v1117
        %v1237 = vadd.f32 %v684, %v1120
        %v1238 = vadd.f32 %v685, %v1122
        %v1239 = vadd.f32 %v686, %v1125
        %v1240 = vadd.f32 %v687, %v1127
        %v1241 = vadd.f32 %v688, %v1130
        %v1242 = vadd.f32 %v689, %v1132
        %v1243 = vadd.f32 %v690, %v1135
        %v1244 = vadd.f32 %v691, %v1137
        %v1245 = vadd.f32 %v692, %v1140
        %v1246 = vadd.f32 %v693, %v1142
        %v1247 = vadd.f32 %v694, %v1145
        %v1248 = vadd.f32 %v695, %v1147
        %v1249 = vadd.f32 %v696, %v1150
        %v1250 = vadd.f32 %v697, %v1152
        %v1251 = vadd.f32 %v698, %v1155
        %v1252 = vadd.f32 %v699, %v1157
        %v1253 = vadd.f32 %v700, %v1160
        %v1254 = vadd.f32 %v701, %v1162
        %v1255 = vadd.f32 %v702, %v1165
        %v1256 = vadd.f32 %v703, %v1167
        %v1257 = vadd.f32 %v704, %v1170
        %v1258 = vadd.f32 %v705, %v1172
        %v1259 = vadd.f32 %v706, %v1175
        %v1260 = vadd.f32 %v707, %v1177
        %v1261 = vadd.f32 %v708, %v1180
        %v1262 = vadd.f32 %v709, %v1182
        %v1263 = vadd.f32 %v710, %v1185
        %v1264 = vadd.f32 %v711, %v1187
        %v1265 = vadd.f32 %v712, %v1190
        %v1266 = vadd.f32 %v713, %v1192
        %v1267 = vadd.f32 %v714, %v1195
        %v1268 = vadd.f32 %v715, %v1197
        %v1269 = vadd.f32 %v716, %v1200
        %v1270 = vadd.f32 %v717, %v1202
        %v1271 = vadd.f32 %v718, %v1205
        %v1272 = vadd.f32 %v719, %v1207
        %1273 = vst [vmem:[#allocation2] sm:$0xff] %v1209
        %1274 = vst [vmem:[#allocation2 + $0x8] sm:$0xff] %v1210
        %1275 = vst [vmem:[#allocation2 + $0x10] sm:$0xff] %v1211
        %1276 = vst [vmem:[#allocation2 + $0x18] sm:$0xff] %v1212
        %1277 = vst [vmem:[#allocation2 + $0x20] sm:$0xff] %v1213
        %1278 = vst [vmem:[#allocation2 + $0x28] sm:$0xff] %v1214
        %1279 = vst [vmem:[#allocation2 + $0x30] sm:$0xff] %v1215
        %1280 = vst [vmem:[#allocation2 + $0x38] sm:$0xff] %v1216
        %1281 = vst [vmem:[#allocation2 + $0x40] sm:$0xff] %v1217
        %1282 = vst [vmem:[#allocation2 + $0x48] sm:$0xff] %v1218
        %1283 = vst [vmem:[#allocation2 + $0x50] sm:$0xff] %v1219
        %1284 = vst [vmem:[#allocation2 + $0x58] sm:$0xff] %v1220
        %1285 = vst [vmem:[#allocation2 + $0x60] sm:$0xff] %v1221
        %1286 = vst [vmem:[#allocation2 + $0x68] sm:$0xff] %v1222
        %1287 = vst [vmem:[#allocation2 + $0x70] sm:$0xff] %v1223
        %1288 = vst [vmem:[#allocation2 + $0x78] sm:$0xff] %v1224
        %1289 = vst [vmem:[#allocation2 + $0x80] sm:$0xff] %v1225
        %1290 = vst [vmem:[#allocation2 + $0x88] sm:$0xff] %v1226
        %1291 = vst [vmem:[#allocation2 + $0x90] sm:$0xff] %v1227
        %1292 = vst [vmem:[#allocation2 + $0x98] sm:$0xff] %v1228
        %1293 = vst [vmem:[#allocation2 + $0xa0] sm:$0xff] %v1229
        %1294 = vst [vmem:[#allocation2 + $0xa8] sm:$0xff] %v1230
        %1295 = vst [vmem:[#allocation2 + $0xb0] sm:$0xff] %v1231
        %1296 = vst [vmem:[#allocation2 + $0xb8] sm:$0xff] %v1232
        %1297 = vst [vmem:[#allocation2 + $0xc0] sm:$0xff] %v1233
        %1298 = vst [vmem:[#allocation2 + $0xc8] sm:$0xff] %v1234
        %1299 = vst [vmem:[#allocation2 + $0xd0] sm:$0xff] %v1235
        %1300 = vst [vmem:[#allocation2 + $0xd8] sm:$0xff] %v1236
        %1301 = vst [vmem:[#allocation2 + $0xe0] sm:$0xff] %v1237
        %1302 = vst [vmem:[#allocation2 + $0xe8] sm:$0xff] %v1238
        %1303 = vst [vmem:[#allocation2 + $0xf0] sm:$0xff] %v1239
        %1304 = vst [vmem:[#allocation2 + $0xf8] sm:$0xff] %v1240
        %1305 = vst [vmem:[#allocation2 + $0x100] sm:$0xff] %v1241
        %1306 = vst [vmem:[#allocation2 + $0x108] sm:$0xff] %v1242
        %1307 = vst [vmem:[#allocation2 + $0x110] sm:$0xff] %v1243
        %1308 = vst [vmem:[#allocation2 + $0x118] sm:$0xff] %v1244
        %1309 = vst [vmem:[#allocation2 + $0x120] sm:$0xff] %v1245
        %1310 = vst [vmem:[#allocation2 + $0x128] sm:$0xff] %v1246
        %1311 = vst [vmem:[#allocation2 + $0x130] sm:$0xff] %v1247
        %1312 = vst [vmem:[#allocation2 + $0x138] sm:$0xff] %v1248
        %1313 = vst [vmem:[#allocation2 + $0x140] sm:$0xff] %v1249
        %1314 = vst [vmem:[#allocation2 + $0x148] sm:$0xff] %v1250
        %1315 = vst [vmem:[#allocation2 + $0x150] sm:$0xff] %v1251
        %1316 = vst [vmem:[#allocation2 + $0x158] sm:$0xff] %v1252
        %1317 = vst [vmem:[#allocation2 + $0x160] sm:$0xff] %v1253
        %1318 = vst [vmem:[#allocation2 + $0x168] sm:$0xff] %v1254
        %1319 = vst [vmem:[#allocation2 + $0x170] sm:$0xff] %v1255
        %1320 = vst [vmem:[#allocation2 + $0x178] sm:$0xff] %v1256
        %1321 = vst [vmem:[#allocation2 + $0x180] sm:$0xff] %v1257
        %1322 = vst [vmem:[#allocation2 + $0x188] sm:$0xff] %v1258
        %1323 = vst [vmem:[#allocation2 + $0x190] sm:$0xff] %v1259
        %1324 = vst [vmem:[#allocation2 + $0x198] sm:$0xff] %v1260
        %1325 = vst [vmem:[#allocation2 + $0x1a0] sm:$0xff] %v1261
        %1326 = vst [vmem:[#allocation2 + $0x1a8] sm:$0xff] %v1262
        %1327 = vst [vmem:[#allocation2 + $0x1b0] sm:$0xff] %v1263
        %1328 = vst [vmem:[#allocation2 + $0x1b8] sm:$0xff] %v1264
        %1329 = vst [vmem:[#allocation2 + $0x1c0] sm:$0xff] %v1265
        %1330 = vst [vmem:[#allocation2 + $0x1c8] sm:$0xff] %v1266
        %1331 = vst [vmem:[#allocation2 + $0x1d0] sm:$0xff] %v1267
        %1332 = vst [vmem:[#allocation2 + $0x1d8] sm:$0xff] %v1268
        %1333 = vst [vmem:[#allocation2 + $0x1e0] sm:$0xff] %v1269
        %1334 = vst [vmem:[#allocation2 + $0x1e8] sm:$0xff] %v1270
        %1335 = vst [vmem:[#allocation2 + $0x1f0] sm:$0xff] %v1271
        %1336 = vst [vmem:[#allocation2 + $0x1f8] sm:$0xff] %v1272
        %p1337 = scmp.eq.s32.totalorder %s22, 4
        // Predicated region
        $region82: #{net_forward.11} parent=72 // pred_check
          %p1338 = pneg %p1337
        $region83: #{net_forward.11} parent=72 // pred_check_branch
          %1340 = sbr.rel (%p1338) target = $region85
        $region84: #{net_forward.11} parent=72 // pred_region
          %v1341 = vld [vmem:[#allocation2] sm:$0xff]
          %v1342 = vld [vmem:[#allocation2 + $0x8] sm:$0xff]
          %v1343 = vld [vmem:[#allocation2 + $0x10] sm:$0xff]
          %v1344 = vld [vmem:[#allocation2 + $0x18] sm:$0xff]
          %v1345 = vld [vmem:[#allocation2 + $0x20] sm:$0xff]
          %v1346 = vld [vmem:[#allocation2 + $0x28] sm:$0xff]
          %v1347 = vld [vmem:[#allocation2 + $0x30] sm:$0xff]
          %v1348 = vld [vmem:[#allocation2 + $0x38] sm:$0xff]
          %v1349 = vld [vmem:[#allocation2 + $0x40] sm:$0xff]
          %v1350 = vld [vmem:[#allocation2 + $0x48] sm:$0xff]
          %v1351 = vld [vmem:[#allocation2 + $0x50] sm:$0xff]
          %v1352 = vld [vmem:[#allocation2 + $0x58] sm:$0xff]
          %v1353 = vld [vmem:[#allocation2 + $0x60] sm:$0xff]
          %v1354 = vld [vmem:[#allocation2 + $0x68] sm:$0xff]
          %v1355 = vld [vmem:[#allocation2 + $0x70] sm:$0xff]
          %v1356 = vld [vmem:[#allocation2 + $0x78] sm:$0xff]
          %v1357 = vld [vmem:[#allocation2 + $0x80] sm:$0xff]
          %v1358 = vld [vmem:[#allocation2 + $0x88] sm:$0xff]
          %v1359 = vld [vmem:[#allocation2 + $0x90] sm:$0xff]
          %v1360 = vld [vmem:[#allocation2 + $0x98] sm:$0xff]
          %v1361 = vld [vmem:[#allocation2 + $0xa0] sm:$0xff]
          %v1362 = vld [vmem:[#allocation2 + $0xa8] sm:$0xff]
          %v1363 = vld [vmem:[#allocation2 + $0xb0] sm:$0xff]
          %v1364 = vld [vmem:[#allocation2 + $0xb8] sm:$0xff]
          %v1365 = vld [vmem:[#allocation2 + $0xc0] sm:$0xff]
          %v1366 = vld [vmem:[#allocation2 + $0xc8] sm:$0xff]
          %v1367 = vld [vmem:[#allocation2 + $0xd0] sm:$0xff]
          %v1368 = vld [vmem:[#allocation2 + $0xd8] sm:$0xff]
          %v1369 = vld [vmem:[#allocation2 + $0xe0] sm:$0xff]
          %v1370 = vld [vmem:[#allocation2 + $0xe8] sm:$0xff]
          %v1371 = vld [vmem:[#allocation2 + $0xf0] sm:$0xff]
          %v1372 = vld [vmem:[#allocation2 + $0xf8] sm:$0xff]
          %v1373 = vld [vmem:[#allocation2 + $0x100] sm:$0xff]
          %v1374 = vld [vmem:[#allocation2 + $0x108] sm:$0xff]
          %v1375 = vld [vmem:[#allocation2 + $0x110] sm:$0xff]
          %v1376 = vld [vmem:[#allocation2 + $0x118] sm:$0xff]
          %v1377 = vld [vmem:[#allocation2 + $0x120] sm:$0xff]
          %v1378 = vld [vmem:[#allocation2 + $0x128] sm:$0xff]
          %v1379 = vld [vmem:[#allocation2 + $0x130] sm:$0xff]
          %v1380 = vld [vmem:[#allocation2 + $0x138] sm:$0xff]
          %v1381 = vld [vmem:[#allocation2 + $0x140] sm:$0xff]
          %v1382 = vld [vmem:[#allocation2 + $0x148] sm:$0xff]
          %v1383 = vld [vmem:[#allocation2 + $0x150] sm:$0xff]
          %v1384 = vld [vmem:[#allocation2 + $0x158] sm:$0xff]
          %v1385 = vld [vmem:[#allocation2 + $0x160] sm:$0xff]
          %v1386 = vld [vmem:[#allocation2 + $0x168] sm:$0xff]
          %v1387 = vld [vmem:[#allocation2 + $0x170] sm:$0xff]
          %v1388 = vld [vmem:[#allocation2 + $0x178] sm:$0xff]
          %v1389 = vld [vmem:[#allocation2 + $0x180] sm:$0xff]
          %v1390 = vld [vmem:[#allocation2 + $0x188] sm:$0xff]
          %v1391 = vld [vmem:[#allocation2 + $0x190] sm:$0xff]
          %v1392 = vld [vmem:[#allocation2 + $0x198] sm:$0xff]
          %v1393 = vld [vmem:[#allocation2 + $0x1a0] sm:$0xff]
          %v1394 = vld [vmem:[#allocation2 + $0x1a8] sm:$0xff]
          %v1395 = vld [vmem:[#allocation2 + $0x1b0] sm:$0xff]
          %v1396 = vld [vmem:[#allocation2 + $0x1b8] sm:$0xff]
          %v1397 = vld [vmem:[#allocation2 + $0x1c0] sm:$0xff]
          %v1398 = vld [vmem:[#allocation2 + $0x1c8] sm:$0xff]
          %v1399 = vld [vmem:[#allocation2 + $0x1d0] sm:$0xff]
          %v1400 = vld [vmem:[#allocation2 + $0x1d8] sm:$0xff]
          %v1401 = vld [vmem:[#allocation2 + $0x1e0] sm:$0xff]
          %v1402 = vld [vmem:[#allocation2 + $0x1e8] sm:$0xff]
          %v1403 = vld [vmem:[#allocation2 + $0x1f0] sm:$0xff]
          %v1404 = vld [vmem:[#allocation2 + $0x1f8] sm:$0xff]
          %v1405 = vld [vmem:[%s575] sm:$0x1]
          %v1407 = vperm.slane %v1405, 0
          %v1409 = vmul.f32 %v1341, %v1407
          %v1410 = vmul.f32 %v1342, %v1407
          %v1411 = vmul.f32 %v1343, %v1407
          %v1412 = vmul.f32 %v1344, %v1407
          %v1413 = vmul.f32 %v1345, %v1407
          %v1414 = vmul.f32 %v1346, %v1407
          %v1415 = vmul.f32 %v1347, %v1407
          %v1416 = vmul.f32 %v1348, %v1407
          %v1417 = vmul.f32 %v1349, %v1407
          %v1418 = vmul.f32 %v1350, %v1407
          %v1419 = vmul.f32 %v1351, %v1407
          %v1420 = vmul.f32 %v1352, %v1407
          %v1421 = vmul.f32 %v1353, %v1407
          %v1422 = vmul.f32 %v1354, %v1407
          %v1423 = vmul.f32 %v1355, %v1407
          %v1424 = vmul.f32 %v1356, %v1407
          %v1425 = vmul.f32 %v1357, %v1407
          %v1426 = vmul.f32 %v1358, %v1407
          %v1427 = vmul.f32 %v1359, %v1407
          %v1428 = vmul.f32 %v1360, %v1407
          %v1429 = vmul.f32 %v1361, %v1407
          %v1430 = vmul.f32 %v1362, %v1407
          %v1431 = vmul.f32 %v1363, %v1407
          %v1432 = vmul.f32 %v1364, %v1407
          %v1433 = vmul.f32 %v1365, %v1407
          %v1434 = vmul.f32 %v1366, %v1407
          %v1435 = vmul.f32 %v1367, %v1407
          %v1436 = vmul.f32 %v1368, %v1407
          %v1437 = vmul.f32 %v1369, %v1407
          %v1438 = vmul.f32 %v1370, %v1407
          %v1439 = vmul.f32 %v1371, %v1407
          %v1440 = vmul.f32 %v1372, %v1407
          %v1441 = vmul.f32 %v1373, %v1407
          %v1442 = vmul.f32 %v1374, %v1407
          %v1443 = vmul.f32 %v1375, %v1407
          %v1444 = vmul.f32 %v1376, %v1407
          %v1445 = vmul.f32 %v1377, %v1407
          %v1446 = vmul.f32 %v1378, %v1407
          %v1447 = vmul.f32 %v1379, %v1407
          %v1448 = vmul.f32 %v1380, %v1407
          %v1449 = vmul.f32 %v1381, %v1407
          %v1450 = vmul.f32 %v1382, %v1407
          %v1451 = vmul.f32 %v1383, %v1407
          %v1452 = vmul.f32 %v1384, %v1407
          %v1453 = vmul.f32 %v1385, %v1407
          %v1454 = vmul.f32 %v1386, %v1407
          %v1455 = vmul.f32 %v1387, %v1407
          %v1456 = vmul.f32 %v1388, %v1407
          %v1457 = vmul.f32 %v1389, %v1407
          %v1458 = vmul.f32 %v1390, %v1407
          %v1459 = vmul.f32 %v1391, %v1407
          %v1460 = vmul.f32 %v1392, %v1407
          %v1461 = vmul.f32 %v1393, %v1407
          %v1462 = vmul.f32 %v1394, %v1407
          %v1463 = vmul.f32 %v1395, %v1407
          %v1464 = vmul.f32 %v1396, %v1407
          %v1465 = vmul.f32 %v1397, %v1407
          %v1466 = vmul.f32 %v1398, %v1407
          %v1467 = vmul.f32 %v1399, %v1407
          %v1468 = vmul.f32 %v1400, %v1407
          %v1469 = vmul.f32 %v1401, %v1407
          %v1470 = vmul.f32 %v1402, %v1407
          %v1471 = vmul.f32 %v1403, %v1407
          %v1472 = vmul.f32 %v1404, %v1407
          %v1473 = vld [vmem:[%s578] sm:$0x1]
          %v1475 = vperm.slane %v1473, 0
          %v1477 = vadd.f32 %v1409, %v1475
          %v1478 = vadd.f32 %v1410, %v1475
          %v1479 = vadd.f32 %v1411, %v1475
          %v1480 = vadd.f32 %v1412, %v1475
          %v1481 = vadd.f32 %v1413, %v1475
          %v1482 = vadd.f32 %v1414, %v1475
          %v1483 = vadd.f32 %v1415, %v1475
          %v1484 = vadd.f32 %v1416, %v1475
          %v1485 = vadd.f32 %v1417, %v1475
          %v1486 = vadd.f32 %v1418, %v1475
          %v1487 = vadd.f32 %v1419, %v1475
          %v1488 = vadd.f32 %v1420, %v1475
          %v1489 = vadd.f32 %v1421, %v1475
          %v1490 = vadd.f32 %v1422, %v1475
          %v1491 = vadd.f32 %v1423, %v1475
          %v1492 = vadd.f32 %v1424, %v1475
          %v1493 = vadd.f32 %v1425, %v1475
          %v1494 = vadd.f32 %v1426, %v1475
          %v1495 = vadd.f32 %v1427, %v1475
          %v1496 = vadd.f32 %v1428, %v1475
          %v1497 = vadd.f32 %v1429, %v1475
          %v1498 = vadd.f32 %v1430, %v1475
          %v1499 = vadd.f32 %v1431, %v1475
          %v1500 = vadd.f32 %v1432, %v1475
          %v1501 = vadd.f32 %v1433, %v1475
          %v1502 = vadd.f32 %v1434, %v1475
          %v1503 = vadd.f32 %v1435, %v1475
          %v1504 = vadd.f32 %v1436, %v1475
          %v1505 = vadd.f32 %v1437, %v1475
          %v1506 = vadd.f32 %v1438, %v1475
          %v1507 = vadd.f32 %v1439, %v1475
          %v1508 = vadd.f32 %v1440, %v1475
          %v1509 = vadd.f32 %v1441, %v1475
          %v1510 = vadd.f32 %v1442, %v1475
          %v1511 = vadd.f32 %v1443, %v1475
          %v1512 = vadd.f32 %v1444, %v1475
          %v1513 = vadd.f32 %v1445, %v1475
          %v1514 = vadd.f32 %v1446, %v1475
          %v1515 = vadd.f32 %v1447, %v1475
          %v1516 = vadd.f32 %v1448, %v1475
          %v1517 = vadd.f32 %v1449, %v1475
          %v1518 = vadd.f32 %v1450, %v1475
          %v1519 = vadd.f32 %v1451, %v1475
          %v1520 = vadd.f32 %v1452, %v1475
          %v1521 = vadd.f32 %v1453, %v1475
          %v1522 = vadd.f32 %v1454, %v1475
          %v1523 = vadd.f32 %v1455, %v1475
          %v1524 = vadd.f32 %v1456, %v1475
          %v1525 = vadd.f32 %v1457, %v1475
          %v1526 = vadd.f32 %v1458, %v1475
          %v1527 = vadd.f32 %v1459, %v1475
          %v1528 = vadd.f32 %v1460, %v1475
          %v1529 = vadd.f32 %v1461, %v1475
          %v1530 = vadd.f32 %v1462, %v1475
          %v1531 = vadd.f32 %v1463, %v1475
          %v1532 = vadd.f32 %v1464, %v1475
          %v1533 = vadd.f32 %v1465, %v1475
          %v1534 = vadd.f32 %v1466, %v1475
          %v1535 = vadd.f32 %v1467, %v1475
          %v1536 = vadd.f32 %v1468, %v1475
          %v1537 = vadd.f32 %v1469, %v1475
          %v1538 = vadd.f32 %v1470, %v1475
          %v1539 = vadd.f32 %v1471, %v1475
          %v1540 = vadd.f32 %v1472, %v1475
          %v1541 = vmax.f32 %v1477, 0.0
          %v1542 = vmax.f32 %v1478, 0.0
          %v1543 = vmax.f32 %v1479, 0.0
          %v1544 = vmax.f32 %v1480, 0.0
          %v1545 = vmax.f32 %v1481, 0.0
          %v1546 = vmax.f32 %v1482, 0.0
          %v1547 = vmax.f32 %v1483, 0.0
          %v1548 = vmax.f32 %v1484, 0.0
          %v1549 = vmax.f32 %v1485, 0.0
          %v1550 = vmax.f32 %v1486, 0.0
          %v1551 = vmax.f32 %v1487, 0.0
          %v1552 = vmax.f32 %v1488, 0.0
          %v1553 = vmax.f32 %v1489, 0.0
          %v1554 = vmax.f32 %v1490, 0.0
          %v1555 = vmax.f32 %v1491, 0.0
          %v1556 = vmax.f32 %v1492, 0.0
          %v1557 = vmax.f32 %v1493, 0.0
          %v1558 = vmax.f32 %v1494, 0.0
          %v1559 = vmax.f32 %v1495, 0.0
          %v1560 = vmax.f32 %v1496, 0.0
          %v1561 = vmax.f32 %v1497, 0.0
          %v1562 = vmax.f32 %v1498, 0.0
          %v1563 = vmax.f32 %v1499, 0.0
          %v1564 = vmax.f32 %v1500, 0.0
          %v1565 = vmax.f32 %v1501, 0.0
          %v1566 = vmax.f32 %v1502, 0.0
          %v1567 = vmax.f32 %v1503, 0.0
          %v1568 = vmax.f32 %v1504, 0.0
          %v1569 = vmax.f32 %v1505, 0.0
          %v1570 = vmax.f32 %v1506, 0.0
          %v1571 = vmax.f32 %v1507, 0.0
          %v1572 = vmax.f32 %v1508, 0.0
          %v1573 = vmax.f32 %v1509, 0.0
          %v1574 = vmax.f32 %v1510, 0.0
          %v1575 = vmax.f32 %v1511, 0.0
          %v1576 = vmax.f32 %v1512, 0.0
          %v1577 = vmax.f32 %v1513, 0.0
          %v1578 = vmax.f32 %v1514, 0.0
          %v1579 = vmax.f32 %v1515, 0.0
          %v1580 = vmax.f32 %v1516, 0.0
          %v1581 = vmax.f32 %v1517, 0.0
          %v1582 = vmax.f32 %v1518, 0.0
          %v1583 = vmax.f32 %v1519, 0.0
          %v1584 = vmax.f32 %v1520, 0.0
          %v1585 = vmax.f32 %v1521, 0.0
          %v1586 = vmax.f32 %v1522, 0.0
          %v1587 = vmax.f32 %v1523, 0.0
          %v1588 = vmax.f32 %v1524, 0.0
          %v1589 = vmax.f32 %v1525, 0.0
          %v1590 = vmax.f32 %v1526, 0.0
          %v1591 = vmax.f32 %v1527, 0.0
          %v1592 = vmax.f32 %v1528, 0.0
          %v1593 = vmax.f32 %v1529, 0.0
          %v1594 = vmax.f32 %v1530, 0.0
          %v1595 = vmax.f32 %v1531, 0.0
          %v1596 = vmax.f32 %v1532, 0.0
          %v1597 = vmax.f32 %v1533, 0.0
          %v1598 = vmax.f32 %v1534, 0.0
          %v1599 = vmax.f32 %v1535, 0.0
          %v1600 = vmax.f32 %v1536, 0.0
          %v1601 = vmax.f32 %v1537, 0.0
          %v1602 = vmax.f32 %v1538, 0.0
          %v1603 = vmax.f32 %v1539, 0.0
          %v1604 = vmax.f32 %v1540, 0.0
          %v1605 = vpack.c.bf16 %v1541, %v1541
          %v1606 = vpack.c.bf16 %v1542, %v1542
          %v1607 = vpack.c.bf16 %v1543, %v1543
          %v1608 = vpack.c.bf16 %v1544, %v1544
          %v1609 = vpack.c.bf16 %v1545, %v1545
          %v1610 = vpack.c.bf16 %v1546, %v1546
          %v1611 = vpack.c.bf16 %v1547, %v1547
          %v1612 = vpack.c.bf16 %v1548, %v1548
          %v1613 = vpack.c.bf16 %v1549, %v1549
          %v1614 = vpack.c.bf16 %v1550, %v1550
          %v1615 = vpack.c.bf16 %v1551, %v1551
          %v1616 = vpack.c.bf16 %v1552, %v1552
          %v1617 = vpack.c.bf16 %v1553, %v1553
          %v1618 = vpack.c.bf16 %v1554, %v1554
          %v1619 = vpack.c.bf16 %v1555, %v1555
          %v1620 = vpack.c.bf16 %v1556, %v1556
          %v1621 = vpack.c.bf16 %v1557, %v1557
          %v1622 = vpack.c.bf16 %v1558, %v1558
          %v1623 = vpack.c.bf16 %v1559, %v1559
          %v1624 = vpack.c.bf16 %v1560, %v1560
          %v1625 = vpack.c.bf16 %v1561, %v1561
          %v1626 = vpack.c.bf16 %v1562, %v1562
          %v1627 = vpack.c.bf16 %v1563, %v1563
          %v1628 = vpack.c.bf16 %v1564, %v1564
          %v1629 = vpack.c.bf16 %v1565, %v1565
          %v1630 = vpack.c.bf16 %v1566, %v1566
          %v1631 = vpack.c.bf16 %v1567, %v1567
          %v1632 = vpack.c.bf16 %v1568, %v1568
          %v1633 = vpack.c.bf16 %v1569, %v1569
          %v1634 = vpack.c.bf16 %v1570, %v1570
          %v1635 = vpack.c.bf16 %v1571, %v1571
          %v1636 = vpack.c.bf16 %v1572, %v1572
          %v1637 = vpack.c.bf16 %v1573, %v1573
          %v1638 = vpack.c.bf16 %v1574, %v1574
          %v1639 = vpack.c.bf16 %v1575, %v1575
          %v1640 = vpack.c.bf16 %v1576, %v1576
          %v1641 = vpack.c.bf16 %v1577, %v1577
          %v1642 = vpack.c.bf16 %v1578, %v1578
          %v1643 = vpack.c.bf16 %v1579, %v1579
          %v1644 = vpack.c.bf16 %v1580, %v1580
          %v1645 = vpack.c.bf16 %v1581, %v1581
          %v1646 = vpack.c.bf16 %v1582, %v1582
          %v1647 = vpack.c.bf16 %v1583, %v1583
          %v1648 = vpack.c.bf16 %v1584, %v1584
          %v1649 = vpack.c.bf16 %v1585, %v1585
          %v1650 = vpack.c.bf16 %v1586, %v1586
          %v1651 = vpack.c.bf16 %v1587, %v1587
          %v1652 = vpack.c.bf16 %v1588, %v1588
          %v1653 = vpack.c.bf16 %v1589, %v1589
          %v1654 = vpack.c.bf16 %v1590, %v1590
          %v1655 = vpack.c.bf16 %v1591, %v1591
          %v1656 = vpack.c.bf16 %v1592, %v1592
          %v1657 = vpack.c.bf16 %v1593, %v1593
          %v1658 = vpack.c.bf16 %v1594, %v1594
          %v1659 = vpack.c.bf16 %v1595, %v1595
          %v1660 = vpack.c.bf16 %v1596, %v1596
          %v1661 = vpack.c.bf16 %v1597, %v1597
          %v1662 = vpack.c.bf16 %v1598, %v1598
          %v1663 = vpack.c.bf16 %v1599, %v1599
          %v1664 = vpack.c.bf16 %v1600, %v1600
          %v1665 = vpack.c.bf16 %v1601, %v1601
          %v1666 = vpack.c.bf16 %v1602, %v1602
          %v1667 = vpack.c.bf16 %v1603, %v1603
          %v1668 = vpack.c.bf16 %v1604, %v1604
          %1669 = vst [vmem:[%s586] sm:$0xf] %v1605
          %1670 = vst [vmem:[%s586 + $0x4] sm:$0xf] %v1606
          %1671 = vst [vmem:[%s586 + $0x8] sm:$0xf] %v1607
          %1672 = vst [vmem:[%s586 + $0xc] sm:$0xf] %v1608
          %1673 = vst [vmem:[%s586 + $0x10] sm:$0xf] %v1609
          %1674 = vst [vmem:[%s586 + $0x14] sm:$0xf] %v1610
          %1675 = vst [vmem:[%s586 + $0x18] sm:$0xf] %v1611
          %1676 = vst [vmem:[%s586 + $0x1c] sm:$0xf] %v1612
          %1677 = vst [vmem:[%s586 + $0x20] sm:$0xf] %v1613
          %1678 = vst [vmem:[%s586 + $0x24] sm:$0xf] %v1614
          %1679 = vst [vmem:[%s586 + $0x28] sm:$0xf] %v1615
          %1680 = vst [vmem:[%s586 + $0x2c] sm:$0xf] %v1616
          %1681 = vst [vmem:[%s586 + $0x30] sm:$0xf] %v1617
          %1682 = vst [vmem:[%s586 + $0x34] sm:$0xf] %v1618
          %1683 = vst [vmem:[%s586 + $0x38] sm:$0xf] %v1619
          %1684 = vst [vmem:[%s586 + $0x3c] sm:$0xf] %v1620
          %1685 = vst [vmem:[%s586 + $0x40] sm:$0xf] %v1621
          %1686 = vst [vmem:[%s586 + $0x44] sm:$0xf] %v1622
          %1687 = vst [vmem:[%s586 + $0x48] sm:$0xf] %v1623
          %1688 = vst [vmem:[%s586 + $0x4c] sm:$0xf] %v1624
          %1689 = vst [vmem:[%s586 + $0x50] sm:$0xf] %v1625
          %1690 = vst [vmem:[%s586 + $0x54] sm:$0xf] %v1626
          %1691 = vst [vmem:[%s586 + $0x58] sm:$0xf] %v1627
          %1692 = vst [vmem:[%s586 + $0x5c] sm:$0xf] %v1628
          %1693 = vst [vmem:[%s586 + $0x60] sm:$0xf] %v1629
          %1694 = vst [vmem:[%s586 + $0x64] sm:$0xf] %v1630
          %1695 = vst [vmem:[%s586 + $0x68] sm:$0xf] %v1631
          %1696 = vst [vmem:[%s586 + $0x6c] sm:$0xf] %v1632
          %1697 = vst [vmem:[%s586 + $0x70] sm:$0xf] %v1633
          %1698 = vst [vmem:[%s586 + $0x74] sm:$0xf] %v1634
          %1699 = vst [vmem:[%s586 + $0x78] sm:$0xf] %v1635
          %1700 = vst [vmem:[%s586 + $0x7c] sm:$0xf] %v1636
          %1701 = vst [vmem:[%s586 + $0x80] sm:$0xf] %v1637
          %1702 = vst [vmem:[%s586 + $0x84] sm:$0xf] %v1638
          %1703 = vst [vmem:[%s586 + $0x88] sm:$0xf] %v1639
          %1704 = vst [vmem:[%s586 + $0x8c] sm:$0xf] %v1640
          %1705 = vst [vmem:[%s586 + $0x90] sm:$0xf] %v1641
          %1706 = vst [vmem:[%s586 + $0x94] sm:$0xf] %v1642
          %1707 = vst [vmem:[%s586 + $0x98] sm:$0xf] %v1643
          %1708 = vst [vmem:[%s586 + $0x9c] sm:$0xf] %v1644
          %1709 = vst [vmem:[%s586 + $0xa0] sm:$0xf] %v1645
          %1710 = vst [vmem:[%s586 + $0xa4] sm:$0xf] %v1646
          %1711 = vst [vmem:[%s586 + $0xa8] sm:$0xf] %v1647
          %1712 = vst [vmem:[%s586 + $0xac] sm:$0xf] %v1648
          %1713 = vst [vmem:[%s586 + $0xb0] sm:$0xf] %v1649
          %1714 = vst [vmem:[%s586 + $0xb4] sm:$0xf] %v1650
          %1715 = vst [vmem:[%s586 + $0xb8] sm:$0xf] %v1651
          %1716 = vst [vmem:[%s586 + $0xbc] sm:$0xf] %v1652
          %1717 = vst [vmem:[%s586 + $0xc0] sm:$0xf] %v1653
          %1718 = vst [vmem:[%s586 + $0xc4] sm:$0xf] %v1654
          %1719 = vst [vmem:[%s586 + $0xc8] sm:$0xf] %v1655
          %1720 = vst [vmem:[%s586 + $0xcc] sm:$0xf] %v1656
          %1721 = vst [vmem:[%s586 + $0xd0] sm:$0xf] %v1657
          %1722 = vst [vmem:[%s586 + $0xd4] sm:$0xf] %v1658
          %1723 = vst [vmem:[%s586 + $0xd8] sm:$0xf] %v1659
          %1724 = vst [vmem:[%s586 + $0xdc] sm:$0xf] %v1660
          %1725 = vst [vmem:[%s586 + $0xe0] sm:$0xf] %v1661
          %1726 = vst [vmem:[%s586 + $0xe4] sm:$0xf] %v1662
          %1727 = vst [vmem:[%s586 + $0xe8] sm:$0xf] %v1663
          %1728 = vst [vmem:[%s586 + $0xec] sm:$0xf] %v1664
          %1729 = vst [vmem:[%s586 + $0xf0] sm:$0xf] %v1665
          %1730 = vst [vmem:[%s586 + $0xf4] sm:$0xf] %v1666
          %1731 = vst [vmem:[%s586 + $0xf8] sm:$0xf] %v1667
          %1732 = vst [vmem:[%s586 + $0xfc] sm:$0xf] %v1668
        $region85: #{net_forward.11} parent=72 // pred_fallthru
          _
        %s1733 = smul.u32 64, %s20
        %p1734 = scmp.lt.s32.totalorder %s1733, 2559
        %s1735 = scalar_select %p1734, %s1733, 2559
        %p1736 = scmp.lt.s32.totalorder %s21, 0
        %s1737 = scalar_select %p1736, %s21, 0
        %s1738 = sadd.s32 %s1737, %s1735
        %s1739 = smul.addr %s1738, 4
        %s1740 = scalar_lea.vmem %s4, %s1739
        // Predicated region
        $region86: #{net_forward.11} parent=72 // pred_check
          %p1741 = pneg %p162
        $region87: #{net_forward.11} parent=72 // pred_check_branch
          %1743 = sbr.rel (%p1741) target = $region89
        $region88: #{net_forward.11} parent=72 // pred_region
          %s1744 = smul.u32 64, %s20
        $region89: #{net_forward.11} parent=72 // pred_fallthru
          _
      $region73: #{net_forward.11} parent=5 // pred_fallthru
        _
      %p1745 = scmp.le.s32.totalorder 2, %s10
      // Predicated region
      $region90: #{net_forward.11} parent=5 // pred_check
        %p1746 = pneg %p1745
      $region91: #{net_forward.11} parent=5 // pred_check_branch
        %1748 = sbr.rel (%p1746) target = $region93
      $region92: #{net_forward.11} parent=5 // pred_region
        %s1749 = ssub.s32 %s10, 2
        // Predicated region
        $region94: #{net_forward.11} parent=92 // pred_check
          %p1750 = pneg %p168
        $region95: #{net_forward.11} parent=92 // pred_check_branch
          %1752 = sbr.rel (%p1750) target = $region97
        $region96: #{net_forward.11} parent=92 // pred_region
          %s1753 = smul.u32 64, %s23
          %p1754 = scmp.lt.s32.totalorder %s1753, 2559
          %s1755 = scalar_select %p1754, %s1753, 2559
          %p1756 = scmp.lt.s32.totalorder %s24, 0
          %s1757 = scalar_select %p1756, %s24, 0
          %s1758 = sadd.s32 %s1757, %s1755
          %s1759 = smul.addr %s1758, 4
          %s1760 = scalar_lea.vmem %s4, %s1759
        $region97: #{net_forward.11} parent=92 // pred_fallthru
          _
      $region93: #{net_forward.11} parent=5 // pred_fallthru
        _
    $region6: #{net_forward.11} parent=1 // loop_footer
      %s14 = sadd.s32 1, %s10
    $region7: #{net_forward.11} parent=1 // loop_footer_branch
      %9 = sbr.rel target = $region3
    $region8: #{net_forward.11} parent=1 // loop_exit
      _

// kernel: net_forward.12
$region0: #{net_forward.12}
  #allocation0 [shape = 'u32[]', space=smem, size = 0x4, offset = 0x4, fixed_abs, tag = 'smem constant byte address 0x4 - core index']
  #allocation1 [shape = 'u32[72,128]{1,0:T(1,128)}', space=vmem, size = 0x9000, scoped, tag = 'internal scratch']
  %s0 = inlined_call_operand.vmem [shape: bf16[5120,128], index: 0, kind: input, shape index: {}]
  %s1 = inlined_call_operand.vmem [shape: bf16[5120,128], index: 1, kind: input, shape index: {}]
  %s2 = inlined_call_operand.vmem [shape: bf16[5120,128], index: 2, kind: input, shape index: {}]
  %s3 = inlined_call_operand.vmem [shape: bf16[5120,128], index: 3, kind: input, shape index: {}]
  %s4 = inlined_call_operand.vmem [shape: bf16[5120,128], index: 4, kind: output, shape index: {}]
  %s5 = sld [smem:[#allocation0]]
  $region49: #{net_forward.12} parent=0
    _
  %s7 = ssub.s32 1, %s5
  %s8 = scalar_select 0, %s7, %s5
  loop: start=0, step=1, limit=12
  $region2: #{net_forward.12} parent=0 // loop_pre_header
    _
  $region3: #{net_forward.12} parent=0 // loop_header
    %s10 = sphi 0, %s14
    %p11 = scmp.ge.s32.totalorder %s10, 12
    %s20 = sphi 0, %s22
    %s23 = sphi 0, %s20
    %s24 = sphi 0, %s23
    %s40 = sphi 0, %s24
    %s46 = sphi 0, %s48
    %s49 = sphi 0, %s46
    %s50 = sphi 0, %s49
    %s66 = sphi 0, %s50
    %s72 = sphi 0, %s74
    %s75 = sphi 0, %s72
    %s76 = sphi 0, %s75
    %s92 = sphi 0, %s76
    %s98 = sphi 0, %s100
    %s101 = sphi 0, %s98
    %s102 = sphi 0, %s101
    %s118 = sphi 0, %s102
    %s124 = sphi 0, %s126
    %s127 = sphi 0, %s124
    %s128 = sphi 0, %s127
    %s144 = sphi 0, %s128
  $region4: #{net_forward.12} parent=0 // loop_header_branch
    %13 = sbr.rel (%p11) target = $region8
  $region5: #{net_forward.12} parent=0 // loop_body
    %s15 = ssub.s32 %s10, 1
    %s16 = ssub.s32 %s10, 2
    %s17 = sadd.s32 %s10, 1
    %s18 = ssub.s32 %s10, %s17
    %p19 = scmp.eq.s32.totalorder %s18, 0
    %s21 = sadd.s32 %s20, 1
    %s22 = scalar_select %p19, %s20, %s21
    %p25 = pneg %p19
    %p26 = scmp.eq.s32.totalorder %s10, 9
    %p27 = por %p25, %p26
    %p28 = scmp.ne.s32.totalorder %s20, %s23
    %p29 = scmp.eq.s32.totalorder %s10, 0
    %p30 = por %p28, %p29
    %p31 = scmp.ne.s32.totalorder %s20, %s23
    %p32 = scmp.eq.s32.totalorder %s15, 9
    %p33 = por %p31, %p32
    %p34 = scmp.ne.s32.totalorder %s23, %s24
    %p35 = scmp.eq.s32.totalorder %s15, 0
    %p36 = por %p34, %p35
    %p37 = scmp.ne.s32.totalorder %s23, %s24
    %p38 = scmp.eq.s32.totalorder %s16, 9
    %p39 = por %p37, %p38
    %p41 = scmp.ne.s32.totalorder %s24, %s40
    %p42 = scmp.eq.s32.totalorder %s16, 0
    %p43 = por %p41, %p42
    %s44 = ssub.s32 %s10, %s17
    %p45 = scmp.eq.s32.totalorder %s44, 0
    %s47 = sadd.s32 %s46, 1
    %s48 = scalar_select %p45, %s46, %s47
    %p51 = pneg %p45
    %p52 = scmp.eq.s32.totalorder %s10, 9
    %p53 = por %p51, %p52
    %p54 = scmp.ne.s32.totalorder %s46, %s49
    %p55 = scmp.eq.s32.totalorder %s10, 0
    %p56 = por %p54, %p55
    %p57 = scmp.ne.s32.totalorder %s46, %s49
    %p58 = scmp.eq.s32.totalorder %s15, 9
    %p59 = por %p57, %p58
    %p60 = scmp.ne.s32.totalorder %s49, %s50
    %p61 = scmp.eq.s32.totalorder %s15, 0
    %p62 = por %p60, %p61
    %p63 = scmp.ne.s32.totalorder %s49, %s50
    %p64 = scmp.eq.s32.totalorder %s16, 9
    %p65 = por %p63, %p64
    %p67 = scmp.ne.s32.totalorder %s50, %s66
    %p68 = scmp.eq.s32.totalorder %s16, 0
    %p69 = por %p67, %p68
    %s70 = ssub.s32 %s10, %s17
    %p71 = scmp.eq.s32.totalorder %s70, 0
    %s73 = sadd.s32 %s72, 1
    %s74 = scalar_select %p71, %s72, %s73
    %p77 = pneg %p71
    %p78 = scmp.eq.s32.totalorder %s10, 9
    %p79 = por %p77, %p78
    %p80 = scmp.ne.s32.totalorder %s72, %s75
    %p81 = scmp.eq.s32.totalorder %s10, 0
    %p82 = por %p80, %p81
    %p83 = scmp.ne.s32.totalorder %s72, %s75
    %p84 = scmp.eq.s32.totalorder %s15, 9
    %p85 = por %p83, %p84
    %p86 = scmp.ne.s32.totalorder %s75, %s76
    %p87 = scmp.eq.s32.totalorder %s15, 0
    %p88 = por %p86, %p87
    %p89 = scmp.ne.s32.totalorder %s75, %s76
    %p90 = scmp.eq.s32.totalorder %s16, 9
    %p91 = por %p89, %p90
    %p93 = scmp.ne.s32.totalorder %s76, %s92
    %p94 = scmp.eq.s32.totalorder %s16, 0
    %p95 = por %p93, %p94
    %s96 = ssub.s32 %s10, %s17
    %p97 = scmp.eq.s32.totalorder %s96, 0
    %s99 = sadd.s32 %s98, 1
    %s100 = scalar_select %p97, %s98, %s99
    %p103 = pneg %p97
    %p104 = scmp.eq.s32.totalorder %s10, 9
    %p105 = por %p103, %p104
    %p106 = scmp.ne.s32.totalorder %s98, %s101
    %p107 = scmp.eq.s32.totalorder %s10, 0
    %p108 = por %p106, %p107
    %p109 = scmp.ne.s32.totalorder %s98, %s101
    %p110 = scmp.eq.s32.totalorder %s15, 9
    %p111 = por %p109, %p110
    %p112 = scmp.ne.s32.totalorder %s101, %s102
    %p113 = scmp.eq.s32.totalorder %s15, 0
    %p114 = por %p112, %p113
    %p115 = scmp.ne.s32.totalorder %s101, %s102
    %p116 = scmp.eq.s32.totalorder %s16, 9
    %p117 = por %p115, %p116
    %p119 = scmp.ne.s32.totalorder %s102, %s118
    %p120 = scmp.eq.s32.totalorder %s16, 0
    %p121 = por %p119, %p120
    %s122 = ssub.s32 %s10, %s17
    %p123 = scmp.eq.s32.totalorder %s122, 0
    %s125 = sadd.s32 %s124, 1
    %s126 = scalar_select %p123, %s124, %s125
    %p129 = pneg %p123
    %p130 = scmp.eq.s32.totalorder %s10, 9
    %p131 = por %p129, %p130
    %p132 = scmp.ne.s32.totalorder %s124, %s127
    %p133 = scmp.eq.s32.totalorder %s10, 0
    %p134 = por %p132, %p133
    %p135 = scmp.ne.s32.totalorder %s124, %s127
    %p136 = scmp.eq.s32.totalorder %s15, 9
    %p137 = por %p135, %p136
    %p138 = scmp.ne.s32.totalorder %s127, %s128
    %p139 = scmp.eq.s32.totalorder %s15, 0
    %p140 = por %p138, %p139
    %p141 = scmp.ne.s32.totalorder %s127, %s128
    %p142 = scmp.eq.s32.totalorder %s16, 9
    %p143 = por %p141, %p142
    %p145 = scmp.ne.s32.totalorder %s128, %s144
    %p146 = scmp.eq.s32.totalorder %s16, 0
    %p147 = por %p145, %p146
    %p148 = scmp.le.s32.totalorder 1, %s10
    %p149 = scmp.lt.s32.totalorder %s10, 11
    %p150 = pnand %p148, %p149
    %p151 = pneg %p150
    // Predicated region
    $region9: #{net_forward.12} parent=5 // pred_check
      _
    $region10: #{net_forward.12} parent=5 // pred_check_branch
      %153 = sbr.rel (%p150) target = $region12
    $region11: #{net_forward.12} parent=5 // pred_region
      %s154 = ssub.s32 %s10, 1
    $region12: #{net_forward.12} parent=5 // pred_fallthru
      _
    %p155 = scmp.lt.s32.totalorder %s10, 10
    // Predicated region
    $region13: #{net_forward.12} parent=5 // pred_check
      %p156 = pneg %p155
    $region14: #{net_forward.12} parent=5 // pred_check_branch
      %158 = sbr.rel (%p156) target = $region16
    $region15: #{net_forward.12} parent=5 // pred_region
      // Predicated region
      $region17: #{net_forward.12} parent=15 // pred_check
        %p159 = pneg %p30
      $region18: #{net_forward.12} parent=15 // pred_check_branch
        %161 = sbr.rel (%p159) target = $region20
      $region19: #{net_forward.12} parent=15 // pred_region
        %s162 = smul.u32 64, %s10
        %p163 = scmp.lt.s32.totalorder %s162, 639
        %s164 = scalar_select %p163, %s162, 639
        %s165 = smul.addr %s164, 4
        %s166 = scalar_lea.vmem %s0, %s165
        %s167 = smul.u32 64, %s10
      $region20: #{net_forward.12} parent=15 // pred_fallthru
        _
      // Predicated region
      $region21: #{net_forward.12} parent=15 // pred_check
        %p168 = pneg %p56
      $region22: #{net_forward.12} parent=15 // pred_check_branch
        %170 = sbr.rel (%p168) target = $region24
      $region23: #{net_forward.12} parent=15 // pred_region
        %s171 = smul.u32 64, %s10
        %p172 = scmp.lt.s32.totalorder %s171, 639
        %s173 = scalar_select %p172, %s171, 639
        %s174 = smul.addr %s173, 4
        %s175 = scalar_lea.vmem %s1, %s174
        %s176 = smul.u32 64, %s10
      $region24: #{net_forward.12} parent=15 // pred_fallthru
        _
      // Predicated region
      $region25: #{net_forward.12} parent=15 // pred_check
        %p177 = pneg %p82
      $region26: #{net_forward.12} parent=15 // pred_check_branch
        %179 = sbr.rel (%p177) target = $region28
      $region27: #{net_forward.12} parent=15 // pred_region
        %s180 = smul.u32 64, %s10
        %p181 = scmp.lt.s32.totalorder %s180, 639
        %s182 = scalar_select %p181, %s180, 639
        %s183 = smul.addr %s182, 4
        %s184 = scalar_lea.vmem %s2, %s183
        %s185 = smul.u32 64, %s10
      $region28: #{net_forward.12} parent=15 // pred_fallthru
        _
      // Predicated region
      $region29: #{net_forward.12} parent=15 // pred_check
        %p186 = pneg %p108
      $region30: #{net_forward.12} parent=15 // pred_check_branch
        %188 = sbr.rel (%p186) target = $region32
      $region31: #{net_forward.12} parent=15 // pred_region
        %s189 = smul.u32 64, %s10
        %p190 = scmp.lt.s32.totalorder %s189, 639
        %s191 = scalar_select %p190, %s189, 639
        %s192 = smul.addr %s191, 4
        %s193 = scalar_lea.vmem %s3, %s192
        %s194 = smul.u32 64, %s10
      $region32: #{net_forward.12} parent=15 // pred_fallthru
        _
    $region16: #{net_forward.12} parent=5 // pred_fallthru
      _
    %p195 = scmp.le.s32.totalorder 1, %s10
    %p196 = scmp.lt.s32.totalorder %s10, 11
    %p197 = pnand %p195, %p196
    %p198 = pneg %p197
    // Predicated region
    $region33: #{net_forward.12} parent=5 // pred_check
      _
    $region34: #{net_forward.12} parent=5 // pred_check_branch
      %200 = sbr.rel (%p197) target = $region36
    $region35: #{net_forward.12} parent=5 // pred_region
      %s201 = ssub.s32 %s10, 1
      %s202 = smul.u32 64, %s15
      %p203 = scmp.lt.s32.totalorder %s202, 639
      %s204 = scalar_select %p203, %s202, 639
      %s205 = smul.addr %s204, 4
      %s206 = scalar_lea.vmem %s0, %s205
      %p207 = pneg %p36
      %p208 = pneg %p33
      %s209 = smul.u32 64, %s15
      %p210 = scmp.lt.s32.totalorder %s209, 639
      %s211 = scalar_select %p210, %s209, 639
      %s212 = smul.addr %s211, 4
      %s213 = scalar_lea.vmem %s1, %s212
      %p214 = pneg %p62
      %p215 = pneg %p59
      %s216 = smul.u32 64, %s15
      %p217 = scmp.lt.s32.totalorder %s216, 639
      %s218 = scalar_select %p217, %s216, 639
      %s219 = smul.addr %s218, 4
      %s220 = scalar_lea.vmem %s2, %s219
      %p221 = pneg %p88
      %p222 = pneg %p85
      %s223 = smul.u32 64, %s15
      %p224 = scmp.lt.s32.totalorder %s223, 639
      %s225 = scalar_select %p224, %s223, 639
      %s226 = smul.addr %s225, 4
      %s227 = scalar_lea.vmem %s3, %s226
      %p228 = pneg %p114
      %p229 = pneg %p111
      %p230 = pneg %p140
      %p231 = pneg %p137
      %s232 = smul.u32 64, %s15
      %p233 = scmp.lt.s32.totalorder %s232, 639
      %s234 = scalar_select %p233, %s232, 639
      %s235 = smul.addr %s234, 4
      %s236 = scalar_lea.vmem %s4, %s235
      %s237 = smul.u32 64, %s15
      %p238 = scmp.lt.s32.totalorder %s237, 639
      %s239 = scalar_select %p238, %s237, 639
      %s240 = smul.addr %s239, 4
      %s241 = scalar_lea.vmem %s0, %s240
      %s242 = smul.u32 64, %s15
      %s243 = smul.u32 64, %s15
      %p244 = scmp.lt.s32.totalorder %s243, 639
      %s245 = scalar_select %p244, %s243, 639
      %s246 = smul.addr %s245, 4
      %s247 = scalar_lea.vmem %s1, %s246
      %s248 = smul.u32 64, %s15
      %s249 = smul.u32 64, %s15
      %p250 = scmp.lt.s32.totalorder %s249, 639
      %s251 = scalar_select %p250, %s249, 639
      %s252 = smul.addr %s251, 4
      %s253 = scalar_lea.vmem %s2, %s252
      %s254 = smul.u32 64, %s15
      %s255 = smul.u32 64, %s15
      %p256 = scmp.lt.s32.totalorder %s255, 639
      %s257 = scalar_select %p256, %s255, 639
      %s258 = smul.addr %s257, 4
      %s259 = scalar_lea.vmem %s3, %s258
      %s260 = smul.u32 64, %s15
      %s261 = smul.u32 64, %s15
      %p262 = scmp.lt.s32.totalorder %s261, 639
      %s263 = scalar_select %p262, %s261, 639
      %s264 = smul.addr %s263, 4
      %s265 = scalar_lea.vmem %s4, %s264
      %s266 = smul.u32 64, %s15
      %v267 = vld [vmem:[%s241] sm:$0xf]
      %v268 = vld [vmem:[%s241 + $0x4] sm:$0xf]
      %v269 = vld [vmem:[%s241 + $0x8] sm:$0xf]
      %v270 = vld [vmem:[%s241 + $0xc] sm:$0xf]
      %v271 = vld [vmem:[%s241 + $0x10] sm:$0xf]
      %v272 = vld [vmem:[%s241 + $0x14] sm:$0xf]
      %v273 = vld [vmem:[%s241 + $0x18] sm:$0xf]
      %v274 = vld [vmem:[%s241 + $0x1c] sm:$0xf]
      %v275 = vld [vmem:[%s241 + $0x20] sm:$0xf]
      %v276 = vld [vmem:[%s241 + $0x24] sm:$0xf]
      %v277 = vld [vmem:[%s241 + $0x28] sm:$0xf]
      %v278 = vld [vmem:[%s241 + $0x2c] sm:$0xf]
      %v279 = vld [vmem:[%s241 + $0x30] sm:$0xf]
      %v280 = vld [vmem:[%s241 + $0x34] sm:$0xf]
      %v281 = vld [vmem:[%s241 + $0x38] sm:$0xf]
      %v282 = vld [vmem:[%s241 + $0x3c] sm:$0xf]
      %v283 = vld [vmem:[%s241 + $0x40] sm:$0xf]
      %v284 = vld [vmem:[%s241 + $0x44] sm:$0xf]
      %v285 = vld [vmem:[%s241 + $0x48] sm:$0xf]
      %v286 = vld [vmem:[%s241 + $0x4c] sm:$0xf]
      %v287 = vld [vmem:[%s241 + $0x50] sm:$0xf]
      %v288 = vld [vmem:[%s241 + $0x54] sm:$0xf]
      %v289 = vld [vmem:[%s241 + $0x58] sm:$0xf]
      %v290 = vld [vmem:[%s241 + $0x5c] sm:$0xf]
      %v291 = vld [vmem:[%s241 + $0x60] sm:$0xf]
      %v292 = vld [vmem:[%s241 + $0x64] sm:$0xf]
      %v293 = vld [vmem:[%s241 + $0x68] sm:$0xf]
      %v294 = vld [vmem:[%s241 + $0x6c] sm:$0xf]
      %v295 = vld [vmem:[%s241 + $0x70] sm:$0xf]
      %v296 = vld [vmem:[%s241 + $0x74] sm:$0xf]
      %v297 = vld [vmem:[%s241 + $0x78] sm:$0xf]
      %v298 = vld [vmem:[%s241 + $0x7c] sm:$0xf]
      %v299 = vld [vmem:[%s241 + $0x80] sm:$0xf]
      %v300 = vld [vmem:[%s241 + $0x84] sm:$0xf]
      %v301 = vld [vmem:[%s241 + $0x88] sm:$0xf]
      %v302 = vld [vmem:[%s241 + $0x8c] sm:$0xf]
      %v303 = vld [vmem:[%s241 + $0x90] sm:$0xf]
      %v304 = vld [vmem:[%s241 + $0x94] sm:$0xf]
      %v305 = vld [vmem:[%s241 + $0x98] sm:$0xf]
      %v306 = vld [vmem:[%s241 + $0x9c] sm:$0xf]
      %v307 = vld [vmem:[%s241 + $0xa0] sm:$0xf]
      %v308 = vld [vmem:[%s241 + $0xa4] sm:$0xf]
      %v309 = vld [vmem:[%s241 + $0xa8] sm:$0xf]
      %v310 = vld [vmem:[%s241 + $0xac] sm:$0xf]
      %v311 = vld [vmem:[%s241 + $0xb0] sm:$0xf]
      %v312 = vld [vmem:[%s241 + $0xb4] sm:$0xf]
      %v313 = vld [vmem:[%s241 + $0xb8] sm:$0xf]
      %v314 = vld [vmem:[%s241 + $0xbc] sm:$0xf]
      %v315 = vld [vmem:[%s241 + $0xc0] sm:$0xf]
      %v316 = vld [vmem:[%s241 + $0xc4] sm:$0xf]
      %v317 = vld [vmem:[%s241 + $0xc8] sm:$0xf]
      %v318 = vld [vmem:[%s241 + $0xcc] sm:$0xf]
      %v319 = vld [vmem:[%s241 + $0xd0] sm:$0xf]
      %v320 = vld [vmem:[%s241 + $0xd4] sm:$0xf]
      %v321 = vld [vmem:[%s241 + $0xd8] sm:$0xf]
      %v322 = vld [vmem:[%s241 + $0xdc] sm:$0xf]
      %v323 = vld [vmem:[%s241 + $0xe0] sm:$0xf]
      %v324 = vld [vmem:[%s241 + $0xe4] sm:$0xf]
      %v325 = vld [vmem:[%s241 + $0xe8] sm:$0xf]
      %v326 = vld [vmem:[%s241 + $0xec] sm:$0xf]
      %v327 = vld [vmem:[%s241 + $0xf0] sm:$0xf]
      %v328 = vld [vmem:[%s241 + $0xf4] sm:$0xf]
      %v329 = vld [vmem:[%s241 + $0xf8] sm:$0xf]
      %v330 = vld [vmem:[%s241 + $0xfc] sm:$0xf]
      %v331 = vld [vmem:[%s247] sm:$0xf]
      %v332 = vld [vmem:[%s247 + $0x4] sm:$0xf]
      %v333 = vld [vmem:[%s247 + $0x8] sm:$0xf]
      %v334 = vld [vmem:[%s247 + $0xc] sm:$0xf]
      %v335 = vld [vmem:[%s247 + $0x10] sm:$0xf]
      %v336 = vld [vmem:[%s247 + $0x14] sm:$0xf]
      %v337 = vld [vmem:[%s247 + $0x18] sm:$0xf]
      %v338 = vld [vmem:[%s247 + $0x1c] sm:$0xf]
      %v339 = vld [vmem:[%s247 + $0x20] sm:$0xf]
      %v340 = vld [vmem:[%s247 + $0x24] sm:$0xf]
      %v341 = vld [vmem:[%s247 + $0x28] sm:$0xf]
      %v342 = vld [vmem:[%s247 + $0x2c] sm:$0xf]
      %v343 = vld [vmem:[%s247 + $0x30] sm:$0xf]
      %v344 = vld [vmem:[%s247 + $0x34] sm:$0xf]
      %v345 = vld [vmem:[%s247 + $0x38] sm:$0xf]
      %v346 = vld [vmem:[%s247 + $0x3c] sm:$0xf]
      %v347 = vld [vmem:[%s247 + $0x40] sm:$0xf]
      %v348 = vld [vmem:[%s247 + $0x44] sm:$0xf]
      %v349 = vld [vmem:[%s247 + $0x48] sm:$0xf]
      %v350 = vld [vmem:[%s247 + $0x4c] sm:$0xf]
      %v351 = vld [vmem:[%s247 + $0x50] sm:$0xf]
      %v352 = vld [vmem:[%s247 + $0x54] sm:$0xf]
      %v353 = vld [vmem:[%s247 + $0x58] sm:$0xf]
      %v354 = vld [vmem:[%s247 + $0x5c] sm:$0xf]
      %v355 = vld [vmem:[%s247 + $0x60] sm:$0xf]
      %v356 = vld [vmem:[%s247 + $0x64] sm:$0xf]
      %v357 = vld [vmem:[%s247 + $0x68] sm:$0xf]
      %v358 = vld [vmem:[%s247 + $0x6c] sm:$0xf]
      %v359 = vld [vmem:[%s247 + $0x70] sm:$0xf]
      %v360 = vld [vmem:[%s247 + $0x74] sm:$0xf]
      %v361 = vld [vmem:[%s247 + $0x78] sm:$0xf]
      %v362 = vld [vmem:[%s247 + $0x7c] sm:$0xf]
      %v363 = vld [vmem:[%s247 + $0x80] sm:$0xf]
      %v364 = vld [vmem:[%s247 + $0x84] sm:$0xf]
      %v365 = vld [vmem:[%s247 + $0x88] sm:$0xf]
      %v366 = vld [vmem:[%s247 + $0x8c] sm:$0xf]
      %v367 = vld [vmem:[%s247 + $0x90] sm:$0xf]
      %v368 = vld [vmem:[%s247 + $0x94] sm:$0xf]
      %v369 = vld [vmem:[%s247 + $0x98] sm:$0xf]
      %v370 = vld [vmem:[%s247 + $0x9c] sm:$0xf]
      %v371 = vld [vmem:[%s247 + $0xa0] sm:$0xf]
      %v372 = vld [vmem:[%s247 + $0xa4] sm:$0xf]
      %v373 = vld [vmem:[%s247 + $0xa8] sm:$0xf]
      %v374 = vld [vmem:[%s247 + $0xac] sm:$0xf]
      %v375 = vld [vmem:[%s247 + $0xb0] sm:$0xf]
      %v376 = vld [vmem:[%s247 + $0xb4] sm:$0xf]
      %v377 = vld [vmem:[%s247 + $0xb8] sm:$0xf]
      %v378 = vld [vmem:[%s247 + $0xbc] sm:$0xf]
      %v379 = vld [vmem:[%s247 + $0xc0] sm:$0xf]
      %v380 = vld [vmem:[%s247 + $0xc4] sm:$0xf]
      %v381 = vld [vmem:[%s247 + $0xc8] sm:$0xf]
      %v382 = vld [vmem:[%s247 + $0xcc] sm:$0xf]
      %v383 = vld [vmem:[%s247 + $0xd0] sm:$0xf]
      %v384 = vld [vmem:[%s247 + $0xd4] sm:$0xf]
      %v385 = vld [vmem:[%s247 + $0xd8] sm:$0xf]
      %v386 = vld [vmem:[%s247 + $0xdc] sm:$0xf]
      %v387 = vld [vmem:[%s247 + $0xe0] sm:$0xf]
      %v388 = vld [vmem:[%s247 + $0xe4] sm:$0xf]
      %v389 = vld [vmem:[%s247 + $0xe8] sm:$0xf]
      %v390 = vld [vmem:[%s247 + $0xec] sm:$0xf]
      %v391 = vld [vmem:[%s247 + $0xf0] sm:$0xf]
      %v392 = vld [vmem:[%s247 + $0xf4] sm:$0xf]
      %v393 = vld [vmem:[%s247 + $0xf8] sm:$0xf]
      %v394 = vld [vmem:[%s247 + $0xfc] sm:$0xf]
      %v395 = vunpack.c.l.bf16 %v267
      %v396 = vunpack.c.l.bf16 %v268
      %v397 = vunpack.c.l.bf16 %v269
      %v398 = vunpack.c.l.bf16 %v270
      %v399 = vunpack.c.l.bf16 %v271
      %v400 = vunpack.c.l.bf16 %v272
      %v401 = vunpack.c.l.bf16 %v273
      %v402 = vunpack.c.l.bf16 %v274
      %v403 = vunpack.c.l.bf16 %v275
      %v404 = vunpack.c.l.bf16 %v276
      %v405 = vunpack.c.l.bf16 %v277
      %v406 = vunpack.c.l.bf16 %v278
      %v407 = vunpack.c.l.bf16 %v279
      %v408 = vunpack.c.l.bf16 %v280
      %v409 = vunpack.c.l.bf16 %v281
      %v410 = vunpack.c.l.bf16 %v282
      %v411 = vunpack.c.l.bf16 %v283
      %v412 = vunpack.c.l.bf16 %v284
      %v413 = vunpack.c.l.bf16 %v285
      %v414 = vunpack.c.l.bf16 %v286
      %v415 = vunpack.c.l.bf16 %v287
      %v416 = vunpack.c.l.bf16 %v288
      %v417 = vunpack.c.l.bf16 %v289
      %v418 = vunpack.c.l.bf16 %v290
      %v419 = vunpack.c.l.bf16 %v291
      %v420 = vunpack.c.l.bf16 %v292
      %v421 = vunpack.c.l.bf16 %v293
      %v422 = vunpack.c.l.bf16 %v294
      %v423 = vunpack.c.l.bf16 %v295
      %v424 = vunpack.c.l.bf16 %v296
      %v425 = vunpack.c.l.bf16 %v297
      %v426 = vunpack.c.l.bf16 %v298
      %v427 = vunpack.c.l.bf16 %v299
      %v428 = vunpack.c.l.bf16 %v300
      %v429 = vunpack.c.l.bf16 %v301
      %v430 = vunpack.c.l.bf16 %v302
      %v431 = vunpack.c.l.bf16 %v303
      %v432 = vunpack.c.l.bf16 %v304
      %v433 = vunpack.c.l.bf16 %v305
      %v434 = vunpack.c.l.bf16 %v306
      %v435 = vunpack.c.l.bf16 %v307
      %v436 = vunpack.c.l.bf16 %v308
      %v437 = vunpack.c.l.bf16 %v309
      %v438 = vunpack.c.l.bf16 %v310
      %v439 = vunpack.c.l.bf16 %v311
      %v440 = vunpack.c.l.bf16 %v312
      %v441 = vunpack.c.l.bf16 %v313
      %v442 = vunpack.c.l.bf16 %v314
      %v443 = vunpack.c.l.bf16 %v315
      %v444 = vunpack.c.l.bf16 %v316
      %v445 = vunpack.c.l.bf16 %v317
      %v446 = vunpack.c.l.bf16 %v318
      %v447 = vunpack.c.l.bf16 %v319
      %v448 = vunpack.c.l.bf16 %v320
      %v449 = vunpack.c.l.bf16 %v321
      %v450 = vunpack.c.l.bf16 %v322
      %v451 = vunpack.c.l.bf16 %v323
      %v452 = vunpack.c.l.bf16 %v324
      %v453 = vunpack.c.l.bf16 %v325
      %v454 = vunpack.c.l.bf16 %v326
      %v455 = vunpack.c.l.bf16 %v327
      %v456 = vunpack.c.l.bf16 %v328
      %v457 = vunpack.c.l.bf16 %v329
      %v458 = vunpack.c.l.bf16 %v330
      %v459 = vunpack.c.l.bf16 %v331
      %v460 = vunpack.c.l.bf16 %v332
      %v461 = vunpack.c.l.bf16 %v333
      %v462 = vunpack.c.l.bf16 %v334
      %v463 = vunpack.c.l.bf16 %v335
      %v464 = vunpack.c.l.bf16 %v336
      %v465 = vunpack.c.l.bf16 %v337
      %v466 = vunpack.c.l.bf16 %v338
      %v467 = vunpack.c.l.bf16 %v339
      %v468 = vunpack.c.l.bf16 %v340
      %v469 = vunpack.c.l.bf16 %v341
      %v470 = vunpack.c.l.bf16 %v342
      %v471 = vunpack.c.l.bf16 %v343
      %v472 = vunpack.c.l.bf16 %v344
      %v473 = vunpack.c.l.bf16 %v345
      %v474 = vunpack.c.l.bf16 %v346
      %v475 = vunpack.c.l.bf16 %v347
      %v476 = vunpack.c.l.bf16 %v348
      %v477 = vunpack.c.l.bf16 %v349
      %v478 = vunpack.c.l.bf16 %v350
      %v479 = vunpack.c.l.bf16 %v351
      %v480 = vunpack.c.l.bf16 %v352
      %v481 = vunpack.c.l.bf16 %v353
      %v482 = vunpack.c.l.bf16 %v354
      %v483 = vunpack.c.l.bf16 %v355
      %v484 = vunpack.c.l.bf16 %v356
      %v485 = vunpack.c.l.bf16 %v357
      %v486 = vunpack.c.l.bf16 %v358
      %v487 = vunpack.c.l.bf16 %v359
      %v488 = vunpack.c.l.bf16 %v360
      %v489 = vunpack.c.l.bf16 %v361
      %v490 = vunpack.c.l.bf16 %v362
      %v491 = vunpack.c.l.bf16 %v363
      %v492 = vunpack.c.l.bf16 %v364
      %v493 = vunpack.c.l.bf16 %v365
      %v494 = vunpack.c.l.bf16 %v366
      %v495 = vunpack.c.l.bf16 %v367
      %v496 = vunpack.c.l.bf16 %v368
      %v497 = vunpack.c.l.bf16 %v369
      %v498 = vunpack.c.l.bf16 %v370
      %v499 = vunpack.c.l.bf16 %v371
      %v500 = vunpack.c.l.bf16 %v372
      %v501 = vunpack.c.l.bf16 %v373
      %v502 = vunpack.c.l.bf16 %v374
      %v503 = vunpack.c.l.bf16 %v375
      %v504 = vunpack.c.l.bf16 %v376
      %v505 = vunpack.c.l.bf16 %v377
      %v506 = vunpack.c.l.bf16 %v378
      %v507 = vunpack.c.l.bf16 %v379
      %v508 = vunpack.c.l.bf16 %v380
      %v509 = vunpack.c.l.bf16 %v381
      %v510 = vunpack.c.l.bf16 %v382
      %v511 = vunpack.c.l.bf16 %v383
      %v512 = vunpack.c.l.bf16 %v384
      %v513 = vunpack.c.l.bf16 %v385
      %v514 = vunpack.c.l.bf16 %v386
      %v515 = vunpack.c.l.bf16 %v387
      %v516 = vunpack.c.l.bf16 %v388
      %v517 = vunpack.c.l.bf16 %v389
      %v518 = vunpack.c.l.bf16 %v390
      %v519 = vunpack.c.l.bf16 %v391
      %v520 = vunpack.c.l.bf16 %v392
      %v521 = vunpack.c.l.bf16 %v393
      %v522 = vunpack.c.l.bf16 %v394
      %v523 = vmax.f32 %v395, %v459
      %v524 = vmax.f32 %v396, %v460
      %v525 = vmax.f32 %v397, %v461
      %v526 = vmax.f32 %v398, %v462
      %v527 = vmax.f32 %v399, %v463
      %v528 = vmax.f32 %v400, %v464
      %v529 = vmax.f32 %v401, %v465
      %v530 = vmax.f32 %v402, %v466
      %v531 = vmax.f32 %v403, %v467
      %v532 = vmax.f32 %v404, %v468
      %v533 = vmax.f32 %v405, %v469
      %v534 = vmax.f32 %v406, %v470
      %v535 = vmax.f32 %v407, %v471
      %v536 = vmax.f32 %v408, %v472
      %v537 = vmax.f32 %v409, %v473
      %v538 = vmax.f32 %v410, %v474
      %v539 = vmax.f32 %v411, %v475
      %v540 = vmax.f32 %v412, %v476
      %v541 = vmax.f32 %v413, %v477
      %v542 = vmax.f32 %v414, %v478
      %v543 = vmax.f32 %v415, %v479
      %v544 = vmax.f32 %v416, %v480
      %v545 = vmax.f32 %v417, %v481
      %v546 = vmax.f32 %v418, %v482
      %v547 = vmax.f32 %v419, %v483
      %v548 = vmax.f32 %v420, %v484
      %v549 = vmax.f32 %v421, %v485
      %v550 = vmax.f32 %v422, %v486
      %v551 = vmax.f32 %v423, %v487
      %v552 = vmax.f32 %v424, %v488
      %v553 = vmax.f32 %v425, %v489
      %v554 = vmax.f32 %v426, %v490
      %v555 = vmax.f32 %v427, %v491
      %v556 = vmax.f32 %v428, %v492
      %v557 = vmax.f32 %v429, %v493
      %v558 = vmax.f32 %v430, %v494
      %v559 = vmax.f32 %v431, %v495
      %v560 = vmax.f32 %v432, %v496
      %v561 = vmax.f32 %v433, %v497
      %v562 = vmax.f32 %v434, %v498
      %v563 = vmax.f32 %v435, %v499
      %v564 = vmax.f32 %v436, %v500
      %v565 = vmax.f32 %v437, %v501
      %v566 = vmax.f32 %v438, %v502
      %v567 = vmax.f32 %v439, %v503
      %v568 = vmax.f32 %v440, %v504
      %v569 = vmax.f32 %v441, %v505
      %v570 = vmax.f32 %v442, %v506
      %v571 = vmax.f32 %v443, %v507
      %v572 = vmax.f32 %v444, %v508
      %v573 = vmax.f32 %v445, %v509
      %v574 = vmax.f32 %v446, %v510
      %v575 = vmax.f32 %v447, %v511
      %v576 = vmax.f32 %v448, %v512
      %v577 = vmax.f32 %v449, %v513
      %v578 = vmax.f32 %v450, %v514
      %v579 = vmax.f32 %v451, %v515
      %v580 = vmax.f32 %v452, %v516
      %v581 = vmax.f32 %v453, %v517
      %v582 = vmax.f32 %v454, %v518
      %v583 = vmax.f32 %v455, %v519
      %v584 = vmax.f32 %v456, %v520
      %v585 = vmax.f32 %v457, %v521
      %v586 = vmax.f32 %v458, %v522
      %v587 = vpack.c.bf16 %v523, %v523
      %v588 = vpack.c.bf16 %v524, %v524
      %v589 = vpack.c.bf16 %v525, %v525
      %v590 = vpack.c.bf16 %v526, %v526
      %v591 = vpack.c.bf16 %v527, %v527
      %v592 = vpack.c.bf16 %v528, %v528
      %v593 = vpack.c.bf16 %v529, %v529
      %v594 = vpack.c.bf16 %v530, %v530
      %v595 = vpack.c.bf16 %v531, %v531
      %v596 = vpack.c.bf16 %v532, %v532
      %v597 = vpack.c.bf16 %v533, %v533
      %v598 = vpack.c.bf16 %v534, %v534
      %v599 = vpack.c.bf16 %v535, %v535
      %v600 = vpack.c.bf16 %v536, %v536
      %v601 = vpack.c.bf16 %v537, %v537
      %v602 = vpack.c.bf16 %v538, %v538
      %v603 = vpack.c.bf16 %v539, %v539
      %v604 = vpack.c.bf16 %v540, %v540
      %v605 = vpack.c.bf16 %v541, %v541
      %v606 = vpack.c.bf16 %v542, %v542
      %v607 = vpack.c.bf16 %v543, %v543
      %v608 = vpack.c.bf16 %v544, %v544
      %v609 = vpack.c.bf16 %v545, %v545
      %v610 = vpack.c.bf16 %v546, %v546
      %v611 = vpack.c.bf16 %v547, %v547
      %v612 = vpack.c.bf16 %v548, %v548
      %v613 = vpack.c.bf16 %v549, %v549
      %v614 = vpack.c.bf16 %v550, %v550
      %v615 = vpack.c.bf16 %v551, %v551
      %v616 = vpack.c.bf16 %v552, %v552
      %v617 = vpack.c.bf16 %v553, %v553
      %v618 = vpack.c.bf16 %v554, %v554
      %v619 = vpack.c.bf16 %v555, %v555
      %v620 = vpack.c.bf16 %v556, %v556
      %v621 = vpack.c.bf16 %v557, %v557
      %v622 = vpack.c.bf16 %v558, %v558
      %v623 = vpack.c.bf16 %v559, %v559
      %v624 = vpack.c.bf16 %v560, %v560
      %v625 = vpack.c.bf16 %v561, %v561
      %v626 = vpack.c.bf16 %v562, %v562
      %v627 = vpack.c.bf16 %v563, %v563
      %v628 = vpack.c.bf16 %v564, %v564
      %v629 = vpack.c.bf16 %v565, %v565
      %v630 = vpack.c.bf16 %v566, %v566
      %v631 = vpack.c.bf16 %v567, %v567
      %v632 = vpack.c.bf16 %v568, %v568
      %v633 = vpack.c.bf16 %v569, %v569
      %v634 = vpack.c.bf16 %v570, %v570
      %v635 = vpack.c.bf16 %v571, %v571
      %v636 = vpack.c.bf16 %v572, %v572
      %v637 = vpack.c.bf16 %v573, %v573
      %v638 = vpack.c.bf16 %v574, %v574
      %v639 = vpack.c.bf16 %v575, %v575
      %v640 = vpack.c.bf16 %v576, %v576
      %v641 = vpack.c.bf16 %v577, %v577
      %v642 = vpack.c.bf16 %v578, %v578
      %v643 = vpack.c.bf16 %v579, %v579
      %v644 = vpack.c.bf16 %v580, %v580
      %v645 = vpack.c.bf16 %v581, %v581
      %v646 = vpack.c.bf16 %v582, %v582
      %v647 = vpack.c.bf16 %v583, %v583
      %v648 = vpack.c.bf16 %v584, %v584
      %v649 = vpack.c.bf16 %v585, %v585
      %v650 = vpack.c.bf16 %v586, %v586
      %v651 = vld [vmem:[%s253] sm:$0xf]
      %v652 = vld [vmem:[%s253 + $0x4] sm:$0xf]
      %v653 = vld [vmem:[%s253 + $0x8] sm:$0xf]
      %v654 = vld [vmem:[%s253 + $0xc] sm:$0xf]
      %v655 = vld [vmem:[%s253 + $0x10] sm:$0xf]
      %v656 = vld [vmem:[%s253 + $0x14] sm:$0xf]
      %v657 = vld [vmem:[%s253 + $0x18] sm:$0xf]
      %v658 = vld [vmem:[%s253 + $0x1c] sm:$0xf]
      %v659 = vld [vmem:[%s253 + $0x20] sm:$0xf]
      %v660 = vld [vmem:[%s253 + $0x24] sm:$0xf]
      %v661 = vld [vmem:[%s253 + $0x28] sm:$0xf]
      %v662 = vld [vmem:[%s253 + $0x2c] sm:$0xf]
      %v663 = vld [vmem:[%s253 + $0x30] sm:$0xf]
      %v664 = vld [vmem:[%s253 + $0x34] sm:$0xf]
      %v665 = vld [vmem:[%s253 + $0x38] sm:$0xf]
      %v666 = vld [vmem:[%s253 + $0x3c] sm:$0xf]
      %v667 = vld [vmem:[%s253 + $0x40] sm:$0xf]
      %v668 = vld [vmem:[%s253 + $0x44] sm:$0xf]
      %v669 = vld [vmem:[%s253 + $0x48] sm:$0xf]
      %v670 = vld [vmem:[%s253 + $0x4c] sm:$0xf]
      %v671 = vld [vmem:[%s253 + $0x50] sm:$0xf]
      %v672 = vld [vmem:[%s253 + $0x54] sm:$0xf]
      %v673 = vld [vmem:[%s253 + $0x58] sm:$0xf]
      %v674 = vld [vmem:[%s253 + $0x5c] sm:$0xf]
      %v675 = vld [vmem:[%s253 + $0x60] sm:$0xf]
      %v676 = vld [vmem:[%s253 + $0x64] sm:$0xf]
      %v677 = vld [vmem:[%s253 + $0x68] sm:$0xf]
      %v678 = vld [vmem:[%s253 + $0x6c] sm:$0xf]
      %v679 = vld [vmem:[%s253 + $0x70] sm:$0xf]
      %v680 = vld [vmem:[%s253 + $0x74] sm:$0xf]
      %v681 = vld [vmem:[%s253 + $0x78] sm:$0xf]
      %v682 = vld [vmem:[%s253 + $0x7c] sm:$0xf]
      %v683 = vld [vmem:[%s253 + $0x80] sm:$0xf]
      %v684 = vld [vmem:[%s253 + $0x84] sm:$0xf]
      %v685 = vld [vmem:[%s253 + $0x88] sm:$0xf]
      %v686 = vld [vmem:[%s253 + $0x8c] sm:$0xf]
      %v687 = vld [vmem:[%s253 + $0x90] sm:$0xf]
      %v688 = vld [vmem:[%s253 + $0x94] sm:$0xf]
      %v689 = vld [vmem:[%s253 + $0x98] sm:$0xf]
      %v690 = vld [vmem:[%s253 + $0x9c] sm:$0xf]
      %v691 = vld [vmem:[%s253 + $0xa0] sm:$0xf]
      %v692 = vld [vmem:[%s253 + $0xa4] sm:$0xf]
      %v693 = vld [vmem:[%s253 + $0xa8] sm:$0xf]
      %v694 = vld [vmem:[%s253 + $0xac] sm:$0xf]
      %v695 = vld [vmem:[%s253 + $0xb0] sm:$0xf]
      %v696 = vld [vmem:[%s253 + $0xb4] sm:$0xf]
      %v697 = vld [vmem:[%s253 + $0xb8] sm:$0xf]
      %v698 = vld [vmem:[%s253 + $0xbc] sm:$0xf]
      %v699 = vld [vmem:[%s253 + $0xc0] sm:$0xf]
      %v700 = vld [vmem:[%s253 + $0xc4] sm:$0xf]
      %v701 = vld [vmem:[%s253 + $0xc8] sm:$0xf]
      %v702 = vld [vmem:[%s253 + $0xcc] sm:$0xf]
      %v703 = vld [vmem:[%s253 + $0xd0] sm:$0xf]
      %v704 = vld [vmem:[%s253 + $0xd4] sm:$0xf]
      %v705 = vld [vmem:[%s253 + $0xd8] sm:$0xf]
      %v706 = vld [vmem:[%s253 + $0xdc] sm:$0xf]
      %v707 = vld [vmem:[%s253 + $0xe0] sm:$0xf]
      %v708 = vld [vmem:[%s253 + $0xe4] sm:$0xf]
      %v709 = vld [vmem:[%s253 + $0xe8] sm:$0xf]
      %v710 = vld [vmem:[%s253 + $0xec] sm:$0xf]
      %v711 = vld [vmem:[%s253 + $0xf0] sm:$0xf]
      %v712 = vld [vmem:[%s253 + $0xf4] sm:$0xf]
      %v713 = vld [vmem:[%s253 + $0xf8] sm:$0xf]
      %v714 = vld [vmem:[%s253 + $0xfc] sm:$0xf]
      %v715 = vld [vmem:[%s259] sm:$0xf]
      %v716 = vld [vmem:[%s259 + $0x4] sm:$0xf]
      %v717 = vld [vmem:[%s259 + $0x8] sm:$0xf]
      %v718 = vld [vmem:[%s259 + $0xc] sm:$0xf]
      %v719 = vld [vmem:[%s259 + $0x10] sm:$0xf]
      %v720 = vld [vmem:[%s259 + $0x14] sm:$0xf]
      %v721 = vld [vmem:[%s259 + $0x18] sm:$0xf]
      %v722 = vld [vmem:[%s259 + $0x1c] sm:$0xf]
      %v723 = vld [vmem:[%s259 + $0x20] sm:$0xf]
      %v724 = vld [vmem:[%s259 + $0x24] sm:$0xf]
      %v725 = vld [vmem:[%s259 + $0x28] sm:$0xf]
      %v726 = vld [vmem:[%s259 + $0x2c] sm:$0xf]
      %v727 = vld [vmem:[%s259 + $0x30] sm:$0xf]
      %v728 = vld [vmem:[%s259 + $0x34] sm:$0xf]
      %v729 = vld [vmem:[%s259 + $0x38] sm:$0xf]
      %v730 = vld [vmem:[%s259 + $0x3c] sm:$0xf]
      %v731 = vld [vmem:[%s259 + $0x40] sm:$0xf]
      %v732 = vld [vmem:[%s259 + $0x44] sm:$0xf]
      %v733 = vld [vmem:[%s259 + $0x48] sm:$0xf]
      %v734 = vld [vmem:[%s259 + $0x4c] sm:$0xf]
      %v735 = vld [vmem:[%s259 + $0x50] sm:$0xf]
      %v736 = vld [vmem:[%s259 + $0x54] sm:$0xf]
      %v737 = vld [vmem:[%s259 + $0x58] sm:$0xf]
      %v738 = vld [vmem:[%s259 + $0x5c] sm:$0xf]
      %v739 = vld [vmem:[%s259 + $0x60] sm:$0xf]
      %v740 = vld [vmem:[%s259 + $0x64] sm:$0xf]
      %v741 = vld [vmem:[%s259 + $0x68] sm:$0xf]
      %v742 = vld [vmem:[%s259 + $0x6c] sm:$0xf]
      %v743 = vld [vmem:[%s259 + $0x70] sm:$0xf]
      %v744 = vld [vmem:[%s259 + $0x74] sm:$0xf]
      %v745 = vld [vmem:[%s259 + $0x78] sm:$0xf]
      %v746 = vld [vmem:[%s259 + $0x7c] sm:$0xf]
      %v747 = vld [vmem:[%s259 + $0x80] sm:$0xf]
      %v748 = vld [vmem:[%s259 + $0x84] sm:$0xf]
      %v749 = vld [vmem:[%s259 + $0x88] sm:$0xf]
      %v750 = vld [vmem:[%s259 + $0x8c] sm:$0xf]
      %v751 = vld [vmem:[%s259 + $0x90] sm:$0xf]
      %v752 = vld [vmem:[%s259 + $0x94] sm:$0xf]
      %v753 = vld [vmem:[%s259 + $0x98] sm:$0xf]
      %v754 = vld [vmem:[%s259 + $0x9c] sm:$0xf]
      %v755 = vld [vmem:[%s259 + $0xa0] sm:$0xf]
      %v756 = vld [vmem:[%s259 + $0xa4] sm:$0xf]
      %v757 = vld [vmem:[%s259 + $0xa8] sm:$0xf]
      %v758 = vld [vmem:[%s259 + $0xac] sm:$0xf]
      %v759 = vld [vmem:[%s259 + $0xb0] sm:$0xf]
      %v760 = vld [vmem:[%s259 + $0xb4] sm:$0xf]
      %v761 = vld [vmem:[%s259 + $0xb8] sm:$0xf]
      %v762 = vld [vmem:[%s259 + $0xbc] sm:$0xf]
      %v763 = vld [vmem:[%s259 + $0xc0] sm:$0xf]
      %v764 = vld [vmem:[%s259 + $0xc4] sm:$0xf]
      %v765 = vld [vmem:[%s259 + $0xc8] sm:$0xf]
      %v766 = vld [vmem:[%s259 + $0xcc] sm:$0xf]
      %v767 = vld [vmem:[%s259 + $0xd0] sm:$0xf]
      %v768 = vld [vmem:[%s259 + $0xd4] sm:$0xf]
      %v769 = vld [vmem:[%s259 + $0xd8] sm:$0xf]
      %v770 = vld [vmem:[%s259 + $0xdc] sm:$0xf]
      %v771 = vld [vmem:[%s259 + $0xe0] sm:$0xf]
      %v772 = vld [vmem:[%s259 + $0xe4] sm:$0xf]
      %v773 = vld [vmem:[%s259 + $0xe8] sm:$0xf]
      %v774 = vld [vmem:[%s259 + $0xec] sm:$0xf]
      %v775 = vld [vmem:[%s259 + $0xf0] sm:$0xf]
      %v776 = vld [vmem:[%s259 + $0xf4] sm:$0xf]
      %v777 = vld [vmem:[%s259 + $0xf8] sm:$0xf]
      %v778 = vld [vmem:[%s259 + $0xfc] sm:$0xf]
      %v779 = vunpack.c.l.bf16 %v651
      %v780 = vunpack.c.l.bf16 %v652
      %v781 = vunpack.c.l.bf16 %v653
      %v782 = vunpack.c.l.bf16 %v654
      %v783 = vunpack.c.l.bf16 %v655
      %v784 = vunpack.c.l.bf16 %v656
      %v785 = vunpack.c.l.bf16 %v657
      %v786 = vunpack.c.l.bf16 %v658
      %v787 = vunpack.c.l.bf16 %v659
      %v788 = vunpack.c.l.bf16 %v660
      %v789 = vunpack.c.l.bf16 %v661
      %v790 = vunpack.c.l.bf16 %v662
      %v791 = vunpack.c.l.bf16 %v663
      %v792 = vunpack.c.l.bf16 %v664
      %v793 = vunpack.c.l.bf16 %v665
      %v794 = vunpack.c.l.bf16 %v666
      %v795 = vunpack.c.l.bf16 %v667
      %v796 = vunpack.c.l.bf16 %v668
      %v797 = vunpack.c.l.bf16 %v669
      %v798 = vunpack.c.l.bf16 %v670
      %v799 = vunpack.c.l.bf16 %v671
      %v800 = vunpack.c.l.bf16 %v672
      %v801 = vunpack.c.l.bf16 %v673
      %v802 = vunpack.c.l.bf16 %v674
      %v803 = vunpack.c.l.bf16 %v675
      %v804 = vunpack.c.l.bf16 %v676
      %v805 = vunpack.c.l.bf16 %v677
      %v806 = vunpack.c.l.bf16 %v678
      %v807 = vunpack.c.l.bf16 %v679
      %v808 = vunpack.c.l.bf16 %v680
      %v809 = vunpack.c.l.bf16 %v681
      %v810 = vunpack.c.l.bf16 %v682
      %v811 = vunpack.c.l.bf16 %v683
      %v812 = vunpack.c.l.bf16 %v684
      %v813 = vunpack.c.l.bf16 %v685
      %v814 = vunpack.c.l.bf16 %v686
      %v815 = vunpack.c.l.bf16 %v687
      %v816 = vunpack.c.l.bf16 %v688
      %v817 = vunpack.c.l.bf16 %v689
      %v818 = vunpack.c.l.bf16 %v690
      %v819 = vunpack.c.l.bf16 %v691
      %v820 = vunpack.c.l.bf16 %v692
      %v821 = vunpack.c.l.bf16 %v693
      %v822 = vunpack.c.l.bf16 %v694
      %v823 = vunpack.c.l.bf16 %v695
      %v824 = vunpack.c.l.bf16 %v696
      %v825 = vunpack.c.l.bf16 %v697
      %v826 = vunpack.c.l.bf16 %v698
      %v827 = vunpack.c.l.bf16 %v699
      %v828 = vunpack.c.l.bf16 %v700
      %v829 = vunpack.c.l.bf16 %v701
      %v830 = vunpack.c.l.bf16 %v702
      %v831 = vunpack.c.l.bf16 %v703
      %v832 = vunpack.c.l.bf16 %v704
      %v833 = vunpack.c.l.bf16 %v705
      %v834 = vunpack.c.l.bf16 %v706
      %v835 = vunpack.c.l.bf16 %v707
      %v836 = vunpack.c.l.bf16 %v708
      %v837 = vunpack.c.l.bf16 %v709
      %v838 = vunpack.c.l.bf16 %v710
      %v839 = vunpack.c.l.bf16 %v711
      %v840 = vunpack.c.l.bf16 %v712
      %v841 = vunpack.c.l.bf16 %v713
      %v842 = vunpack.c.l.bf16 %v714
      %v843 = vunpack.c.l.bf16 %v715
      %v844 = vunpack.c.l.bf16 %v716
      %v845 = vunpack.c.l.bf16 %v717
      %v846 = vunpack.c.l.bf16 %v718
      %v847 = vunpack.c.l.bf16 %v719
      %v848 = vunpack.c.l.bf16 %v720
      %v849 = vunpack.c.l.bf16 %v721
      %v850 = vunpack.c.l.bf16 %v722
      %v851 = vunpack.c.l.bf16 %v723
      %v852 = vunpack.c.l.bf16 %v724
      %v853 = vunpack.c.l.bf16 %v725
      %v854 = vunpack.c.l.bf16 %v726
      %v855 = vunpack.c.l.bf16 %v727
      %v856 = vunpack.c.l.bf16 %v728
      %v857 = vunpack.c.l.bf16 %v729
      %v858 = vunpack.c.l.bf16 %v730
      %v859 = vunpack.c.l.bf16 %v731
      %v860 = vunpack.c.l.bf16 %v732
      %v861 = vunpack.c.l.bf16 %v733
      %v862 = vunpack.c.l.bf16 %v734
      %v863 = vunpack.c.l.bf16 %v735
      %v864 = vunpack.c.l.bf16 %v736
      %v865 = vunpack.c.l.bf16 %v737
      %v866 = vunpack.c.l.bf16 %v738
      %v867 = vunpack.c.l.bf16 %v739
      %v868 = vunpack.c.l.bf16 %v740
      %v869 = vunpack.c.l.bf16 %v741
      %v870 = vunpack.c.l.bf16 %v742
      %v871 = vunpack.c.l.bf16 %v743
      %v872 = vunpack.c.l.bf16 %v744
      %v873 = vunpack.c.l.bf16 %v745
      %v874 = vunpack.c.l.bf16 %v746
      %v875 = vunpack.c.l.bf16 %v747
      %v876 = vunpack.c.l.bf16 %v748
      %v877 = vunpack.c.l.bf16 %v749
      %v878 = vunpack.c.l.bf16 %v750
      %v879 = vunpack.c.l.bf16 %v751
      %v880 = vunpack.c.l.bf16 %v752
      %v881 = vunpack.c.l.bf16 %v753
      %v882 = vunpack.c.l.bf16 %v754
      %v883 = vunpack.c.l.bf16 %v755
      %v884 = vunpack.c.l.bf16 %v756
      %v885 = vunpack.c.l.bf16 %v757
      %v886 = vunpack.c.l.bf16 %v758
      %v887 = vunpack.c.l.bf16 %v759
      %v888 = vunpack.c.l.bf16 %v760
      %v889 = vunpack.c.l.bf16 %v761
      %v890 = vunpack.c.l.bf16 %v762
      %v891 = vunpack.c.l.bf16 %v763
      %v892 = vunpack.c.l.bf16 %v764
      %v893 = vunpack.c.l.bf16 %v765
      %v894 = vunpack.c.l.bf16 %v766
      %v895 = vunpack.c.l.bf16 %v767
      %v896 = vunpack.c.l.bf16 %v768
      %v897 = vunpack.c.l.bf16 %v769
      %v898 = vunpack.c.l.bf16 %v770
      %v899 = vunpack.c.l.bf16 %v771
      %v900 = vunpack.c.l.bf16 %v772
      %v901 = vunpack.c.l.bf16 %v773
      %v902 = vunpack.c.l.bf16 %v774
      %v903 = vunpack.c.l.bf16 %v775
      %v904 = vunpack.c.l.bf16 %v776
      %v905 = vunpack.c.l.bf16 %v777
      %v906 = vunpack.c.l.bf16 %v778
      %v907 = vmax.f32 %v779, %v843
      %v908 = vmax.f32 %v780, %v844
      %v909 = vmax.f32 %v781, %v845
      %v910 = vmax.f32 %v782, %v846
      %v911 = vmax.f32 %v783, %v847
      %v912 = vmax.f32 %v784, %v848
      %v913 = vmax.f32 %v785, %v849
      %v914 = vmax.f32 %v786, %v850
      %v915 = vmax.f32 %v787, %v851
      %v916 = vmax.f32 %v788, %v852
      %v917 = vmax.f32 %v789, %v853
      %v918 = vmax.f32 %v790, %v854
      %v919 = vmax.f32 %v791, %v855
      %v920 = vmax.f32 %v792, %v856
      %v921 = vmax.f32 %v793, %v857
      %v922 = vmax.f32 %v794, %v858
      %v923 = vmax.f32 %v795, %v859
      %v924 = vmax.f32 %v796, %v860
      %v925 = vmax.f32 %v797, %v861
      %v926 = vmax.f32 %v798, %v862
      %v927 = vmax.f32 %v799, %v863
      %v928 = vmax.f32 %v800, %v864
      %v929 = vmax.f32 %v801, %v865
      %v930 = vmax.f32 %v802, %v866
      %v931 = vmax.f32 %v803, %v867
      %v932 = vmax.f32 %v804, %v868
      %v933 = vmax.f32 %v805, %v869
      %v934 = vmax.f32 %v806, %v870
      %v935 = vmax.f32 %v807, %v871
      %v936 = vmax.f32 %v808, %v872
      %v937 = vmax.f32 %v809, %v873
      %v938 = vmax.f32 %v810, %v874
      %v939 = vmax.f32 %v811, %v875
      %v940 = vmax.f32 %v812, %v876
      %v941 = vmax.f32 %v813, %v877
      %v942 = vmax.f32 %v814, %v878
      %v943 = vmax.f32 %v815, %v879
      %v944 = vmax.f32 %v816, %v880
      %v945 = vmax.f32 %v817, %v881
      %v946 = vmax.f32 %v818, %v882
      %v947 = vmax.f32 %v819, %v883
      %v948 = vmax.f32 %v820, %v884
      %v949 = vmax.f32 %v821, %v885
      %v950 = vmax.f32 %v822, %v886
      %v951 = vmax.f32 %v823, %v887
      %v952 = vmax.f32 %v824, %v888
      %v953 = vmax.f32 %v825, %v889
      %v954 = vmax.f32 %v826, %v890
      %v955 = vmax.f32 %v827, %v891
      %v956 = vmax.f32 %v828, %v892
      %v957 = vmax.f32 %v829, %v893
      %v958 = vmax.f32 %v830, %v894
      %v959 = vmax.f32 %v831, %v895
      %v960 = vmax.f32 %v832, %v896
      %v961 = vmax.f32 %v833, %v897
      %v962 = vmax.f32 %v834, %v898
      %v963 = vmax.f32 %v835, %v899
      %v964 = vmax.f32 %v836, %v900
      %v965 = vmax.f32 %v837, %v901
      %v966 = vmax.f32 %v838, %v902
      %v967 = vmax.f32 %v839, %v903
      %v968 = vmax.f32 %v840, %v904
      %v969 = vmax.f32 %v841, %v905
      %v970 = vmax.f32 %v842, %v906
      %v971 = vpack.c.bf16 %v907, %v907
      %v972 = vpack.c.bf16 %v908, %v908
      %v973 = vpack.c.bf16 %v909, %v909
      %v974 = vpack.c.bf16 %v910, %v910
      %v975 = vpack.c.bf16 %v911, %v911
      %v976 = vpack.c.bf16 %v912, %v912
      %v977 = vpack.c.bf16 %v913, %v913
      %v978 = vpack.c.bf16 %v914, %v914
      %v979 = vpack.c.bf16 %v915, %v915
      %v980 = vpack.c.bf16 %v916, %v916
      %v981 = vpack.c.bf16 %v917, %v917
      %v982 = vpack.c.bf16 %v918, %v918
      %v983 = vpack.c.bf16 %v919, %v919
      %v984 = vpack.c.bf16 %v920, %v920
      %v985 = vpack.c.bf16 %v921, %v921
      %v986 = vpack.c.bf16 %v922, %v922
      %v987 = vpack.c.bf16 %v923, %v923
      %v988 = vpack.c.bf16 %v924, %v924
      %v989 = vpack.c.bf16 %v925, %v925
      %v990 = vpack.c.bf16 %v926, %v926
      %v991 = vpack.c.bf16 %v927, %v927
      %v992 = vpack.c.bf16 %v928, %v928
      %v993 = vpack.c.bf16 %v929, %v929
      %v994 = vpack.c.bf16 %v930, %v930
      %v995 = vpack.c.bf16 %v931, %v931
      %v996 = vpack.c.bf16 %v932, %v932
      %v997 = vpack.c.bf16 %v933, %v933
      %v998 = vpack.c.bf16 %v934, %v934
      %v999 = vpack.c.bf16 %v935, %v935
      %v1000 = vpack.c.bf16 %v936, %v936
      %v1001 = vpack.c.bf16 %v937, %v937
      %v1002 = vpack.c.bf16 %v938, %v938
      %v1003 = vpack.c.bf16 %v939, %v939
      %v1004 = vpack.c.bf16 %v940, %v940
      %v1005 = vpack.c.bf16 %v941, %v941
      %v1006 = vpack.c.bf16 %v942, %v942
      %v1007 = vpack.c.bf16 %v943, %v943
      %v1008 = vpack.c.bf16 %v944, %v944
      %v1009 = vpack.c.bf16 %v945, %v945
      %v1010 = vpack.c.bf16 %v946, %v946
      %v1011 = vpack.c.bf16 %v947, %v947
      %v1012 = vpack.c.bf16 %v948, %v948
      %v1013 = vpack.c.bf16 %v949, %v949
      %v1014 = vpack.c.bf16 %v950, %v950
      %v1015 = vpack.c.bf16 %v951, %v951
      %v1016 = vpack.c.bf16 %v952, %v952
      %v1017 = vpack.c.bf16 %v953, %v953
      %v1018 = vpack.c.bf16 %v954, %v954
      %v1019 = vpack.c.bf16 %v955, %v955
      %v1020 = vpack.c.bf16 %v956, %v956
      %v1021 = vpack.c.bf16 %v957, %v957
      %v1022 = vpack.c.bf16 %v958, %v958
      %v1023 = vpack.c.bf16 %v959, %v959
      %v1024 = vpack.c.bf16 %v960, %v960
      %v1025 = vpack.c.bf16 %v961, %v961
      %v1026 = vpack.c.bf16 %v962, %v962
      %v1027 = vpack.c.bf16 %v963, %v963
      %v1028 = vpack.c.bf16 %v964, %v964
      %v1029 = vpack.c.bf16 %v965, %v965
      %v1030 = vpack.c.bf16 %v966, %v966
      %v1031 = vpack.c.bf16 %v967, %v967
      %v1032 = vpack.c.bf16 %v968, %v968
      %v1033 = vpack.c.bf16 %v969, %v969
      %v1034 = vpack.c.bf16 %v970, %v970
      %v1035 = vunpack.c.l.bf16 %v587
      %v1036 = vunpack.c.l.bf16 %v588
      %v1037 = vunpack.c.l.bf16 %v589
      %v1038 = vunpack.c.l.bf16 %v590
      %v1039 = vunpack.c.l.bf16 %v591
      %v1040 = vunpack.c.l.bf16 %v592
      %v1041 = vunpack.c.l.bf16 %v593
      %v1042 = vunpack.c.l.bf16 %v594
      %v1043 = vunpack.c.l.bf16 %v595
      %v1044 = vunpack.c.l.bf16 %v596
      %v1045 = vunpack.c.l.bf16 %v597
      %v1046 = vunpack.c.l.bf16 %v598
      %v1047 = vunpack.c.l.bf16 %v599
      %v1048 = vunpack.c.l.bf16 %v600
      %v1049 = vunpack.c.l.bf16 %v601
      %v1050 = vunpack.c.l.bf16 %v602
      %v1051 = vunpack.c.l.bf16 %v603
      %v1052 = vunpack.c.l.bf16 %v604
      %v1053 = vunpack.c.l.bf16 %v605
      %v1054 = vunpack.c.l.bf16 %v606
      %v1055 = vunpack.c.l.bf16 %v607
      %v1056 = vunpack.c.l.bf16 %v608
      %v1057 = vunpack.c.l.bf16 %v609
      %v1058 = vunpack.c.l.bf16 %v610
      %v1059 = vunpack.c.l.bf16 %v611
      %v1060 = vunpack.c.l.bf16 %v612
      %v1061 = vunpack.c.l.bf16 %v613
      %v1062 = vunpack.c.l.bf16 %v614
      %v1063 = vunpack.c.l.bf16 %v615
      %v1064 = vunpack.c.l.bf16 %v616
      %v1065 = vunpack.c.l.bf16 %v617
      %v1066 = vunpack.c.l.bf16 %v618
      %v1067 = vunpack.c.l.bf16 %v619
      %v1068 = vunpack.c.l.bf16 %v620
      %v1069 = vunpack.c.l.bf16 %v621
      %v1070 = vunpack.c.l.bf16 %v622
      %v1071 = vunpack.c.l.bf16 %v623
      %v1072 = vunpack.c.l.bf16 %v624
      %v1073 = vunpack.c.l.bf16 %v625
      %v1074 = vunpack.c.l.bf16 %v626
      %v1075 = vunpack.c.l.bf16 %v627
      %v1076 = vunpack.c.l.bf16 %v628
      %v1077 = vunpack.c.l.bf16 %v629
      %v1078 = vunpack.c.l.bf16 %v630
      %v1079 = vunpack.c.l.bf16 %v631
      %v1080 = vunpack.c.l.bf16 %v632
      %v1081 = vunpack.c.l.bf16 %v633
      %v1082 = vunpack.c.l.bf16 %v634
      %v1083 = vunpack.c.l.bf16 %v635
      %v1084 = vunpack.c.l.bf16 %v636
      %v1085 = vunpack.c.l.bf16 %v637
      %v1086 = vunpack.c.l.bf16 %v638
      %v1087 = vunpack.c.l.bf16 %v639
      %v1088 = vunpack.c.l.bf16 %v640
      %v1089 = vunpack.c.l.bf16 %v641
      %v1090 = vunpack.c.l.bf16 %v642
      %v1091 = vunpack.c.l.bf16 %v643
      %v1092 = vunpack.c.l.bf16 %v644
      %v1093 = vunpack.c.l.bf16 %v645
      %v1094 = vunpack.c.l.bf16 %v646
      %v1095 = vunpack.c.l.bf16 %v647
      %v1096 = vunpack.c.l.bf16 %v648
      %v1097 = vunpack.c.l.bf16 %v649
      %v1098 = vunpack.c.l.bf16 %v650
      %v1099 = vunpack.c.l.bf16 %v971
      %v1100 = vunpack.c.l.bf16 %v972
      %v1101 = vunpack.c.l.bf16 %v973
      %v1102 = vunpack.c.l.bf16 %v974
      %v1103 = vunpack.c.l.bf16 %v975
      %v1104 = vunpack.c.l.bf16 %v976
      %v1105 = vunpack.c.l.bf16 %v977
      %v1106 = vunpack.c.l.bf16 %v978
      %v1107 = vunpack.c.l.bf16 %v979
      %v1108 = vunpack.c.l.bf16 %v980
      %v1109 = vunpack.c.l.bf16 %v981
      %v1110 = vunpack.c.l.bf16 %v982
      %v1111 = vunpack.c.l.bf16 %v983
      %v1112 = vunpack.c.l.bf16 %v984
      %v1113 = vunpack.c.l.bf16 %v985
      %v1114 = vunpack.c.l.bf16 %v986
      %v1115 = vunpack.c.l.bf16 %v987
      %v1116 = vunpack.c.l.bf16 %v988
      %v1117 = vunpack.c.l.bf16 %v989
      %v1118 = vunpack.c.l.bf16 %v990
      %v1119 = vunpack.c.l.bf16 %v991
      %v1120 = vunpack.c.l.bf16 %v992
      %v1121 = vunpack.c.l.bf16 %v993
      %v1122 = vunpack.c.l.bf16 %v994
      %v1123 = vunpack.c.l.bf16 %v995
      %v1124 = vunpack.c.l.bf16 %v996
      %v1125 = vunpack.c.l.bf16 %v997
      %v1126 = vunpack.c.l.bf16 %v998
      %v1127 = vunpack.c.l.bf16 %v999
      %v1128 = vunpack.c.l.bf16 %v1000
      %v1129 = vunpack.c.l.bf16 %v1001
      %v1130 = vunpack.c.l.bf16 %v1002
      %v1131 = vunpack.c.l.bf16 %v1003
      %v1132 = vunpack.c.l.bf16 %v1004
      %v1133 = vunpack.c.l.bf16 %v1005
      %v1134 = vunpack.c.l.bf16 %v1006
      %v1135 = vunpack.c.l.bf16 %v1007
      %v1136 = vunpack.c.l.bf16 %v1008
      %v1137 = vunpack.c.l.bf16 %v1009
      %v1138 = vunpack.c.l.bf16 %v1010
      %v1139 = vunpack.c.l.bf16 %v1011
      %v1140 = vunpack.c.l.bf16 %v1012
      %v1141 = vunpack.c.l.bf16 %v1013
      %v1142 = vunpack.c.l.bf16 %v1014
      %v1143 = vunpack.c.l.bf16 %v1015
      %v1144 = vunpack.c.l.bf16 %v1016
      %v1145 = vunpack.c.l.bf16 %v1017
      %v1146 = vunpack.c.l.bf16 %v1018
      %v1147 = vunpack.c.l.bf16 %v1019
      %v1148 = vunpack.c.l.bf16 %v1020
      %v1149 = vunpack.c.l.bf16 %v1021
      %v1150 = vunpack.c.l.bf16 %v1022
      %v1151 = vunpack.c.l.bf16 %v1023
      %v1152 = vunpack.c.l.bf16 %v1024
      %v1153 = vunpack.c.l.bf16 %v1025
      %v1154 = vunpack.c.l.bf16 %v1026
      %v1155 = vunpack.c.l.bf16 %v1027
      %v1156 = vunpack.c.l.bf16 %v1028
      %v1157 = vunpack.c.l.bf16 %v1029
      %v1158 = vunpack.c.l.bf16 %v1030
      %v1159 = vunpack.c.l.bf16 %v1031
      %v1160 = vunpack.c.l.bf16 %v1032
      %v1161 = vunpack.c.l.bf16 %v1033
      %v1162 = vunpack.c.l.bf16 %v1034
      %v1163 = vmax.f32 %v1035, %v1099
      %v1164 = vmax.f32 %v1036, %v1100
      %v1165 = vmax.f32 %v1037, %v1101
      %v1166 = vmax.f32 %v1038, %v1102
      %v1167 = vmax.f32 %v1039, %v1103
      %v1168 = vmax.f32 %v1040, %v1104
      %v1169 = vmax.f32 %v1041, %v1105
      %v1170 = vmax.f32 %v1042, %v1106
      %v1171 = vmax.f32 %v1043, %v1107
      %v1172 = vmax.f32 %v1044, %v1108
      %v1173 = vmax.f32 %v1045, %v1109
      %v1174 = vmax.f32 %v1046, %v1110
      %v1175 = vmax.f32 %v1047, %v1111
      %v1176 = vmax.f32 %v1048, %v1112
      %v1177 = vmax.f32 %v1049, %v1113
      %v1178 = vmax.f32 %v1050, %v1114
      %v1179 = vmax.f32 %v1051, %v1115
      %v1180 = vmax.f32 %v1052, %v1116
      %v1181 = vmax.f32 %v1053, %v1117
      %v1182 = vmax.f32 %v1054, %v1118
      %v1183 = vmax.f32 %v1055, %v1119
      %v1184 = vmax.f32 %v1056, %v1120
      %v1185 = vmax.f32 %v1057, %v1121
      %v1186 = vmax.f32 %v1058, %v1122
      %v1187 = vmax.f32 %v1059, %v1123
      %v1188 = vmax.f32 %v1060, %v1124
      %v1189 = vmax.f32 %v1061, %v1125
      %v1190 = vmax.f32 %v1062, %v1126
      %v1191 = vmax.f32 %v1063, %v1127
      %v1192 = vmax.f32 %v1064, %v1128
      %v1193 = vmax.f32 %v1065, %v1129
      %v1194 = vmax.f32 %v1066, %v1130
      %v1195 = vmax.f32 %v1067, %v1131
      %v1196 = vmax.f32 %v1068, %v1132
      %v1197 = vmax.f32 %v1069, %v1133
      %v1198 = vmax.f32 %v1070, %v1134
      %v1199 = vmax.f32 %v1071, %v1135
      %v1200 = vmax.f32 %v1072, %v1136
      %v1201 = vmax.f32 %v1073, %v1137
      %v1202 = vmax.f32 %v1074, %v1138
      %v1203 = vmax.f32 %v1075, %v1139
      %v1204 = vmax.f32 %v1076, %v1140
      %v1205 = vmax.f32 %v1077, %v1141
      %v1206 = vmax.f32 %v1078, %v1142
      %v1207 = vmax.f32 %v1079, %v1143
      %v1208 = vmax.f32 %v1080, %v1144
      %v1209 = vmax.f32 %v1081, %v1145
      %v1210 = vmax.f32 %v1082, %v1146
      %v1211 = vmax.f32 %v1083, %v1147
      %v1212 = vmax.f32 %v1084, %v1148
      %v1213 = vmax.f32 %v1085, %v1149
      %v1214 = vmax.f32 %v1086, %v1150
      %v1215 = vmax.f32 %v1087, %v1151
      %v1216 = vmax.f32 %v1088, %v1152
      %v1217 = vmax.f32 %v1089, %v1153
      %v1218 = vmax.f32 %v1090, %v1154
      %v1219 = vmax.f32 %v1091, %v1155
      %v1220 = vmax.f32 %v1092, %v1156
      %v1221 = vmax.f32 %v1093, %v1157
      %v1222 = vmax.f32 %v1094, %v1158
      %v1223 = vmax.f32 %v1095, %v1159
      %v1224 = vmax.f32 %v1096, %v1160
      %v1225 = vmax.f32 %v1097, %v1161
      %v1226 = vmax.f32 %v1098, %v1162
      %v1227 = vpack.c.bf16 %v1163, %v1163
      %v1228 = vpack.c.bf16 %v1164, %v1164
      %v1229 = vpack.c.bf16 %v1165, %v1165
      %v1230 = vpack.c.bf16 %v1166, %v1166
      %v1231 = vpack.c.bf16 %v1167, %v1167
      %v1232 = vpack.c.bf16 %v1168, %v1168
      %v1233 = vpack.c.bf16 %v1169, %v1169
      %v1234 = vpack.c.bf16 %v1170, %v1170
      %v1235 = vpack.c.bf16 %v1171, %v1171
      %v1236 = vpack.c.bf16 %v1172, %v1172
      %v1237 = vpack.c.bf16 %v1173, %v1173
      %v1238 = vpack.c.bf16 %v1174, %v1174
      %v1239 = vpack.c.bf16 %v1175, %v1175
      %v1240 = vpack.c.bf16 %v1176, %v1176
      %v1241 = vpack.c.bf16 %v1177, %v1177
      %v1242 = vpack.c.bf16 %v1178, %v1178
      %v1243 = vpack.c.bf16 %v1179, %v1179
      %v1244 = vpack.c.bf16 %v1180, %v1180
      %v1245 = vpack.c.bf16 %v1181, %v1181
      %v1246 = vpack.c.bf16 %v1182, %v1182
      %v1247 = vpack.c.bf16 %v1183, %v1183
      %v1248 = vpack.c.bf16 %v1184, %v1184
      %v1249 = vpack.c.bf16 %v1185, %v1185
      %v1250 = vpack.c.bf16 %v1186, %v1186
      %v1251 = vpack.c.bf16 %v1187, %v1187
      %v1252 = vpack.c.bf16 %v1188, %v1188
      %v1253 = vpack.c.bf16 %v1189, %v1189
      %v1254 = vpack.c.bf16 %v1190, %v1190
      %v1255 = vpack.c.bf16 %v1191, %v1191
      %v1256 = vpack.c.bf16 %v1192, %v1192
      %v1257 = vpack.c.bf16 %v1193, %v1193
      %v1258 = vpack.c.bf16 %v1194, %v1194
      %v1259 = vpack.c.bf16 %v1195, %v1195
      %v1260 = vpack.c.bf16 %v1196, %v1196
      %v1261 = vpack.c.bf16 %v1197, %v1197
      %v1262 = vpack.c.bf16 %v1198, %v1198
      %v1263 = vpack.c.bf16 %v1199, %v1199
      %v1264 = vpack.c.bf16 %v1200, %v1200
      %v1265 = vpack.c.bf16 %v1201, %v1201
      %v1266 = vpack.c.bf16 %v1202, %v1202
      %v1267 = vpack.c.bf16 %v1203, %v1203
      %v1268 = vpack.c.bf16 %v1204, %v1204
      %v1269 = vpack.c.bf16 %v1205, %v1205
      %v1270 = vpack.c.bf16 %v1206, %v1206
      %v1271 = vpack.c.bf16 %v1207, %v1207
      %v1272 = vpack.c.bf16 %v1208, %v1208
      %v1273 = vpack.c.bf16 %v1209, %v1209
      %v1274 = vpack.c.bf16 %v1210, %v1210
      %v1275 = vpack.c.bf16 %v1211, %v1211
      %v1276 = vpack.c.bf16 %v1212, %v1212
      %v1277 = vpack.c.bf16 %v1213, %v1213
      %v1278 = vpack.c.bf16 %v1214, %v1214
      %v1279 = vpack.c.bf16 %v1215, %v1215
      %v1280 = vpack.c.bf16 %v1216, %v1216
      %v1281 = vpack.c.bf16 %v1217, %v1217
      %v1282 = vpack.c.bf16 %v1218, %v1218
      %v1283 = vpack.c.bf16 %v1219, %v1219
      %v1284 = vpack.c.bf16 %v1220, %v1220
      %v1285 = vpack.c.bf16 %v1221, %v1221
      %v1286 = vpack.c.bf16 %v1222, %v1222
      %v1287 = vpack.c.bf16 %v1223, %v1223
      %v1288 = vpack.c.bf16 %v1224, %v1224
      %v1289 = vpack.c.bf16 %v1225, %v1225
      %v1290 = vpack.c.bf16 %v1226, %v1226
      %1291 = vst [vmem:[%s265] sm:$0xf] %v1227
      %1292 = vst [vmem:[%s265 + $0x4] sm:$0xf] %v1228
      %1293 = vst [vmem:[%s265 + $0x8] sm:$0xf] %v1229
      %1294 = vst [vmem:[%s265 + $0xc] sm:$0xf] %v1230
      %1295 = vst [vmem:[%s265 + $0x10] sm:$0xf] %v1231
      %1296 = vst [vmem:[%s265 + $0x14] sm:$0xf] %v1232
      %1297 = vst [vmem:[%s265 + $0x18] sm:$0xf] %v1233
      %1298 = vst [vmem:[%s265 + $0x1c] sm:$0xf] %v1234
      %1299 = vst [vmem:[%s265 + $0x20] sm:$0xf] %v1235
      %1300 = vst [vmem:[%s265 + $0x24] sm:$0xf] %v1236
      %1301 = vst [vmem:[%s265 + $0x28] sm:$0xf] %v1237
      %1302 = vst [vmem:[%s265 + $0x2c] sm:$0xf] %v1238
      %1303 = vst [vmem:[%s265 + $0x30] sm:$0xf] %v1239
      %1304 = vst [vmem:[%s265 + $0x34] sm:$0xf] %v1240
      %1305 = vst [vmem:[%s265 + $0x38] sm:$0xf] %v1241
      %1306 = vst [vmem:[%s265 + $0x3c] sm:$0xf] %v1242
      %1307 = vst [vmem:[%s265 + $0x40] sm:$0xf] %v1243
      %1308 = vst [vmem:[%s265 + $0x44] sm:$0xf] %v1244
      %1309 = vst [vmem:[%s265 + $0x48] sm:$0xf] %v1245
      %1310 = vst [vmem:[%s265 + $0x4c] sm:$0xf] %v1246
      %1311 = vst [vmem:[%s265 + $0x50] sm:$0xf] %v1247
      %1312 = vst [vmem:[%s265 + $0x54] sm:$0xf] %v1248
      %1313 = vst [vmem:[%s265 + $0x58] sm:$0xf] %v1249
      %1314 = vst [vmem:[%s265 + $0x5c] sm:$0xf] %v1250
      %1315 = vst [vmem:[%s265 + $0x60] sm:$0xf] %v1251
      %1316 = vst [vmem:[%s265 + $0x64] sm:$0xf] %v1252
      %1317 = vst [vmem:[%s265 + $0x68] sm:$0xf] %v1253
      %1318 = vst [vmem:[%s265 + $0x6c] sm:$0xf] %v1254
      %1319 = vst [vmem:[%s265 + $0x70] sm:$0xf] %v1255
      %1320 = vst [vmem:[%s265 + $0x74] sm:$0xf] %v1256
      %1321 = vst [vmem:[%s265 + $0x78] sm:$0xf] %v1257
      %1322 = vst [vmem:[%s265 + $0x7c] sm:$0xf] %v1258
      %1323 = vst [vmem:[%s265 + $0x80] sm:$0xf] %v1259
      %1324 = vst [vmem:[%s265 + $0x84] sm:$0xf] %v1260
      %1325 = vst [vmem:[%s265 + $0x88] sm:$0xf] %v1261
      %1326 = vst [vmem:[%s265 + $0x8c] sm:$0xf] %v1262
      %1327 = vst [vmem:[%s265 + $0x90] sm:$0xf] %v1263
      %1328 = vst [vmem:[%s265 + $0x94] sm:$0xf] %v1264
      %1329 = vst [vmem:[%s265 + $0x98] sm:$0xf] %v1265
      %1330 = vst [vmem:[%s265 + $0x9c] sm:$0xf] %v1266
      %1331 = vst [vmem:[%s265 + $0xa0] sm:$0xf] %v1267
      %1332 = vst [vmem:[%s265 + $0xa4] sm:$0xf] %v1268
      %1333 = vst [vmem:[%s265 + $0xa8] sm:$0xf] %v1269
      %1334 = vst [vmem:[%s265 + $0xac] sm:$0xf] %v1270
      %1335 = vst [vmem:[%s265 + $0xb0] sm:$0xf] %v1271
      %1336 = vst [vmem:[%s265 + $0xb4] sm:$0xf] %v1272
      %1337 = vst [vmem:[%s265 + $0xb8] sm:$0xf] %v1273
      %1338 = vst [vmem:[%s265 + $0xbc] sm:$0xf] %v1274
      %1339 = vst [vmem:[%s265 + $0xc0] sm:$0xf] %v1275
      %1340 = vst [vmem:[%s265 + $0xc4] sm:$0xf] %v1276
      %1341 = vst [vmem:[%s265 + $0xc8] sm:$0xf] %v1277
      %1342 = vst [vmem:[%s265 + $0xcc] sm:$0xf] %v1278
      %1343 = vst [vmem:[%s265 + $0xd0] sm:$0xf] %v1279
      %1344 = vst [vmem:[%s265 + $0xd4] sm:$0xf] %v1280
      %1345 = vst [vmem:[%s265 + $0xd8] sm:$0xf] %v1281
      %1346 = vst [vmem:[%s265 + $0xdc] sm:$0xf] %v1282
      %1347 = vst [vmem:[%s265 + $0xe0] sm:$0xf] %v1283
      %1348 = vst [vmem:[%s265 + $0xe4] sm:$0xf] %v1284
      %1349 = vst [vmem:[%s265 + $0xe8] sm:$0xf] %v1285
      %1350 = vst [vmem:[%s265 + $0xec] sm:$0xf] %v1286
      %1351 = vst [vmem:[%s265 + $0xf0] sm:$0xf] %v1287
      %1352 = vst [vmem:[%s265 + $0xf4] sm:$0xf] %v1288
      %1353 = vst [vmem:[%s265 + $0xf8] sm:$0xf] %v1289
      %1354 = vst [vmem:[%s265 + $0xfc] sm:$0xf] %v1290
      %s1355 = smul.u32 64, %s15
      %p1356 = scmp.lt.s32.totalorder %s1355, 639
      %s1357 = scalar_select %p1356, %s1355, 639
      %s1358 = smul.addr %s1357, 4
      %s1359 = scalar_lea.vmem %s4, %s1358
      // Predicated region
      $region37: #{net_forward.12} parent=35 // pred_check
        %p1360 = pneg %p137
      $region38: #{net_forward.12} parent=35 // pred_check_branch
        %1362 = sbr.rel (%p1360) target = $region40
      $region39: #{net_forward.12} parent=35 // pred_region
        %s1363 = smul.u32 64, %s15
      $region40: #{net_forward.12} parent=35 // pred_fallthru
        _
    $region36: #{net_forward.12} parent=5 // pred_fallthru
      _
    %p1364 = scmp.le.s32.totalorder 2, %s10
    // Predicated region
    $region41: #{net_forward.12} parent=5 // pred_check
      %p1365 = pneg %p1364
    $region42: #{net_forward.12} parent=5 // pred_check_branch
      %1367 = sbr.rel (%p1365) target = $region44
    $region43: #{net_forward.12} parent=5 // pred_region
      %s1368 = ssub.s32 %s10, 2
      // Predicated region
      $region45: #{net_forward.12} parent=43 // pred_check
        %p1369 = pneg %p143
      $region46: #{net_forward.12} parent=43 // pred_check_branch
        %1371 = sbr.rel (%p1369) target = $region48
      $region47: #{net_forward.12} parent=43 // pred_region
        %s1372 = smul.u32 64, %s16
        %p1373 = scmp.lt.s32.totalorder %s1372, 639
        %s1374 = scalar_select %p1373, %s1372, 639
        %s1375 = smul.addr %s1374, 4
        %s1376 = scalar_lea.vmem %s4, %s1375
      $region48: #{net_forward.12} parent=43 // pred_fallthru
        _
    $region44: #{net_forward.12} parent=5 // pred_fallthru
      _
  $region6: #{net_forward.12} parent=0 // loop_footer
    %s14 = sadd.s32 1, %s10
  $region7: #{net_forward.12} parent=0 // loop_footer_branch
    %9 = sbr.rel target = $region3
  $region8: #{net_forward.12} parent=0 // loop_exit
    _

// kernel: net_forward.13
$region0: #{net_forward.13}
  #allocation0 [shape = 'u32[]', space=smem, size = 0x4, offset = 0x4, fixed_abs, tag = 'smem constant byte address 0x4 - core index']
  #allocation1 [shape = 'u32[72,128]{1,0:T(1,128)}', space=vmem, size = 0x9000, scoped, tag = 'internal scratch']
  #allocation2 [shape = 'f32[16,128]{1,0:T(8,128)}', space=vmem, size = 0x2000, scoped, tag = 'scratch operand']
  %s0 = inlined_call_operand.vmem [shape: bf16[16,320000], index: 0, kind: input, shape index: {}]
  %s1 = inlined_call_operand.hbm [shape: bf16[320000,128], index: 1, kind: input, shape index: {}]
  %s2 = inlined_call_operand.vmem [shape: f32[1,128], index: 2, kind: input, shape index: {}]
  %s3 = inlined_call_operand.vmem [shape: f32[1,128], index: 3, kind: input, shape index: {}]
  %s4 = inlined_call_operand.vmem [shape: f32[16,128], index: 4, kind: output, shape index: {}]
  %s5 = sld [smem:[#allocation0]]
  $region84: #{net_forward.13} parent=0
    _
  %s7 = ssub.s32 1, %s5
  %s8 = scalar_select 0, %s7, %s5
  $region1: #{net_forward.13} parent=0
    #allocation3 [shape = 'u8[32768]{0}', space=vmem, size = 0x8000, scoped, tag = 'input window, operand 0']
    #allocation4 [shape = 'u8[262144]{0}', space=vmem, size = 0x40000, scoped, tag = 'input window, operand 1']
    #allocation5 [shape = 's32[2]{0}', space=sflag, size = 0x8, scoped, tag = 'scoped memory for net_forward.13']
    %9 = vsyncpa [#allocation5], 0
    %s10 = scalar_lea.sflag [#allocation5], 1
    %11 = vsyncpa %s10, 0
    loop: start=0, step=1, limit=627
    $region2: #{net_forward.13} parent=1 // loop_pre_header
      _
    $region3: #{net_forward.13} parent=1 // loop_header
      %s13 = sphi 0, %s17
      %p14 = scmp.ge.s32.totalorder %s13, 627
      %s20 = sphi 0, %s39
      %s21 = sphi 0, %s35
      %s22 = sphi 0, %s31
      %s23 = sphi 0, %s20
      %s24 = sphi 0, %s21
      %s25 = sphi 0, %s22
      %s26 = sphi 0, %s23
      %s27 = sphi 0, %s24
      %s28 = sphi 0, %s25
      %s44 = sphi 0, %s46
      %s47 = sphi 0, %s44
      %s48 = sphi 0, %s47
      %s64 = sphi 0, %s48
      %s72 = sphi 0, %s74
      %s75 = sphi 0, %s72
      %s76 = sphi 0, %s75
      %s92 = sphi 0, %s76
      %s98 = sphi 0, %s100
      %s101 = sphi 0, %s98
      %s102 = sphi 0, %s101
      %s118 = sphi 0, %s102
      %s124 = sphi 0, %s126
      %s127 = sphi 0, %s124
      %s128 = sphi 0, %s127
      %s144 = sphi 0, %s128
      %s152 = sphi 0, %s154
      %s155 = sphi 0, %s152
      %s156 = sphi 0, %s155
      %s172 = sphi 0, %s156
    $region4: #{net_forward.13} parent=1 // loop_header_branch
      %16 = sbr.rel (%p14) target = $region8
    $region5: #{net_forward.13} parent=1 // loop_body
      %s18 = ssub.s32 %s13, 1
      %s19 = ssub.s32 %s13, 2
      %s29 = sadd.s32 1, %s22
      %p30 = scmp.ge.s32.totalorder %s29, 625
      %s31 = scalar_select %p30, 0, %s29
      %s32 = sadd.s32 1, %s21
      %s33 = scalar_select %p30, %s32, %s21
      %p34 = scmp.ge.s32.totalorder %s33, 1
      %s35 = scalar_select %p34, 0, %s33
      %s36 = sadd.s32 1, %s20
      %s37 = scalar_select %p34, %s36, %s20
      %p38 = scmp.ge.s32.totalorder %s37, 1
      %s39 = scalar_select %p38, 0, %s37
      %s40 = ssub.s32 %s20, %s39
      %s41 = ssub.s32 %s22, %s31
      %s42 = sor.u32 %s40, %s41
      %p43 = scmp.eq.s32.totalorder %s42, 0
      %s45 = sadd.s32 %s44, 1
      %s46 = scalar_select %p43, %s44, %s45
      %p49 = pneg %p43
      %p50 = scmp.eq.s32.totalorder %s13, 624
      %p51 = por %p49, %p50
      %p52 = scmp.ne.s32.totalorder %s44, %s47
      %p53 = scmp.eq.s32.totalorder %s13, 0
      %p54 = por %p52, %p53
      %p55 = scmp.ne.s32.totalorder %s44, %s47
      %p56 = scmp.eq.s32.totalorder %s18, 624
      %p57 = por %p55, %p56
      %p58 = scmp.ne.s32.totalorder %s47, %s48
      %p59 = scmp.eq.s32.totalorder %s18, 0
      %p60 = por %p58, %p59
      %p61 = scmp.ne.s32.totalorder %s47, %s48
      %p62 = scmp.eq.s32.totalorder %s19, 624
      %p63 = por %p61, %p62
      %p65 = scmp.ne.s32.totalorder %s48, %s64
      %p66 = scmp.eq.s32.totalorder %s19, 0
      %p67 = por %p65, %p66
      %s68 = ssub.s32 %s22, %s31
      %s69 = ssub.s32 %s21, %s35
      %s70 = sor.u32 %s68, %s69
      %p71 = scmp.eq.s32.totalorder %s70, 0
      %s73 = sadd.s32 %s72, 1
      %s74 = scalar_select %p71, %s72, %s73
      %p77 = pneg %p71
      %p78 = scmp.eq.s32.totalorder %s13, 624
      %p79 = por %p77, %p78
      %p80 = scmp.ne.s32.totalorder %s72, %s75
      %p81 = scmp.eq.s32.totalorder %s13, 0
      %p82 = por %p80, %p81
      %p83 = scmp.ne.s32.totalorder %s72, %s75
      %p84 = scmp.eq.s32.totalorder %s18, 624
      %p85 = por %p83, %p84
      %p86 = scmp.ne.s32.totalorder %s75, %s76
      %p87 = scmp.eq.s32.totalorder %s18, 0
      %p88 = por %p86, %p87
      %p89 = scmp.ne.s32.totalorder %s75, %s76
      %p90 = scmp.eq.s32.totalorder %s19, 624
      %p91 = por %p89, %p90
      %p93 = scmp.ne.s32.totalorder %s76, %s92
      %p94 = scmp.eq.s32.totalorder %s19, 0
      %p95 = por %p93, %p94
      %s96 = ssub.s32 %s21, %s35
      %p97 = scmp.eq.s32.totalorder %s96, 0
      %s99 = sadd.s32 %s98, 1
      %s100 = scalar_select %p97, %s98, %s99
      %p103 = pneg %p97
      %p104 = scmp.eq.s32.totalorder %s13, 624
      %p105 = por %p103, %p104
      %p106 = scmp.ne.s32.totalorder %s98, %s101
      %p107 = scmp.eq.s32.totalorder %s13, 0
      %p108 = por %p106, %p107
      %p109 = scmp.ne.s32.totalorder %s98, %s101
      %p110 = scmp.eq.s32.totalorder %s18, 624
      %p111 = por %p109, %p110
      %p112 = scmp.ne.s32.totalorder %s101, %s102
      %p113 = scmp.eq.s32.totalorder %s18, 0
      %p114 = por %p112, %p113
      %p115 = scmp.ne.s32.totalorder %s101, %s102
      %p116 = scmp.eq.s32.totalorder %s19, 624
      %p117 = por %p115, %p116
      %p119 = scmp.ne.s32.totalorder %s102, %s118
      %p120 = scmp.eq.s32.totalorder %s19, 0
      %p121 = por %p119, %p120
      %s122 = ssub.s32 %s21, %s35
      %p123 = scmp.eq.s32.totalorder %s122, 0
      %s125 = sadd.s32 %s124, 1
      %s126 = scalar_select %p123, %s124, %s125
      %p129 = pneg %p123
      %p130 = scmp.eq.s32.totalorder %s13, 624
      %p131 = por %p129, %p130
      %p132 = scmp.ne.s32.totalorder %s124, %s127
      %p133 = scmp.eq.s32.totalorder %s13, 0
      %p134 = por %p132, %p133
      %p135 = scmp.ne.s32.totalorder %s124, %s127
      %p136 = scmp.eq.s32.totalorder %s18, 624
      %p137 = por %p135, %p136
      %p138 = scmp.ne.s32.totalorder %s127, %s128
      %p139 = scmp.eq.s32.totalorder %s18, 0
      %p140 = por %p138, %p139
      %p141 = scmp.ne.s32.totalorder %s127, %s128
      %p142 = scmp.eq.s32.totalorder %s19, 624
      %p143 = por %p141, %p142
      %p145 = scmp.ne.s32.totalorder %s128, %s144
      %p146 = scmp.eq.s32.totalorder %s19, 0
      %p147 = por %p145, %p146
      %s148 = ssub.s32 %s20, %s39
      %s149 = ssub.s32 %s21, %s35
      %s150 = sor.u32 %s148, %s149
      %p151 = scmp.eq.s32.totalorder %s150, 0
      %s153 = sadd.s32 %s152, 1
      %s154 = scalar_select %p151, %s152, %s153
      %p157 = pneg %p151
      %p158 = scmp.eq.s32.totalorder %s13, 624
      %p159 = por %p157, %p158
      %p160 = scmp.ne.s32.totalorder %s152, %s155
      %p161 = scmp.eq.s32.totalorder %s13, 0
      %p162 = por %p160, %p161
      %p163 = scmp.ne.s32.totalorder %s152, %s155
      %p164 = scmp.eq.s32.totalorder %s18, 624
      %p165 = por %p163, %p164
      %p166 = scmp.ne.s32.totalorder %s155, %s156
      %p167 = scmp.eq.s32.totalorder %s18, 0
      %p168 = por %p166, %p167
      %p169 = scmp.ne.s32.totalorder %s155, %s156
      %p170 = scmp.eq.s32.totalorder %s19, 624
      %p171 = por %p169, %p170
      %p173 = scmp.ne.s32.totalorder %s156, %s172
      %p174 = scmp.eq.s32.totalorder %s19, 0
      %p175 = por %p173, %p174
      %p176 = scmp.le.s32.totalorder 1, %s13
      %p177 = scmp.lt.s32.totalorder %s13, 626
      %p178 = pnand %p176, %p177
      %p179 = pneg %p178
      // Predicated region
      $region9: #{net_forward.13} parent=5 // pred_check
        _
      $region10: #{net_forward.13} parent=5 // pred_check_branch
        %181 = sbr.rel (%p178) target = $region12
      $region11: #{net_forward.13} parent=5 // pred_region
        %s182 = ssub.s32 %s13, 1
        // Predicated region
        $region13: #{net_forward.13} parent=11 // pred_check
          %p183 = pneg %p114
        $region14: #{net_forward.13} parent=11 // pred_check_branch
          %185 = sbr.rel (%p183) target = $region16
        $region15: #{net_forward.13} parent=11 // pred_region
          %p186 = scmp.lt.s32.totalorder %s24, 0
          %s187 = scalar_select %p186, %s24, 0
          %s188 = scalar_lea.vmem %s2, %s187
        $region16: #{net_forward.13} parent=11 // pred_fallthru
          _
        // Predicated region
        $region17: #{net_forward.13} parent=11 // pred_check
          %p189 = pneg %p140
        $region18: #{net_forward.13} parent=11 // pred_check_branch
          %191 = sbr.rel (%p189) target = $region20
        $region19: #{net_forward.13} parent=11 // pred_region
          %p192 = scmp.lt.s32.totalorder %s24, 0
          %s193 = scalar_select %p192, %s24, 0
          %s194 = scalar_lea.vmem %s3, %s193
        $region20: #{net_forward.13} parent=11 // pred_fallthru
          _
      $region12: #{net_forward.13} parent=5 // pred_fallthru
        _
      %p195 = scmp.lt.s32.totalorder %s13, 625
      // Predicated region
      $region21: #{net_forward.13} parent=5 // pred_check
        %p196 = pneg %p195
      $region22: #{net_forward.13} parent=5 // pred_check_branch
        %198 = sbr.rel (%p196) target = $region24
      $region23: #{net_forward.13} parent=5 // pred_region
        // Predicated region
        $region25: #{net_forward.13} parent=23 // pred_check
          %p199 = pneg %p54
        $region26: #{net_forward.13} parent=23 // pred_check_branch
          %201 = sbr.rel (%p199) target = $region28
        $region27: #{net_forward.13} parent=23 // pred_region
          %s202 = sand.u32 %s44, 1
          %s203 = sand.u32 %s44, 1
          %s204 = smul.addr %s203, 32
          %s205 = scalar_lea.vmem [#allocation3], %s204
          %s206 = smul.u32 2, %s20
          %s207 = smul.u32 4, %s22
          %s208 = smul.addr %s206, 2500
          %s209 = sadd.s32 %s207, %s208
          %s210 = smul.addr %s209, 4
          %s211 = scalar_lea.vmem %s0, %s210
          // Predicated region
          $region29: #{net_forward.13} parent=27 // pred_check
            _
          $region30: #{net_forward.13} parent=27 // pred_check_branch
            %213 = sbr.rel (0) target = $region32
          $region31: #{net_forward.13} parent=27 // pred_region
            // Predicated region
            $region33: #{net_forward.13} parent=31 // pred_check
              _
            $region34: #{net_forward.13} parent=31 // pred_check_branch
              %215 = sbr.rel (0) target = $region36
            $region35: #{net_forward.13} parent=31 // pred_region
              loop: start=0, step=1, limit=1
              $region37: #{net_forward.13} parent=35 // loop_pre_header
                _
              $region38: #{net_forward.13} parent=35 // loop_header
                %s217 = sphi 0, %s221
                %p218 = scmp.ge.s32.totalorder %s217, 1
                %s222 = sphi %s211, %s211
                %s223 = sphi %s205, %s205
              $region39: #{net_forward.13} parent=35 // loop_header_branch
                %220 = sbr.rel (%p218) target = $region43
              $region40: #{net_forward.13} parent=35 // loop_body
                %v224 = vld [vmem:[%s222] sm:$0xff]
                %225 = vst [vmem:[%s223] sm:$0xff] %v224
                %v226 = vld [vmem:[%s222 + $0x8] sm:$0xff]
                %227 = vst [vmem:[%s223 + $0x8] sm:$0xff] %v226
                %v228 = vld [vmem:[%s222 + $0x2710] sm:$0xff]
                %229 = vst [vmem:[%s223 + $0x10] sm:$0xff] %v228
                %v230 = vld [vmem:[%s222 + $0x2718] sm:$0xff]
                %231 = vst [vmem:[%s223 + $0x18] sm:$0xff] %v230
              $region41: #{net_forward.13} parent=35 // loop_footer
                %s221 = sadd.s32 1, %s217
              $region42: #{net_forward.13} parent=35 // loop_footer_branch
                %216 = sbr.rel target = $region38
              $region43: #{net_forward.13} parent=35 // loop_exit
                _
            $region36: #{net_forward.13} parent=31 // pred_fallthru
              _
            // Predicated region
            $region44: #{net_forward.13} parent=31 // pred_check
              _
            $region45: #{net_forward.13} parent=31 // pred_check_branch
              %233 = sbr.rel target = $region47
            $region46: #{net_forward.13} parent=31 // pred_region
              _
            $region47: #{net_forward.13} parent=31 // pred_fallthru
              _
          $region32: #{net_forward.13} parent=27 // pred_fallthru
            _
          %234 = vnop
        $region28: #{net_forward.13} parent=23 // pred_fallthru
          _
        // Predicated region
        $region48: #{net_forward.13} parent=23 // pred_check
          %p235 = pneg %p82
        $region49: #{net_forward.13} parent=23 // pred_check_branch
          %237 = sbr.rel (%p235) target = $region51
        $region50: #{net_forward.13} parent=23 // pred_region
          %s238 = sand.u32 %s72, 1
          %s239 = scalar_lea.sflag [#allocation5], %s238
          %s240 = sand.u32 %s72, 1
          %s241 = smul.addr %s240, 256
          %s242 = scalar_lea.vmem [#allocation4], %s241
          %s243 = smul.u32 64, %s22
          %245 = vsyncadd %s239, 0
          %s246 = sadd.s32 %s21, %s243
          %s247 = smul.addr %s246, 4
          %s248 = scalar_lea.hbm %s1, %s247
          %s249 = sshll.u32 %s248, 4
          %s250 = int_to_ptr.hbm [resolvable:$true] %s249
          %s251 = sshll.u32 %s242, 4
          %s252 = int_to_ptr.vmem [resolvable:$true] %s251
          %257 = dma.hbm_to_vmem [thread:$0]  %s250, 4096, %s252, %s239, 64, 64, 4
        $region51: #{net_forward.13} parent=23 // pred_fallthru
          _
      $region24: #{net_forward.13} parent=5 // pred_fallthru
        _
      %p258 = scmp.le.s32.totalorder 1, %s13
      %p259 = scmp.lt.s32.totalorder %s13, 626
      %p260 = pnand %p258, %p259
      %p261 = pneg %p260
      // Predicated region
      $region52: #{net_forward.13} parent=5 // pred_check
        _
      $region53: #{net_forward.13} parent=5 // pred_check_branch
        %263 = sbr.rel (%p260) target = $region55
      $region54: #{net_forward.13} parent=5 // pred_region
        %s264 = ssub.s32 %s13, 1
        %s265 = sand.u32 %s47, 1
        %s266 = sand.u32 %s47, 1
        %s267 = smul.addr %s266, 32
        %s268 = scalar_lea.vmem [#allocation3], %s267
        // Predicated region
        $region56: #{net_forward.13} parent=54 // pred_check
          %p269 = pneg %p60
        $region57: #{net_forward.13} parent=54 // pred_check_branch
          %271 = sbr.rel (%p269) target = $region59
        $region58: #{net_forward.13} parent=54 // pred_region
          _
        $region59: #{net_forward.13} parent=54 // pred_fallthru
          _
        %s272 = sand.u32 %s75, 1
        %s273 = scalar_lea.sflag [#allocation5], %s272
        %s274 = sand.u32 %s75, 1
        %s275 = smul.addr %s274, 256
        %s276 = scalar_lea.vmem [#allocation4], %s275
        // Predicated region
        $region60: #{net_forward.13} parent=54 // pred_check
          %p277 = pneg %p88
        $region61: #{net_forward.13} parent=54 // pred_check_branch
          %279 = sbr.rel (%p277) target = $region63
        $region62: #{net_forward.13} parent=54 // pred_region
          %281 = dma.done %s273, 4096
        $region63: #{net_forward.13} parent=54 // pred_fallthru
          _
        %s282 = sand.u32 %s47, 1
        %s283 = sand.u32 %s47, 1
        %s284 = smul.addr %s283, 32
        %s285 = scalar_lea.vmem [#allocation3], %s284
        %p286 = pneg %p60
        %p287 = pneg %p57
        %s288 = sand.u32 %s75, 1
        %s289 = scalar_lea.sflag [#allocation5], %s288
        %s290 = sand.u32 %s75, 1
        %s291 = smul.addr %s290, 256
        %s292 = scalar_lea.vmem [#allocation4], %s291
        %p293 = pneg %p88
        %p294 = pneg %p85
        %p295 = scmp.lt.s32.totalorder %s24, 0
        %s296 = scalar_select %p295, %s24, 0
        %s297 = scalar_lea.vmem %s2, %s296
        %p298 = pneg %p114
        %p299 = pneg %p111
        %p300 = scmp.lt.s32.totalorder %s24, 0
        %s301 = scalar_select %p300, %s24, 0
        %s302 = scalar_lea.vmem %s3, %s301
        %p303 = pneg %p140
        %p304 = pneg %p137
        %p305 = pneg %p168
        %p306 = pneg %p165
        %s307 = smul.u32 2, %s23
        %p308 = scmp.lt.s32.totalorder %s307, 1
        %s309 = scalar_select %p308, %s307, 1
        %p310 = scmp.lt.s32.totalorder %s24, 0
        %s311 = scalar_select %p310, %s24, 0
        %s312 = sadd.s32 %s311, %s309
        %s313 = smul.addr %s312, 8
        %s314 = scalar_lea.vmem %s4, %s313
        %s315 = smul.u32 2, %s23
        %s316 = smul.u32 4, %s25
        %s317 = smul.u32 64, %s25
        %p318 = scmp.lt.s32.totalorder %s24, 0
        %s319 = scalar_select %p318, %s24, 0
        %s320 = scalar_lea.vmem %s2, %s319
        %p321 = scmp.lt.s32.totalorder %s24, 0
        %s322 = scalar_select %p321, %s24, 0
        %s323 = scalar_lea.vmem %s3, %s322
        %s324 = smul.u32 2, %s23
        %p325 = scmp.lt.s32.totalorder %s324, 1
        %s326 = scalar_select %p325, %s324, 1
        %p327 = scmp.lt.s32.totalorder %s24, 0
        %s328 = scalar_select %p327, %s24, 0
        %s329 = sadd.s32 %s328, %s326
        %s330 = smul.addr %s329, 8
        %s331 = scalar_lea.vmem %s4, %s330
        %s332 = smul.u32 2, %s23
        %p333 = scmp.eq.s32.totalorder %s25, 0
        // Predicated region
        $region64: #{net_forward.13} parent=54 // pred_check
          %p334 = pneg %p333
        $region65: #{net_forward.13} parent=54 // pred_check_branch
          %336 = sbr.rel (%p334) target = $region67
        $region66: #{net_forward.13} parent=54 // pred_region
          %337 = vst [vmem:[#allocation2] sm:$0xff] 0.0
          %338 = vst [vmem:[#allocation2 + $0x8] sm:$0xff] 0.0
        $region67: #{net_forward.13} parent=54 // pred_fallthru
          _
        %v339 = vld [vmem:[#allocation2] sm:$0xff]
        %v340 = vld [vmem:[#allocation2 + $0x8] sm:$0xff]
        %v341 = vld [vmem:[%s268] sm:$0xff]
        %v342 = vld [vmem:[%s268 + $0x8] sm:$0xff]
        %v343 = vld [vmem:[%s268 + $0x10] sm:$0xff]
        %v344 = vld [vmem:[%s268 + $0x18] sm:$0xff]
        %v345 = vld [vmem:[%s276] sm:$0xf]
        %v346 = vld [vmem:[%s276 + $0x4] sm:$0xf]
        %v347 = vld [vmem:[%s276 + $0x8] sm:$0xf]
        %v348 = vld [vmem:[%s276 + $0xc] sm:$0xf]
        %v349 = vld [vmem:[%s276 + $0x10] sm:$0xf]
        %v350 = vld [vmem:[%s276 + $0x14] sm:$0xf]
        %v351 = vld [vmem:[%s276 + $0x18] sm:$0xf]
        %v352 = vld [vmem:[%s276 + $0x1c] sm:$0xf]
        %v353 = vld [vmem:[%s276 + $0x20] sm:$0xf]
        %v354 = vld [vmem:[%s276 + $0x24] sm:$0xf]
        %v355 = vld [vmem:[%s276 + $0x28] sm:$0xf]
        %v356 = vld [vmem:[%s276 + $0x2c] sm:$0xf]
        %v357 = vld [vmem:[%s276 + $0x30] sm:$0xf]
        %v358 = vld [vmem:[%s276 + $0x34] sm:$0xf]
        %v359 = vld [vmem:[%s276 + $0x38] sm:$0xf]
        %v360 = vld [vmem:[%s276 + $0x3c] sm:$0xf]
        %v361 = vld [vmem:[%s276 + $0x40] sm:$0xf]
        %v362 = vld [vmem:[%s276 + $0x44] sm:$0xf]
        %v363 = vld [vmem:[%s276 + $0x48] sm:$0xf]
        %v364 = vld [vmem:[%s276 + $0x4c] sm:$0xf]
        %v365 = vld [vmem:[%s276 + $0x50] sm:$0xf]
        %v366 = vld [vmem:[%s276 + $0x54] sm:$0xf]
        %v367 = vld [vmem:[%s276 + $0x58] sm:$0xf]
        %v368 = vld [vmem:[%s276 + $0x5c] sm:$0xf]
        %v369 = vld [vmem:[%s276 + $0x60] sm:$0xf]
        %v370 = vld [vmem:[%s276 + $0x64] sm:$0xf]
        %v371 = vld [vmem:[%s276 + $0x68] sm:$0xf]
        %v372 = vld [vmem:[%s276 + $0x6c] sm:$0xf]
        %v373 = vld [vmem:[%s276 + $0x70] sm:$0xf]
        %v374 = vld [vmem:[%s276 + $0x74] sm:$0xf]
        %v375 = vld [vmem:[%s276 + $0x78] sm:$0xf]
        %v376 = vld [vmem:[%s276 + $0x7c] sm:$0xf]
        %v377 = vld [vmem:[%s276 + $0x80] sm:$0xf]
        %v378 = vld [vmem:[%s276 + $0x84] sm:$0xf]
        %v379 = vld [vmem:[%s276 + $0x88] sm:$0xf]
        %v380 = vld [vmem:[%s276 + $0x8c] sm:$0xf]
        %v381 = vld [vmem:[%s276 + $0x90] sm:$0xf]
        %v382 = vld [vmem:[%s276 + $0x94] sm:$0xf]
        %v383 = vld [vmem:[%s276 + $0x98] sm:$0xf]
        %v384 = vld [vmem:[%s276 + $0x9c] sm:$0xf]
        %v385 = vld [vmem:[%s276 + $0xa0] sm:$0xf]
        %v386 = vld [vmem:[%s276 + $0xa4] sm:$0xf]
        %v387 = vld [vmem:[%s276 + $0xa8] sm:$0xf]
        %v388 = vld [vmem:[%s276 + $0xac] sm:$0xf]
        %v389 = vld [vmem:[%s276 + $0xb0] sm:$0xf]
        %v390 = vld [vmem:[%s276 + $0xb4] sm:$0xf]
        %v391 = vld [vmem:[%s276 + $0xb8] sm:$0xf]
        %v392 = vld [vmem:[%s276 + $0xbc] sm:$0xf]
        %v393 = vld [vmem:[%s276 + $0xc0] sm:$0xf]
        %v394 = vld [vmem:[%s276 + $0xc4] sm:$0xf]
        %v395 = vld [vmem:[%s276 + $0xc8] sm:$0xf]
        %v396 = vld [vmem:[%s276 + $0xcc] sm:$0xf]
        %v397 = vld [vmem:[%s276 + $0xd0] sm:$0xf]
        %v398 = vld [vmem:[%s276 + $0xd4] sm:$0xf]
        %v399 = vld [vmem:[%s276 + $0xd8] sm:$0xf]
        %v400 = vld [vmem:[%s276 + $0xdc] sm:$0xf]
        %v401 = vld [vmem:[%s276 + $0xe0] sm:$0xf]
        %v402 = vld [vmem:[%s276 + $0xe4] sm:$0xf]
        %v403 = vld [vmem:[%s276 + $0xe8] sm:$0xf]
        %v404 = vld [vmem:[%s276 + $0xec] sm:$0xf]
        %v405 = vld [vmem:[%s276 + $0xf0] sm:$0xf]
        %v406 = vld [vmem:[%s276 + $0xf4] sm:$0xf]
        %v407 = vld [vmem:[%s276 + $0xf8] sm:$0xf]
        %v408 = vld [vmem:[%s276 + $0xfc] sm:$0xf]
        %v413 = vunpack.c.l.b16 %v341
        %v414 = vunpack.c.h.b16 %v341
        %v415 = vunpack.c.l.b16 %v342
        %v416 = vunpack.c.h.b16 %v342
        %v417 = vunpack.c.l.b16 %v343
        %v418 = vunpack.c.h.b16 %v343
        %v419 = vunpack.c.l.b16 %v344
        %v420 = vunpack.c.h.b16 %v344
        %v421 = vpack.c.b16 %v417, %v413
        %v422 = vpack.c.b16 %v418, %v414
        %v423 = vpack.c.b16 %v419, %v415
        %v424 = vpack.c.b16 %v420, %v416
        %v493 = vunpack.c.l.b16 %v345
        %v494 = vunpack.c.l.b16 %v346
        %v495 = vunpack.c.l.b16 %v347
        %v496 = vunpack.c.l.b16 %v348
        %v497 = vunpack.c.l.b16 %v349
        %v498 = vunpack.c.l.b16 %v350
        %v499 = vunpack.c.l.b16 %v351
        %v500 = vunpack.c.l.b16 %v352
        %v501 = vunpack.c.l.b16 %v353
        %v502 = vunpack.c.l.b16 %v354
        %v503 = vunpack.c.l.b16 %v355
        %v504 = vunpack.c.l.b16 %v356
        %v505 = vunpack.c.l.b16 %v357
        %v506 = vunpack.c.l.b16 %v358
        %v507 = vunpack.c.l.b16 %v359
        %v508 = vunpack.c.l.b16 %v360
        %v509 = vunpack.c.l.b16 %v361
        %v510 = vunpack.c.l.b16 %v362
        %v511 = vunpack.c.l.b16 %v363
        %v512 = vunpack.c.l.b16 %v364
        %v513 = vunpack.c.l.b16 %v365
        %v514 = vunpack.c.l.b16 %v366
        %v515 = vunpack.c.l.b16 %v367
        %v516 = vunpack.c.l.b16 %v368
        %v517 = vunpack.c.l.b16 %v369
        %v518 = vunpack.c.l.b16 %v370
        %v519 = vunpack.c.l.b16 %v371
        %v520 = vunpack.c.l.b16 %v372
        %v521 = vunpack.c.l.b16 %v373
        %v522 = vunpack.c.l.b16 %v374
        %v523 = vunpack.c.l.b16 %v375
        %v524 = vunpack.c.l.b16 %v376
        %v525 = vunpack.c.l.b16 %v377
        %v526 = vunpack.c.l.b16 %v378
        %v527 = vunpack.c.l.b16 %v379
        %v528 = vunpack.c.l.b16 %v380
        %v529 = vunpack.c.l.b16 %v381
        %v530 = vunpack.c.l.b16 %v382
        %v531 = vunpack.c.l.b16 %v383
        %v532 = vunpack.c.l.b16 %v384
        %v533 = vunpack.c.l.b16 %v385
        %v534 = vunpack.c.l.b16 %v386
        %v535 = vunpack.c.l.b16 %v387
        %v536 = vunpack.c.l.b16 %v388
        %v537 = vunpack.c.l.b16 %v389
        %v538 = vunpack.c.l.b16 %v390
        %v539 = vunpack.c.l.b16 %v391
        %v540 = vunpack.c.l.b16 %v392
        %v541 = vunpack.c.l.b16 %v393
        %v542 = vunpack.c.l.b16 %v394
        %v543 = vunpack.c.l.b16 %v395
        %v544 = vunpack.c.l.b16 %v396
        %v545 = vunpack.c.l.b16 %v397
        %v546 = vunpack.c.l.b16 %v398
        %v547 = vunpack.c.l.b16 %v399
        %v548 = vunpack.c.l.b16 %v400
        %v549 = vunpack.c.l.b16 %v401
        %v550 = vunpack.c.l.b16 %v402
        %v551 = vunpack.c.l.b16 %v403
        %v552 = vunpack.c.l.b16 %v404
        %v553 = vunpack.c.l.b16 %v405
        %v554 = vunpack.c.l.b16 %v406
        %v555 = vunpack.c.l.b16 %v407
        %v556 = vunpack.c.l.b16 %v408
        %v557 = vpack.c.b16 %v494, %v493
        %v558 = vpack.c.b16 %v496, %v495
        %v559 = vpack.c.b16 %v498, %v497
        %v560 = vpack.c.b16 %v500, %v499
        %v561 = vpack.c.b16 %v502, %v501
        %v562 = vpack.c.b16 %v504, %v503
        %v563 = vpack.c.b16 %v506, %v505
        %v564 = vpack.c.b16 %v508, %v507
        %v565 = vpack.c.b16 %v510, %v509
        %v566 = vpack.c.b16 %v512, %v511
        %v567 = vpack.c.b16 %v514, %v513
        %v568 = vpack.c.b16 %v516, %v515
        %v569 = vpack.c.b16 %v518, %v517
        %v570 = vpack.c.b16 %v520, %v519
        %v571 = vpack.c.b16 %v522, %v521
        %v572 = vpack.c.b16 %v524, %v523
        %v573 = vpack.c.b16 %v526, %v525
        %v574 = vpack.c.b16 %v528, %v527
        %v575 = vpack.c.b16 %v530, %v529
        %v576 = vpack.c.b16 %v532, %v531
        %v577 = vpack.c.b16 %v534, %v533
        %v578 = vpack.c.b16 %v536, %v535
        %v579 = vpack.c.b16 %v538, %v537
        %v580 = vpack.c.b16 %v540, %v539
        %v581 = vpack.c.b16 %v542, %v541
        %v582 = vpack.c.b16 %v544, %v543
        %v583 = vpack.c.b16 %v546, %v545
        %v584 = vpack.c.b16 %v548, %v547
        %v585 = vpack.c.b16 %v550, %v549
        %v586 = vpack.c.b16 %v552, %v551
        %v587 = vpack.c.b16 %v554, %v553
        %v588 = vpack.c.b16 %v556, %v555
        %621 = vmatpush.bf16.msra.mxu0 %v564
        %622 = vmatpush.bf16.msra.mxu0 %v563
        %623 = vmatpush.bf16.msra.mxu0 %v562
        %624 = vmatpush.bf16.msra.mxu0 %v561
        %625 = vmatpush.bf16.msra.mxu0 %v560
        %626 = vmatpush.bf16.msra.mxu0 %v559
        %627 = vmatpush.bf16.msra.mxu0 %v558
        %628 = vmatpush.bf16.msra.mxu0 %v557
        %629 = vmatmul.bf16.gmra.mxu0 %v421
        %v630 = vpop.f32.mrf.mxu0
        %v631 = vadd.f32 0.0, %v630
        %v632 = vpop.f32.mrf.mxu0
        %v633 = vadd.f32 0.0, %v632
        %634 = vdwg.mxu0
        %635 = vmatpush.bf16.msra.mxu0 %v572
        %636 = vmatpush.bf16.msra.mxu0 %v571
        %637 = vmatpush.bf16.msra.mxu0 %v570
        %638 = vmatpush.bf16.msra.mxu0 %v569
        %639 = vmatpush.bf16.msra.mxu0 %v568
        %640 = vmatpush.bf16.msra.mxu0 %v567
        %641 = vmatpush.bf16.msra.mxu0 %v566
        %642 = vmatpush.bf16.msra.mxu0 %v565
        %643 = vmatmul.bf16.gmra.mxu0 %v422
        %v644 = vpop.f32.mrf.mxu0
        %v645 = vadd.f32 %v631, %v644
        %v646 = vpop.f32.mrf.mxu0
        %v647 = vadd.f32 %v633, %v646
        %648 = vdwg.mxu0
        %649 = vmatpush.bf16.msra.mxu0 %v580
        %650 = vmatpush.bf16.msra.mxu0 %v579
        %651 = vmatpush.bf16.msra.mxu0 %v578
        %652 = vmatpush.bf16.msra.mxu0 %v577
        %653 = vmatpush.bf16.msra.mxu0 %v576
        %654 = vmatpush.bf16.msra.mxu0 %v575
        %655 = vmatpush.bf16.msra.mxu0 %v574
        %656 = vmatpush.bf16.msra.mxu0 %v573
        %657 = vmatmul.bf16.gmra.mxu0 %v423
        %v658 = vpop.f32.mrf.mxu0
        %v659 = vadd.f32 %v645, %v658
        %v660 = vpop.f32.mrf.mxu0
        %v661 = vadd.f32 %v647, %v660
        %662 = vdwg.mxu0
        %663 = vmatpush.bf16.msra.mxu0 %v588
        %664 = vmatpush.bf16.msra.mxu0 %v587
        %665 = vmatpush.bf16.msra.mxu0 %v586
        %666 = vmatpush.bf16.msra.mxu0 %v585
        %667 = vmatpush.bf16.msra.mxu0 %v584
        %668 = vmatpush.bf16.msra.mxu0 %v583
        %669 = vmatpush.bf16.msra.mxu0 %v582
        %670 = vmatpush.bf16.msra.mxu0 %v581
        %671 = vmatmul.bf16.gmra.mxu0 %v424
        %v672 = vpop.f32.mrf.mxu0
        %v673 = vadd.f32 %v659, %v672
        %v674 = vpop.f32.mrf.mxu0
        %v675 = vadd.f32 %v661, %v674
        %676 = vdwg.mxu0
        %v677 = vadd.f32 %v339, %v673
        %v678 = vadd.f32 %v340, %v675
        %679 = vst [vmem:[#allocation2] sm:$0xff] %v677
        %680 = vst [vmem:[#allocation2 + $0x8] sm:$0xff] %v678
        %p681 = scmp.eq.s32.totalorder %s25, 624
        // Predicated region
        $region68: #{net_forward.13} parent=54 // pred_check
          %p682 = pneg %p681
        $region69: #{net_forward.13} parent=54 // pred_check_branch
          %684 = sbr.rel (%p682) target = $region71
        $region70: #{net_forward.13} parent=54 // pred_region
          %v685 = vld [vmem:[#allocation2] sm:$0xff]
          %v686 = vld [vmem:[#allocation2 + $0x8] sm:$0xff]
          %v687 = vld [vmem:[%s320] sm:$0x1]
          %v689 = vperm.slane %v687, 0
          %v691 = vmul.f32 %v685, %v689
          %v692 = vmul.f32 %v686, %v689
          %v693 = vld [vmem:[%s323] sm:$0x1]
          %v695 = vperm.slane %v693, 0
          %v697 = vadd.f32 %v691, %v695
          %v698 = vadd.f32 %v692, %v695
          %699 = vst [vmem:[%s331] sm:$0xff] %v697
          %700 = vst [vmem:[%s331 + $0x8] sm:$0xff] %v698
        $region71: #{net_forward.13} parent=54 // pred_fallthru
          _
        %s701 = smul.u32 2, %s23
        %p702 = scmp.lt.s32.totalorder %s701, 1
        %s703 = scalar_select %p702, %s701, 1
        %p704 = scmp.lt.s32.totalorder %s24, 0
        %s705 = scalar_select %p704, %s24, 0
        %s706 = sadd.s32 %s705, %s703
        %s707 = smul.addr %s706, 8
        %s708 = scalar_lea.vmem %s4, %s707
        // Predicated region
        $region72: #{net_forward.13} parent=54 // pred_check
          %p709 = pneg %p165
        $region73: #{net_forward.13} parent=54 // pred_check_branch
          %711 = sbr.rel (%p709) target = $region75
        $region74: #{net_forward.13} parent=54 // pred_region
          %s712 = smul.u32 2, %s23
        $region75: #{net_forward.13} parent=54 // pred_fallthru
          _
        // Predicated region
        $region76: #{net_forward.13} parent=54 // pred_check
          %p713 = pneg %p165
        $region77: #{net_forward.13} parent=54 // pred_check_branch
          %715 = sbr.rel (%p713) target = $region79
        $region78: #{net_forward.13} parent=54 // pred_region
          %s716 = smul.u32 2, %s23
          %p717 = scmp.lt.s32.totalorder %s716, 1
          %s718 = scalar_select %p717, %s716, 1
          %p719 = scmp.lt.s32.totalorder %s24, 0
          %s720 = scalar_select %p719, %s24, 0
          %s721 = sadd.s32 %s720, %s718
          %s722 = smul.addr %s721, 8
          %s723 = scalar_lea.vmem %s4, %s722
        $region79: #{net_forward.13} parent=54 // pred_fallthru
          _
      $region55: #{net_forward.13} parent=5 // pred_fallthru
        _
      %p724 = scmp.le.s32.totalorder 2, %s13
      // Predicated region
      $region80: #{net_forward.13} parent=5 // pred_check
        %p725 = pneg %p724
      $region81: #{net_forward.13} parent=5 // pred_check_branch
        %727 = sbr.rel (%p725) target = $region83
      $region82: #{net_forward.13} parent=5 // pred_region
        %s728 = ssub.s32 %s13, 2
      $region83: #{net_forward.13} parent=5 // pred_fallthru
        _
    $region6: #{net_forward.13} parent=1 // loop_footer
      %s17 = sadd.s32 1, %s13
    $region7: #{net_forward.13} parent=1 // loop_footer_branch
      %12 = sbr.rel target = $region3
    $region8: #{net_forward.13} parent=1 // loop_exit
      _
    %729 = vsyncpa [#allocation5], 1
    %s730 = scalar_lea.sflag [#allocation5], 1
    %731 = vsyncpa %s730, 1

</llo_original>
